<compile_context>
chip_gen: v7x
topology: tpu7x:2x2x1
jax: 0.10.0
libtpu: 0.0.40
codegen_flags: <defaults>
</compile_context>

<pallas_src>
import functools

import jax
import jax.numpy as jnp
from jax.experimental import pallas as pl
from jax.experimental.pallas import tpu as pltpu


def _round_up(x, m):
    return (x + m - 1) // m * m


# ---------------------------------------------------------------- Pallas kernels

def _conv_pool_kernel(p_ref, w_ref, b_ref, o_ref, *, ncor, m, mode):
    """Fused Conv3x3 GEMM (+bias) [+2x2 max-pool] + ReLU, one Cout tile.

    mode == "single": p_ref is (M, K)        -- no pool.
    mode == "concat": p_ref is (4*M, K)      -- one MXU feed, max over corners
                                                via aligned row slices (M%8==0).
    mode == "loop"  : p_ref is (4, M, K)     -- per-corner dots (tiny M).
    max(conv) + b == max(conv + b); ReLU follows the pool as in the module.
    """
    w = w_ref[...]
    if mode == "single":
        acc = jnp.dot(p_ref[...], w, preferred_element_type=jnp.float32)
    elif mode == "concat":
        r = jnp.dot(p_ref[...], w, preferred_element_type=jnp.float32)
        acc = r[:m]
        for i in range(1, ncor):
            acc = jnp.maximum(acc, r[i * m:(i + 1) * m])
    else:  # "loop"
        acc = jnp.dot(p_ref[0], w, preferred_element_type=jnp.float32)
        for i in range(1, ncor):
            acc = jnp.maximum(
                acc, jnp.dot(p_ref[i], w, preferred_element_type=jnp.float32))
    acc = jnp.maximum(acc + b_ref[...], 0.0)
    o_ref[...] = acc.astype(o_ref.dtype)


def _fc_kernel(x_ref, w_ref, b_ref, o_ref, *, relu):
    acc = jnp.dot(x_ref[...], w_ref[...], preferred_element_type=jnp.float32)
    acc = acc + b_ref[...]
    if relu:
        acc = jnp.maximum(acc, 0.0)
    o_ref[...] = acc.astype(o_ref.dtype)


def _fc_exit_kernel(x_ref, w_ref, b_ref, we_ref, be_ref,
                    z_ref, ent_ref, acc_ref, *, nf, nc):
    """Fused Linear(+ReLU) + fine|coarse exit heads + entropy means.

    Grid iterates over the lin output dim; the exit GEMM is accumulated
    tile-by-tile against the ReLU'd lin tile (still in VMEM), so the full lin
    activation never touches HBM.  Last step adds the exit bias, writes the
    (B, 128) logits and the packed (1, 2) [fine_mean, coarse_mean] entropies.
    """
    j = pl.program_id(0)

    @pl.when(j == 0)
    def _():
        acc_ref[...] = jnp.zeros_like(acc_ref)

    lin = jnp.dot(x_ref[...], w_ref[...], preferred_element_type=jnp.float32)
    lin = jnp.maximum(lin + b_ref[...], 0.0)                     # (B, tile_n)
    acc_ref[...] += jnp.dot(lin.astype(jnp.bfloat16), we_ref[...],
                            preferred_element_type=jnp.float32)  # (B, 128)

    @pl.when(j == pl.num_programs(0) - 1)
    def _():
        z = acc_ref[...] + be_ref[...]
        z_ref[...] = z
        col = jax.lax.broadcasted_iota(jnp.int32, z.shape, 1)
        inv_b = 1.0 / z.shape[0]

        def mean_entropy(lo, hi):
            mask = (col >= lo) & (col < hi)
            zs = jnp.where(mask, z, -1e30)
            m = jnp.max(zs, axis=1, keepdims=True)
            e = jnp.exp(zs - m)                   # masked lanes underflow to 0
            s = jnp.sum(e, axis=1, keepdims=True)
            p = e / s
            logp = zs - m - jnp.log(s)
            ent = -jnp.sum(jnp.where(mask, p * logp, 0.0), axis=1,
                           keepdims=True)
            return jnp.sum(ent, axis=0, keepdims=True) * inv_b   # (1, 1)

        ent_ref[...] = jnp.concatenate(
            [mean_entropy(0, nf), mean_entropy(nf, nf + nc)], axis=1)


# ---------------------------------------------------------------- wrappers

def conv_stage(x, w, b, *, stride=1, pool=True):
    """Conv3x3(pad=1) [+ MaxPool2x2] + ReLU on an NHWC activation."""
    n, h, wd, c = x.shape
    kpad, cout = w.shape
    kraw = 9 * c
    ho = (h + 2 - 3) // stride + 1
    wo = (wd + 2 - 3) // stride + 1
    if x.dtype != jnp.bfloat16:
        x = x.astype(jnp.bfloat16)
    pat = jax.lax.conv_general_dilated_patches(
        x, filter_shape=(3, 3), window_strides=(stride, stride),
        padding=((1, 1), (1, 1)),
        dimension_numbers=("NHWC", "HWIO", "NHWC"))        # (n, ho, wo, 9*c)
    if kpad != kraw:                                        # e.g. 27 -> 32
        pat = jnp.pad(pat, ((0, 0), (0, 0), (0, 0), (0, kpad - kraw)))

    if pool:
        assert ho % 2 == 0 and wo % 2 == 0, "2x2 pool needs even conv output"
        hp, wp = ho // 2, wo // 2
        m = n * hp * wp
        pat = pat.reshape(n, hp, 2, wp, 2, kpad).transpose(2, 4, 0, 1, 3, 5)
        if m % 8 == 0:
            pat = pat.reshape(4 * m, kpad)
            ncor, mode = 4, "concat"
        else:
            pat = pat.reshape(4, m, kpad)
            ncor, mode = 4, "loop"
        oh, ow = hp, wp
    else:
        m = n * ho * wo
        pat = pat.reshape(m, kpad)
        ncor, mode = 1, "single"
        oh, ow = ho, wo

    tile_c = 128 if cout % 128 == 0 else cout
    zeros = (0,) * pat.ndim
    out = pl.pallas_call(
        functools.partial(_conv_pool_kernel, ncor=ncor, m=m, mode=mode),
        out_shape=jax.ShapeDtypeStruct((m, cout), jnp.bfloat16),
        grid_spec=pltpu.PrefetchScalarGridSpec(
            num_scalar_prefetch=0,
            grid=(cout // tile_c,),
            in_specs=[pl.BlockSpec(pat.shape, lambda j: zeros),  # resident
                      pl.BlockSpec((kpad, tile_c), lambda j: (0, j)),
                      pl.BlockSpec((1, tile_c), lambda j: (0, j))],
            out_specs=pl.BlockSpec((m, tile_c), lambda j: (0, j))),
        compiler_params=pltpu.CompilerParams(
            dimension_semantics=("parallel",)),
    )(pat, w, b)
    return out.reshape(n, oh, ow, cout)


def fc(x, w, b, *, relu, tile_n=1024, out_dtype=jnp.bfloat16):
    """x:(M,K) bf16 @ w:(K,N) bf16 + b, tiled over N so weight DMA pipelines."""
    m, k = x.shape
    n = w.shape[1]
    if n % tile_n != 0:
        tile_n = n
    return pl.pallas_call(
        functools.partial(_fc_kernel, relu=relu),
        out_shape=jax.ShapeDtypeStruct((m, n), out_dtype),
        grid_spec=pltpu.PrefetchScalarGridSpec(
            num_scalar_prefetch=0,
            grid=(n // tile_n,),
            in_specs=[pl.BlockSpec((m, k), lambda j: (0, 0)),
                      pl.BlockSpec((k, tile_n), lambda j: (0, j)),
                      pl.BlockSpec((1, tile_n), lambda j: (0, j))],
            out_specs=pl.BlockSpec((m, tile_n), lambda j: (0, j))),
        compiler_params=pltpu.CompilerParams(
            dimension_semantics=("parallel",)),
    )(x, w, b)


def fc_exit(x, w, b, we, be, nf, nc, *, tile_n=1024):
    """Fused Linear+ReLU then concatenated fine|coarse exit heads + entropies.

    Returns (z_fine, z_coarse, ent) where ent is a (1,2) f32 array holding
    [mean fine entropy, mean coarse entropy].
    """
    bsz, k = x.shape
    n = w.shape[1]
    npad = we.shape[1]
    if n % tile_n != 0:
        tile_n = n
    z, ent = pl.pallas_call(
        functools.partial(_fc_exit_kernel, nf=nf, nc=nc),
        out_shape=(jax.ShapeDtypeStruct((bsz, npad), jnp.float32),
                   jax.ShapeDtypeStruct((1, 2), jnp.float32)),
        grid_spec=pltpu.PrefetchScalarGridSpec(
            num_scalar_prefetch=0,
            grid=(n // tile_n,),
            in_specs=[pl.BlockSpec((bsz, k), lambda j: (0, 0)),      # resident
                      pl.BlockSpec((k, tile_n), lambda j: (0, j)),
                      pl.BlockSpec((1, tile_n), lambda j: (0, j)),
                      pl.BlockSpec((tile_n, npad), lambda j: (j, 0)),
                      pl.BlockSpec((1, npad), lambda j: (0, 0))],    # resident
            out_specs=(pl.BlockSpec((bsz, npad), lambda j: (0, 0)),
                       pl.BlockSpec((1, 2), lambda j: (0, 0))),
            scratch_shapes=[pltpu.VMEM((bsz, npad), jnp.float32)]),
        # accumulator carried across the grid -> must be "arbitrary"
        compiler_params=pltpu.CompilerParams(
            dimension_semantics=("arbitrary",)),
    )(x, w, b, we, be)
    return z[:, :nf], z[:, nf:nf + nc], ent


# ---------------------------------------------------------------- parameters

def init_params(num_fine=100, num_coarse=20, seed=0):
    """Random parameters pre-laid-out for the kernels (one-time, host side).

    Conv GEMM weights are (9*Cin, Cout) with rows in the
    lax.conv_general_dilated_patches channel order; lin1 / cls1 rows are in
    NHWC-flatten order; exit heads are concatenated fine|coarse and padded to
    128 lanes.  Matmul weights are bf16 (f32 accumulation in-kernel), biases
    f32.  To load PyTorch weights, apply the corresponding one-time permutes
    (e.g. conv: w.permute(1,2,3,0).reshape(9*Cin, Cout)).
    """
    key = jax.random.PRNGKey(seed)
    p = {}

    def nxt():
        nonlocal key
        key, k = jax.random.split(key)
        return k

    def conv(name, cin, cout):
        kraw = 9 * cin
        kpad = _round_up(kraw, 32)
        w = 0.05 * jax.random.normal(nxt(), (kraw, cout), jnp.float32)
        w = jnp.pad(w, ((0, kpad - kraw), (0, 0)))
        p[name + "_w"] = w.astype(jnp.bfloat16)
        p[name + "_b"] = 0.05 * jax.random.normal(nxt(), (1, cout), jnp.float32)

    def dense(name, k, n):
        w = 0.05 * jax.random.normal(nxt(), (k, n), jnp.float32)
        p[name + "_w"] = w.astype(jnp.bfloat16)
        p[name + "_b"] = 0.05 * jax.random.normal(nxt(), (1, n), jnp.float32)

    def exits(name, k, nf, nc):
        npad = _round_up(nf + nc, 128)
        w = 0.05 * jax.random.normal(nxt(), (k, nf + nc), jnp.float32)
        b = 0.05 * jax.random.normal(nxt(), (1, nf + nc), jnp.float32)
        p[name + "_w"] = jnp.pad(
            w, ((0, 0), (0, npad - (nf + nc)))).astype(jnp.bfloat16)
        p[name + "_b"] = jnp.pad(b, ((0, 0), (0, npad - (nf + nc))))

    conv("f1c1", 3, 64)
    conv("b1c1", 64, 256); conv("b1c2", 256, 128)
    dense("lin1", 128 * 2 * 2, 2048)
    exits("e1", 2048, num_fine, num_coarse)
    conv("f2c1", 64, 192); conv("f2c2", 192, 384)
    conv("b2c1", 384, 256)
    dense("lin2", 256, 2048)
    exits("e2", 2048, num_fine, num_coarse)
    conv("f3c1", 384, 256); conv("f3c2", 256, 256)
    dense("cls1", 256 * 2 * 2, 2048); dense("cls2", 2048, 2048)
    exits("e3", 2048, num_fine, num_coarse)
    return p


# ---------------------------------------------------------------- forward pass

@functools.partial(jax.jit, static_argnames=("nf", "nc"))
def _stage1(p, x_nchw, nf, nc):
    x = jnp.transpose(x_nchw, (0, 2, 3, 1)).astype(jnp.bfloat16)   # NCHW->NHWC
    a1 = conv_stage(x, p["f1c1_w"], p["f1c1_b"], stride=2)         # (N,8,8,64)
    z1 = conv_stage(a1, p["b1c1_w"], p["b1c1_b"])                  # (N,4,4,256)
    z1 = conv_stage(z1, p["b1c2_w"], p["b1c2_b"])                  # (N,2,2,128)
    # Dropout is identity in eval mode; lin1 rows expect NHWC-flatten order.
    zf, zc, ent = fc_exit(z1.reshape(z1.shape[0], -1),
                          p["lin1_w"], p["lin1_b"], p["e1_w"], p["e1_b"], nf, nc)
    return a1, zf, zc, ent


@functools.partial(jax.jit, static_argnames=("nf", "nc"))
def _stage2(p, a1, nf, nc):
    a2 = conv_stage(a1, p["f2c1_w"], p["f2c1_b"])                  # (N,4,4,192)
    a2 = conv_stage(a2, p["f2c2_w"], p["f2c2_b"], pool=False)      # (N,4,4,384)
    z2 = conv_stage(a2, p["b2c1_w"], p["b2c1_b"], stride=2)        # (N,1,1,256)
    zf, zc, ent = fc_exit(z2.reshape(z2.shape[0], -1),
                          p["lin2_w"], p["lin2_b"], p["e2_w"], p["e2_b"], nf, nc)
    return a2, zf, zc, ent


@functools.partial(jax.jit, static_argnames=("nf", "nc"))
def _stage3(p, a2, nf, nc):
    a3 = conv_stage(a2, p["f3c1_w"], p["f3c1_b"], pool=False)      # (N,4,4,256)
    a3 = conv_stage(a3, p["f3c2_w"], p["f3c2_b"])                  # (N,2,2,256)
    z3 = fc(a3.reshape(a3.shape[0], -1), p["cls1_w"], p["cls1_b"], relu=True)
    zf, zc, ent = fc_exit(z3, p["cls2_w"], p["cls2_b"],
                          p["e3_w"], p["e3_b"], nf, nc)
    return zf, zc, ent


def _means(ent):
    e = jax.device_get(ent)                      # one blocking sync per exit
    return float(e[0, 0]), float(e[0, 1])


def super_hbn_forward(p, x_nchw, threshold=None, fine_tolerance=0.5,
                      training=False, num_fine=100, num_coarse=20):
    if threshold is None:
        threshold = [0.5, 0.5]

    a1, z1f, z1c, e1 = _stage1(p, x_nchw, nf=num_fine, nc=num_coarse)

    if training:
        # TODO(synk): training-mode Dropout masking is not applied; eval
        # (identity) semantics are used for the training-mode return path too.
        a2, z2f, z2c, _ = _stage2(p, a1, nf=num_fine, nc=num_coarse)
        z3f, z3c, _ = _stage3(p, a2, nf=num_fine, nc=num_coarse)
        return (z1f, z1c, z2f, z2c, z3f, z3c)

    # Speculatively enqueue the next stage BEFORE the blocking exit decision so
    # the D2H sync overlaps the next stage's weight DMA/compute on the common
    # no-exit path (the speculative work is simply discarded if the exit fires).
    a2, z2f, z2c, e2 = _stage2(p, a1, nf=num_fine, nc=num_coarse)
    hfm, hcm = _means(e1)
    if hfm - fine_tolerance < hcm and hfm < threshold[0]:
        return (z1f, "fine exit 1", hfm, hcm, hfm - hcm)
    elif hcm < hfm - fine_tolerance and hcm < threshold[0]:
        return (z1c, "coarse exit 1", hfm, hcm, hfm - hcm)

    z3f, z3c, e3 = _stage3(p, a2, nf=num_fine, nc=num_coarse)
    hfm, hcm = _means(e2)
    if hfm - fine_tolerance < hcm and hfm < threshold[1]:
        return (z2f, "fine exit 2", hfm, hcm, hfm - hcm)
    elif hcm < hfm - fine_tolerance and hcm < threshold[1]:
        return (z2c, "coarse exit 2", hfm, hcm, hfm - hcm)

    hfm, hcm = _means(e3)
    if hfm - fine_tolerance < hcm:
        return (z3f, "fine exit 3", hfm, hcm, hfm - hcm)
    else:
        return (z3c, "coarse exit 3", hfm, hcm, hfm - hcm)


# ---------------------------------------------------------------- main

if __name__ == "__main__":
    params = init_params(num_fine=100, num_coarse=20, seed=0)
    x = jax.random.normal(jax.random.PRNGKey(0), (2, 3, 32, 32), jnp.float32)

    out = super_hbn_forward(params, x)                 # eval mode (early exits)
    jax.block_until_ready(out[0])
    out_train = super_hbn_forward(params, x, training=True)   # all six heads
    jax.block_until_ready(out_train[-1])
    print("KERNEL_OK")
</pallas_src>

<mosaic_0001>
module attributes {stable_mosaic.version = 11 : i64} {
  func.func @_conv_pool_kernel(%arg0: i32, %arg1: memref<512x32xbf16, #tpu.memory_space<vmem>>, %arg2: memref<32x64xbf16, #tpu.memory_space<vmem>>, %arg3: memref<1x64xf32, #tpu.memory_space<vmem>>, %arg4: memref<128x64xbf16, #tpu.memory_space<vmem>>) attributes {dimension_semantics = [#tpu.dimension_semantics<parallel>], iteration_bounds = array<i64: 1>, scalar_prefetch = 0 : i64, scratch_operands = 0 : i64, tpu.core_type = #tpu.core_type<tc>, window_params = [{pipeline_mode = #tpu.pipeline_mode<synchronous>, transform_indices = @transform_0, window_bounds = array<i64: 512, 32>}, {transform_indices = @transform_1, window_bounds = array<i64: 32, 64>}, {transform_indices = @transform_2, window_bounds = array<i64: 1, 64>}, {transform_indices = @transform_3, window_bounds = array<i64: 128, 64>}]} {
    %c0 = arith.constant 0 : index
    %c0_0 = arith.constant 0 : index
    %0 = vector.load %arg2[%c0, %c0_0] : memref<32x64xbf16, #tpu.memory_space<vmem>>, vector<32x64xbf16>
    %c0_1 = arith.constant 0 : index
    %c0_2 = arith.constant 0 : index
    %1 = vector.load %arg1[%c0_1, %c0_2] : memref<512x32xbf16, #tpu.memory_space<vmem>>, vector<512x32xbf16>
    %cst = arith.constant dense<0.000000e+00> : vector<512x64xf32>
    %2 = tpu.matmul %1, %0, %cst {dimension_numbers = #tpu.dot_dimension_numbers<[1], [0], [0], [1], [0, 0, 1, 1], [], []>} : vector<512x32xbf16>, vector<32x64xbf16>, vector<512x64xf32> -> vector<512x64xf32>
    %3 = vector.extract_strided_slice %2 {offsets = [0, 0], sizes = [128, 64], strides = [1, 1]} : vector<512x64xf32> to vector<128x64xf32>
    %4 = vector.extract_strided_slice %2 {offsets = [128, 0], sizes = [128, 64], strides = [1, 1]} : vector<512x64xf32> to vector<128x64xf32>
    %5 = arith.maximumf %3, %4 : vector<128x64xf32>
    %6 = vector.extract_strided_slice %2 {offsets = [256, 0], sizes = [128, 64], strides = [1, 1]} : vector<512x64xf32> to vector<128x64xf32>
    %7 = arith.maximumf %5, %6 : vector<128x64xf32>
    %8 = vector.extract_strided_slice %2 {offsets = [384, 0], sizes = [128, 64], strides = [1, 1]} : vector<512x64xf32> to vector<128x64xf32>
    %9 = arith.maximumf %7, %8 : vector<128x64xf32>
    %c0_3 = arith.constant 0 : index
    %c0_4 = arith.constant 0 : index
    %10 = vector.load %arg3[%c0_3, %c0_4] : memref<1x64xf32, #tpu.memory_space<vmem>>, vector<1x64xf32>
    %11 = vector.broadcast %10 : vector<1x64xf32> to vector<128x64xf32>
    %12 = arith.addf %9, %11 : vector<128x64xf32>
    %cst_5 = arith.constant 0.000000e+00 : f32
    %13 = vector.broadcast %cst_5 : f32 to vector<128x64xf32>
    %14 = arith.maximumf %12, %13 : vector<128x64xf32>
    %15 = arith.truncf %14 : vector<128x64xf32> to vector<128x64xbf16>
    %c0_6 = arith.constant 0 : index
    %c0_7 = arith.constant 0 : index
    %16 = vector.load %arg4[%c0_6, %c0_7] : memref<128x64xbf16, #tpu.memory_space<vmem>>, vector<128x64xbf16>
    tpu.vector_store %arg4[%c0_6, %c0_7], %15 {strides = array<i32>} : memref<128x64xbf16, #tpu.memory_space<vmem>>, vector<128x64xbf16>,
    return
  }
  func.func @transform_0(%arg0: i32) -> (i32, i32) {
    %c0_i32 = arith.constant 0 : i32
    %c0_i32_0 = arith.constant 0 : i32
    %c0_i32_1 = arith.constant 0 : i32
    return %c0_i32, %c0_i32_0 : i32, i32
  }
  func.func @transform_1(%arg0: i32) -> (i32, i32) {
    %c0_i32 = arith.constant 0 : i32
    %c0_i32_0 = arith.constant 0 : i32
    return %c0_i32, %arg0 : i32, i32
  }
  func.func @transform_2(%arg0: i32) -> (i32, i32) {
    %c0_i32 = arith.constant 0 : i32
    %c0_i32_0 = arith.constant 0 : i32
    return %c0_i32, %arg0 : i32, i32
  }
  func.func @transform_3(%arg0: i32) -> (i32, i32) {
    %c0_i32 = arith.constant 0 : i32
    %c0_i32_0 = arith.constant 0 : i32
    return %c0_i32, %arg0 : i32, i32
  }
}

module attributes {stable_mosaic.version = 11 : i64} {
  func.func @_conv_pool_kernel(%arg0: i32, %arg1: memref<128x576xbf16, #tpu.memory_space<vmem>>, %arg2: memref<576x128xbf16, #tpu.memory_space<vmem>>, %arg3: memref<1x128xf32, #tpu.memory_space<vmem>>, %arg4: memref<32x128xbf16, #tpu.memory_space<vmem>>) attributes {dimension_semantics = [#tpu.dimension_semantics<parallel>], iteration_bounds = array<i64: 2>, scalar_prefetch = 0 : i64, scratch_operands = 0 : i64, tpu.core_type = #tpu.core_type<tc>, window_params = [{pipeline_mode = #tpu.pipeline_mode<synchronous>, transform_indices = @transform_0, window_bounds = array<i64: 128, 576>}, {transform_indices = @transform_1, window_bounds = array<i64: 576, 128>}, {transform_indices = @transform_2, window_bounds = array<i64: 1, 128>}, {transform_indices = @transform_3, window_bounds = array<i64: 32, 128>}]} {
    %c0 = arith.constant 0 : index
    %c0_0 = arith.constant 0 : index
    %0 = vector.load %arg2[%c0, %c0_0] : memref<576x128xbf16, #tpu.memory_space<vmem>>, vector<576x128xbf16>
    %c0_1 = arith.constant 0 : index
    %c0_2 = arith.constant 0 : index
    %1 = vector.load %arg1[%c0_1, %c0_2] : memref<128x576xbf16, #tpu.memory_space<vmem>>, vector<128x576xbf16>
    %cst = arith.constant dense<0.000000e+00> : vector<128x128xf32>
    %2 = tpu.matmul %1, %0, %cst {dimension_numbers = #tpu.dot_dimension_numbers<[1], [0], [0], [1], [0, 0, 1, 1], [], []>} : vector<128x576xbf16>, vector<576x128xbf16>, vector<128x128xf32> -> vector<128x128xf32>
    %3 = vector.extract_strided_slice %2 {offsets = [0, 0], sizes = [32, 128], strides = [1, 1]} : vector<128x128xf32> to vector<32x128xf32>
    %4 = vector.extract_strided_slice %2 {offsets = [32, 0], sizes = [32, 128], strides = [1, 1]} : vector<128x128xf32> to vector<32x128xf32>
    %5 = arith.maximumf %3, %4 : vector<32x128xf32>
    %6 = vector.extract_strided_slice %2 {offsets = [64, 0], sizes = [32, 128], strides = [1, 1]} : vector<128x128xf32> to vector<32x128xf32>
    %7 = arith.maximumf %5, %6 : vector<32x128xf32>
    %8 = vector.extract_strided_slice %2 {offsets = [96, 0], sizes = [32, 128], strides = [1, 1]} : vector<128x128xf32> to vector<32x128xf32>
    %9 = arith.maximumf %7, %8 : vector<32x128xf32>
    %c0_3 = arith.constant 0 : index
    %c0_4 = arith.constant 0 : index
    %10 = vector.load %arg3[%c0_3, %c0_4] : memref<1x128xf32, #tpu.memory_space<vmem>>, vector<1x128xf32>
    %11 = vector.broadcast %10 : vector<1x128xf32> to vector<32x128xf32>
    %12 = arith.addf %9, %11 : vector<32x128xf32>
    %cst_5 = arith.constant 0.000000e+00 : f32
    %13 = vector.broadcast %cst_5 : f32 to vector<32x128xf32>
    %14 = arith.maximumf %12, %13 : vector<32x128xf32>
    %15 = arith.truncf %14 : vector<32x128xf32> to vector<32x128xbf16>
    %c0_6 = arith.constant 0 : index
    %c0_7 = arith.constant 0 : index
    %16 = vector.load %arg4[%c0_6, %c0_7] : memref<32x128xbf16, #tpu.memory_space<vmem>>, vector<32x128xbf16>
    tpu.vector_store %arg4[%c0_6, %c0_7], %15 {strides = array<i32>} : memref<32x128xbf16, #tpu.memory_space<vmem>>, vector<32x128xbf16>,
    return
  }
  func.func @transform_0(%arg0: i32) -> (i32, i32) {
    %c0_i32 = arith.constant 0 : i32
    %c0_i32_0 = arith.constant 0 : i32
    %c0_i32_1 = arith.constant 0 : i32
    return %c0_i32, %c0_i32_0 : i32, i32
  }
  func.func @transform_1(%arg0: i32) -> (i32, i32) {
    %c0_i32 = arith.constant 0 : i32
    %c0_i32_0 = arith.constant 0 : i32
    return %c0_i32, %arg0 : i32, i32
  }
  func.func @transform_2(%arg0: i32) -> (i32, i32) {
    %c0_i32 = arith.constant 0 : i32
    %c0_i32_0 = arith.constant 0 : i32
    return %c0_i32, %arg0 : i32, i32
  }
  func.func @transform_3(%arg0: i32) -> (i32, i32) {
    %c0_i32 = arith.constant 0 : i32
    %c0_i32_0 = arith.constant 0 : i32
    return %c0_i32, %arg0 : i32, i32
  }
}

module attributes {stable_mosaic.version = 11 : i64} {
  func.func @_conv_pool_kernel(%arg0: i32, %arg1: memref<32x2304xbf16, #tpu.memory_space<vmem>>, %arg2: memref<2304x128xbf16, #tpu.memory_space<vmem>>, %arg3: memref<1x128xf32, #tpu.memory_space<vmem>>, %arg4: memref<8x128xbf16, #tpu.memory_space<vmem>>) attributes {dimension_semantics = [#tpu.dimension_semantics<parallel>], iteration_bounds = array<i64: 1>, scalar_prefetch = 0 : i64, scratch_operands = 0 : i64, tpu.core_type = #tpu.core_type<tc>, window_params = [{pipeline_mode = #tpu.pipeline_mode<synchronous>, transform_indices = @transform_0, window_bounds = array<i64: 32, 2304>}, {transform_indices = @transform_1, window_bounds = array<i64: 2304, 128>}, {transform_indices = @transform_2, window_bounds = array<i64: 1, 128>}, {transform_indices = @transform_3, window_bounds = array<i64: 8, 128>}]} {
    %c0 = arith.constant 0 : index
    %c0_0 = arith.constant 0 : index
    %0 = vector.load %arg2[%c0, %c0_0] : memref<2304x128xbf16, #tpu.memory_space<vmem>>, vector<2304x128xbf16>
    %c0_1 = arith.constant 0 : index
    %c0_2 = arith.constant 0 : index
    %1 = vector.load %arg1[%c0_1, %c0_2] : memref<32x2304xbf16, #tpu.memory_space<vmem>>, vector<32x2304xbf16>
    %cst = arith.constant dense<0.000000e+00> : vector<32x128xf32>
    %2 = tpu.matmul %1, %0, %cst {dimension_numbers = #tpu.dot_dimension_numbers<[1], [0], [0], [1], [0, 0, 1, 1], [], []>} : vector<32x2304xbf16>, vector<2304x128xbf16>, vector<32x128xf32> -> vector<32x128xf32>
    %3 = vector.extract_strided_slice %2 {offsets = [0, 0], sizes = [8, 128], strides = [1, 1]} : vector<32x128xf32> to vector<8x128xf32>
    %4 = vector.extract_strided_slice %2 {offsets = [8, 0], sizes = [8, 128], strides = [1, 1]} : vector<32x128xf32> to vector<8x128xf32>
    %5 = arith.maximumf %3, %4 : vector<8x128xf32>
    %6 = vector.extract_strided_slice %2 {offsets = [16, 0], sizes = [8, 128], strides = [1, 1]} : vector<32x128xf32> to vector<8x128xf32>
    %7 = arith.maximumf %5, %6 : vector<8x128xf32>
    %8 = vector.extract_strided_slice %2 {offsets = [24, 0], sizes = [8, 128], strides = [1, 1]} : vector<32x128xf32> to vector<8x128xf32>
    %9 = arith.maximumf %7, %8 : vector<8x128xf32>
    %c0_3 = arith.constant 0 : index
    %c0_4 = arith.constant 0 : index
    %10 = vector.load %arg3[%c0_3, %c0_4] : memref<1x128xf32, #tpu.memory_space<vmem>>, vector<1x128xf32>
    %11 = vector.broadcast %10 : vector<1x128xf32> to vector<8x128xf32>
    %12 = arith.addf %9, %11 : vector<8x128xf32>
    %cst_5 = arith.constant 0.000000e+00 : f32
    %13 = vector.broadcast %cst_5 : f32 to vector<8x128xf32>
    %14 = arith.maximumf %12, %13 : vector<8x128xf32>
    %15 = arith.truncf %14 : vector<8x128xf32> to vector<8x128xbf16>
    %c0_6 = arith.constant 0 : index
    %c0_7 = arith.constant 0 : index
    %16 = vector.load %arg4[%c0_6, %c0_7] : memref<8x128xbf16, #tpu.memory_space<vmem>>, vector<8x128xbf16>
    tpu.vector_store %arg4[%c0_6, %c0_7], %15 {strides = array<i32>} : memref<8x128xbf16, #tpu.memory_space<vmem>>, vector<8x128xbf16>,
    return
  }
  func.func @transform_0(%arg0: i32) -> (i32, i32) {
    %c0_i32 = arith.constant 0 : i32
    %c0_i32_0 = arith.constant 0 : i32
    %c0_i32_1 = arith.constant 0 : i32
    return %c0_i32, %c0_i32_0 : i32, i32
  }
  func.func @transform_1(%arg0: i32) -> (i32, i32) {
    %c0_i32 = arith.constant 0 : i32
    %c0_i32_0 = arith.constant 0 : i32
    return %c0_i32, %arg0 : i32, i32
  }
  func.func @transform_2(%arg0: i32) -> (i32, i32) {
    %c0_i32 = arith.constant 0 : i32
    %c0_i32_0 = arith.constant 0 : i32
    return %c0_i32, %arg0 : i32, i32
  }
  func.func @transform_3(%arg0: i32) -> (i32, i32) {
    %c0_i32 = arith.constant 0 : i32
    %c0_i32_0 = arith.constant 0 : i32
    return %c0_i32, %arg0 : i32, i32
  }
}

module attributes {stable_mosaic.version = 11 : i64} {
  func.func @_fc_exit_kernel(%arg0: i32, %arg1: memref<2x512xbf16, #tpu.memory_space<vmem>>, %arg2: memref<512x1024xbf16, #tpu.memory_space<vmem>>, %arg3: memref<1x1024xf32, #tpu.memory_space<vmem>>, %arg4: memref<1024x128xbf16, #tpu.memory_space<vmem>>, %arg5: memref<1x128xf32, #tpu.memory_space<vmem>>, %arg6: memref<2x128xf32, #tpu.memory_space<vmem>>, %arg7: memref<1x2xf32, #tpu.memory_space<vmem>>, %arg8: memref<2x128xf32, #tpu.memory_space<vmem>>) attributes {dimension_semantics = [#tpu.dimension_semantics<arbitrary>], iteration_bounds = array<i64: 2>, scalar_prefetch = 0 : i64, scratch_operands = 1 : i64, tpu.core_type = #tpu.core_type<tc>, window_params = [{pipeline_mode = #tpu.pipeline_mode<synchronous>, transform_indices = @transform_0, window_bounds = array<i64: 2, 512>}, {transform_indices = @transform_1, window_bounds = array<i64: 512, 1024>}, {transform_indices = @transform_2, window_bounds = array<i64: 1, 1024>}, {transform_indices = @transform_3, window_bounds = array<i64: 1024, 128>}, {pipeline_mode = #tpu.pipeline_mode<synchronous>, transform_indices = @transform_4, window_bounds = array<i64: 1, 128>}, {pipeline_mode = #tpu.pipeline_mode<synchronous>, transform_indices = @transform_5, window_bounds = array<i64: 2, 128>}, {pipeline_mode = #tpu.pipeline_mode<synchronous>, transform_indices = @transform_6, window_bounds = array<i64: 1, 2>}]} {
    %c0_i32 = arith.constant 0 : i32
    %0 = arith.cmpi eq, %arg0, %c0_i32 : i32
    %1 = arith.extui %0 : i1 to i32
    %c0_i32_0 = arith.constant 0 : i32
    %2 = arith.cmpi ne, %1, %c0_i32_0 : i32
    scf.if %2 {
      %cst_15 = arith.constant 0.000000e+00 : f32
      %20 = vector.broadcast %cst_15 : f32 to vector<2x128xf32>
      %c0_16 = arith.constant 0 : index
      %c0_17 = arith.constant 0 : index
      %21 = vector.load %arg8[%c0_16, %c0_17] : memref<2x128xf32, #tpu.memory_space<vmem>>, vector<2x128xf32>
      tpu.vector_store %arg8[%c0_16, %c0_17], %20 {strides = array<i32>} : memref<2x128xf32, #tpu.memory_space<vmem>>, vector<2x128xf32>,
    } else {
    }
    %c0 = arith.constant 0 : index
    %c0_1 = arith.constant 0 : index
    %3 = vector.load %arg1[%c0, %c0_1] : memref<2x512xbf16, #tpu.memory_space<vmem>>, vector<2x512xbf16>
    %c0_2 = arith.constant 0 : index
    %c0_3 = arith.constant 0 : index
    %4 = vector.load %arg2[%c0_2, %c0_3] : memref<512x1024xbf16, #tpu.memory_space<vmem>>, vector<512x1024xbf16>
    %cst = arith.constant dense<0.000000e+00> : vector<2x1024xf32>
    %5 = tpu.matmul %3, %4, %cst {dimension_numbers = #tpu.dot_dimension_numbers<[1], [0], [0], [1], [0, 0, 1, 1], [], []>} : vector<2x512xbf16>, vector<512x1024xbf16>, vector<2x1024xf32> -> vector<2x1024xf32>
    %c0_4 = arith.constant 0 : index
    %c0_5 = arith.constant 0 : index
    %6 = vector.load %arg3[%c0_4, %c0_5] : memref<1x1024xf32, #tpu.memory_space<vmem>>, vector<1x1024xf32>
    %7 = vector.broadcast %6 : vector<1x1024xf32> to vector<2x1024xf32>
    %8 = arith.addf %5, %7 : vector<2x1024xf32>
    %cst_6 = arith.constant 0.000000e+00 : f32
    %9 = vector.broadcast %cst_6 : f32 to vector<2x1024xf32>
    %10 = arith.maximumf %8, %9 : vector<2x1024xf32>
    %c0_7 = arith.constant 0 : index
    %c0_8 = arith.constant 0 : index
    %11 = vector.load %arg8[%c0_7, %c0_8] : memref<2x128xf32, #tpu.memory_space<vmem>>, vector<2x128xf32>
    %12 = arith.truncf %10 : vector<2x1024xf32> to vector<2x1024xbf16>
    %c0_9 = arith.constant 0 : index
    %c0_10 = arith.constant 0 : index
    %13 = vector.load %arg4[%c0_9, %c0_10] : memref<1024x128xbf16, #tpu.memory_space<vmem>>, vector<1024x128xbf16>
    %cst_11 = arith.constant dense<0.000000e+00> : vector<2x128xf32>
    %14 = tpu.matmul %12, %13, %cst_11 {dimension_numbers = #tpu.dot_dimension_numbers<[1], [0], [0], [1], [0, 0, 1, 1], [], []>} : vector<2x1024xbf16>, vector<1024x128xbf16>, vector<2x128xf32> -> vector<2x128xf32>
    %15 = arith.addf %11, %14 : vector<2x128xf32>
    %c0_12 = arith.constant 0 : index
    %c0_13 = arith.constant 0 : index
    %16 = vector.load %arg8[%c0_12, %c0_13] : memref<2x128xf32, #tpu.memory_space<vmem>>, vector<2x128xf32>
    tpu.vector_store %arg8[%c0_12, %c0_13], %15 {strides = array<i32>} : memref<2x128xf32, #tpu.memory_space<vmem>>, vector<2x128xf32>,
    %c1_i32 = arith.constant 1 : i32
    %17 = arith.cmpi eq, %arg0, %c1_i32 : i32
    %18 = arith.extui %17 : i1 to i32
    %c0_i32_14 = arith.constant 0 : i32
    %19 = arith.cmpi ne, %18, %c0_i32_14 : i32
    scf.if %19 {
      %c0_15 = arith.constant 0 : index
      %c0_16 = arith.constant 0 : index
      %20 = vector.load %arg8[%c0_15, %c0_16] : memref<2x128xf32, #tpu.memory_space<vmem>>, vector<2x128xf32>
      %c0_17 = arith.constant 0 : index
      %c0_18 = arith.constant 0 : index
      %21 = vector.load %arg5[%c0_17, %c0_18] : memref<1x128xf32, #tpu.memory_space<vmem>>, vector<1x128xf32>
      %22 = vector.broadcast %21 : vector<1x128xf32> to vector<2x128xf32>
      %23 = arith.addf %20, %22 : vector<2x128xf32>
      %c0_19 = arith.constant 0 : index
      %c0_20 = arith.constant 0 : index
      %24 = vector.load %arg6[%c0_19, %c0_20] : memref<2x128xf32, #tpu.memory_space<vmem>>, vector<2x128xf32>
      tpu.vector_store %arg6[%c0_19, %c0_20], %23 {strides = array<i32>} : memref<2x128xf32, #tpu.memory_space<vmem>>, vector<2x128xf32>,
      %25 = tpu.iota {dimensions = array<i32: 1>} : vector<2x128xi32>
      %c0_i32_21 = arith.constant 0 : i32
      %26 = vector.broadcast %c0_i32_21 : i32 to vector<2x128xi32>
      %27 = arith.cmpi sge, %25, %26 : vector<2x128xi32>
      %c100_i32 = arith.constant 100 : i32
      %28 = vector.broadcast %c100_i32 : i32 to vector<2x128xi32>
      %29 = arith.cmpi slt, %25, %28 : vector<2x128xi32>
      %30 = arith.andi %27, %29 : vector<2x128xi1>
      %cst_22 = arith.constant -1.000000e+30 : f32
      %31 = vector.broadcast %cst_22 : f32 to vector<2x128xf32>
      %32 = arith.select %30, %23, %31 : vector<2x128xi1>, vector<2x128xf32>
      %cst_23 = arith.constant dense<0xFF800000> : vector<2xf32>
      %33 = vector.multi_reduction <maximumf>, %32, %cst_23 [1] : vector<2x128xf32> to vector<2xf32>
      %34 = vector.shape_cast %33 : vector<2xf32> to vector<2x1xf32>
      %35 = vector.broadcast %34 : vector<2x1xf32> to vector<2x128xf32>
      %36 = arith.subf %32, %35 : vector<2x128xf32>
      %37 = math.exp %36 : vector<2x128xf32>
      %cst_24 = arith.constant dense<0.000000e+00> : vector<2xf32>
      %38 = vector.multi_reduction <add>, %37, %cst_24 [1] : vector<2x128xf32> to vector<2xf32>
      %39 = vector.shape_cast %38 : vector<2xf32> to vector<2x1xf32>
      %40 = vector.broadcast %39 : vector<2x1xf32> to vector<2x128xf32>
      %41 = arith.divf %37, %40 : vector<2x128xf32>
      %42 = vector.broadcast %34 : vector<2x1xf32> to vector<2x128xf32>
      %43 = arith.subf %32, %42 : vector<2x128xf32>
      %44 = math.log %39 : vector<2x1xf32>
      %45 = vector.broadcast %44 : vector<2x1xf32> to vector<2x128xf32>
      %46 = arith.subf %43, %45 : vector<2x128xf32>
      %47 = arith.mulf %41, %46 : vector<2x128xf32>
      %cst_25 = arith.constant 0.000000e+00 : f32
      %48 = vector.broadcast %cst_25 : f32 to vector<2x128xf32>
      %49 = arith.select %30, %47, %48 : vector<2x128xi1>, vector<2x128xf32>
      %cst_26 = arith.constant dense<0.000000e+00> : vector<2xf32>
      %50 = vector.multi_reduction <add>, %49, %cst_26 [1] : vector<2x128xf32> to vector<2xf32>
      %51 = vector.shape_cast %50 : vector<2xf32> to vector<2x1xf32>
      %cst_27 = arith.constant 0.000000e+00 : f32
      %52 = vector.broadcast %cst_27 : f32 to vector<2x1xf32>
      %53 = arith.subf %52, %51 : vector<2x1xf32>
      %cst_28 = arith.constant dense<0.000000e+00> : vector<1xf32>
      %54 = vector.multi_reduction <add>, %53, %cst_28 [0] : vector<2x1xf32> to vector<1xf32>
      %55 = vector.shape_cast %54 : vector<1xf32> to vector<1x1xf32>
      %cst_29 = arith.constant 5.000000e-01 : f32
      %56 = vector.broadcast %cst_29 : f32 to vector<1x1xf32>
      %57 = arith.mulf %55, %56 : vector<1x1xf32>
      %c100_i32_30 = arith.constant 100 : i32
      %58 = vector.broadcast %c100_i32_30 : i32 to vector<2x128xi32>
      %59 = arith.cmpi sge, %25, %58 : vector<2x128xi32>
      %c120_i32 = arith.constant 120 : i32
      %60 = vector.broadcast %c120_i32 : i32 to vector<2x128xi32>
      %61 = arith.cmpi slt, %25, %60 : vector<2x128xi32>
      %62 = arith.andi %59, %61 : vector<2x128xi1>
      %cst_31 = arith.constant -1.000000e+30 : f32
      %63 = vector.broadcast %cst_31 : f32 to vector<2x128xf32>
      %64 = arith.select %62, %23, %63 : vector<2x128xi1>, vector<2x128xf32>
      %cst_32 = arith.constant dense<0xFF800000> : vector<2xf32>
      %65 = vector.multi_reduction <maximumf>, %64, %cst_32 [1] : vector<2x128xf32> to vector<2xf32>
      %66 = vector.shape_cast %65 : vector<2xf32> to vector<2x1xf32>
      %67 = vector.broadcast %66 : vector<2x1xf32> to vector<2x128xf32>
      %68 = arith.subf %64, %67 : vector<2x128xf32>
      %69 = math.exp %68 : vector<2x128xf32>
      %cst_33 = arith.constant dense<0.000000e+00> : vector<2xf32>
      %70 = vector.multi_reduction <add>, %69, %cst_33 [1] : vector<2x128xf32> to vector<2xf32>
      %71 = vector.shape_cast %70 : vector<2xf32> to vector<2x1xf32>
      %72 = vector.broadcast %71 : vector<2x1xf32> to vector<2x128xf32>
      %73 = arith.divf %69, %72 : vector<2x128xf32>
      %74 = vector.broadcast %66 : vector<2x1xf32> to vector<2x128xf32>
      %75 = arith.subf %64, %74 : vector<2x128xf32>
      %76 = math.log %71 : vector<2x1xf32>
      %77 = vector.broadcast %76 : vector<2x1xf32> to vector<2x128xf32>
      %78 = arith.subf %75, %77 : vector<2x128xf32>
      %79 = arith.mulf %73, %78 : vector<2x128xf32>
      %cst_34 = arith.constant 0.000000e+00 : f32
      %80 = vector.broadcast %cst_34 : f32 to vector<2x128xf32>
      %81 = arith.select %62, %79, %80 : vector<2x128xi1>, vector<2x128xf32>
      %cst_35 = arith.constant dense<0.000000e+00> : vector<2xf32>
      %82 = vector.multi_reduction <add>, %81, %cst_35 [1] : vector<2x128xf32> to vector<2xf32>
      %83 = vector.shape_cast %82 : vector<2xf32> to vector<2x1xf32>
      %cst_36 = arith.constant 0.000000e+00 : f32
      %84 = vector.broadcast %cst_36 : f32 to vector<2x1xf32>
      %85 = arith.subf %84, %83 : vector<2x1xf32>
      %cst_37 = arith.constant dense<0.000000e+00> : vector<1xf32>
      %86 = vector.multi_reduction <add>, %85, %cst_37 [0] : vector<2x1xf32> to vector<1xf32>
      %87 = vector.shape_cast %86 : vector<1xf32> to vector<1x1xf32>
      %cst_38 = arith.constant 5.000000e-01 : f32
      %88 = vector.broadcast %cst_38 : f32 to vector<1x1xf32>
      %89 = arith.mulf %87, %88 : vector<1x1xf32>
      %90 = tpu.concatenate %57, %89 in 1 : vector<1x1xf32>, vector<1x1xf32> -> vector<1x2xf32>
      %c0_39 = arith.constant 0 : index
      %c0_40 = arith.constant 0 : index
      %91 = vector.load %arg7[%c0_39, %c0_40] : memref<1x2xf32, #tpu.memory_space<vmem>>, vector<1x2xf32>
      tpu.vector_store %arg7[%c0_39, %c0_40], %90 {strides = array<i32>} : memref<1x2xf32, #tpu.memory_space<vmem>>, vector<1x2xf32>,
    } else {
    }
    return
  }
  func.func @transform_0(%arg0: i32) -> (i32, i32) {
    %c0_i32 = arith.constant 0 : i32
    %c0_i32_0 = arith.constant 0 : i32
    %c0_i32_1 = arith.constant 0 : i32
    return %c0_i32, %c0_i32_0 : i32, i32
  }
  func.func @transform_1(%arg0: i32) -> (i32, i32) {
    %c0_i32 = arith.constant 0 : i32
    %c0_i32_0 = arith.constant 0 : i32
    return %c0_i32, %arg0 : i32, i32
  }
  func.func @transform_2(%arg0: i32) -> (i32, i32) {
    %c0_i32 = arith.constant 0 : i32
    %c0_i32_0 = arith.constant 0 : i32
    return %c0_i32, %arg0 : i32, i32
  }
  func.func @transform_3(%arg0: i32) -> (i32, i32) {
    %c0_i32 = arith.constant 0 : i32
    %c0_i32_0 = arith.constant 0 : i32
    return %arg0, %c0_i32 : i32, i32
  }
  func.func @transform_4(%arg0: i32) -> (i32, i32) {
    %c0_i32 = arith.constant 0 : i32
    %c0_i32_0 = arith.constant 0 : i32
    %c0_i32_1 = arith.constant 0 : i32
    return %c0_i32, %c0_i32_0 : i32, i32
  }
  func.func @transform_5(%arg0: i32) -> (i32, i32) {
    %c0_i32 = arith.constant 0 : i32
    %c0_i32_0 = arith.constant 0 : i32
    %c0_i32_1 = arith.constant 0 : i32
    return %c0_i32, %c0_i32_0 : i32, i32
  }
  func.func @transform_6(%arg0: i32) -> (i32, i32) {
    %c0_i32 = arith.constant 0 : i32
    %c0_i32_0 = arith.constant 0 : i32
    %c0_i32_1 = arith.constant 0 : i32
    return %c0_i32, %c0_i32_0 : i32, i32
  }
}

</mosaic_0001>

<llo_original>
// kernel: _stage1.4
$region0: #{_stage1.4}
  #allocation0 [shape = 'u32[]', space=smem, size = 0x4, offset = 0x4, fixed_abs, tag = 'smem constant byte address 0x4 - core index']
  #allocation1 [shape = 'u32[144,128]{1,0:T(1,128)}', space=vmem, size = 0x12000, scoped, tag = 'internal scratch']
  %s0 = inlined_call_operand.vmem [shape: bf16[512,32], index: 0, kind: input, shape index: {}]
  %s1 = inlined_call_operand.vmem [shape: bf16[32,64], index: 1, kind: input, shape index: {}]
  %s2 = inlined_call_operand.vmem [shape: f32[1,64], index: 2, kind: input, shape index: {}]
  %s3 = inlined_call_operand.vmem [shape: bf16[128,64], index: 3, kind: output, shape index: {}]
  %s4 = sld [smem:[#allocation0]]
  $region22: #{_stage1.4} parent=0
    _
  %s6 = ssub.s32 1, %s4
  %s7 = scalar_select 0, %s6, %s4
  // Predicated region
  $region2: #{_stage1.4} parent=0 // pred_check
    _
  $region3: #{_stage1.4} parent=0 // pred_check_branch
    %9 = sbr.rel (0) target = $region5
  $region4: #{_stage1.4} parent=0 // pred_region
    _
  $region5: #{_stage1.4} parent=0 // pred_fallthru
    _
  // Predicated region
  $region6: #{_stage1.4} parent=0 // pred_check
    _
  $region7: #{_stage1.4} parent=0 // pred_check_branch
    %11 = sbr.rel (0) target = $region9
  $region8: #{_stage1.4} parent=0 // pred_region
    _
  $region9: #{_stage1.4} parent=0 // pred_fallthru
    _
  // Predicated region
  $region10: #{_stage1.4} parent=0 // pred_check
    _
  $region11: #{_stage1.4} parent=0 // pred_check_branch
    %13 = sbr.rel (0) target = $region13
  $region12: #{_stage1.4} parent=0 // pred_region
    _
  $region13: #{_stage1.4} parent=0 // pred_fallthru
    _
  %v15 = vld [vmem:[%s1] sm:$0xf]
  %v16 = vld [vmem:[%s1 + $0x4] sm:$0xf]
  %v17 = vld [vmem:[%s1 + $0x8] sm:$0xf]
  %v18 = vld [vmem:[%s1 + $0xc] sm:$0xf]
  %v19 = vld [vmem:[%s0] sm:$0xf]
  %v20 = vld [vmem:[%s0 + $0x4] sm:$0xf]
  %v21 = vld [vmem:[%s0 + $0x8] sm:$0xf]
  %v22 = vld [vmem:[%s0 + $0xc] sm:$0xf]
  %v23 = vld [vmem:[%s0 + $0x10] sm:$0xf]
  %v24 = vld [vmem:[%s0 + $0x14] sm:$0xf]
  %v25 = vld [vmem:[%s0 + $0x18] sm:$0xf]
  %v26 = vld [vmem:[%s0 + $0x1c] sm:$0xf]
  %v27 = vld [vmem:[%s0 + $0x20] sm:$0xf]
  %v28 = vld [vmem:[%s0 + $0x24] sm:$0xf]
  %v29 = vld [vmem:[%s0 + $0x28] sm:$0xf]
  %v30 = vld [vmem:[%s0 + $0x2c] sm:$0xf]
  %v31 = vld [vmem:[%s0 + $0x30] sm:$0xf]
  %v32 = vld [vmem:[%s0 + $0x34] sm:$0xf]
  %v33 = vld [vmem:[%s0 + $0x38] sm:$0xf]
  %v34 = vld [vmem:[%s0 + $0x3c] sm:$0xf]
  %v35 = vld [vmem:[%s0 + $0x40] sm:$0xf]
  %v36 = vld [vmem:[%s0 + $0x44] sm:$0xf]
  %v37 = vld [vmem:[%s0 + $0x48] sm:$0xf]
  %v38 = vld [vmem:[%s0 + $0x4c] sm:$0xf]
  %v39 = vld [vmem:[%s0 + $0x50] sm:$0xf]
  %v40 = vld [vmem:[%s0 + $0x54] sm:$0xf]
  %v41 = vld [vmem:[%s0 + $0x58] sm:$0xf]
  %v42 = vld [vmem:[%s0 + $0x5c] sm:$0xf]
  %v43 = vld [vmem:[%s0 + $0x60] sm:$0xf]
  %v44 = vld [vmem:[%s0 + $0x64] sm:$0xf]
  %v45 = vld [vmem:[%s0 + $0x68] sm:$0xf]
  %v46 = vld [vmem:[%s0 + $0x6c] sm:$0xf]
  %v47 = vld [vmem:[%s0 + $0x70] sm:$0xf]
  %v48 = vld [vmem:[%s0 + $0x74] sm:$0xf]
  %v49 = vld [vmem:[%s0 + $0x78] sm:$0xf]
  %v50 = vld [vmem:[%s0 + $0x7c] sm:$0xf]
  %v51 = vld [vmem:[%s0 + $0x80] sm:$0xf]
  %v52 = vld [vmem:[%s0 + $0x84] sm:$0xf]
  %v53 = vld [vmem:[%s0 + $0x88] sm:$0xf]
  %v54 = vld [vmem:[%s0 + $0x8c] sm:$0xf]
  %v55 = vld [vmem:[%s0 + $0x90] sm:$0xf]
  %v56 = vld [vmem:[%s0 + $0x94] sm:$0xf]
  %v57 = vld [vmem:[%s0 + $0x98] sm:$0xf]
  %v58 = vld [vmem:[%s0 + $0x9c] sm:$0xf]
  %v59 = vld [vmem:[%s0 + $0xa0] sm:$0xf]
  %v60 = vld [vmem:[%s0 + $0xa4] sm:$0xf]
  %v61 = vld [vmem:[%s0 + $0xa8] sm:$0xf]
  %v62 = vld [vmem:[%s0 + $0xac] sm:$0xf]
  %v63 = vld [vmem:[%s0 + $0xb0] sm:$0xf]
  %v64 = vld [vmem:[%s0 + $0xb4] sm:$0xf]
  %v65 = vld [vmem:[%s0 + $0xb8] sm:$0xf]
  %v66 = vld [vmem:[%s0 + $0xbc] sm:$0xf]
  %v67 = vld [vmem:[%s0 + $0xc0] sm:$0xf]
  %v68 = vld [vmem:[%s0 + $0xc4] sm:$0xf]
  %v69 = vld [vmem:[%s0 + $0xc8] sm:$0xf]
  %v70 = vld [vmem:[%s0 + $0xcc] sm:$0xf]
  %v71 = vld [vmem:[%s0 + $0xd0] sm:$0xf]
  %v72 = vld [vmem:[%s0 + $0xd4] sm:$0xf]
  %v73 = vld [vmem:[%s0 + $0xd8] sm:$0xf]
  %v74 = vld [vmem:[%s0 + $0xdc] sm:$0xf]
  %v75 = vld [vmem:[%s0 + $0xe0] sm:$0xf]
  %v76 = vld [vmem:[%s0 + $0xe4] sm:$0xf]
  %v77 = vld [vmem:[%s0 + $0xe8] sm:$0xf]
  %v78 = vld [vmem:[%s0 + $0xec] sm:$0xf]
  %v79 = vld [vmem:[%s0 + $0xf0] sm:$0xf]
  %v80 = vld [vmem:[%s0 + $0xf4] sm:$0xf]
  %v81 = vld [vmem:[%s0 + $0xf8] sm:$0xf]
  %v82 = vld [vmem:[%s0 + $0xfc] sm:$0xf]
  %v147 = vunpack.c.l.b16 %v19
  %v148 = vunpack.c.l.b16 %v20
  %v149 = vunpack.c.l.b16 %v21
  %v150 = vunpack.c.l.b16 %v22
  %v151 = vunpack.c.l.b16 %v23
  %v152 = vunpack.c.l.b16 %v24
  %v153 = vunpack.c.l.b16 %v25
  %v154 = vunpack.c.l.b16 %v26
  %v155 = vunpack.c.l.b16 %v27
  %v156 = vunpack.c.l.b16 %v28
  %v157 = vunpack.c.l.b16 %v29
  %v158 = vunpack.c.l.b16 %v30
  %v159 = vunpack.c.l.b16 %v31
  %v160 = vunpack.c.l.b16 %v32
  %v161 = vunpack.c.l.b16 %v33
  %v162 = vunpack.c.l.b16 %v34
  %v163 = vunpack.c.l.b16 %v35
  %v164 = vunpack.c.l.b16 %v36
  %v165 = vunpack.c.l.b16 %v37
  %v166 = vunpack.c.l.b16 %v38
  %v167 = vunpack.c.l.b16 %v39
  %v168 = vunpack.c.l.b16 %v40
  %v169 = vunpack.c.l.b16 %v41
  %v170 = vunpack.c.l.b16 %v42
  %v171 = vunpack.c.l.b16 %v43
  %v172 = vunpack.c.l.b16 %v44
  %v173 = vunpack.c.l.b16 %v45
  %v174 = vunpack.c.l.b16 %v46
  %v175 = vunpack.c.l.b16 %v47
  %v176 = vunpack.c.l.b16 %v48
  %v177 = vunpack.c.l.b16 %v49
  %v178 = vunpack.c.l.b16 %v50
  %v179 = vunpack.c.l.b16 %v51
  %v180 = vunpack.c.l.b16 %v52
  %v181 = vunpack.c.l.b16 %v53
  %v182 = vunpack.c.l.b16 %v54
  %v183 = vunpack.c.l.b16 %v55
  %v184 = vunpack.c.l.b16 %v56
  %v185 = vunpack.c.l.b16 %v57
  %v186 = vunpack.c.l.b16 %v58
  %v187 = vunpack.c.l.b16 %v59
  %v188 = vunpack.c.l.b16 %v60
  %v189 = vunpack.c.l.b16 %v61
  %v190 = vunpack.c.l.b16 %v62
  %v191 = vunpack.c.l.b16 %v63
  %v192 = vunpack.c.l.b16 %v64
  %v193 = vunpack.c.l.b16 %v65
  %v194 = vunpack.c.l.b16 %v66
  %v195 = vunpack.c.l.b16 %v67
  %v196 = vunpack.c.l.b16 %v68
  %v197 = vunpack.c.l.b16 %v69
  %v198 = vunpack.c.l.b16 %v70
  %v199 = vunpack.c.l.b16 %v71
  %v200 = vunpack.c.l.b16 %v72
  %v201 = vunpack.c.l.b16 %v73
  %v202 = vunpack.c.l.b16 %v74
  %v203 = vunpack.c.l.b16 %v75
  %v204 = vunpack.c.l.b16 %v76
  %v205 = vunpack.c.l.b16 %v77
  %v206 = vunpack.c.l.b16 %v78
  %v207 = vunpack.c.l.b16 %v79
  %v208 = vunpack.c.l.b16 %v80
  %v209 = vunpack.c.l.b16 %v81
  %v210 = vunpack.c.l.b16 %v82
  %v211 = vpack.c.b16 %v148, %v147
  %v212 = vpack.c.b16 %v150, %v149
  %v213 = vpack.c.b16 %v152, %v151
  %v214 = vpack.c.b16 %v154, %v153
  %v215 = vpack.c.b16 %v156, %v155
  %v216 = vpack.c.b16 %v158, %v157
  %v217 = vpack.c.b16 %v160, %v159
  %v218 = vpack.c.b16 %v162, %v161
  %v219 = vpack.c.b16 %v164, %v163
  %v220 = vpack.c.b16 %v166, %v165
  %v221 = vpack.c.b16 %v168, %v167
  %v222 = vpack.c.b16 %v170, %v169
  %v223 = vpack.c.b16 %v172, %v171
  %v224 = vpack.c.b16 %v174, %v173
  %v225 = vpack.c.b16 %v176, %v175
  %v226 = vpack.c.b16 %v178, %v177
  %v227 = vpack.c.b16 %v180, %v179
  %v228 = vpack.c.b16 %v182, %v181
  %v229 = vpack.c.b16 %v184, %v183
  %v230 = vpack.c.b16 %v186, %v185
  %v231 = vpack.c.b16 %v188, %v187
  %v232 = vpack.c.b16 %v190, %v189
  %v233 = vpack.c.b16 %v192, %v191
  %v234 = vpack.c.b16 %v194, %v193
  %v235 = vpack.c.b16 %v196, %v195
  %v236 = vpack.c.b16 %v198, %v197
  %v237 = vpack.c.b16 %v200, %v199
  %v238 = vpack.c.b16 %v202, %v201
  %v239 = vpack.c.b16 %v204, %v203
  %v240 = vpack.c.b16 %v206, %v205
  %v241 = vpack.c.b16 %v208, %v207
  %v242 = vpack.c.b16 %v210, %v209
  %v247 = vunpack.c.l.b16 %v15
  %v248 = vunpack.c.l.b16 %v16
  %v249 = vunpack.c.l.b16 %v17
  %v250 = vunpack.c.l.b16 %v18
  %v251 = vpack.c.b16 %v248, %v247
  %v252 = vpack.c.b16 %v250, %v249
  %vm255 = vcmask 261120
  %v257 = vsel %vm255, %v211, 0
  %v260 = vsel %vm255, %v212, 0
  %v263 = vsel %vm255, %v213, 0
  %v266 = vsel %vm255, %v214, 0
  %v269 = vsel %vm255, %v215, 0
  %v272 = vsel %vm255, %v216, 0
  %v275 = vsel %vm255, %v217, 0
  %v278 = vsel %vm255, %v218, 0
  %v281 = vsel %vm255, %v219, 0
  %v284 = vsel %vm255, %v220, 0
  %v287 = vsel %vm255, %v221, 0
  %v290 = vsel %vm255, %v222, 0
  %v293 = vsel %vm255, %v223, 0
  %v296 = vsel %vm255, %v224, 0
  %v299 = vsel %vm255, %v225, 0
  %v302 = vsel %vm255, %v226, 0
  %v305 = vsel %vm255, %v227, 0
  %v308 = vsel %vm255, %v228, 0
  %v311 = vsel %vm255, %v229, 0
  %v314 = vsel %vm255, %v230, 0
  %v317 = vsel %vm255, %v231, 0
  %v320 = vsel %vm255, %v232, 0
  %v323 = vsel %vm255, %v233, 0
  %v326 = vsel %vm255, %v234, 0
  %v329 = vsel %vm255, %v235, 0
  %v332 = vsel %vm255, %v236, 0
  %v335 = vsel %vm255, %v237, 0
  %v338 = vsel %vm255, %v238, 0
  %v341 = vsel %vm255, %v239, 0
  %v344 = vsel %vm255, %v240, 0
  %v347 = vsel %vm255, %v241, 0
  %v350 = vsel %vm255, %v242, 0
  %352 = vmatprep.subr.bf16.mxu0 0
  %353 = vmatpush1.bf16.msra.mxu0 %v251
  %354 = vmatprep.subr.bf16.mxu0 0
  %355 = vmatpush1.bf16.msra.mxu0 %v252
  %356 = vmatprep.subr.bf16.mxu0 0
  %357 = vmatpush1.bf16.msra.mxu0 0
  %358 = vmatprep.subr.bf16.mxu0 0
  %359 = vmatpush1.bf16.msra.mxu0 0
  %360 = vmatprep.subr.bf16.mxu0 0
  %361 = vmatpush1.bf16.msra.mxu0 0
  %362 = vmatprep.subr.bf16.mxu0 0
  %363 = vmatpush1.bf16.msra.mxu0 0
  %364 = vmatprep.subr.bf16.mxu0 0
  %365 = vmatpush1.bf16.msra.mxu0 0
  %366 = vmatprep.subr.bf16.mxu0 0
  %367 = vmatpush1.bf16.msra.mxu0 0
  %368 = vmatprep.subr.bf16.mxu0 0
  %369 = vmatpush1.bf16.msra.mxu0 0
  %370 = vmatprep.subr.bf16.mxu0 0
  %371 = vmatpush1.bf16.msra.mxu0 0
  %372 = vmatprep.subr.bf16.mxu0 0
  %373 = vmatpush1.bf16.msra.mxu0 0
  %374 = vmatprep.subr.bf16.mxu0 0
  %375 = vmatpush1.bf16.msra.mxu0 0
  %376 = vmatprep.subr.bf16.mxu0 0
  %377 = vmatpush1.bf16.msra.mxu0 0
  %378 = vmatprep.subr.bf16.mxu0 0
  %379 = vmatpush1.bf16.msra.mxu0 0
  %380 = vmatprep.subr.bf16.mxu0 0
  %381 = vmatpush1.bf16.msra.mxu0 0
  %382 = vmatprep.subr.bf16.mxu0 0
  %383 = vmatpush1.bf16.msra.mxu0 0
  %384 = vmatprep.mubr.bf16.mxu0 0
  %385 = vmatmul.mubr.bf16.gmra.mrb[0].mxu0 %v257
  %v386 = vpop.f32.mrb[0].mxu0
  %v387 = vadd.f32 0.0, %v386
  %v388 = vpop.f32.mrb[0].mxu0
  %v389 = vpop.f32.mrb[0].mxu0
  %v390 = vadd.f32 0.0, %v389
  %v391 = vpop.f32.mrb[0].mxu0
  %392 = vmatprep.mubr.bf16.mxu0 0
  %393 = vmatmul.mubr.bf16.gmra.mrb[0].mxu0 %v260
  %v394 = vpop.f32.mrb[0].mxu0
  %v395 = vadd.f32 0.0, %v394
  %v396 = vpop.f32.mrb[0].mxu0
  %v397 = vpop.f32.mrb[0].mxu0
  %v398 = vadd.f32 0.0, %v397
  %v399 = vpop.f32.mrb[0].mxu0
  %400 = vmatprep.mubr.bf16.mxu0 0
  %401 = vmatmul.mubr.bf16.gmra.mrb[0].mxu0 %v263
  %v402 = vpop.f32.mrb[0].mxu0
  %v403 = vadd.f32 0.0, %v402
  %v404 = vpop.f32.mrb[0].mxu0
  %v405 = vpop.f32.mrb[0].mxu0
  %v406 = vadd.f32 0.0, %v405
  %v407 = vpop.f32.mrb[0].mxu0
  %408 = vmatprep.mubr.bf16.mxu0 0
  %409 = vmatmul.mubr.bf16.gmra.mrb[0].mxu0 %v266
  %v410 = vpop.f32.mrb[0].mxu0
  %v411 = vadd.f32 0.0, %v410
  %v412 = vpop.f32.mrb[0].mxu0
  %v413 = vpop.f32.mrb[0].mxu0
  %v414 = vadd.f32 0.0, %v413
  %v415 = vpop.f32.mrb[0].mxu0
  %416 = vmatprep.mubr.bf16.mxu0 0
  %417 = vmatmul.mubr.bf16.gmra.mrb[0].mxu0 %v269
  %v418 = vpop.f32.mrb[0].mxu0
  %v419 = vadd.f32 0.0, %v418
  %v420 = vpop.f32.mrb[0].mxu0
  %v421 = vpop.f32.mrb[0].mxu0
  %v422 = vadd.f32 0.0, %v421
  %v423 = vpop.f32.mrb[0].mxu0
  %424 = vmatprep.mubr.bf16.mxu0 0
  %425 = vmatmul.mubr.bf16.gmra.mrb[0].mxu0 %v272
  %v426 = vpop.f32.mrb[0].mxu0
  %v427 = vadd.f32 0.0, %v426
  %v428 = vpop.f32.mrb[0].mxu0
  %v429 = vpop.f32.mrb[0].mxu0
  %v430 = vadd.f32 0.0, %v429
  %v431 = vpop.f32.mrb[0].mxu0
  %432 = vmatprep.mubr.bf16.mxu0 0
  %433 = vmatmul.mubr.bf16.gmra.mrb[0].mxu0 %v275
  %v434 = vpop.f32.mrb[0].mxu0
  %v435 = vadd.f32 0.0, %v434
  %v436 = vpop.f32.mrb[0].mxu0
  %v437 = vpop.f32.mrb[0].mxu0
  %v438 = vadd.f32 0.0, %v437
  %v439 = vpop.f32.mrb[0].mxu0
  %440 = vmatprep.mubr.bf16.mxu0 0
  %441 = vmatmul.mubr.bf16.gmra.mrb[0].mxu0 %v278
  %v442 = vpop.f32.mrb[0].mxu0
  %v443 = vadd.f32 0.0, %v442
  %v444 = vpop.f32.mrb[0].mxu0
  %v445 = vpop.f32.mrb[0].mxu0
  %v446 = vadd.f32 0.0, %v445
  %v447 = vpop.f32.mrb[0].mxu0
  %448 = vmatprep.mubr.bf16.mxu0 0
  %449 = vmatmul.mubr.bf16.gmra.mrb[0].mxu0 %v281
  %v450 = vpop.f32.mrb[0].mxu0
  %v451 = vadd.f32 0.0, %v450
  %v452 = vpop.f32.mrb[0].mxu0
  %v453 = vpop.f32.mrb[0].mxu0
  %v454 = vadd.f32 0.0, %v453
  %v455 = vpop.f32.mrb[0].mxu0
  %456 = vmatprep.mubr.bf16.mxu0 0
  %457 = vmatmul.mubr.bf16.gmra.mrb[0].mxu0 %v284
  %v458 = vpop.f32.mrb[0].mxu0
  %v459 = vadd.f32 0.0, %v458
  %v460 = vpop.f32.mrb[0].mxu0
  %v461 = vpop.f32.mrb[0].mxu0
  %v462 = vadd.f32 0.0, %v461
  %v463 = vpop.f32.mrb[0].mxu0
  %464 = vmatprep.mubr.bf16.mxu0 0
  %465 = vmatmul.mubr.bf16.gmra.mrb[0].mxu0 %v287
  %v466 = vpop.f32.mrb[0].mxu0
  %v467 = vadd.f32 0.0, %v466
  %v468 = vpop.f32.mrb[0].mxu0
  %v469 = vpop.f32.mrb[0].mxu0
  %v470 = vadd.f32 0.0, %v469
  %v471 = vpop.f32.mrb[0].mxu0
  %472 = vmatprep.mubr.bf16.mxu0 0
  %473 = vmatmul.mubr.bf16.gmra.mrb[0].mxu0 %v290
  %v474 = vpop.f32.mrb[0].mxu0
  %v475 = vadd.f32 0.0, %v474
  %v476 = vpop.f32.mrb[0].mxu0
  %v477 = vpop.f32.mrb[0].mxu0
  %v478 = vadd.f32 0.0, %v477
  %v479 = vpop.f32.mrb[0].mxu0
  %480 = vmatprep.mubr.bf16.mxu0 0
  %481 = vmatmul.mubr.bf16.gmra.mrb[0].mxu0 %v293
  %v482 = vpop.f32.mrb[0].mxu0
  %v483 = vadd.f32 0.0, %v482
  %v484 = vpop.f32.mrb[0].mxu0
  %v485 = vpop.f32.mrb[0].mxu0
  %v486 = vadd.f32 0.0, %v485
  %v487 = vpop.f32.mrb[0].mxu0
  %488 = vmatprep.mubr.bf16.mxu0 0
  %489 = vmatmul.mubr.bf16.gmra.mrb[0].mxu0 %v296
  %v490 = vpop.f32.mrb[0].mxu0
  %v491 = vadd.f32 0.0, %v490
  %v492 = vpop.f32.mrb[0].mxu0
  %v493 = vpop.f32.mrb[0].mxu0
  %v494 = vadd.f32 0.0, %v493
  %v495 = vpop.f32.mrb[0].mxu0
  %496 = vmatprep.mubr.bf16.mxu0 0
  %497 = vmatmul.mubr.bf16.gmra.mrb[0].mxu0 %v299
  %v498 = vpop.f32.mrb[0].mxu0
  %v499 = vadd.f32 0.0, %v498
  %v500 = vpop.f32.mrb[0].mxu0
  %v501 = vpop.f32.mrb[0].mxu0
  %v502 = vadd.f32 0.0, %v501
  %v503 = vpop.f32.mrb[0].mxu0
  %504 = vmatprep.mubr.bf16.mxu0 0
  %505 = vmatmul.mubr.bf16.gmra.mrb[0].mxu0 %v302
  %v506 = vpop.f32.mrb[0].mxu0
  %v507 = vadd.f32 0.0, %v506
  %v508 = vpop.f32.mrb[0].mxu0
  %v509 = vpop.f32.mrb[0].mxu0
  %v510 = vadd.f32 0.0, %v509
  %v511 = vpop.f32.mrb[0].mxu0
  %512 = vmatprep.mubr.bf16.mxu0 0
  %513 = vmatmul.mubr.bf16.gmra.mrb[0].mxu0 %v305
  %v514 = vpop.f32.mrb[0].mxu0
  %v515 = vadd.f32 0.0, %v514
  %v516 = vpop.f32.mrb[0].mxu0
  %v517 = vpop.f32.mrb[0].mxu0
  %v518 = vadd.f32 0.0, %v517
  %v519 = vpop.f32.mrb[0].mxu0
  %520 = vmatprep.mubr.bf16.mxu0 0
  %521 = vmatmul.mubr.bf16.gmra.mrb[0].mxu0 %v308
  %v522 = vpop.f32.mrb[0].mxu0
  %v523 = vadd.f32 0.0, %v522
  %v524 = vpop.f32.mrb[0].mxu0
  %v525 = vpop.f32.mrb[0].mxu0
  %v526 = vadd.f32 0.0, %v525
  %v527 = vpop.f32.mrb[0].mxu0
  %528 = vmatprep.mubr.bf16.mxu0 0
  %529 = vmatmul.mubr.bf16.gmra.mrb[0].mxu0 %v311
  %v530 = vpop.f32.mrb[0].mxu0
  %v531 = vadd.f32 0.0, %v530
  %v532 = vpop.f32.mrb[0].mxu0
  %v533 = vpop.f32.mrb[0].mxu0
  %v534 = vadd.f32 0.0, %v533
  %v535 = vpop.f32.mrb[0].mxu0
  %536 = vmatprep.mubr.bf16.mxu0 0
  %537 = vmatmul.mubr.bf16.gmra.mrb[0].mxu0 %v314
  %v538 = vpop.f32.mrb[0].mxu0
  %v539 = vadd.f32 0.0, %v538
  %v540 = vpop.f32.mrb[0].mxu0
  %v541 = vpop.f32.mrb[0].mxu0
  %v542 = vadd.f32 0.0, %v541
  %v543 = vpop.f32.mrb[0].mxu0
  %544 = vmatprep.mubr.bf16.mxu0 0
  %545 = vmatmul.mubr.bf16.gmra.mrb[0].mxu0 %v317
  %v546 = vpop.f32.mrb[0].mxu0
  %v547 = vadd.f32 0.0, %v546
  %v548 = vpop.f32.mrb[0].mxu0
  %v549 = vpop.f32.mrb[0].mxu0
  %v550 = vadd.f32 0.0, %v549
  %v551 = vpop.f32.mrb[0].mxu0
  %552 = vmatprep.mubr.bf16.mxu0 0
  %553 = vmatmul.mubr.bf16.gmra.mrb[0].mxu0 %v320
  %v554 = vpop.f32.mrb[0].mxu0
  %v555 = vadd.f32 0.0, %v554
  %v556 = vpop.f32.mrb[0].mxu0
  %v557 = vpop.f32.mrb[0].mxu0
  %v558 = vadd.f32 0.0, %v557
  %v559 = vpop.f32.mrb[0].mxu0
  %560 = vmatprep.mubr.bf16.mxu0 0
  %561 = vmatmul.mubr.bf16.gmra.mrb[0].mxu0 %v323
  %v562 = vpop.f32.mrb[0].mxu0
  %v563 = vadd.f32 0.0, %v562
  %v564 = vpop.f32.mrb[0].mxu0
  %v565 = vpop.f32.mrb[0].mxu0
  %v566 = vadd.f32 0.0, %v565
  %v567 = vpop.f32.mrb[0].mxu0
  %568 = vmatprep.mubr.bf16.mxu0 0
  %569 = vmatmul.mubr.bf16.gmra.mrb[0].mxu0 %v326
  %v570 = vpop.f32.mrb[0].mxu0
  %v571 = vadd.f32 0.0, %v570
  %v572 = vpop.f32.mrb[0].mxu0
  %v573 = vpop.f32.mrb[0].mxu0
  %v574 = vadd.f32 0.0, %v573
  %v575 = vpop.f32.mrb[0].mxu0
  %576 = vmatprep.mubr.bf16.mxu0 0
  %577 = vmatmul.mubr.bf16.gmra.mrb[0].mxu0 %v329
  %v578 = vpop.f32.mrb[0].mxu0
  %v579 = vadd.f32 0.0, %v578
  %v580 = vpop.f32.mrb[0].mxu0
  %v581 = vpop.f32.mrb[0].mxu0
  %v582 = vadd.f32 0.0, %v581
  %v583 = vpop.f32.mrb[0].mxu0
  %584 = vmatprep.mubr.bf16.mxu0 0
  %585 = vmatmul.mubr.bf16.gmra.mrb[0].mxu0 %v332
  %v586 = vpop.f32.mrb[0].mxu0
  %v587 = vadd.f32 0.0, %v586
  %v588 = vpop.f32.mrb[0].mxu0
  %v589 = vpop.f32.mrb[0].mxu0
  %v590 = vadd.f32 0.0, %v589
  %v591 = vpop.f32.mrb[0].mxu0
  %592 = vmatprep.mubr.bf16.mxu0 0
  %593 = vmatmul.mubr.bf16.gmra.mrb[0].mxu0 %v335
  %v594 = vpop.f32.mrb[0].mxu0
  %v595 = vadd.f32 0.0, %v594
  %v596 = vpop.f32.mrb[0].mxu0
  %v597 = vpop.f32.mrb[0].mxu0
  %v598 = vadd.f32 0.0, %v597
  %v599 = vpop.f32.mrb[0].mxu0
  %600 = vmatprep.mubr.bf16.mxu0 0
  %601 = vmatmul.mubr.bf16.gmra.mrb[0].mxu0 %v338
  %v602 = vpop.f32.mrb[0].mxu0
  %v603 = vadd.f32 0.0, %v602
  %v604 = vpop.f32.mrb[0].mxu0
  %v605 = vpop.f32.mrb[0].mxu0
  %v606 = vadd.f32 0.0, %v605
  %v607 = vpop.f32.mrb[0].mxu0
  %608 = vmatprep.mubr.bf16.mxu0 0
  %609 = vmatmul.mubr.bf16.gmra.mrb[0].mxu0 %v341
  %v610 = vpop.f32.mrb[0].mxu0
  %v611 = vadd.f32 0.0, %v610
  %v612 = vpop.f32.mrb[0].mxu0
  %v613 = vpop.f32.mrb[0].mxu0
  %v614 = vadd.f32 0.0, %v613
  %v615 = vpop.f32.mrb[0].mxu0
  %616 = vmatprep.mubr.bf16.mxu0 0
  %617 = vmatmul.mubr.bf16.gmra.mrb[0].mxu0 %v344
  %v618 = vpop.f32.mrb[0].mxu0
  %v619 = vadd.f32 0.0, %v618
  %v620 = vpop.f32.mrb[0].mxu0
  %v621 = vpop.f32.mrb[0].mxu0
  %v622 = vadd.f32 0.0, %v621
  %v623 = vpop.f32.mrb[0].mxu0
  %624 = vmatprep.mubr.bf16.mxu0 0
  %625 = vmatmul.mubr.bf16.gmra.mrb[0].mxu0 %v347
  %v626 = vpop.f32.mrb[0].mxu0
  %v627 = vadd.f32 0.0, %v626
  %v628 = vpop.f32.mrb[0].mxu0
  %v629 = vpop.f32.mrb[0].mxu0
  %v630 = vadd.f32 0.0, %v629
  %v631 = vpop.f32.mrb[0].mxu0
  %632 = vmatprep.mubr.bf16.mxu0 0
  %633 = vmatmul.mubr.bf16.gmra.mrb[0].mxu0 %v350
  %v634 = vpop.f32.mrb[0].mxu0
  %v635 = vadd.f32 0.0, %v634
  %v636 = vpop.f32.mrb[0].mxu0
  %v637 = vpop.f32.mrb[0].mxu0
  %v638 = vadd.f32 0.0, %v637
  %v639 = vpop.f32.mrb[0].mxu0
  %640 = vdwg.mxu0
  %v641 = vmax.f32 %v387, %v451
  %v642 = vmax.f32 %v390, %v454
  %v643 = vmax.f32 %v395, %v459
  %v644 = vmax.f32 %v398, %v462
  %v645 = vmax.f32 %v403, %v467
  %v646 = vmax.f32 %v406, %v470
  %v647 = vmax.f32 %v411, %v475
  %v648 = vmax.f32 %v414, %v478
  %v649 = vmax.f32 %v419, %v483
  %v650 = vmax.f32 %v422, %v486
  %v651 = vmax.f32 %v427, %v491
  %v652 = vmax.f32 %v430, %v494
  %v653 = vmax.f32 %v435, %v499
  %v654 = vmax.f32 %v438, %v502
  %v655 = vmax.f32 %v443, %v507
  %v656 = vmax.f32 %v446, %v510
  %v657 = vmax.f32 %v641, %v515
  %v658 = vmax.f32 %v642, %v518
  %v659 = vmax.f32 %v643, %v523
  %v660 = vmax.f32 %v644, %v526
  %v661 = vmax.f32 %v645, %v531
  %v662 = vmax.f32 %v646, %v534
  %v663 = vmax.f32 %v647, %v539
  %v664 = vmax.f32 %v648, %v542
  %v665 = vmax.f32 %v649, %v547
  %v666 = vmax.f32 %v650, %v550
  %v667 = vmax.f32 %v651, %v555
  %v668 = vmax.f32 %v652, %v558
  %v669 = vmax.f32 %v653, %v563
  %v670 = vmax.f32 %v654, %v566
  %v671 = vmax.f32 %v655, %v571
  %v672 = vmax.f32 %v656, %v574
  %v673 = vmax.f32 %v657, %v579
  %v674 = vmax.f32 %v658, %v582
  %v675 = vmax.f32 %v659, %v587
  %v676 = vmax.f32 %v660, %v590
  %v677 = vmax.f32 %v661, %v595
  %v678 = vmax.f32 %v662, %v598
  %v679 = vmax.f32 %v663, %v603
  %v680 = vmax.f32 %v664, %v606
  %v681 = vmax.f32 %v665, %v611
  %v682 = vmax.f32 %v666, %v614
  %v683 = vmax.f32 %v667, %v619
  %v684 = vmax.f32 %v668, %v622
  %v685 = vmax.f32 %v669, %v627
  %v686 = vmax.f32 %v670, %v630
  %v687 = vmax.f32 %v671, %v635
  %v688 = vmax.f32 %v672, %v638
  %v689 = vld [vmem:[%s2] sm:$0x1]
  %v691 = vlaneseq
  %v692 = vshrl.u32 %v691, 7
  %v693 = vsub.s32 0, %v692
  %v694 = vrot.slane %v689, %v693
  %v696 = vadd.f32 %v673, %v694
  %v697 = vadd.f32 %v674, %v694
  %v698 = vadd.f32 %v675, %v694
  %v699 = vadd.f32 %v676, %v694
  %v700 = vadd.f32 %v677, %v694
  %v701 = vadd.f32 %v678, %v694
  %v702 = vadd.f32 %v679, %v694
  %v703 = vadd.f32 %v680, %v694
  %v704 = vadd.f32 %v681, %v694
  %v705 = vadd.f32 %v682, %v694
  %v706 = vadd.f32 %v683, %v694
  %v707 = vadd.f32 %v684, %v694
  %v708 = vadd.f32 %v685, %v694
  %v709 = vadd.f32 %v686, %v694
  %v710 = vadd.f32 %v687, %v694
  %v711 = vadd.f32 %v688, %v694
  %v712 = vmax.f32 %v696, 0.0
  %v713 = vmax.f32 %v697, 0.0
  %v714 = vmax.f32 %v698, 0.0
  %v715 = vmax.f32 %v699, 0.0
  %v716 = vmax.f32 %v700, 0.0
  %v717 = vmax.f32 %v701, 0.0
  %v718 = vmax.f32 %v702, 0.0
  %v719 = vmax.f32 %v703, 0.0
  %v720 = vmax.f32 %v704, 0.0
  %v721 = vmax.f32 %v705, 0.0
  %v722 = vmax.f32 %v706, 0.0
  %v723 = vmax.f32 %v707, 0.0
  %v724 = vmax.f32 %v708, 0.0
  %v725 = vmax.f32 %v709, 0.0
  %v726 = vmax.f32 %v710, 0.0
  %v727 = vmax.f32 %v711, 0.0
  %v728 = vpack.c.bf16 %v713, %v712
  %v729 = vpack.c.bf16 %v715, %v714
  %v730 = vpack.c.bf16 %v717, %v716
  %v731 = vpack.c.bf16 %v719, %v718
  %v732 = vpack.c.bf16 %v721, %v720
  %v733 = vpack.c.bf16 %v723, %v722
  %v734 = vpack.c.bf16 %v725, %v724
  %v735 = vpack.c.bf16 %v727, %v726
  %v744 = vunpack.c.l.b16 %v728
  %v745 = vunpack.c.h.b16 %v728
  %v746 = vunpack.c.l.b16 %v729
  %v747 = vunpack.c.h.b16 %v729
  %v748 = vunpack.c.l.b16 %v730
  %v749 = vunpack.c.h.b16 %v730
  %v750 = vunpack.c.l.b16 %v731
  %v751 = vunpack.c.h.b16 %v731
  %v752 = vunpack.c.l.b16 %v732
  %v753 = vunpack.c.h.b16 %v732
  %v754 = vunpack.c.l.b16 %v733
  %v755 = vunpack.c.h.b16 %v733
  %v756 = vunpack.c.l.b16 %v734
  %v757 = vunpack.c.h.b16 %v734
  %v758 = vunpack.c.l.b16 %v735
  %v759 = vunpack.c.h.b16 %v735
  %v760 = vpack.c.b16 %v744, %v744
  %v761 = vpack.c.b16 %v745, %v745
  %v762 = vpack.c.b16 %v746, %v746
  %v763 = vpack.c.b16 %v747, %v747
  %v764 = vpack.c.b16 %v748, %v748
  %v765 = vpack.c.b16 %v749, %v749
  %v766 = vpack.c.b16 %v750, %v750
  %v767 = vpack.c.b16 %v751, %v751
  %v768 = vpack.c.b16 %v752, %v752
  %v769 = vpack.c.b16 %v753, %v753
  %v770 = vpack.c.b16 %v754, %v754
  %v771 = vpack.c.b16 %v755, %v755
  %v772 = vpack.c.b16 %v756, %v756
  %v773 = vpack.c.b16 %v757, %v757
  %v774 = vpack.c.b16 %v758, %v758
  %v775 = vpack.c.b16 %v759, %v759
  %vm792 = vcmask 519168
  %793 = vst.msk [vmem:[%s3] sm:$0xf] %vm792, %v760
  %794 = vst.msk [vmem:[%s3 + $0x4] sm:$0xf] %vm792, %v761
  %795 = vst.msk [vmem:[%s3 + $0x8] sm:$0xf] %vm792, %v762
  %796 = vst.msk [vmem:[%s3 + $0xc] sm:$0xf] %vm792, %v763
  %797 = vst.msk [vmem:[%s3 + $0x10] sm:$0xf] %vm792, %v764
  %798 = vst.msk [vmem:[%s3 + $0x14] sm:$0xf] %vm792, %v765
  %799 = vst.msk [vmem:[%s3 + $0x18] sm:$0xf] %vm792, %v766
  %800 = vst.msk [vmem:[%s3 + $0x1c] sm:$0xf] %vm792, %v767
  %801 = vst.msk [vmem:[%s3 + $0x20] sm:$0xf] %vm792, %v768
  %802 = vst.msk [vmem:[%s3 + $0x24] sm:$0xf] %vm792, %v769
  %803 = vst.msk [vmem:[%s3 + $0x28] sm:$0xf] %vm792, %v770
  %804 = vst.msk [vmem:[%s3 + $0x2c] sm:$0xf] %vm792, %v771
  %805 = vst.msk [vmem:[%s3 + $0x30] sm:$0xf] %vm792, %v772
  %806 = vst.msk [vmem:[%s3 + $0x34] sm:$0xf] %vm792, %v773
  %807 = vst.msk [vmem:[%s3 + $0x38] sm:$0xf] %vm792, %v774
  %808 = vst.msk [vmem:[%s3 + $0x3c] sm:$0xf] %vm792, %v775
  // Predicated region
  $region14: #{_stage1.4} parent=0 // pred_check
    _
  $region15: #{_stage1.4} parent=0 // pred_check_branch
    %810 = sbr.rel (0) target = $region17
  $region16: #{_stage1.4} parent=0 // pred_region
    _
  $region17: #{_stage1.4} parent=0 // pred_fallthru
    _
  // Predicated region
  $region18: #{_stage1.4} parent=0 // pred_check
    _
  $region19: #{_stage1.4} parent=0 // pred_check_branch
    %812 = sbr.rel (0) target = $region21
  $region20: #{_stage1.4} parent=0 // pred_region
    _
  $region21: #{_stage1.4} parent=0 // pred_fallthru
    _

// kernel: _stage1.5
$region0: #{_stage1.5}
  #allocation0 [shape = 'u32[]', space=smem, size = 0x4, offset = 0x4, fixed_abs, tag = 'smem constant byte address 0x4 - core index']
  #allocation1 [shape = 'u32[144,128]{1,0:T(1,128)}', space=vmem, size = 0x12000, scoped, tag = 'internal scratch']
  %s0 = inlined_call_operand.vmem [shape: bf16[128,576], index: 0, kind: input, shape index: {}]
  %s1 = inlined_call_operand.vmem [shape: bf16[576,256], index: 1, kind: input, shape index: {}]
  %s2 = inlined_call_operand.vmem [shape: f32[1,256], index: 2, kind: input, shape index: {}]
  %s3 = inlined_call_operand.vmem [shape: bf16[32,256], index: 3, kind: output, shape index: {}]
  %s4 = sld [smem:[#allocation0]]
  $region123: #{_stage1.5} parent=0
    _
  %s6 = ssub.s32 1, %s4
  %s7 = scalar_select 0, %s6, %s4
  $region1: #{_stage1.5} parent=0
    #allocation2 [shape = 'u8[294912]{0}', space=vmem, size = 0x48000, scoped, tag = 'input window, operand 1']
    #allocation3 [shape = 'u8[16384]{0}', space=vmem, size = 0x4000, scoped, tag = 'output window, operand 0']
    loop: start=0, step=1, limit=4
    $region2: #{_stage1.5} parent=1 // loop_pre_header
      _
    $region3: #{_stage1.5} parent=1 // loop_header
      %s9 = sphi 0, %s13
      %p10 = scmp.ge.s32.totalorder %s9, 4
      %s17 = sphi 0, %s17
      %s19 = sphi 0, %s17
      %s20 = sphi 0, %s19
      %s34 = sphi 0, %s20
      %s40 = sphi 0, %s42
      %s43 = sphi 0, %s40
      %s44 = sphi 0, %s43
      %s60 = sphi 0, %s44
      %s66 = sphi 0, %s68
      %s69 = sphi 0, %s66
      %s70 = sphi 0, %s69
      %s86 = sphi 0, %s70
      %s92 = sphi 0, %s94
      %s95 = sphi 0, %s92
      %s96 = sphi 0, %s95
      %s112 = sphi 0, %s96
    $region4: #{_stage1.5} parent=1 // loop_header_branch
      %12 = sbr.rel (%p10) target = $region8
    $region5: #{_stage1.5} parent=1 // loop_body
      %s14 = ssub.s32 %s9, 1
      %s15 = ssub.s32 %s9, 2
      %s16 = sadd.s32 %s9, 1
      %s18 = sadd.s32 %s17, 1
      %p21 = scmp.eq.s32.totalorder %s9, 1
      %p22 = scmp.ne.s32.totalorder %s17, %s19
      %p23 = scmp.eq.s32.totalorder %s9, 0
      %p24 = por %p22, %p23
      %p25 = scmp.ne.s32.totalorder %s17, %s19
      %p26 = scmp.eq.s32.totalorder %s14, 1
      %p27 = por %p25, %p26
      %p28 = scmp.ne.s32.totalorder %s19, %s20
      %p29 = scmp.eq.s32.totalorder %s14, 0
      %p30 = por %p28, %p29
      %p31 = scmp.ne.s32.totalorder %s19, %s20
      %p32 = scmp.eq.s32.totalorder %s15, 1
      %p33 = por %p31, %p32
      %p35 = scmp.ne.s32.totalorder %s20, %s34
      %p36 = scmp.eq.s32.totalorder %s15, 0
      %p37 = por %p35, %p36
      %s38 = ssub.s32 %s9, %s16
      %p39 = scmp.eq.s32.totalorder %s38, 0
      %s41 = sadd.s32 %s40, 1
      %s42 = scalar_select %p39, %s40, %s41
      %p45 = pneg %p39
      %p46 = scmp.eq.s32.totalorder %s9, 1
      %p47 = por %p45, %p46
      %p48 = scmp.ne.s32.totalorder %s40, %s43
      %p49 = scmp.eq.s32.totalorder %s9, 0
      %p50 = por %p48, %p49
      %p51 = scmp.ne.s32.totalorder %s40, %s43
      %p52 = scmp.eq.s32.totalorder %s14, 1
      %p53 = por %p51, %p52
      %p54 = scmp.ne.s32.totalorder %s43, %s44
      %p55 = scmp.eq.s32.totalorder %s14, 0
      %p56 = por %p54, %p55
      %p57 = scmp.ne.s32.totalorder %s43, %s44
      %p58 = scmp.eq.s32.totalorder %s15, 1
      %p59 = por %p57, %p58
      %p61 = scmp.ne.s32.totalorder %s44, %s60
      %p62 = scmp.eq.s32.totalorder %s15, 0
      %p63 = por %p61, %p62
      %s64 = ssub.s32 %s9, %s16
      %p65 = scmp.eq.s32.totalorder %s64, 0
      %s67 = sadd.s32 %s66, 1
      %s68 = scalar_select %p65, %s66, %s67
      %p71 = pneg %p65
      %p72 = scmp.eq.s32.totalorder %s9, 1
      %p73 = por %p71, %p72
      %p74 = scmp.ne.s32.totalorder %s66, %s69
      %p75 = scmp.eq.s32.totalorder %s9, 0
      %p76 = por %p74, %p75
      %p77 = scmp.ne.s32.totalorder %s66, %s69
      %p78 = scmp.eq.s32.totalorder %s14, 1
      %p79 = por %p77, %p78
      %p80 = scmp.ne.s32.totalorder %s69, %s70
      %p81 = scmp.eq.s32.totalorder %s14, 0
      %p82 = por %p80, %p81
      %p83 = scmp.ne.s32.totalorder %s69, %s70
      %p84 = scmp.eq.s32.totalorder %s15, 1
      %p85 = por %p83, %p84
      %p87 = scmp.ne.s32.totalorder %s70, %s86
      %p88 = scmp.eq.s32.totalorder %s15, 0
      %p89 = por %p87, %p88
      %s90 = ssub.s32 %s9, %s16
      %p91 = scmp.eq.s32.totalorder %s90, 0
      %s93 = sadd.s32 %s92, 1
      %s94 = scalar_select %p91, %s92, %s93
      %p97 = pneg %p91
      %p98 = scmp.eq.s32.totalorder %s9, 1
      %p99 = por %p97, %p98
      %p100 = scmp.ne.s32.totalorder %s92, %s95
      %p101 = scmp.eq.s32.totalorder %s9, 0
      %p102 = por %p100, %p101
      %p103 = scmp.ne.s32.totalorder %s92, %s95
      %p104 = scmp.eq.s32.totalorder %s14, 1
      %p105 = por %p103, %p104
      %p106 = scmp.ne.s32.totalorder %s95, %s96
      %p107 = scmp.eq.s32.totalorder %s14, 0
      %p108 = por %p106, %p107
      %p109 = scmp.ne.s32.totalorder %s95, %s96
      %p110 = scmp.eq.s32.totalorder %s15, 1
      %p111 = por %p109, %p110
      %p113 = scmp.ne.s32.totalorder %s96, %s112
      %p114 = scmp.eq.s32.totalorder %s15, 0
      %p115 = por %p113, %p114
      %p116 = scmp.le.s32.totalorder 1, %s9
      %p117 = scmp.lt.s32.totalorder %s9, 3
      %p118 = pnand %p116, %p117
      %p119 = pneg %p118
      // Predicated region
      $region9: #{_stage1.5} parent=5 // pred_check
        _
      $region10: #{_stage1.5} parent=5 // pred_check_branch
        %121 = sbr.rel (%p118) target = $region12
      $region11: #{_stage1.5} parent=5 // pred_region
        %s122 = ssub.s32 %s9, 1
        // Predicated region
        $region13: #{_stage1.5} parent=11 // pred_check
          %p123 = pneg %p30
        $region14: #{_stage1.5} parent=11 // pred_check_branch
          %125 = sbr.rel (%p123) target = $region16
        $region15: #{_stage1.5} parent=11 // pred_region
          _
        $region16: #{_stage1.5} parent=11 // pred_fallthru
          _
      $region12: #{_stage1.5} parent=5 // pred_fallthru
        _
      %p126 = scmp.lt.s32.totalorder %s9, 2
      // Predicated region
      $region17: #{_stage1.5} parent=5 // pred_check
        %p127 = pneg %p126
      $region18: #{_stage1.5} parent=5 // pred_check_branch
        %129 = sbr.rel (%p127) target = $region20
      $region19: #{_stage1.5} parent=5 // pred_region
        // Predicated region
        $region21: #{_stage1.5} parent=19 // pred_check
          %p130 = pneg %p50
        $region22: #{_stage1.5} parent=19 // pred_check_branch
          %132 = sbr.rel (%p130) target = $region24
        $region23: #{_stage1.5} parent=19 // pred_region
          %s133 = sand.u32 %s40, 1
          %s134 = sand.u32 %s40, 1
          %s135 = smul.addr %s134, 288
          %s136 = scalar_lea.vmem [#allocation2], %s135
          %s137 = smul.addr %s9, 4
          %s138 = scalar_lea.vmem %s1, %s137
          // Predicated region
          $region25: #{_stage1.5} parent=23 // pred_check
            _
          $region26: #{_stage1.5} parent=23 // pred_check_branch
            %140 = sbr.rel (0) target = $region28
          $region27: #{_stage1.5} parent=23 // pred_region
            // Predicated region
            $region29: #{_stage1.5} parent=27 // pred_check
              _
            $region30: #{_stage1.5} parent=27 // pred_check_branch
              %142 = sbr.rel target = $region32
            $region31: #{_stage1.5} parent=27 // pred_region
              // Predicated region
              $region44: #{_stage1.5} parent=31 // pred_check
                _
              $region45: #{_stage1.5} parent=31 // pred_check_branch
                %299 = sbr.rel (0) target = $region47
              $region46: #{_stage1.5} parent=31 // pred_region
                loop: start=0, step=1, limit=1
                $region48: #{_stage1.5} parent=46 // loop_pre_header
                  _
                $region49: #{_stage1.5} parent=46 // loop_header
                  %s301 = sphi 0, %s305
                  %p302 = scmp.ge.s32.totalorder %s301, 1
                  %s306 = sphi %s138, %s138
                  %s307 = sphi %s136, %s136
                $region50: #{_stage1.5} parent=46 // loop_header_branch
                  %304 = sbr.rel (%p302) target = $region54
                $region51: #{_stage1.5} parent=46 // loop_body
                  _
                $region52: #{_stage1.5} parent=46 // loop_footer
                  %s305 = sadd.s32 1, %s301
                $region53: #{_stage1.5} parent=46 // loop_footer_branch
                  %300 = sbr.rel target = $region49
                $region54: #{_stage1.5} parent=46 // loop_exit
                  _
                loop: start=0, step=1, limit=1
                $region55: #{_stage1.5} parent=46 // loop_pre_header
                  _
                $region56: #{_stage1.5} parent=46 // loop_header
                  %s310 = sphi 0, %s314
                  %p311 = scmp.ge.s32.totalorder %s310, 1
                  %s315 = sphi %s138, %s138
                  %s316 = sphi %s136, %s136
                $region57: #{_stage1.5} parent=46 // loop_header_branch
                  %313 = sbr.rel (%p311) target = $region61
                $region58: #{_stage1.5} parent=46 // loop_body
                  %v317 = vld [vmem:[%s315] sm:$0xf]
                  %318 = vst [vmem:[%s316] sm:$0xf] %v317
                  %v319 = vld [vmem:[%s315 + $0x8] sm:$0xf]
                  %320 = vst [vmem:[%s316 + $0x4] sm:$0xf] %v319
                  %v321 = vld [vmem:[%s315 + $0x10] sm:$0xf]
                  %322 = vst [vmem:[%s316 + $0x8] sm:$0xf] %v321
                  %v323 = vld [vmem:[%s315 + $0x18] sm:$0xf]
                  %324 = vst [vmem:[%s316 + $0xc] sm:$0xf] %v323
                  %v325 = vld [vmem:[%s315 + $0x20] sm:$0xf]
                  %326 = vst [vmem:[%s316 + $0x10] sm:$0xf] %v325
                  %v327 = vld [vmem:[%s315 + $0x28] sm:$0xf]
                  %328 = vst [vmem:[%s316 + $0x14] sm:$0xf] %v327
                  %v329 = vld [vmem:[%s315 + $0x30] sm:$0xf]
                  %330 = vst [vmem:[%s316 + $0x18] sm:$0xf] %v329
                  %v331 = vld [vmem:[%s315 + $0x38] sm:$0xf]
                  %332 = vst [vmem:[%s316 + $0x1c] sm:$0xf] %v331
                  %v333 = vld [vmem:[%s315 + $0x40] sm:$0xf]
                  %334 = vst [vmem:[%s316 + $0x20] sm:$0xf] %v333
                  %v335 = vld [vmem:[%s315 + $0x48] sm:$0xf]
                  %336 = vst [vmem:[%s316 + $0x24] sm:$0xf] %v335
                  %v337 = vld [vmem:[%s315 + $0x50] sm:$0xf]
                  %338 = vst [vmem:[%s316 + $0x28] sm:$0xf] %v337
                  %v339 = vld [vmem:[%s315 + $0x58] sm:$0xf]
                  %340 = vst [vmem:[%s316 + $0x2c] sm:$0xf] %v339
                  %v341 = vld [vmem:[%s315 + $0x60] sm:$0xf]
                  %342 = vst [vmem:[%s316 + $0x30] sm:$0xf] %v341
                  %v343 = vld [vmem:[%s315 + $0x68] sm:$0xf]
                  %344 = vst [vmem:[%s316 + $0x34] sm:$0xf] %v343
                  %v345 = vld [vmem:[%s315 + $0x70] sm:$0xf]
                  %346 = vst [vmem:[%s316 + $0x38] sm:$0xf] %v345
                  %v347 = vld [vmem:[%s315 + $0x78] sm:$0xf]
                  %348 = vst [vmem:[%s316 + $0x3c] sm:$0xf] %v347
                  %v349 = vld [vmem:[%s315 + $0x80] sm:$0xf]
                  %350 = vst [vmem:[%s316 + $0x40] sm:$0xf] %v349
                  %v351 = vld [vmem:[%s315 + $0x88] sm:$0xf]
                  %352 = vst [vmem:[%s316 + $0x44] sm:$0xf] %v351
                  %v353 = vld [vmem:[%s315 + $0x90] sm:$0xf]
                  %354 = vst [vmem:[%s316 + $0x48] sm:$0xf] %v353
                  %v355 = vld [vmem:[%s315 + $0x98] sm:$0xf]
                  %356 = vst [vmem:[%s316 + $0x4c] sm:$0xf] %v355
                  %v357 = vld [vmem:[%s315 + $0xa0] sm:$0xf]
                  %358 = vst [vmem:[%s316 + $0x50] sm:$0xf] %v357
                  %v359 = vld [vmem:[%s315 + $0xa8] sm:$0xf]
                  %360 = vst [vmem:[%s316 + $0x54] sm:$0xf] %v359
                  %v361 = vld [vmem:[%s315 + $0xb0] sm:$0xf]
                  %362 = vst [vmem:[%s316 + $0x58] sm:$0xf] %v361
                  %v363 = vld [vmem:[%s315 + $0xb8] sm:$0xf]
                  %364 = vst [vmem:[%s316 + $0x5c] sm:$0xf] %v363
                  %v365 = vld [vmem:[%s315 + $0xc0] sm:$0xf]
                  %366 = vst [vmem:[%s316 + $0x60] sm:$0xf] %v365
                  %v367 = vld [vmem:[%s315 + $0xc8] sm:$0xf]
                  %368 = vst [vmem:[%s316 + $0x64] sm:$0xf] %v367
                  %v369 = vld [vmem:[%s315 + $0xd0] sm:$0xf]
                  %370 = vst [vmem:[%s316 + $0x68] sm:$0xf] %v369
                  %v371 = vld [vmem:[%s315 + $0xd8] sm:$0xf]
                  %372 = vst [vmem:[%s316 + $0x6c] sm:$0xf] %v371
                  %v373 = vld [vmem:[%s315 + $0xe0] sm:$0xf]
                  %374 = vst [vmem:[%s316 + $0x70] sm:$0xf] %v373
                  %v375 = vld [vmem:[%s315 + $0xe8] sm:$0xf]
                  %376 = vst [vmem:[%s316 + $0x74] sm:$0xf] %v375
                  %v377 = vld [vmem:[%s315 + $0xf0] sm:$0xf]
                  %378 = vst [vmem:[%s316 + $0x78] sm:$0xf] %v377
                  %v379 = vld [vmem:[%s315 + $0xf8] sm:$0xf]
                  %380 = vst [vmem:[%s316 + $0x7c] sm:$0xf] %v379
                  %v381 = vld [vmem:[%s315 + $0x100] sm:$0xf]
                  %382 = vst [vmem:[%s316 + $0x80] sm:$0xf] %v381
                  %v383 = vld [vmem:[%s315 + $0x108] sm:$0xf]
                  %384 = vst [vmem:[%s316 + $0x84] sm:$0xf] %v383
                  %v385 = vld [vmem:[%s315 + $0x110] sm:$0xf]
                  %386 = vst [vmem:[%s316 + $0x88] sm:$0xf] %v385
                  %v387 = vld [vmem:[%s315 + $0x118] sm:$0xf]
                  %388 = vst [vmem:[%s316 + $0x8c] sm:$0xf] %v387
                  %v389 = vld [vmem:[%s315 + $0x120] sm:$0xf]
                  %390 = vst [vmem:[%s316 + $0x90] sm:$0xf] %v389
                  %v391 = vld [vmem:[%s315 + $0x128] sm:$0xf]
                  %392 = vst [vmem:[%s316 + $0x94] sm:$0xf] %v391
                  %v393 = vld [vmem:[%s315 + $0x130] sm:$0xf]
                  %394 = vst [vmem:[%s316 + $0x98] sm:$0xf] %v393
                  %v395 = vld [vmem:[%s315 + $0x138] sm:$0xf]
                  %396 = vst [vmem:[%s316 + $0x9c] sm:$0xf] %v395
                  %v397 = vld [vmem:[%s315 + $0x140] sm:$0xf]
                  %398 = vst [vmem:[%s316 + $0xa0] sm:$0xf] %v397
                  %v399 = vld [vmem:[%s315 + $0x148] sm:$0xf]
                  %400 = vst [vmem:[%s316 + $0xa4] sm:$0xf] %v399
                  %v401 = vld [vmem:[%s315 + $0x150] sm:$0xf]
                  %402 = vst [vmem:[%s316 + $0xa8] sm:$0xf] %v401
                  %v403 = vld [vmem:[%s315 + $0x158] sm:$0xf]
                  %404 = vst [vmem:[%s316 + $0xac] sm:$0xf] %v403
                  %v405 = vld [vmem:[%s315 + $0x160] sm:$0xf]
                  %406 = vst [vmem:[%s316 + $0xb0] sm:$0xf] %v405
                  %v407 = vld [vmem:[%s315 + $0x168] sm:$0xf]
                  %408 = vst [vmem:[%s316 + $0xb4] sm:$0xf] %v407
                  %v409 = vld [vmem:[%s315 + $0x170] sm:$0xf]
                  %410 = vst [vmem:[%s316 + $0xb8] sm:$0xf] %v409
                  %v411 = vld [vmem:[%s315 + $0x178] sm:$0xf]
                  %412 = vst [vmem:[%s316 + $0xbc] sm:$0xf] %v411
                  %v413 = vld [vmem:[%s315 + $0x180] sm:$0xf]
                  %414 = vst [vmem:[%s316 + $0xc0] sm:$0xf] %v413
                  %v415 = vld [vmem:[%s315 + $0x188] sm:$0xf]
                  %416 = vst [vmem:[%s316 + $0xc4] sm:$0xf] %v415
                  %v417 = vld [vmem:[%s315 + $0x190] sm:$0xf]
                  %418 = vst [vmem:[%s316 + $0xc8] sm:$0xf] %v417
                  %v419 = vld [vmem:[%s315 + $0x198] sm:$0xf]
                  %420 = vst [vmem:[%s316 + $0xcc] sm:$0xf] %v419
                  %v421 = vld [vmem:[%s315 + $0x1a0] sm:$0xf]
                  %422 = vst [vmem:[%s316 + $0xd0] sm:$0xf] %v421
                  %v423 = vld [vmem:[%s315 + $0x1a8] sm:$0xf]
                  %424 = vst [vmem:[%s316 + $0xd4] sm:$0xf] %v423
                  %v425 = vld [vmem:[%s315 + $0x1b0] sm:$0xf]
                  %426 = vst [vmem:[%s316 + $0xd8] sm:$0xf] %v425
                  %v427 = vld [vmem:[%s315 + $0x1b8] sm:$0xf]
                  %428 = vst [vmem:[%s316 + $0xdc] sm:$0xf] %v427
                  %v429 = vld [vmem:[%s315 + $0x1c0] sm:$0xf]
                  %430 = vst [vmem:[%s316 + $0xe0] sm:$0xf] %v429
                  %v431 = vld [vmem:[%s315 + $0x1c8] sm:$0xf]
                  %432 = vst [vmem:[%s316 + $0xe4] sm:$0xf] %v431
                  %v433 = vld [vmem:[%s315 + $0x1d0] sm:$0xf]
                  %434 = vst [vmem:[%s316 + $0xe8] sm:$0xf] %v433
                  %v435 = vld [vmem:[%s315 + $0x1d8] sm:$0xf]
                  %436 = vst [vmem:[%s316 + $0xec] sm:$0xf] %v435
                  %v437 = vld [vmem:[%s315 + $0x1e0] sm:$0xf]
                  %438 = vst [vmem:[%s316 + $0xf0] sm:$0xf] %v437
                  %v439 = vld [vmem:[%s315 + $0x1e8] sm:$0xf]
                  %440 = vst [vmem:[%s316 + $0xf4] sm:$0xf] %v439
                  %v441 = vld [vmem:[%s315 + $0x1f0] sm:$0xf]
                  %442 = vst [vmem:[%s316 + $0xf8] sm:$0xf] %v441
                  %v443 = vld [vmem:[%s315 + $0x1f8] sm:$0xf]
                  %444 = vst [vmem:[%s316 + $0xfc] sm:$0xf] %v443
                  %v445 = vld [vmem:[%s315 + $0x200] sm:$0xf]
                  %446 = vst [vmem:[%s316 + $0x100] sm:$0xf] %v445
                  %v447 = vld [vmem:[%s315 + $0x208] sm:$0xf]
                  %448 = vst [vmem:[%s316 + $0x104] sm:$0xf] %v447
                  %v449 = vld [vmem:[%s315 + $0x210] sm:$0xf]
                  %450 = vst [vmem:[%s316 + $0x108] sm:$0xf] %v449
                  %v451 = vld [vmem:[%s315 + $0x218] sm:$0xf]
                  %452 = vst [vmem:[%s316 + $0x10c] sm:$0xf] %v451
                  %v453 = vld [vmem:[%s315 + $0x220] sm:$0xf]
                  %454 = vst [vmem:[%s316 + $0x110] sm:$0xf] %v453
                  %v455 = vld [vmem:[%s315 + $0x228] sm:$0xf]
                  %456 = vst [vmem:[%s316 + $0x114] sm:$0xf] %v455
                  %v457 = vld [vmem:[%s315 + $0x230] sm:$0xf]
                  %458 = vst [vmem:[%s316 + $0x118] sm:$0xf] %v457
                  %v459 = vld [vmem:[%s315 + $0x238] sm:$0xf]
                  %460 = vst [vmem:[%s316 + $0x11c] sm:$0xf] %v459
                $region59: #{_stage1.5} parent=46 // loop_footer
                  %s314 = sadd.s32 1, %s310
                $region60: #{_stage1.5} parent=46 // loop_footer_branch
                  %309 = sbr.rel target = $region56
                $region61: #{_stage1.5} parent=46 // loop_exit
                  _
              $region47: #{_stage1.5} parent=31 // pred_fallthru
                _
            $region32: #{_stage1.5} parent=27 // pred_fallthru
              _
            // Predicated region
            $region33: #{_stage1.5} parent=27 // pred_check
              _
            $region34: #{_stage1.5} parent=27 // pred_check_branch
              %144 = sbr.rel (0) target = $region36
            $region35: #{_stage1.5} parent=27 // pred_region
              loop: start=0, step=1, limit=1
              $region37: #{_stage1.5} parent=35 // loop_pre_header
                _
              $region38: #{_stage1.5} parent=35 // loop_header
                %s147 = sphi 0, %s151
                %p148 = scmp.ge.s32.totalorder %s147, 1
                %s152 = sphi %s138, %s138
                %s153 = sphi %s136, %s136
              $region39: #{_stage1.5} parent=35 // loop_header_branch
                %150 = sbr.rel (%p148) target = $region43
              $region40: #{_stage1.5} parent=35 // loop_body
                %v154 = vld [vmem:[%s152] sm:$0xf]
                %155 = vst [vmem:[%s153] sm:$0xf] %v154
                %v156 = vld [vmem:[%s152 + $0x8] sm:$0xf]
                %157 = vst [vmem:[%s153 + $0x4] sm:$0xf] %v156
                %v158 = vld [vmem:[%s152 + $0x10] sm:$0xf]
                %159 = vst [vmem:[%s153 + $0x8] sm:$0xf] %v158
                %v160 = vld [vmem:[%s152 + $0x18] sm:$0xf]
                %161 = vst [vmem:[%s153 + $0xc] sm:$0xf] %v160
                %v162 = vld [vmem:[%s152 + $0x20] sm:$0xf]
                %163 = vst [vmem:[%s153 + $0x10] sm:$0xf] %v162
                %v164 = vld [vmem:[%s152 + $0x28] sm:$0xf]
                %165 = vst [vmem:[%s153 + $0x14] sm:$0xf] %v164
                %v166 = vld [vmem:[%s152 + $0x30] sm:$0xf]
                %167 = vst [vmem:[%s153 + $0x18] sm:$0xf] %v166
                %v168 = vld [vmem:[%s152 + $0x38] sm:$0xf]
                %169 = vst [vmem:[%s153 + $0x1c] sm:$0xf] %v168
                %v170 = vld [vmem:[%s152 + $0x40] sm:$0xf]
                %171 = vst [vmem:[%s153 + $0x20] sm:$0xf] %v170
                %v172 = vld [vmem:[%s152 + $0x48] sm:$0xf]
                %173 = vst [vmem:[%s153 + $0x24] sm:$0xf] %v172
                %v174 = vld [vmem:[%s152 + $0x50] sm:$0xf]
                %175 = vst [vmem:[%s153 + $0x28] sm:$0xf] %v174
                %v176 = vld [vmem:[%s152 + $0x58] sm:$0xf]
                %177 = vst [vmem:[%s153 + $0x2c] sm:$0xf] %v176
                %v178 = vld [vmem:[%s152 + $0x60] sm:$0xf]
                %179 = vst [vmem:[%s153 + $0x30] sm:$0xf] %v178
                %v180 = vld [vmem:[%s152 + $0x68] sm:$0xf]
                %181 = vst [vmem:[%s153 + $0x34] sm:$0xf] %v180
                %v182 = vld [vmem:[%s152 + $0x70] sm:$0xf]
                %183 = vst [vmem:[%s153 + $0x38] sm:$0xf] %v182
                %v184 = vld [vmem:[%s152 + $0x78] sm:$0xf]
                %185 = vst [vmem:[%s153 + $0x3c] sm:$0xf] %v184
                %v186 = vld [vmem:[%s152 + $0x80] sm:$0xf]
                %187 = vst [vmem:[%s153 + $0x40] sm:$0xf] %v186
                %v188 = vld [vmem:[%s152 + $0x88] sm:$0xf]
                %189 = vst [vmem:[%s153 + $0x44] sm:$0xf] %v188
                %v190 = vld [vmem:[%s152 + $0x90] sm:$0xf]
                %191 = vst [vmem:[%s153 + $0x48] sm:$0xf] %v190
                %v192 = vld [vmem:[%s152 + $0x98] sm:$0xf]
                %193 = vst [vmem:[%s153 + $0x4c] sm:$0xf] %v192
                %v194 = vld [vmem:[%s152 + $0xa0] sm:$0xf]
                %195 = vst [vmem:[%s153 + $0x50] sm:$0xf] %v194
                %v196 = vld [vmem:[%s152 + $0xa8] sm:$0xf]
                %197 = vst [vmem:[%s153 + $0x54] sm:$0xf] %v196
                %v198 = vld [vmem:[%s152 + $0xb0] sm:$0xf]
                %199 = vst [vmem:[%s153 + $0x58] sm:$0xf] %v198
                %v200 = vld [vmem:[%s152 + $0xb8] sm:$0xf]
                %201 = vst [vmem:[%s153 + $0x5c] sm:$0xf] %v200
                %v202 = vld [vmem:[%s152 + $0xc0] sm:$0xf]
                %203 = vst [vmem:[%s153 + $0x60] sm:$0xf] %v202
                %v204 = vld [vmem:[%s152 + $0xc8] sm:$0xf]
                %205 = vst [vmem:[%s153 + $0x64] sm:$0xf] %v204
                %v206 = vld [vmem:[%s152 + $0xd0] sm:$0xf]
                %207 = vst [vmem:[%s153 + $0x68] sm:$0xf] %v206
                %v208 = vld [vmem:[%s152 + $0xd8] sm:$0xf]
                %209 = vst [vmem:[%s153 + $0x6c] sm:$0xf] %v208
                %v210 = vld [vmem:[%s152 + $0xe0] sm:$0xf]
                %211 = vst [vmem:[%s153 + $0x70] sm:$0xf] %v210
                %v212 = vld [vmem:[%s152 + $0xe8] sm:$0xf]
                %213 = vst [vmem:[%s153 + $0x74] sm:$0xf] %v212
                %v214 = vld [vmem:[%s152 + $0xf0] sm:$0xf]
                %215 = vst [vmem:[%s153 + $0x78] sm:$0xf] %v214
                %v216 = vld [vmem:[%s152 + $0xf8] sm:$0xf]
                %217 = vst [vmem:[%s153 + $0x7c] sm:$0xf] %v216
                %v218 = vld [vmem:[%s152 + $0x100] sm:$0xf]
                %219 = vst [vmem:[%s153 + $0x80] sm:$0xf] %v218
                %v220 = vld [vmem:[%s152 + $0x108] sm:$0xf]
                %221 = vst [vmem:[%s153 + $0x84] sm:$0xf] %v220
                %v222 = vld [vmem:[%s152 + $0x110] sm:$0xf]
                %223 = vst [vmem:[%s153 + $0x88] sm:$0xf] %v222
                %v224 = vld [vmem:[%s152 + $0x118] sm:$0xf]
                %225 = vst [vmem:[%s153 + $0x8c] sm:$0xf] %v224
                %v226 = vld [vmem:[%s152 + $0x120] sm:$0xf]
                %227 = vst [vmem:[%s153 + $0x90] sm:$0xf] %v226
                %v228 = vld [vmem:[%s152 + $0x128] sm:$0xf]
                %229 = vst [vmem:[%s153 + $0x94] sm:$0xf] %v228
                %v230 = vld [vmem:[%s152 + $0x130] sm:$0xf]
                %231 = vst [vmem:[%s153 + $0x98] sm:$0xf] %v230
                %v232 = vld [vmem:[%s152 + $0x138] sm:$0xf]
                %233 = vst [vmem:[%s153 + $0x9c] sm:$0xf] %v232
                %v234 = vld [vmem:[%s152 + $0x140] sm:$0xf]
                %235 = vst [vmem:[%s153 + $0xa0] sm:$0xf] %v234
                %v236 = vld [vmem:[%s152 + $0x148] sm:$0xf]
                %237 = vst [vmem:[%s153 + $0xa4] sm:$0xf] %v236
                %v238 = vld [vmem:[%s152 + $0x150] sm:$0xf]
                %239 = vst [vmem:[%s153 + $0xa8] sm:$0xf] %v238
                %v240 = vld [vmem:[%s152 + $0x158] sm:$0xf]
                %241 = vst [vmem:[%s153 + $0xac] sm:$0xf] %v240
                %v242 = vld [vmem:[%s152 + $0x160] sm:$0xf]
                %243 = vst [vmem:[%s153 + $0xb0] sm:$0xf] %v242
                %v244 = vld [vmem:[%s152 + $0x168] sm:$0xf]
                %245 = vst [vmem:[%s153 + $0xb4] sm:$0xf] %v244
                %v246 = vld [vmem:[%s152 + $0x170] sm:$0xf]
                %247 = vst [vmem:[%s153 + $0xb8] sm:$0xf] %v246
                %v248 = vld [vmem:[%s152 + $0x178] sm:$0xf]
                %249 = vst [vmem:[%s153 + $0xbc] sm:$0xf] %v248
                %v250 = vld [vmem:[%s152 + $0x180] sm:$0xf]
                %251 = vst [vmem:[%s153 + $0xc0] sm:$0xf] %v250
                %v252 = vld [vmem:[%s152 + $0x188] sm:$0xf]
                %253 = vst [vmem:[%s153 + $0xc4] sm:$0xf] %v252
                %v254 = vld [vmem:[%s152 + $0x190] sm:$0xf]
                %255 = vst [vmem:[%s153 + $0xc8] sm:$0xf] %v254
                %v256 = vld [vmem:[%s152 + $0x198] sm:$0xf]
                %257 = vst [vmem:[%s153 + $0xcc] sm:$0xf] %v256
                %v258 = vld [vmem:[%s152 + $0x1a0] sm:$0xf]
                %259 = vst [vmem:[%s153 + $0xd0] sm:$0xf] %v258
                %v260 = vld [vmem:[%s152 + $0x1a8] sm:$0xf]
                %261 = vst [vmem:[%s153 + $0xd4] sm:$0xf] %v260
                %v262 = vld [vmem:[%s152 + $0x1b0] sm:$0xf]
                %263 = vst [vmem:[%s153 + $0xd8] sm:$0xf] %v262
                %v264 = vld [vmem:[%s152 + $0x1b8] sm:$0xf]
                %265 = vst [vmem:[%s153 + $0xdc] sm:$0xf] %v264
                %v266 = vld [vmem:[%s152 + $0x1c0] sm:$0xf]
                %267 = vst [vmem:[%s153 + $0xe0] sm:$0xf] %v266
                %v268 = vld [vmem:[%s152 + $0x1c8] sm:$0xf]
                %269 = vst [vmem:[%s153 + $0xe4] sm:$0xf] %v268
                %v270 = vld [vmem:[%s152 + $0x1d0] sm:$0xf]
                %271 = vst [vmem:[%s153 + $0xe8] sm:$0xf] %v270
                %v272 = vld [vmem:[%s152 + $0x1d8] sm:$0xf]
                %273 = vst [vmem:[%s153 + $0xec] sm:$0xf] %v272
                %v274 = vld [vmem:[%s152 + $0x1e0] sm:$0xf]
                %275 = vst [vmem:[%s153 + $0xf0] sm:$0xf] %v274
                %v276 = vld [vmem:[%s152 + $0x1e8] sm:$0xf]
                %277 = vst [vmem:[%s153 + $0xf4] sm:$0xf] %v276
                %v278 = vld [vmem:[%s152 + $0x1f0] sm:$0xf]
                %279 = vst [vmem:[%s153 + $0xf8] sm:$0xf] %v278
                %v280 = vld [vmem:[%s152 + $0x1f8] sm:$0xf]
                %281 = vst [vmem:[%s153 + $0xfc] sm:$0xf] %v280
                %v282 = vld [vmem:[%s152 + $0x200] sm:$0xf]
                %283 = vst [vmem:[%s153 + $0x100] sm:$0xf] %v282
                %v284 = vld [vmem:[%s152 + $0x208] sm:$0xf]
                %285 = vst [vmem:[%s153 + $0x104] sm:$0xf] %v284
                %v286 = vld [vmem:[%s152 + $0x210] sm:$0xf]
                %287 = vst [vmem:[%s153 + $0x108] sm:$0xf] %v286
                %v288 = vld [vmem:[%s152 + $0x218] sm:$0xf]
                %289 = vst [vmem:[%s153 + $0x10c] sm:$0xf] %v288
                %v290 = vld [vmem:[%s152 + $0x220] sm:$0xf]
                %291 = vst [vmem:[%s153 + $0x110] sm:$0xf] %v290
                %v292 = vld [vmem:[%s152 + $0x228] sm:$0xf]
                %293 = vst [vmem:[%s153 + $0x114] sm:$0xf] %v292
                %v294 = vld [vmem:[%s152 + $0x230] sm:$0xf]
                %295 = vst [vmem:[%s153 + $0x118] sm:$0xf] %v294
                %v296 = vld [vmem:[%s152 + $0x238] sm:$0xf]
                %297 = vst [vmem:[%s153 + $0x11c] sm:$0xf] %v296
              $region41: #{_stage1.5} parent=35 // loop_footer
                %s151 = sadd.s32 1, %s147
              $region42: #{_stage1.5} parent=35 // loop_footer_branch
                %146 = sbr.rel target = $region38
              $region43: #{_stage1.5} parent=35 // loop_exit
                _
            $region36: #{_stage1.5} parent=27 // pred_fallthru
              _
          $region28: #{_stage1.5} parent=23 // pred_fallthru
            _
          %461 = vnop
        $region24: #{_stage1.5} parent=19 // pred_fallthru
          _
        // Predicated region
        $region62: #{_stage1.5} parent=19 // pred_check
          %p462 = pneg %p76
        $region63: #{_stage1.5} parent=19 // pred_check_branch
          %464 = sbr.rel (%p462) target = $region65
        $region64: #{_stage1.5} parent=19 // pred_region
          %p465 = scmp.lt.s32.totalorder %s9, 1
          %s466 = scalar_select %p465, %s9, 1
          %s467 = scalar_lea.vmem %s2, %s466
        $region65: #{_stage1.5} parent=19 // pred_fallthru
          _
      $region20: #{_stage1.5} parent=5 // pred_fallthru
        _
      %p468 = scmp.le.s32.totalorder 1, %s9
      %p469 = scmp.lt.s32.totalorder %s9, 3
      %p470 = pnand %p468, %p469
      %p471 = pneg %p470
      // Predicated region
      $region66: #{_stage1.5} parent=5 // pred_check
        _
      $region67: #{_stage1.5} parent=5 // pred_check_branch
        %473 = sbr.rel (%p470) target = $region69
      $region68: #{_stage1.5} parent=5 // pred_region
        %s474 = ssub.s32 %s9, 1
        %s475 = sand.u32 %s43, 1
        %s476 = sand.u32 %s43, 1
        %s477 = smul.addr %s476, 288
        %s478 = scalar_lea.vmem [#allocation2], %s477
        // Predicated region
        $region70: #{_stage1.5} parent=68 // pred_check
          %p479 = pneg %p56
        $region71: #{_stage1.5} parent=68 // pred_check_branch
          %481 = sbr.rel (%p479) target = $region73
        $region72: #{_stage1.5} parent=68 // pred_region
          _
        $region73: #{_stage1.5} parent=68 // pred_fallthru
          _
        %p482 = pneg %p30
        %p483 = pneg %p27
        %s484 = sand.u32 %s43, 1
        %s485 = sand.u32 %s43, 1
        %s486 = smul.addr %s485, 288
        %s487 = scalar_lea.vmem [#allocation2], %s486
        %p488 = pneg %p56
        %p489 = pneg %p53
        %p490 = scmp.lt.s32.totalorder %s14, 1
        %s491 = scalar_select %p490, %s14, 1
        %s492 = scalar_lea.vmem %s2, %s491
        %p493 = pneg %p82
        %p494 = pneg %p79
        %p495 = pneg %p108
        %p496 = pneg %p105
        %s497 = sand.u32 %s95, 1
        %s498 = sand.u32 %s95, 1
        %s499 = smul.addr %s498, 16
        %s500 = scalar_lea.vmem [#allocation3], %s499
        %p501 = scmp.lt.s32.totalorder %s14, 1
        %s502 = scalar_select %p501, %s14, 1
        %s503 = scalar_lea.vmem %s2, %s502
        %v505 = vld [vmem:[%s478] sm:$0xf]
        %v506 = vld [vmem:[%s478 + $0x4] sm:$0xf]
        %v507 = vld [vmem:[%s478 + $0x8] sm:$0xf]
        %v508 = vld [vmem:[%s478 + $0xc] sm:$0xf]
        %v509 = vld [vmem:[%s478 + $0x10] sm:$0xf]
        %v510 = vld [vmem:[%s478 + $0x14] sm:$0xf]
        %v511 = vld [vmem:[%s478 + $0x18] sm:$0xf]
        %v512 = vld [vmem:[%s478 + $0x1c] sm:$0xf]
        %v513 = vld [vmem:[%s478 + $0x20] sm:$0xf]
        %v514 = vld [vmem:[%s478 + $0x24] sm:$0xf]
        %v515 = vld [vmem:[%s478 + $0x28] sm:$0xf]
        %v516 = vld [vmem:[%s478 + $0x2c] sm:$0xf]
        %v517 = vld [vmem:[%s478 + $0x30] sm:$0xf]
        %v518 = vld [vmem:[%s478 + $0x34] sm:$0xf]
        %v519 = vld [vmem:[%s478 + $0x38] sm:$0xf]
        %v520 = vld [vmem:[%s478 + $0x3c] sm:$0xf]
        %v521 = vld [vmem:[%s478 + $0x40] sm:$0xf]
        %v522 = vld [vmem:[%s478 + $0x44] sm:$0xf]
        %v523 = vld [vmem:[%s478 + $0x48] sm:$0xf]
        %v524 = vld [vmem:[%s478 + $0x4c] sm:$0xf]
        %v525 = vld [vmem:[%s478 + $0x50] sm:$0xf]
        %v526 = vld [vmem:[%s478 + $0x54] sm:$0xf]
        %v527 = vld [vmem:[%s478 + $0x58] sm:$0xf]
        %v528 = vld [vmem:[%s478 + $0x5c] sm:$0xf]
        %v529 = vld [vmem:[%s478 + $0x60] sm:$0xf]
        %v530 = vld [vmem:[%s478 + $0x64] sm:$0xf]
        %v531 = vld [vmem:[%s478 + $0x68] sm:$0xf]
        %v532 = vld [vmem:[%s478 + $0x6c] sm:$0xf]
        %v533 = vld [vmem:[%s478 + $0x70] sm:$0xf]
        %v534 = vld [vmem:[%s478 + $0x74] sm:$0xf]
        %v535 = vld [vmem:[%s478 + $0x78] sm:$0xf]
        %v536 = vld [vmem:[%s478 + $0x7c] sm:$0xf]
        %v537 = vld [vmem:[%s478 + $0x80] sm:$0xf]
        %v538 = vld [vmem:[%s478 + $0x84] sm:$0xf]
        %v539 = vld [vmem:[%s478 + $0x88] sm:$0xf]
        %v540 = vld [vmem:[%s478 + $0x8c] sm:$0xf]
        %v541 = vld [vmem:[%s478 + $0x90] sm:$0xf]
        %v542 = vld [vmem:[%s478 + $0x94] sm:$0xf]
        %v543 = vld [vmem:[%s478 + $0x98] sm:$0xf]
        %v544 = vld [vmem:[%s478 + $0x9c] sm:$0xf]
        %v545 = vld [vmem:[%s478 + $0xa0] sm:$0xf]
        %v546 = vld [vmem:[%s478 + $0xa4] sm:$0xf]
        %v547 = vld [vmem:[%s478 + $0xa8] sm:$0xf]
        %v548 = vld [vmem:[%s478 + $0xac] sm:$0xf]
        %v549 = vld [vmem:[%s478 + $0xb0] sm:$0xf]
        %v550 = vld [vmem:[%s478 + $0xb4] sm:$0xf]
        %v551 = vld [vmem:[%s478 + $0xb8] sm:$0xf]
        %v552 = vld [vmem:[%s478 + $0xbc] sm:$0xf]
        %v553 = vld [vmem:[%s478 + $0xc0] sm:$0xf]
        %v554 = vld [vmem:[%s478 + $0xc4] sm:$0xf]
        %v555 = vld [vmem:[%s478 + $0xc8] sm:$0xf]
        %v556 = vld [vmem:[%s478 + $0xcc] sm:$0xf]
        %v557 = vld [vmem:[%s478 + $0xd0] sm:$0xf]
        %v558 = vld [vmem:[%s478 + $0xd4] sm:$0xf]
        %v559 = vld [vmem:[%s478 + $0xd8] sm:$0xf]
        %v560 = vld [vmem:[%s478 + $0xdc] sm:$0xf]
        %v561 = vld [vmem:[%s478 + $0xe0] sm:$0xf]
        %v562 = vld [vmem:[%s478 + $0xe4] sm:$0xf]
        %v563 = vld [vmem:[%s478 + $0xe8] sm:$0xf]
        %v564 = vld [vmem:[%s478 + $0xec] sm:$0xf]
        %v565 = vld [vmem:[%s478 + $0xf0] sm:$0xf]
        %v566 = vld [vmem:[%s478 + $0xf4] sm:$0xf]
        %v567 = vld [vmem:[%s478 + $0xf8] sm:$0xf]
        %v568 = vld [vmem:[%s478 + $0xfc] sm:$0xf]
        %v569 = vld [vmem:[%s478 + $0x100] sm:$0xf]
        %v570 = vld [vmem:[%s478 + $0x104] sm:$0xf]
        %v571 = vld [vmem:[%s478 + $0x108] sm:$0xf]
        %v572 = vld [vmem:[%s478 + $0x10c] sm:$0xf]
        %v573 = vld [vmem:[%s478 + $0x110] sm:$0xf]
        %v574 = vld [vmem:[%s478 + $0x114] sm:$0xf]
        %v575 = vld [vmem:[%s478 + $0x118] sm:$0xf]
        %v576 = vld [vmem:[%s478 + $0x11c] sm:$0xf]
        %v577 = vld [vmem:[%s0] sm:$0xff]
        %v578 = vld [vmem:[%s0 + $0x8] sm:$0xff]
        %v579 = vld [vmem:[%s0 + $0x10] sm:$0xf]
        %v580 = vld [vmem:[%s0 + $0x14] sm:$0xff]
        %v581 = vld [vmem:[%s0 + $0x1c] sm:$0xff]
        %v582 = vld [vmem:[%s0 + $0x24] sm:$0xf]
        %v583 = vld [vmem:[%s0 + $0x28] sm:$0xff]
        %v584 = vld [vmem:[%s0 + $0x30] sm:$0xff]
        %v585 = vld [vmem:[%s0 + $0x38] sm:$0xf]
        %v586 = vld [vmem:[%s0 + $0x3c] sm:$0xff]
        %v587 = vld [vmem:[%s0 + $0x44] sm:$0xff]
        %v588 = vld [vmem:[%s0 + $0x4c] sm:$0xf]
        %v589 = vld [vmem:[%s0 + $0x50] sm:$0xff]
        %v590 = vld [vmem:[%s0 + $0x58] sm:$0xff]
        %v591 = vld [vmem:[%s0 + $0x60] sm:$0xf]
        %v592 = vld [vmem:[%s0 + $0x64] sm:$0xff]
        %v593 = vld [vmem:[%s0 + $0x6c] sm:$0xff]
        %v594 = vld [vmem:[%s0 + $0x74] sm:$0xf]
        %v595 = vld [vmem:[%s0 + $0x78] sm:$0xff]
        %v596 = vld [vmem:[%s0 + $0x80] sm:$0xff]
        %v597 = vld [vmem:[%s0 + $0x88] sm:$0xf]
        %v598 = vld [vmem:[%s0 + $0x8c] sm:$0xff]
        %v599 = vld [vmem:[%s0 + $0x94] sm:$0xff]
        %v600 = vld [vmem:[%s0 + $0x9c] sm:$0xf]
        %v601 = vld [vmem:[%s0 + $0xa0] sm:$0xff]
        %v602 = vld [vmem:[%s0 + $0xa8] sm:$0xff]
        %v603 = vld [vmem:[%s0 + $0xb0] sm:$0xf]
        %v604 = vld [vmem:[%s0 + $0xb4] sm:$0xff]
        %v605 = vld [vmem:[%s0 + $0xbc] sm:$0xff]
        %v606 = vld [vmem:[%s0 + $0xc4] sm:$0xf]
        %v607 = vld [vmem:[%s0 + $0xc8] sm:$0xff]
        %v608 = vld [vmem:[%s0 + $0xd0] sm:$0xff]
        %v609 = vld [vmem:[%s0 + $0xd8] sm:$0xf]
        %v610 = vld [vmem:[%s0 + $0xdc] sm:$0xff]
        %v611 = vld [vmem:[%s0 + $0xe4] sm:$0xff]
        %v612 = vld [vmem:[%s0 + $0xec] sm:$0xf]
        %v613 = vld [vmem:[%s0 + $0xf0] sm:$0xff]
        %v614 = vld [vmem:[%s0 + $0xf8] sm:$0xff]
        %v615 = vld [vmem:[%s0 + $0x100] sm:$0xf]
        %v616 = vld [vmem:[%s0 + $0x104] sm:$0xff]
        %v617 = vld [vmem:[%s0 + $0x10c] sm:$0xff]
        %v618 = vld [vmem:[%s0 + $0x114] sm:$0xf]
        %v619 = vld [vmem:[%s0 + $0x118] sm:$0xff]
        %v620 = vld [vmem:[%s0 + $0x120] sm:$0xff]
        %v621 = vld [vmem:[%s0 + $0x128] sm:$0xf]
        %v622 = vld [vmem:[%s0 + $0x12c] sm:$0xff]
        %v623 = vld [vmem:[%s0 + $0x134] sm:$0xff]
        %v624 = vld [vmem:[%s0 + $0x13c] sm:$0xf]
        %v673 = vunpack.c.l.b16 %v577
        %v674 = vunpack.c.h.b16 %v577
        %v675 = vunpack.c.l.b16 %v578
        %v676 = vunpack.c.h.b16 %v578
        %v677 = vunpack.c.l.b16 %v579
        %v678 = vunpack.c.l.b16 %v580
        %v679 = vunpack.c.h.b16 %v580
        %v680 = vunpack.c.l.b16 %v581
        %v681 = vunpack.c.h.b16 %v581
        %v682 = vunpack.c.l.b16 %v582
        %v683 = vunpack.c.l.b16 %v583
        %v684 = vunpack.c.h.b16 %v583
        %v685 = vunpack.c.l.b16 %v584
        %v686 = vunpack.c.h.b16 %v584
        %v687 = vunpack.c.l.b16 %v585
        %v688 = vunpack.c.l.b16 %v586
        %v689 = vunpack.c.h.b16 %v586
        %v690 = vunpack.c.l.b16 %v587
        %v691 = vunpack.c.h.b16 %v587
        %v692 = vunpack.c.l.b16 %v588
        %v693 = vunpack.c.l.b16 %v589
        %v694 = vunpack.c.h.b16 %v589
        %v695 = vunpack.c.l.b16 %v590
        %v696 = vunpack.c.h.b16 %v590
        %v697 = vunpack.c.l.b16 %v591
        %v698 = vunpack.c.l.b16 %v592
        %v699 = vunpack.c.h.b16 %v592
        %v700 = vunpack.c.l.b16 %v593
        %v701 = vunpack.c.h.b16 %v593
        %v702 = vunpack.c.l.b16 %v594
        %v703 = vunpack.c.l.b16 %v595
        %v704 = vunpack.c.h.b16 %v595
        %v705 = vunpack.c.l.b16 %v596
        %v706 = vunpack.c.h.b16 %v596
        %v707 = vunpack.c.l.b16 %v597
        %v708 = vunpack.c.l.b16 %v598
        %v709 = vunpack.c.h.b16 %v598
        %v710 = vunpack.c.l.b16 %v599
        %v711 = vunpack.c.h.b16 %v599
        %v712 = vunpack.c.l.b16 %v600
        %v713 = vunpack.c.l.b16 %v601
        %v714 = vunpack.c.h.b16 %v601
        %v715 = vunpack.c.l.b16 %v602
        %v716 = vunpack.c.h.b16 %v602
        %v717 = vunpack.c.l.b16 %v603
        %v718 = vunpack.c.l.b16 %v604
        %v719 = vunpack.c.h.b16 %v604
        %v720 = vunpack.c.l.b16 %v605
        %v721 = vunpack.c.h.b16 %v605
        %v722 = vunpack.c.l.b16 %v606
        %v723 = vunpack.c.l.b16 %v607
        %v724 = vunpack.c.h.b16 %v607
        %v725 = vunpack.c.l.b16 %v608
        %v726 = vunpack.c.h.b16 %v608
        %v727 = vunpack.c.l.b16 %v609
        %v728 = vunpack.c.l.b16 %v610
        %v729 = vunpack.c.h.b16 %v610
        %v730 = vunpack.c.l.b16 %v611
        %v731 = vunpack.c.h.b16 %v611
        %v732 = vunpack.c.l.b16 %v612
        %v733 = vunpack.c.l.b16 %v613
        %v734 = vunpack.c.h.b16 %v613
        %v735 = vunpack.c.l.b16 %v614
        %v736 = vunpack.c.h.b16 %v614
        %v737 = vunpack.c.l.b16 %v615
        %v738 = vunpack.c.l.b16 %v616
        %v739 = vunpack.c.h.b16 %v616
        %v740 = vunpack.c.l.b16 %v617
        %v741 = vunpack.c.h.b16 %v617
        %v742 = vunpack.c.l.b16 %v618
        %v743 = vunpack.c.l.b16 %v619
        %v744 = vunpack.c.h.b16 %v619
        %v745 = vunpack.c.l.b16 %v620
        %v746 = vunpack.c.h.b16 %v620
        %v747 = vunpack.c.l.b16 %v621
        %v748 = vunpack.c.l.b16 %v622
        %v749 = vunpack.c.h.b16 %v622
        %v750 = vunpack.c.l.b16 %v623
        %v751 = vunpack.c.h.b16 %v623
        %v752 = vunpack.c.l.b16 %v624
        %v753 = vpack.c.b16 %v678, %v673
        %v754 = vpack.c.b16 %v679, %v674
        %v755 = vpack.c.b16 %v680, %v675
        %v756 = vpack.c.b16 %v681, %v676
        %v757 = vpack.c.b16 %v682, %v677
        %v758 = vpack.c.b16 %v688, %v683
        %v759 = vpack.c.b16 %v689, %v684
        %v760 = vpack.c.b16 %v690, %v685
        %v761 = vpack.c.b16 %v691, %v686
        %v762 = vpack.c.b16 %v692, %v687
        %v763 = vpack.c.b16 %v698, %v693
        %v764 = vpack.c.b16 %v699, %v694
        %v765 = vpack.c.b16 %v700, %v695
        %v766 = vpack.c.b16 %v701, %v696
        %v767 = vpack.c.b16 %v702, %v697
        %v768 = vpack.c.b16 %v708, %v703
        %v769 = vpack.c.b16 %v709, %v704
        %v770 = vpack.c.b16 %v710, %v705
        %v771 = vpack.c.b16 %v711, %v706
        %v772 = vpack.c.b16 %v712, %v707
        %v773 = vpack.c.b16 %v718, %v713
        %v774 = vpack.c.b16 %v719, %v714
        %v775 = vpack.c.b16 %v720, %v715
        %v776 = vpack.c.b16 %v721, %v716
        %v777 = vpack.c.b16 %v722, %v717
        %v778 = vpack.c.b16 %v728, %v723
        %v779 = vpack.c.b16 %v729, %v724
        %v780 = vpack.c.b16 %v730, %v725
        %v781 = vpack.c.b16 %v731, %v726
        %v782 = vpack.c.b16 %v732, %v727
        %v783 = vpack.c.b16 %v738, %v733
        %v784 = vpack.c.b16 %v739, %v734
        %v785 = vpack.c.b16 %v740, %v735
        %v786 = vpack.c.b16 %v741, %v736
        %v787 = vpack.c.b16 %v742, %v737
        %v788 = vpack.c.b16 %v748, %v743
        %v789 = vpack.c.b16 %v749, %v744
        %v790 = vpack.c.b16 %v750, %v745
        %v791 = vpack.c.b16 %v751, %v746
        %v792 = vpack.c.b16 %v752, %v747
        %v897 = vunpack.c.l.b16 %v505
        %v898 = vunpack.c.l.b16 %v506
        %v899 = vunpack.c.l.b16 %v507
        %v900 = vunpack.c.l.b16 %v508
        %v901 = vunpack.c.l.b16 %v509
        %v902 = vunpack.c.l.b16 %v510
        %v903 = vunpack.c.l.b16 %v511
        %v904 = vunpack.c.l.b16 %v512
        %v905 = vunpack.c.l.b16 %v513
        %v906 = vunpack.c.l.b16 %v514
        %v907 = vunpack.c.l.b16 %v515
        %v908 = vunpack.c.l.b16 %v516
        %v909 = vunpack.c.l.b16 %v517
        %v910 = vunpack.c.l.b16 %v518
        %v911 = vunpack.c.l.b16 %v519
        %v912 = vunpack.c.l.b16 %v520
        %v913 = vunpack.c.l.b16 %v521
        %v914 = vunpack.c.l.b16 %v522
        %v915 = vunpack.c.l.b16 %v523
        %v916 = vunpack.c.l.b16 %v524
        %v917 = vunpack.c.l.b16 %v525
        %v918 = vunpack.c.l.b16 %v526
        %v919 = vunpack.c.l.b16 %v527
        %v920 = vunpack.c.l.b16 %v528
        %v921 = vunpack.c.l.b16 %v529
        %v922 = vunpack.c.l.b16 %v530
        %v923 = vunpack.c.l.b16 %v531
        %v924 = vunpack.c.l.b16 %v532
        %v925 = vunpack.c.l.b16 %v533
        %v926 = vunpack.c.l.b16 %v534
        %v927 = vunpack.c.l.b16 %v535
        %v928 = vunpack.c.l.b16 %v536
        %v929 = vunpack.c.l.b16 %v537
        %v930 = vunpack.c.l.b16 %v538
        %v931 = vunpack.c.l.b16 %v539
        %v932 = vunpack.c.l.b16 %v540
        %v933 = vunpack.c.l.b16 %v541
        %v934 = vunpack.c.l.b16 %v542
        %v935 = vunpack.c.l.b16 %v543
        %v936 = vunpack.c.l.b16 %v544
        %v937 = vunpack.c.l.b16 %v545
        %v938 = vunpack.c.l.b16 %v546
        %v939 = vunpack.c.l.b16 %v547
        %v940 = vunpack.c.l.b16 %v548
        %v941 = vunpack.c.l.b16 %v549
        %v942 = vunpack.c.l.b16 %v550
        %v943 = vunpack.c.l.b16 %v551
        %v944 = vunpack.c.l.b16 %v552
        %v945 = vunpack.c.l.b16 %v553
        %v946 = vunpack.c.l.b16 %v554
        %v947 = vunpack.c.l.b16 %v555
        %v948 = vunpack.c.l.b16 %v556
        %v949 = vunpack.c.l.b16 %v557
        %v950 = vunpack.c.l.b16 %v558
        %v951 = vunpack.c.l.b16 %v559
        %v952 = vunpack.c.l.b16 %v560
        %v953 = vunpack.c.l.b16 %v561
        %v954 = vunpack.c.l.b16 %v562
        %v955 = vunpack.c.l.b16 %v563
        %v956 = vunpack.c.l.b16 %v564
        %v957 = vunpack.c.l.b16 %v565
        %v958 = vunpack.c.l.b16 %v566
        %v959 = vunpack.c.l.b16 %v567
        %v960 = vunpack.c.l.b16 %v568
        %v961 = vunpack.c.l.b16 %v569
        %v962 = vunpack.c.l.b16 %v570
        %v963 = vunpack.c.l.b16 %v571
        %v964 = vunpack.c.l.b16 %v572
        %v965 = vunpack.c.l.b16 %v573
        %v966 = vunpack.c.l.b16 %v574
        %v967 = vunpack.c.l.b16 %v575
        %v968 = vunpack.c.l.b16 %v576
        %v969 = vpack.c.b16 %v898, %v897
        %v970 = vpack.c.b16 %v900, %v899
        %v971 = vpack.c.b16 %v902, %v901
        %v972 = vpack.c.b16 %v904, %v903
        %v973 = vpack.c.b16 %v906, %v905
        %v974 = vpack.c.b16 %v908, %v907
        %v975 = vpack.c.b16 %v910, %v909
        %v976 = vpack.c.b16 %v912, %v911
        %v977 = vpack.c.b16 %v914, %v913
        %v978 = vpack.c.b16 %v916, %v915
        %v979 = vpack.c.b16 %v918, %v917
        %v980 = vpack.c.b16 %v920, %v919
        %v981 = vpack.c.b16 %v922, %v921
        %v982 = vpack.c.b16 %v924, %v923
        %v983 = vpack.c.b16 %v926, %v925
        %v984 = vpack.c.b16 %v928, %v927
        %v985 = vpack.c.b16 %v930, %v929
        %v986 = vpack.c.b16 %v932, %v931
        %v987 = vpack.c.b16 %v934, %v933
        %v988 = vpack.c.b16 %v936, %v935
        %v989 = vpack.c.b16 %v938, %v937
        %v990 = vpack.c.b16 %v940, %v939
        %v991 = vpack.c.b16 %v942, %v941
        %v992 = vpack.c.b16 %v944, %v943
        %v993 = vpack.c.b16 %v946, %v945
        %v994 = vpack.c.b16 %v948, %v947
        %v995 = vpack.c.b16 %v950, %v949
        %v996 = vpack.c.b16 %v952, %v951
        %v997 = vpack.c.b16 %v954, %v953
        %v998 = vpack.c.b16 %v956, %v955
        %v999 = vpack.c.b16 %v958, %v957
        %v1000 = vpack.c.b16 %v960, %v959
        %v1001 = vpack.c.b16 %v962, %v961
        %v1002 = vpack.c.b16 %v964, %v963
        %v1003 = vpack.c.b16 %v966, %v965
        %v1004 = vpack.c.b16 %v968, %v967
        %vm1041 = vcmask 523264
        %v1043 = vsel %vm1041, %v757, 0
        %v1046 = vsel %vm1041, %v762, 0
        %v1049 = vsel %vm1041, %v767, 0
        %v1052 = vsel %vm1041, %v772, 0
        %v1055 = vsel %vm1041, %v777, 0
        %v1058 = vsel %vm1041, %v782, 0
        %v1061 = vsel %vm1041, %v787, 0
        %v1064 = vsel %vm1041, %v792, 0
        %1066 = vmatprep.subr.bf16.mxu0 0
        %1067 = vmatpush1.bf16.msra.mxu0 %v969
        %1068 = vmatprep.subr.bf16.mxu0 0
        %1069 = vmatpush1.bf16.msra.mxu0 %v970
        %1070 = vmatprep.subr.bf16.mxu0 0
        %1071 = vmatpush1.bf16.msra.mxu0 %v971
        %1072 = vmatprep.subr.bf16.mxu0 0
        %1073 = vmatpush1.bf16.msra.mxu0 %v972
        %1074 = vmatprep.subr.bf16.mxu0 0
        %1075 = vmatpush1.bf16.msra.mxu0 %v973
        %1076 = vmatprep.subr.bf16.mxu0 0
        %1077 = vmatpush1.bf16.msra.mxu0 %v974
        %1078 = vmatprep.subr.bf16.mxu0 0
        %1079 = vmatpush1.bf16.msra.mxu0 %v975
        %1080 = vmatprep.subr.bf16.mxu0 0
        %1081 = vmatpush1.bf16.msra.mxu0 %v976
        %1082 = vmatprep.subr.bf16.mxu0 0
        %1083 = vmatpush1.bf16.msra.mxu0 %v977
        %1084 = vmatprep.subr.bf16.mxu0 0
        %1085 = vmatpush1.bf16.msra.mxu0 %v978
        %1086 = vmatprep.subr.bf16.mxu0 0
        %1087 = vmatpush1.bf16.msra.mxu0 %v979
        %1088 = vmatprep.subr.bf16.mxu0 0
        %1089 = vmatpush1.bf16.msra.mxu0 %v980
        %1090 = vmatprep.subr.bf16.mxu0 0
        %1091 = vmatpush1.bf16.msra.mxu0 %v981
        %1092 = vmatprep.subr.bf16.mxu0 0
        %1093 = vmatpush1.bf16.msra.mxu0 %v982
        %1094 = vmatprep.subr.bf16.mxu0 0
        %1095 = vmatpush1.bf16.msra.mxu0 %v983
        %1096 = vmatprep.subr.bf16.mxu0 0
        %1097 = vmatpush1.bf16.msra.mxu0 %v984
        %1098 = vmatprep.mubr.bf16.mxu0 %v754
        %1099 = vmatmul.mubr.bf16.gmra.mrb[0].mxu0 %v753
        %v1100 = vpop.f32.mrb[0].mxu0
        %v1101 = vadd.f32 0.0, %v1100
        %v1102 = vpop.f32.mrb[0].mxu0
        %v1103 = vpop.f32.mrb[0].mxu0
        %v1104 = vadd.f32 0.0, %v1103
        %v1105 = vpop.f32.mrb[0].mxu0
        %1106 = vmatprep.mubr.bf16.mxu0 %v759
        %1107 = vmatmul.mubr.bf16.gmra.mrb[0].mxu0 %v758
        %v1108 = vpop.f32.mrb[0].mxu0
        %v1109 = vadd.f32 0.0, %v1108
        %v1110 = vpop.f32.mrb[0].mxu0
        %v1111 = vpop.f32.mrb[0].mxu0
        %v1112 = vadd.f32 0.0, %v1111
        %v1113 = vpop.f32.mrb[0].mxu0
        %1114 = vmatprep.mubr.bf16.mxu0 %v764
        %1115 = vmatmul.mubr.bf16.gmra.mrb[0].mxu0 %v763
        %v1116 = vpop.f32.mrb[0].mxu0
        %v1117 = vadd.f32 0.0, %v1116
        %v1118 = vpop.f32.mrb[0].mxu0
        %v1119 = vpop.f32.mrb[0].mxu0
        %v1120 = vadd.f32 0.0, %v1119
        %v1121 = vpop.f32.mrb[0].mxu0
        %1122 = vmatprep.mubr.bf16.mxu0 %v769
        %1123 = vmatmul.mubr.bf16.gmra.mrb[0].mxu0 %v768
        %v1124 = vpop.f32.mrb[0].mxu0
        %v1125 = vadd.f32 0.0, %v1124
        %v1126 = vpop.f32.mrb[0].mxu0
        %v1127 = vpop.f32.mrb[0].mxu0
        %v1128 = vadd.f32 0.0, %v1127
        %v1129 = vpop.f32.mrb[0].mxu0
        %1130 = vmatprep.mubr.bf16.mxu0 %v774
        %1131 = vmatmul.mubr.bf16.gmra.mrb[0].mxu0 %v773
        %v1132 = vpop.f32.mrb[0].mxu0
        %v1133 = vadd.f32 0.0, %v1132
        %v1134 = vpop.f32.mrb[0].mxu0
        %v1135 = vpop.f32.mrb[0].mxu0
        %v1136 = vadd.f32 0.0, %v1135
        %v1137 = vpop.f32.mrb[0].mxu0
        %1138 = vmatprep.mubr.bf16.mxu0 %v779
        %1139 = vmatmul.mubr.bf16.gmra.mrb[0].mxu0 %v778
        %v1140 = vpop.f32.mrb[0].mxu0
        %v1141 = vadd.f32 0.0, %v1140
        %v1142 = vpop.f32.mrb[0].mxu0
        %v1143 = vpop.f32.mrb[0].mxu0
        %v1144 = vadd.f32 0.0, %v1143
        %v1145 = vpop.f32.mrb[0].mxu0
        %1146 = vmatprep.mubr.bf16.mxu0 %v784
        %1147 = vmatmul.mubr.bf16.gmra.mrb[0].mxu0 %v783
        %v1148 = vpop.f32.mrb[0].mxu0
        %v1149 = vadd.f32 0.0, %v1148
        %v1150 = vpop.f32.mrb[0].mxu0
        %v1151 = vpop.f32.mrb[0].mxu0
        %v1152 = vadd.f32 0.0, %v1151
        %v1153 = vpop.f32.mrb[0].mxu0
        %1154 = vmatprep.mubr.bf16.mxu0 %v789
        %1155 = vmatmul.mubr.bf16.gmra.mrb[0].mxu0 %v788
        %v1156 = vpop.f32.mrb[0].mxu0
        %v1157 = vadd.f32 0.0, %v1156
        %v1158 = vpop.f32.mrb[0].mxu0
        %v1159 = vpop.f32.mrb[0].mxu0
        %v1160 = vadd.f32 0.0, %v1159
        %v1161 = vpop.f32.mrb[0].mxu0
        %1162 = vdwg.mxu0
        %1163 = vmatprep.subr.bf16.mxu0 0
        %1164 = vmatpush1.bf16.msra.mxu0 %v985
        %1165 = vmatprep.subr.bf16.mxu0 0
        %1166 = vmatpush1.bf16.msra.mxu0 %v986
        %1167 = vmatprep.subr.bf16.mxu0 0
        %1168 = vmatpush1.bf16.msra.mxu0 %v987
        %1169 = vmatprep.subr.bf16.mxu0 0
        %1170 = vmatpush1.bf16.msra.mxu0 %v988
        %1171 = vmatprep.subr.bf16.mxu0 0
        %1172 = vmatpush1.bf16.msra.mxu0 %v989
        %1173 = vmatprep.subr.bf16.mxu0 0
        %1174 = vmatpush1.bf16.msra.mxu0 %v990
        %1175 = vmatprep.subr.bf16.mxu0 0
        %1176 = vmatpush1.bf16.msra.mxu0 %v991
        %1177 = vmatprep.subr.bf16.mxu0 0
        %1178 = vmatpush1.bf16.msra.mxu0 %v992
        %1179 = vmatprep.subr.bf16.mxu0 0
        %1180 = vmatpush1.bf16.msra.mxu0 %v993
        %1181 = vmatprep.subr.bf16.mxu0 0
        %1182 = vmatpush1.bf16.msra.mxu0 %v994
        %1183 = vmatprep.subr.bf16.mxu0 0
        %1184 = vmatpush1.bf16.msra.mxu0 %v995
        %1185 = vmatprep.subr.bf16.mxu0 0
        %1186 = vmatpush1.bf16.msra.mxu0 %v996
        %1187 = vmatprep.subr.bf16.mxu0 0
        %1188 = vmatpush1.bf16.msra.mxu0 %v997
        %1189 = vmatprep.subr.bf16.mxu0 0
        %1190 = vmatpush1.bf16.msra.mxu0 %v998
        %1191 = vmatprep.subr.bf16.mxu0 0
        %1192 = vmatpush1.bf16.msra.mxu0 %v999
        %1193 = vmatprep.subr.bf16.mxu0 0
        %1194 = vmatpush1.bf16.msra.mxu0 %v1000
        %1195 = vmatprep.mubr.bf16.mxu0 %v756
        %1196 = vmatmul.mubr.bf16.gmra.mrb[0].mxu0 %v755
        %v1197 = vpop.f32.mrb[0].mxu0
        %v1198 = vadd.f32 %v1101, %v1197
        %v1199 = vpop.f32.mrb[0].mxu0
        %v1200 = vpop.f32.mrb[0].mxu0
        %v1201 = vadd.f32 %v1104, %v1200
        %v1202 = vpop.f32.mrb[0].mxu0
        %1203 = vmatprep.mubr.bf16.mxu0 %v761
        %1204 = vmatmul.mubr.bf16.gmra.mrb[0].mxu0 %v760
        %v1205 = vpop.f32.mrb[0].mxu0
        %v1206 = vadd.f32 %v1109, %v1205
        %v1207 = vpop.f32.mrb[0].mxu0
        %v1208 = vpop.f32.mrb[0].mxu0
        %v1209 = vadd.f32 %v1112, %v1208
        %v1210 = vpop.f32.mrb[0].mxu0
        %1211 = vmatprep.mubr.bf16.mxu0 %v766
        %1212 = vmatmul.mubr.bf16.gmra.mrb[0].mxu0 %v765
        %v1213 = vpop.f32.mrb[0].mxu0
        %v1214 = vadd.f32 %v1117, %v1213
        %v1215 = vpop.f32.mrb[0].mxu0
        %v1216 = vpop.f32.mrb[0].mxu0
        %v1217 = vadd.f32 %v1120, %v1216
        %v1218 = vpop.f32.mrb[0].mxu0
        %1219 = vmatprep.mubr.bf16.mxu0 %v771
        %1220 = vmatmul.mubr.bf16.gmra.mrb[0].mxu0 %v770
        %v1221 = vpop.f32.mrb[0].mxu0
        %v1222 = vadd.f32 %v1125, %v1221
        %v1223 = vpop.f32.mrb[0].mxu0
        %v1224 = vpop.f32.mrb[0].mxu0
        %v1225 = vadd.f32 %v1128, %v1224
        %v1226 = vpop.f32.mrb[0].mxu0
        %1227 = vmatprep.mubr.bf16.mxu0 %v776
        %1228 = vmatmul.mubr.bf16.gmra.mrb[0].mxu0 %v775
        %v1229 = vpop.f32.mrb[0].mxu0
        %v1230 = vadd.f32 %v1133, %v1229
        %v1231 = vpop.f32.mrb[0].mxu0
        %v1232 = vpop.f32.mrb[0].mxu0
        %v1233 = vadd.f32 %v1136, %v1232
        %v1234 = vpop.f32.mrb[0].mxu0
        %1235 = vmatprep.mubr.bf16.mxu0 %v781
        %1236 = vmatmul.mubr.bf16.gmra.mrb[0].mxu0 %v780
        %v1237 = vpop.f32.mrb[0].mxu0
        %v1238 = vadd.f32 %v1141, %v1237
        %v1239 = vpop.f32.mrb[0].mxu0
        %v1240 = vpop.f32.mrb[0].mxu0
        %v1241 = vadd.f32 %v1144, %v1240
        %v1242 = vpop.f32.mrb[0].mxu0
        %1243 = vmatprep.mubr.bf16.mxu0 %v786
        %1244 = vmatmul.mubr.bf16.gmra.mrb[0].mxu0 %v785
        %v1245 = vpop.f32.mrb[0].mxu0
        %v1246 = vadd.f32 %v1149, %v1245
        %v1247 = vpop.f32.mrb[0].mxu0
        %v1248 = vpop.f32.mrb[0].mxu0
        %v1249 = vadd.f32 %v1152, %v1248
        %v1250 = vpop.f32.mrb[0].mxu0
        %1251 = vmatprep.mubr.bf16.mxu0 %v791
        %1252 = vmatmul.mubr.bf16.gmra.mrb[0].mxu0 %v790
        %v1253 = vpop.f32.mrb[0].mxu0
        %v1254 = vadd.f32 %v1157, %v1253
        %v1255 = vpop.f32.mrb[0].mxu0
        %v1256 = vpop.f32.mrb[0].mxu0
        %v1257 = vadd.f32 %v1160, %v1256
        %v1258 = vpop.f32.mrb[0].mxu0
        %1259 = vdwg.mxu0
        %1260 = vmatprep.subr.bf16.mxu0 0
        %1261 = vmatpush1.bf16.msra.mxu0 %v1001
        %1262 = vmatprep.subr.bf16.mxu0 0
        %1263 = vmatpush1.bf16.msra.mxu0 %v1002
        %1264 = vmatprep.subr.bf16.mxu0 0
        %1265 = vmatpush1.bf16.msra.mxu0 %v1003
        %1266 = vmatprep.subr.bf16.mxu0 0
        %1267 = vmatpush1.bf16.msra.mxu0 %v1004
        %1268 = vmatprep.subr.bf16.mxu0 0
        %1269 = vmatpush1.bf16.msra.mxu0 0
        %1270 = vmatprep.subr.bf16.mxu0 0
        %1271 = vmatpush1.bf16.msra.mxu0 0
        %1272 = vmatprep.subr.bf16.mxu0 0
        %1273 = vmatpush1.bf16.msra.mxu0 0
        %1274 = vmatprep.subr.bf16.mxu0 0
        %1275 = vmatpush1.bf16.msra.mxu0 0
        %1276 = vmatprep.subr.bf16.mxu0 0
        %1277 = vmatpush1.bf16.msra.mxu0 0
        %1278 = vmatprep.subr.bf16.mxu0 0
        %1279 = vmatpush1.bf16.msra.mxu0 0
        %1280 = vmatprep.subr.bf16.mxu0 0
        %1281 = vmatpush1.bf16.msra.mxu0 0
        %1282 = vmatprep.subr.bf16.mxu0 0
        %1283 = vmatpush1.bf16.msra.mxu0 0
        %1284 = vmatprep.subr.bf16.mxu0 0
        %1285 = vmatpush1.bf16.msra.mxu0 0
        %1286 = vmatprep.subr.bf16.mxu0 0
        %1287 = vmatpush1.bf16.msra.mxu0 0
        %1288 = vmatprep.subr.bf16.mxu0 0
        %1289 = vmatpush1.bf16.msra.mxu0 0
        %1290 = vmatprep.subr.bf16.mxu0 0
        %1291 = vmatpush1.bf16.msra.mxu0 0
        %1292 = vmatprep.mubr.bf16.mxu0 0
        %1293 = vmatmul.mubr.bf16.gmra.mrb[0].mxu0 %v1043
        %v1294 = vpop.f32.mrb[0].mxu0
        %v1295 = vadd.f32 %v1198, %v1294
        %v1296 = vpop.f32.mrb[0].mxu0
        %v1297 = vpop.f32.mrb[0].mxu0
        %v1298 = vadd.f32 %v1201, %v1297
        %v1299 = vpop.f32.mrb[0].mxu0
        %1300 = vmatprep.mubr.bf16.mxu0 0
        %1301 = vmatmul.mubr.bf16.gmra.mrb[0].mxu0 %v1046
        %v1302 = vpop.f32.mrb[0].mxu0
        %v1303 = vadd.f32 %v1206, %v1302
        %v1304 = vpop.f32.mrb[0].mxu0
        %v1305 = vpop.f32.mrb[0].mxu0
        %v1306 = vadd.f32 %v1209, %v1305
        %v1307 = vpop.f32.mrb[0].mxu0
        %1308 = vmatprep.mubr.bf16.mxu0 0
        %1309 = vmatmul.mubr.bf16.gmra.mrb[0].mxu0 %v1049
        %v1310 = vpop.f32.mrb[0].mxu0
        %v1311 = vadd.f32 %v1214, %v1310
        %v1312 = vpop.f32.mrb[0].mxu0
        %v1313 = vpop.f32.mrb[0].mxu0
        %v1314 = vadd.f32 %v1217, %v1313
        %v1315 = vpop.f32.mrb[0].mxu0
        %1316 = vmatprep.mubr.bf16.mxu0 0
        %1317 = vmatmul.mubr.bf16.gmra.mrb[0].mxu0 %v1052
        %v1318 = vpop.f32.mrb[0].mxu0
        %v1319 = vadd.f32 %v1222, %v1318
        %v1320 = vpop.f32.mrb[0].mxu0
        %v1321 = vpop.f32.mrb[0].mxu0
        %v1322 = vadd.f32 %v1225, %v1321
        %v1323 = vpop.f32.mrb[0].mxu0
        %1324 = vmatprep.mubr.bf16.mxu0 0
        %1325 = vmatmul.mubr.bf16.gmra.mrb[0].mxu0 %v1055
        %v1326 = vpop.f32.mrb[0].mxu0
        %v1327 = vadd.f32 %v1230, %v1326
        %v1328 = vpop.f32.mrb[0].mxu0
        %v1329 = vpop.f32.mrb[0].mxu0
        %v1330 = vadd.f32 %v1233, %v1329
        %v1331 = vpop.f32.mrb[0].mxu0
        %1332 = vmatprep.mubr.bf16.mxu0 0
        %1333 = vmatmul.mubr.bf16.gmra.mrb[0].mxu0 %v1058
        %v1334 = vpop.f32.mrb[0].mxu0
        %v1335 = vadd.f32 %v1238, %v1334
        %v1336 = vpop.f32.mrb[0].mxu0
        %v1337 = vpop.f32.mrb[0].mxu0
        %v1338 = vadd.f32 %v1241, %v1337
        %v1339 = vpop.f32.mrb[0].mxu0
        %1340 = vmatprep.mubr.bf16.mxu0 0
        %1341 = vmatmul.mubr.bf16.gmra.mrb[0].mxu0 %v1061
        %v1342 = vpop.f32.mrb[0].mxu0
        %v1343 = vadd.f32 %v1246, %v1342
        %v1344 = vpop.f32.mrb[0].mxu0
        %v1345 = vpop.f32.mrb[0].mxu0
        %v1346 = vadd.f32 %v1249, %v1345
        %v1347 = vpop.f32.mrb[0].mxu0
        %1348 = vmatprep.mubr.bf16.mxu0 0
        %1349 = vmatmul.mubr.bf16.gmra.mrb[0].mxu0 %v1064
        %v1350 = vpop.f32.mrb[0].mxu0
        %v1351 = vadd.f32 %v1254, %v1350
        %v1352 = vpop.f32.mrb[0].mxu0
        %v1353 = vpop.f32.mrb[0].mxu0
        %v1354 = vadd.f32 %v1257, %v1353
        %v1355 = vpop.f32.mrb[0].mxu0
        %1356 = vdwg.mxu0
        %v1357 = vmax.f32 %v1295, %v1311
        %v1358 = vmax.f32 %v1298, %v1314
        %v1359 = vmax.f32 %v1303, %v1319
        %v1360 = vmax.f32 %v1306, %v1322
        %v1361 = vmax.f32 %v1357, %v1327
        %v1362 = vmax.f32 %v1358, %v1330
        %v1363 = vmax.f32 %v1359, %v1335
        %v1364 = vmax.f32 %v1360, %v1338
        %v1365 = vmax.f32 %v1361, %v1343
        %v1366 = vmax.f32 %v1362, %v1346
        %v1367 = vmax.f32 %v1363, %v1351
        %v1368 = vmax.f32 %v1364, %v1354
        %v1369 = vld [vmem:[%s503] sm:$0x1]
        %v1371 = vlaneseq
        %v1372 = vshrl.u32 %v1371, 7
        %v1373 = vsub.s32 0, %v1372
        %v1374 = vrot.slane %v1369, %v1373
        %v1376 = vadd.f32 %v1365, %v1374
        %v1377 = vadd.f32 %v1366, %v1374
        %v1378 = vadd.f32 %v1367, %v1374
        %v1379 = vadd.f32 %v1368, %v1374
        %v1380 = vmax.f32 %v1376, 0.0
        %v1381 = vmax.f32 %v1377, 0.0
        %v1382 = vmax.f32 %v1378, 0.0
        %v1383 = vmax.f32 %v1379, 0.0
        %v1384 = vpack.c.bf16 %v1381, %v1380
        %v1385 = vpack.c.bf16 %v1383, %v1382
        %v1388 = vunpack.c.l.b16 %v1384
        %v1389 = vunpack.c.h.b16 %v1384
        %v1390 = vunpack.c.l.b16 %v1385
        %v1391 = vunpack.c.h.b16 %v1385
        %v1392 = vpack.c.b16 %v1388, %v1388
        %v1393 = vpack.c.b16 %v1389, %v1389
        %v1394 = vpack.c.b16 %v1390, %v1390
        %v1395 = vpack.c.b16 %v1391, %v1391
        %1400 = vst [vmem:[%s500] sm:$0xf] %v1392
        %1401 = vst [vmem:[%s500 + $0x4] sm:$0xf] %v1393
        %1402 = vst [vmem:[%s500 + $0x8] sm:$0xf] %v1394
        %1403 = vst [vmem:[%s500 + $0xc] sm:$0xf] %v1395
        %s1404 = sand.u32 %s95, 1
        %s1405 = sand.u32 %s95, 1
        %s1406 = smul.addr %s1405, 16
        %s1407 = scalar_lea.vmem [#allocation3], %s1406
        // Predicated region
        $region74: #{_stage1.5} parent=68 // pred_check
          %p1408 = pneg %p105
        $region75: #{_stage1.5} parent=68 // pred_check_branch
          %1410 = sbr.rel (%p1408) target = $region77
        $region76: #{_stage1.5} parent=68 // pred_region
          %s1411 = smul.addr %s14, 4
          %s1412 = scalar_lea.vmem %s3, %s1411
          // Predicated region
          $region78: #{_stage1.5} parent=76 // pred_check
            _
          $region79: #{_stage1.5} parent=76 // pred_check_branch
            %1414 = sbr.rel (0) target = $region81
          $region80: #{_stage1.5} parent=76 // pred_region
            // Predicated region
            $region82: #{_stage1.5} parent=80 // pred_check
              _
            $region83: #{_stage1.5} parent=80 // pred_check_branch
              %1416 = sbr.rel target = $region85
            $region84: #{_stage1.5} parent=80 // pred_region
              // Predicated region
              $region97: #{_stage1.5} parent=84 // pred_check
                _
              $region98: #{_stage1.5} parent=84 // pred_check_branch
                %1437 = sbr.rel (0) target = $region100
              $region99: #{_stage1.5} parent=84 // pred_region
                loop: start=0, step=1, limit=1
                $region101: #{_stage1.5} parent=99 // loop_pre_header
                  _
                $region102: #{_stage1.5} parent=99 // loop_header
                  %s1439 = sphi 0, %s1443
                  %p1440 = scmp.ge.s32.totalorder %s1439, 1
                  %s1444 = sphi %s1407, %s1407
                  %s1445 = sphi %s1412, %s1412
                $region103: #{_stage1.5} parent=99 // loop_header_branch
                  %1442 = sbr.rel (%p1440) target = $region107
                $region104: #{_stage1.5} parent=99 // loop_body
                  _
                $region105: #{_stage1.5} parent=99 // loop_footer
                  %s1443 = sadd.s32 1, %s1439
                $region106: #{_stage1.5} parent=99 // loop_footer_branch
                  %1438 = sbr.rel target = $region102
                $region107: #{_stage1.5} parent=99 // loop_exit
                  _
                loop: start=0, step=1, limit=1
                $region108: #{_stage1.5} parent=99 // loop_pre_header
                  _
                $region109: #{_stage1.5} parent=99 // loop_header
                  %s1448 = sphi 0, %s1452
                  %p1449 = scmp.ge.s32.totalorder %s1448, 1
                  %s1453 = sphi %s1407, %s1407
                  %s1454 = sphi %s1412, %s1412
                $region110: #{_stage1.5} parent=99 // loop_header_branch
                  %1451 = sbr.rel (%p1449) target = $region114
                $region111: #{_stage1.5} parent=99 // loop_body
                  %v1455 = vld [vmem:[%s1453] sm:$0xf]
                  %1456 = vst [vmem:[%s1454] sm:$0xf] %v1455
                  %v1457 = vld [vmem:[%s1453 + $0x4] sm:$0xf]
                  %1458 = vst [vmem:[%s1454 + $0x8] sm:$0xf] %v1457
                  %v1459 = vld [vmem:[%s1453 + $0x8] sm:$0xf]
                  %1460 = vst [vmem:[%s1454 + $0x10] sm:$0xf] %v1459
                  %v1461 = vld [vmem:[%s1453 + $0xc] sm:$0xf]
                  %1462 = vst [vmem:[%s1454 + $0x18] sm:$0xf] %v1461
                $region112: #{_stage1.5} parent=99 // loop_footer
                  %s1452 = sadd.s32 1, %s1448
                $region113: #{_stage1.5} parent=99 // loop_footer_branch
                  %1447 = sbr.rel target = $region109
                $region114: #{_stage1.5} parent=99 // loop_exit
                  _
              $region100: #{_stage1.5} parent=84 // pred_fallthru
                _
            $region85: #{_stage1.5} parent=80 // pred_fallthru
              _
            // Predicated region
            $region86: #{_stage1.5} parent=80 // pred_check
              _
            $region87: #{_stage1.5} parent=80 // pred_check_branch
              %1418 = sbr.rel (0) target = $region89
            $region88: #{_stage1.5} parent=80 // pred_region
              loop: start=0, step=1, limit=1
              $region90: #{_stage1.5} parent=88 // loop_pre_header
                _
              $region91: #{_stage1.5} parent=88 // loop_header
                %s1421 = sphi 0, %s1425
                %p1422 = scmp.ge.s32.totalorder %s1421, 1
                %s1426 = sphi %s1407, %s1407
                %s1427 = sphi %s1412, %s1412
              $region92: #{_stage1.5} parent=88 // loop_header_branch
                %1424 = sbr.rel (%p1422) target = $region96
              $region93: #{_stage1.5} parent=88 // loop_body
                %v1428 = vld [vmem:[%s1426] sm:$0xf]
                %1429 = vst [vmem:[%s1427] sm:$0xf] %v1428
                %v1430 = vld [vmem:[%s1426 + $0x4] sm:$0xf]
                %1431 = vst [vmem:[%s1427 + $0x8] sm:$0xf] %v1430
                %v1432 = vld [vmem:[%s1426 + $0x8] sm:$0xf]
                %1433 = vst [vmem:[%s1427 + $0x10] sm:$0xf] %v1432
                %v1434 = vld [vmem:[%s1426 + $0xc] sm:$0xf]
                %1435 = vst [vmem:[%s1427 + $0x18] sm:$0xf] %v1434
              $region94: #{_stage1.5} parent=88 // loop_footer
                %s1425 = sadd.s32 1, %s1421
              $region95: #{_stage1.5} parent=88 // loop_footer_branch
                %1420 = sbr.rel target = $region91
              $region96: #{_stage1.5} parent=88 // loop_exit
                _
            $region89: #{_stage1.5} parent=80 // pred_fallthru
              _
          $region81: #{_stage1.5} parent=76 // pred_fallthru
            _
          %1463 = vnop
        $region77: #{_stage1.5} parent=68 // pred_fallthru
          _
      $region69: #{_stage1.5} parent=5 // pred_fallthru
        _
      %p1464 = scmp.le.s32.totalorder 2, %s9
      // Predicated region
      $region115: #{_stage1.5} parent=5 // pred_check
        %p1465 = pneg %p1464
      $region116: #{_stage1.5} parent=5 // pred_check_branch
        %1467 = sbr.rel (%p1465) target = $region118
      $region117: #{_stage1.5} parent=5 // pred_region
        %s1468 = ssub.s32 %s9, 2
        // Predicated region
        $region119: #{_stage1.5} parent=117 // pred_check
          %p1469 = pneg %p111
        $region120: #{_stage1.5} parent=117 // pred_check_branch
          %1471 = sbr.rel (%p1469) target = $region122
        $region121: #{_stage1.5} parent=117 // pred_region
          %s1472 = sand.u32 %s96, 1
          %s1473 = sand.u32 %s96, 1
          %s1474 = smul.addr %s1473, 16
          %s1475 = scalar_lea.vmem [#allocation3], %s1474
        $region122: #{_stage1.5} parent=117 // pred_fallthru
          _
      $region118: #{_stage1.5} parent=5 // pred_fallthru
        _
    $region6: #{_stage1.5} parent=1 // loop_footer
      %s13 = sadd.s32 1, %s9
    $region7: #{_stage1.5} parent=1 // loop_footer_branch
      %8 = sbr.rel target = $region3
    $region8: #{_stage1.5} parent=1 // loop_exit
      _

// kernel: _stage1.6
$region0: #{_stage1.6}
  #allocation0 [shape = 'u32[]', space=smem, size = 0x4, offset = 0x4, fixed_abs, tag = 'smem constant byte address 0x4 - core index']
  #allocation1 [shape = 'u32[144,128]{1,0:T(1,128)}', space=vmem, size = 0x12000, scoped, tag = 'internal scratch']
  %s0 = inlined_call_operand.vmem [shape: bf16[32,2304], index: 0, kind: input, shape index: {}]
  %s1 = inlined_call_operand.vmem [shape: bf16[2304,128], index: 1, kind: input, shape index: {}]
  %s2 = inlined_call_operand.vmem [shape: f32[1,128], index: 2, kind: input, shape index: {}]
  %s3 = inlined_call_operand.vmem [shape: bf16[8,128], index: 3, kind: output, shape index: {}]
  %s4 = sld [smem:[#allocation0]]
  $region22: #{_stage1.6} parent=0
    _
  %s6 = ssub.s32 1, %s4
  %s7 = scalar_select 0, %s6, %s4
  // Predicated region
  $region2: #{_stage1.6} parent=0 // pred_check
    _
  $region3: #{_stage1.6} parent=0 // pred_check_branch
    %9 = sbr.rel (0) target = $region5
  $region4: #{_stage1.6} parent=0 // pred_region
    _
  $region5: #{_stage1.6} parent=0 // pred_fallthru
    _
  // Predicated region
  $region6: #{_stage1.6} parent=0 // pred_check
    _
  $region7: #{_stage1.6} parent=0 // pred_check_branch
    %11 = sbr.rel (0) target = $region9
  $region8: #{_stage1.6} parent=0 // pred_region
    _
  $region9: #{_stage1.6} parent=0 // pred_fallthru
    _
  // Predicated region
  $region10: #{_stage1.6} parent=0 // pred_check
    _
  $region11: #{_stage1.6} parent=0 // pred_check_branch
    %13 = sbr.rel (0) target = $region13
  $region12: #{_stage1.6} parent=0 // pred_region
    _
  $region13: #{_stage1.6} parent=0 // pred_fallthru
    _
  %v15 = vld [vmem:[%s1] sm:$0xf]
  %v16 = vld [vmem:[%s1 + $0x4] sm:$0xf]
  %v17 = vld [vmem:[%s1 + $0x8] sm:$0xf]
  %v18 = vld [vmem:[%s1 + $0xc] sm:$0xf]
  %v19 = vld [vmem:[%s1 + $0x10] sm:$0xf]
  %v20 = vld [vmem:[%s1 + $0x14] sm:$0xf]
  %v21 = vld [vmem:[%s1 + $0x18] sm:$0xf]
  %v22 = vld [vmem:[%s1 + $0x1c] sm:$0xf]
  %v23 = vld [vmem:[%s1 + $0x20] sm:$0xf]
  %v24 = vld [vmem:[%s1 + $0x24] sm:$0xf]
  %v25 = vld [vmem:[%s1 + $0x28] sm:$0xf]
  %v26 = vld [vmem:[%s1 + $0x2c] sm:$0xf]
  %v27 = vld [vmem:[%s1 + $0x30] sm:$0xf]
  %v28 = vld [vmem:[%s1 + $0x34] sm:$0xf]
  %v29 = vld [vmem:[%s1 + $0x38] sm:$0xf]
  %v30 = vld [vmem:[%s1 + $0x3c] sm:$0xf]
  %v31 = vld [vmem:[%s1 + $0x40] sm:$0xf]
  %v32 = vld [vmem:[%s1 + $0x44] sm:$0xf]
  %v33 = vld [vmem:[%s1 + $0x48] sm:$0xf]
  %v34 = vld [vmem:[%s1 + $0x4c] sm:$0xf]
  %v35 = vld [vmem:[%s1 + $0x50] sm:$0xf]
  %v36 = vld [vmem:[%s1 + $0x54] sm:$0xf]
  %v37 = vld [vmem:[%s1 + $0x58] sm:$0xf]
  %v38 = vld [vmem:[%s1 + $0x5c] sm:$0xf]
  %v39 = vld [vmem:[%s1 + $0x60] sm:$0xf]
  %v40 = vld [vmem:[%s1 + $0x64] sm:$0xf]
  %v41 = vld [vmem:[%s1 + $0x68] sm:$0xf]
  %v42 = vld [vmem:[%s1 + $0x6c] sm:$0xf]
  %v43 = vld [vmem:[%s1 + $0x70] sm:$0xf]
  %v44 = vld [vmem:[%s1 + $0x74] sm:$0xf]
  %v45 = vld [vmem:[%s1 + $0x78] sm:$0xf]
  %v46 = vld [vmem:[%s1 + $0x7c] sm:$0xf]
  %v47 = vld [vmem:[%s1 + $0x80] sm:$0xf]
  %v48 = vld [vmem:[%s1 + $0x84] sm:$0xf]
  %v49 = vld [vmem:[%s1 + $0x88] sm:$0xf]
  %v50 = vld [vmem:[%s1 + $0x8c] sm:$0xf]
  %v51 = vld [vmem:[%s1 + $0x90] sm:$0xf]
  %v52 = vld [vmem:[%s1 + $0x94] sm:$0xf]
  %v53 = vld [vmem:[%s1 + $0x98] sm:$0xf]
  %v54 = vld [vmem:[%s1 + $0x9c] sm:$0xf]
  %v55 = vld [vmem:[%s1 + $0xa0] sm:$0xf]
  %v56 = vld [vmem:[%s1 + $0xa4] sm:$0xf]
  %v57 = vld [vmem:[%s1 + $0xa8] sm:$0xf]
  %v58 = vld [vmem:[%s1 + $0xac] sm:$0xf]
  %v59 = vld [vmem:[%s1 + $0xb0] sm:$0xf]
  %v60 = vld [vmem:[%s1 + $0xb4] sm:$0xf]
  %v61 = vld [vmem:[%s1 + $0xb8] sm:$0xf]
  %v62 = vld [vmem:[%s1 + $0xbc] sm:$0xf]
  %v63 = vld [vmem:[%s1 + $0xc0] sm:$0xf]
  %v64 = vld [vmem:[%s1 + $0xc4] sm:$0xf]
  %v65 = vld [vmem:[%s1 + $0xc8] sm:$0xf]
  %v66 = vld [vmem:[%s1 + $0xcc] sm:$0xf]
  %v67 = vld [vmem:[%s1 + $0xd0] sm:$0xf]
  %v68 = vld [vmem:[%s1 + $0xd4] sm:$0xf]
  %v69 = vld [vmem:[%s1 + $0xd8] sm:$0xf]
  %v70 = vld [vmem:[%s1 + $0xdc] sm:$0xf]
  %v71 = vld [vmem:[%s1 + $0xe0] sm:$0xf]
  %v72 = vld [vmem:[%s1 + $0xe4] sm:$0xf]
  %v73 = vld [vmem:[%s1 + $0xe8] sm:$0xf]
  %v74 = vld [vmem:[%s1 + $0xec] sm:$0xf]
  %v75 = vld [vmem:[%s1 + $0xf0] sm:$0xf]
  %v76 = vld [vmem:[%s1 + $0xf4] sm:$0xf]
  %v77 = vld [vmem:[%s1 + $0xf8] sm:$0xf]
  %v78 = vld [vmem:[%s1 + $0xfc] sm:$0xf]
  %v79 = vld [vmem:[%s1 + $0x100] sm:$0xf]
  %v80 = vld [vmem:[%s1 + $0x104] sm:$0xf]
  %v81 = vld [vmem:[%s1 + $0x108] sm:$0xf]
  %v82 = vld [vmem:[%s1 + $0x10c] sm:$0xf]
  %v83 = vld [vmem:[%s1 + $0x110] sm:$0xf]
  %v84 = vld [vmem:[%s1 + $0x114] sm:$0xf]
  %v85 = vld [vmem:[%s1 + $0x118] sm:$0xf]
  %v86 = vld [vmem:[%s1 + $0x11c] sm:$0xf]
  %v87 = vld [vmem:[%s1 + $0x120] sm:$0xf]
  %v88 = vld [vmem:[%s1 + $0x124] sm:$0xf]
  %v89 = vld [vmem:[%s1 + $0x128] sm:$0xf]
  %v90 = vld [vmem:[%s1 + $0x12c] sm:$0xf]
  %v91 = vld [vmem:[%s1 + $0x130] sm:$0xf]
  %v92 = vld [vmem:[%s1 + $0x134] sm:$0xf]
  %v93 = vld [vmem:[%s1 + $0x138] sm:$0xf]
  %v94 = vld [vmem:[%s1 + $0x13c] sm:$0xf]
  %v95 = vld [vmem:[%s1 + $0x140] sm:$0xf]
  %v96 = vld [vmem:[%s1 + $0x144] sm:$0xf]
  %v97 = vld [vmem:[%s1 + $0x148] sm:$0xf]
  %v98 = vld [vmem:[%s1 + $0x14c] sm:$0xf]
  %v99 = vld [vmem:[%s1 + $0x150] sm:$0xf]
  %v100 = vld [vmem:[%s1 + $0x154] sm:$0xf]
  %v101 = vld [vmem:[%s1 + $0x158] sm:$0xf]
  %v102 = vld [vmem:[%s1 + $0x15c] sm:$0xf]
  %v103 = vld [vmem:[%s1 + $0x160] sm:$0xf]
  %v104 = vld [vmem:[%s1 + $0x164] sm:$0xf]
  %v105 = vld [vmem:[%s1 + $0x168] sm:$0xf]
  %v106 = vld [vmem:[%s1 + $0x16c] sm:$0xf]
  %v107 = vld [vmem:[%s1 + $0x170] sm:$0xf]
  %v108 = vld [vmem:[%s1 + $0x174] sm:$0xf]
  %v109 = vld [vmem:[%s1 + $0x178] sm:$0xf]
  %v110 = vld [vmem:[%s1 + $0x17c] sm:$0xf]
  %v111 = vld [vmem:[%s1 + $0x180] sm:$0xf]
  %v112 = vld [vmem:[%s1 + $0x184] sm:$0xf]
  %v113 = vld [vmem:[%s1 + $0x188] sm:$0xf]
  %v114 = vld [vmem:[%s1 + $0x18c] sm:$0xf]
  %v115 = vld [vmem:[%s1 + $0x190] sm:$0xf]
  %v116 = vld [vmem:[%s1 + $0x194] sm:$0xf]
  %v117 = vld [vmem:[%s1 + $0x198] sm:$0xf]
  %v118 = vld [vmem:[%s1 + $0x19c] sm:$0xf]
  %v119 = vld [vmem:[%s1 + $0x1a0] sm:$0xf]
  %v120 = vld [vmem:[%s1 + $0x1a4] sm:$0xf]
  %v121 = vld [vmem:[%s1 + $0x1a8] sm:$0xf]
  %v122 = vld [vmem:[%s1 + $0x1ac] sm:$0xf]
  %v123 = vld [vmem:[%s1 + $0x1b0] sm:$0xf]
  %v124 = vld [vmem:[%s1 + $0x1b4] sm:$0xf]
  %v125 = vld [vmem:[%s1 + $0x1b8] sm:$0xf]
  %v126 = vld [vmem:[%s1 + $0x1bc] sm:$0xf]
  %v127 = vld [vmem:[%s1 + $0x1c0] sm:$0xf]
  %v128 = vld [vmem:[%s1 + $0x1c4] sm:$0xf]
  %v129 = vld [vmem:[%s1 + $0x1c8] sm:$0xf]
  %v130 = vld [vmem:[%s1 + $0x1cc] sm:$0xf]
  %v131 = vld [vmem:[%s1 + $0x1d0] sm:$0xf]
  %v132 = vld [vmem:[%s1 + $0x1d4] sm:$0xf]
  %v133 = vld [vmem:[%s1 + $0x1d8] sm:$0xf]
  %v134 = vld [vmem:[%s1 + $0x1dc] sm:$0xf]
  %v135 = vld [vmem:[%s1 + $0x1e0] sm:$0xf]
  %v136 = vld [vmem:[%s1 + $0x1e4] sm:$0xf]
  %v137 = vld [vmem:[%s1 + $0x1e8] sm:$0xf]
  %v138 = vld [vmem:[%s1 + $0x1ec] sm:$0xf]
  %v139 = vld [vmem:[%s1 + $0x1f0] sm:$0xf]
  %v140 = vld [vmem:[%s1 + $0x1f4] sm:$0xf]
  %v141 = vld [vmem:[%s1 + $0x1f8] sm:$0xf]
  %v142 = vld [vmem:[%s1 + $0x1fc] sm:$0xf]
  %v143 = vld [vmem:[%s1 + $0x200] sm:$0xf]
  %v144 = vld [vmem:[%s1 + $0x204] sm:$0xf]
  %v145 = vld [vmem:[%s1 + $0x208] sm:$0xf]
  %v146 = vld [vmem:[%s1 + $0x20c] sm:$0xf]
  %v147 = vld [vmem:[%s1 + $0x210] sm:$0xf]
  %v148 = vld [vmem:[%s1 + $0x214] sm:$0xf]
  %v149 = vld [vmem:[%s1 + $0x218] sm:$0xf]
  %v150 = vld [vmem:[%s1 + $0x21c] sm:$0xf]
  %v151 = vld [vmem:[%s1 + $0x220] sm:$0xf]
  %v152 = vld [vmem:[%s1 + $0x224] sm:$0xf]
  %v153 = vld [vmem:[%s1 + $0x228] sm:$0xf]
  %v154 = vld [vmem:[%s1 + $0x22c] sm:$0xf]
  %v155 = vld [vmem:[%s1 + $0x230] sm:$0xf]
  %v156 = vld [vmem:[%s1 + $0x234] sm:$0xf]
  %v157 = vld [vmem:[%s1 + $0x238] sm:$0xf]
  %v158 = vld [vmem:[%s1 + $0x23c] sm:$0xf]
  %v159 = vld [vmem:[%s1 + $0x240] sm:$0xf]
  %v160 = vld [vmem:[%s1 + $0x244] sm:$0xf]
  %v161 = vld [vmem:[%s1 + $0x248] sm:$0xf]
  %v162 = vld [vmem:[%s1 + $0x24c] sm:$0xf]
  %v163 = vld [vmem:[%s1 + $0x250] sm:$0xf]
  %v164 = vld [vmem:[%s1 + $0x254] sm:$0xf]
  %v165 = vld [vmem:[%s1 + $0x258] sm:$0xf]
  %v166 = vld [vmem:[%s1 + $0x25c] sm:$0xf]
  %v167 = vld [vmem:[%s1 + $0x260] sm:$0xf]
  %v168 = vld [vmem:[%s1 + $0x264] sm:$0xf]
  %v169 = vld [vmem:[%s1 + $0x268] sm:$0xf]
  %v170 = vld [vmem:[%s1 + $0x26c] sm:$0xf]
  %v171 = vld [vmem:[%s1 + $0x270] sm:$0xf]
  %v172 = vld [vmem:[%s1 + $0x274] sm:$0xf]
  %v173 = vld [vmem:[%s1 + $0x278] sm:$0xf]
  %v174 = vld [vmem:[%s1 + $0x27c] sm:$0xf]
  %v175 = vld [vmem:[%s1 + $0x280] sm:$0xf]
  %v176 = vld [vmem:[%s1 + $0x284] sm:$0xf]
  %v177 = vld [vmem:[%s1 + $0x288] sm:$0xf]
  %v178 = vld [vmem:[%s1 + $0x28c] sm:$0xf]
  %v179 = vld [vmem:[%s1 + $0x290] sm:$0xf]
  %v180 = vld [vmem:[%s1 + $0x294] sm:$0xf]
  %v181 = vld [vmem:[%s1 + $0x298] sm:$0xf]
  %v182 = vld [vmem:[%s1 + $0x29c] sm:$0xf]
  %v183 = vld [vmem:[%s1 + $0x2a0] sm:$0xf]
  %v184 = vld [vmem:[%s1 + $0x2a4] sm:$0xf]
  %v185 = vld [vmem:[%s1 + $0x2a8] sm:$0xf]
  %v186 = vld [vmem:[%s1 + $0x2ac] sm:$0xf]
  %v187 = vld [vmem:[%s1 + $0x2b0] sm:$0xf]
  %v188 = vld [vmem:[%s1 + $0x2b4] sm:$0xf]
  %v189 = vld [vmem:[%s1 + $0x2b8] sm:$0xf]
  %v190 = vld [vmem:[%s1 + $0x2bc] sm:$0xf]
  %v191 = vld [vmem:[%s1 + $0x2c0] sm:$0xf]
  %v192 = vld [vmem:[%s1 + $0x2c4] sm:$0xf]
  %v193 = vld [vmem:[%s1 + $0x2c8] sm:$0xf]
  %v194 = vld [vmem:[%s1 + $0x2cc] sm:$0xf]
  %v195 = vld [vmem:[%s1 + $0x2d0] sm:$0xf]
  %v196 = vld [vmem:[%s1 + $0x2d4] sm:$0xf]
  %v197 = vld [vmem:[%s1 + $0x2d8] sm:$0xf]
  %v198 = vld [vmem:[%s1 + $0x2dc] sm:$0xf]
  %v199 = vld [vmem:[%s1 + $0x2e0] sm:$0xf]
  %v200 = vld [vmem:[%s1 + $0x2e4] sm:$0xf]
  %v201 = vld [vmem:[%s1 + $0x2e8] sm:$0xf]
  %v202 = vld [vmem:[%s1 + $0x2ec] sm:$0xf]
  %v203 = vld [vmem:[%s1 + $0x2f0] sm:$0xf]
  %v204 = vld [vmem:[%s1 + $0x2f4] sm:$0xf]
  %v205 = vld [vmem:[%s1 + $0x2f8] sm:$0xf]
  %v206 = vld [vmem:[%s1 + $0x2fc] sm:$0xf]
  %v207 = vld [vmem:[%s1 + $0x300] sm:$0xf]
  %v208 = vld [vmem:[%s1 + $0x304] sm:$0xf]
  %v209 = vld [vmem:[%s1 + $0x308] sm:$0xf]
  %v210 = vld [vmem:[%s1 + $0x30c] sm:$0xf]
  %v211 = vld [vmem:[%s1 + $0x310] sm:$0xf]
  %v212 = vld [vmem:[%s1 + $0x314] sm:$0xf]
  %v213 = vld [vmem:[%s1 + $0x318] sm:$0xf]
  %v214 = vld [vmem:[%s1 + $0x31c] sm:$0xf]
  %v215 = vld [vmem:[%s1 + $0x320] sm:$0xf]
  %v216 = vld [vmem:[%s1 + $0x324] sm:$0xf]
  %v217 = vld [vmem:[%s1 + $0x328] sm:$0xf]
  %v218 = vld [vmem:[%s1 + $0x32c] sm:$0xf]
  %v219 = vld [vmem:[%s1 + $0x330] sm:$0xf]
  %v220 = vld [vmem:[%s1 + $0x334] sm:$0xf]
  %v221 = vld [vmem:[%s1 + $0x338] sm:$0xf]
  %v222 = vld [vmem:[%s1 + $0x33c] sm:$0xf]
  %v223 = vld [vmem:[%s1 + $0x340] sm:$0xf]
  %v224 = vld [vmem:[%s1 + $0x344] sm:$0xf]
  %v225 = vld [vmem:[%s1 + $0x348] sm:$0xf]
  %v226 = vld [vmem:[%s1 + $0x34c] sm:$0xf]
  %v227 = vld [vmem:[%s1 + $0x350] sm:$0xf]
  %v228 = vld [vmem:[%s1 + $0x354] sm:$0xf]
  %v229 = vld [vmem:[%s1 + $0x358] sm:$0xf]
  %v230 = vld [vmem:[%s1 + $0x35c] sm:$0xf]
  %v231 = vld [vmem:[%s1 + $0x360] sm:$0xf]
  %v232 = vld [vmem:[%s1 + $0x364] sm:$0xf]
  %v233 = vld [vmem:[%s1 + $0x368] sm:$0xf]
  %v234 = vld [vmem:[%s1 + $0x36c] sm:$0xf]
  %v235 = vld [vmem:[%s1 + $0x370] sm:$0xf]
  %v236 = vld [vmem:[%s1 + $0x374] sm:$0xf]
  %v237 = vld [vmem:[%s1 + $0x378] sm:$0xf]
  %v238 = vld [vmem:[%s1 + $0x37c] sm:$0xf]
  %v239 = vld [vmem:[%s1 + $0x380] sm:$0xf]
  %v240 = vld [vmem:[%s1 + $0x384] sm:$0xf]
  %v241 = vld [vmem:[%s1 + $0x388] sm:$0xf]
  %v242 = vld [vmem:[%s1 + $0x38c] sm:$0xf]
  %v243 = vld [vmem:[%s1 + $0x390] sm:$0xf]
  %v244 = vld [vmem:[%s1 + $0x394] sm:$0xf]
  %v245 = vld [vmem:[%s1 + $0x398] sm:$0xf]
  %v246 = vld [vmem:[%s1 + $0x39c] sm:$0xf]
  %v247 = vld [vmem:[%s1 + $0x3a0] sm:$0xf]
  %v248 = vld [vmem:[%s1 + $0x3a4] sm:$0xf]
  %v249 = vld [vmem:[%s1 + $0x3a8] sm:$0xf]
  %v250 = vld [vmem:[%s1 + $0x3ac] sm:$0xf]
  %v251 = vld [vmem:[%s1 + $0x3b0] sm:$0xf]
  %v252 = vld [vmem:[%s1 + $0x3b4] sm:$0xf]
  %v253 = vld [vmem:[%s1 + $0x3b8] sm:$0xf]
  %v254 = vld [vmem:[%s1 + $0x3bc] sm:$0xf]
  %v255 = vld [vmem:[%s1 + $0x3c0] sm:$0xf]
  %v256 = vld [vmem:[%s1 + $0x3c4] sm:$0xf]
  %v257 = vld [vmem:[%s1 + $0x3c8] sm:$0xf]
  %v258 = vld [vmem:[%s1 + $0x3cc] sm:$0xf]
  %v259 = vld [vmem:[%s1 + $0x3d0] sm:$0xf]
  %v260 = vld [vmem:[%s1 + $0x3d4] sm:$0xf]
  %v261 = vld [vmem:[%s1 + $0x3d8] sm:$0xf]
  %v262 = vld [vmem:[%s1 + $0x3dc] sm:$0xf]
  %v263 = vld [vmem:[%s1 + $0x3e0] sm:$0xf]
  %v264 = vld [vmem:[%s1 + $0x3e4] sm:$0xf]
  %v265 = vld [vmem:[%s1 + $0x3e8] sm:$0xf]
  %v266 = vld [vmem:[%s1 + $0x3ec] sm:$0xf]
  %v267 = vld [vmem:[%s1 + $0x3f0] sm:$0xf]
  %v268 = vld [vmem:[%s1 + $0x3f4] sm:$0xf]
  %v269 = vld [vmem:[%s1 + $0x3f8] sm:$0xf]
  %v270 = vld [vmem:[%s1 + $0x3fc] sm:$0xf]
  %v271 = vld [vmem:[%s1 + $0x400] sm:$0xf]
  %v272 = vld [vmem:[%s1 + $0x404] sm:$0xf]
  %v273 = vld [vmem:[%s1 + $0x408] sm:$0xf]
  %v274 = vld [vmem:[%s1 + $0x40c] sm:$0xf]
  %v275 = vld [vmem:[%s1 + $0x410] sm:$0xf]
  %v276 = vld [vmem:[%s1 + $0x414] sm:$0xf]
  %v277 = vld [vmem:[%s1 + $0x418] sm:$0xf]
  %v278 = vld [vmem:[%s1 + $0x41c] sm:$0xf]
  %v279 = vld [vmem:[%s1 + $0x420] sm:$0xf]
  %v280 = vld [vmem:[%s1 + $0x424] sm:$0xf]
  %v281 = vld [vmem:[%s1 + $0x428] sm:$0xf]
  %v282 = vld [vmem:[%s1 + $0x42c] sm:$0xf]
  %v283 = vld [vmem:[%s1 + $0x430] sm:$0xf]
  %v284 = vld [vmem:[%s1 + $0x434] sm:$0xf]
  %v285 = vld [vmem:[%s1 + $0x438] sm:$0xf]
  %v286 = vld [vmem:[%s1 + $0x43c] sm:$0xf]
  %v287 = vld [vmem:[%s1 + $0x440] sm:$0xf]
  %v288 = vld [vmem:[%s1 + $0x444] sm:$0xf]
  %v289 = vld [vmem:[%s1 + $0x448] sm:$0xf]
  %v290 = vld [vmem:[%s1 + $0x44c] sm:$0xf]
  %v291 = vld [vmem:[%s1 + $0x450] sm:$0xf]
  %v292 = vld [vmem:[%s1 + $0x454] sm:$0xf]
  %v293 = vld [vmem:[%s1 + $0x458] sm:$0xf]
  %v294 = vld [vmem:[%s1 + $0x45c] sm:$0xf]
  %v295 = vld [vmem:[%s1 + $0x460] sm:$0xf]
  %v296 = vld [vmem:[%s1 + $0x464] sm:$0xf]
  %v297 = vld [vmem:[%s1 + $0x468] sm:$0xf]
  %v298 = vld [vmem:[%s1 + $0x46c] sm:$0xf]
  %v299 = vld [vmem:[%s1 + $0x470] sm:$0xf]
  %v300 = vld [vmem:[%s1 + $0x474] sm:$0xf]
  %v301 = vld [vmem:[%s1 + $0x478] sm:$0xf]
  %v302 = vld [vmem:[%s1 + $0x47c] sm:$0xf]
  %v303 = vld [vmem:[%s0] sm:$0xff]
  %v304 = vld [vmem:[%s0 + $0x8] sm:$0xff]
  %v305 = vld [vmem:[%s0 + $0x10] sm:$0xff]
  %v306 = vld [vmem:[%s0 + $0x18] sm:$0xff]
  %v307 = vld [vmem:[%s0 + $0x20] sm:$0xff]
  %v308 = vld [vmem:[%s0 + $0x28] sm:$0xff]
  %v309 = vld [vmem:[%s0 + $0x30] sm:$0xff]
  %v310 = vld [vmem:[%s0 + $0x38] sm:$0xff]
  %v311 = vld [vmem:[%s0 + $0x40] sm:$0xff]
  %v312 = vld [vmem:[%s0 + $0x48] sm:$0xff]
  %v313 = vld [vmem:[%s0 + $0x50] sm:$0xff]
  %v314 = vld [vmem:[%s0 + $0x58] sm:$0xff]
  %v315 = vld [vmem:[%s0 + $0x60] sm:$0xff]
  %v316 = vld [vmem:[%s0 + $0x68] sm:$0xff]
  %v317 = vld [vmem:[%s0 + $0x70] sm:$0xff]
  %v318 = vld [vmem:[%s0 + $0x78] sm:$0xff]
  %v319 = vld [vmem:[%s0 + $0x80] sm:$0xff]
  %v320 = vld [vmem:[%s0 + $0x88] sm:$0xff]
  %v321 = vld [vmem:[%s0 + $0x90] sm:$0xff]
  %v322 = vld [vmem:[%s0 + $0x98] sm:$0xff]
  %v323 = vld [vmem:[%s0 + $0xa0] sm:$0xff]
  %v324 = vld [vmem:[%s0 + $0xa8] sm:$0xff]
  %v325 = vld [vmem:[%s0 + $0xb0] sm:$0xff]
  %v326 = vld [vmem:[%s0 + $0xb8] sm:$0xff]
  %v327 = vld [vmem:[%s0 + $0xc0] sm:$0xff]
  %v328 = vld [vmem:[%s0 + $0xc8] sm:$0xff]
  %v329 = vld [vmem:[%s0 + $0xd0] sm:$0xff]
  %v330 = vld [vmem:[%s0 + $0xd8] sm:$0xff]
  %v331 = vld [vmem:[%s0 + $0xe0] sm:$0xff]
  %v332 = vld [vmem:[%s0 + $0xe8] sm:$0xff]
  %v333 = vld [vmem:[%s0 + $0xf0] sm:$0xff]
  %v334 = vld [vmem:[%s0 + $0xf8] sm:$0xff]
  %v335 = vld [vmem:[%s0 + $0x100] sm:$0xff]
  %v336 = vld [vmem:[%s0 + $0x108] sm:$0xff]
  %v337 = vld [vmem:[%s0 + $0x110] sm:$0xff]
  %v338 = vld [vmem:[%s0 + $0x118] sm:$0xff]
  %v375 = vunpack.c.l.b16 %v303
  %v376 = vunpack.c.h.b16 %v303
  %v377 = vunpack.c.l.b16 %v304
  %v378 = vunpack.c.h.b16 %v304
  %v379 = vunpack.c.l.b16 %v305
  %v380 = vunpack.c.h.b16 %v305
  %v381 = vunpack.c.l.b16 %v306
  %v382 = vunpack.c.h.b16 %v306
  %v383 = vunpack.c.l.b16 %v307
  %v384 = vunpack.c.h.b16 %v307
  %v385 = vunpack.c.l.b16 %v308
  %v386 = vunpack.c.h.b16 %v308
  %v387 = vunpack.c.l.b16 %v309
  %v388 = vunpack.c.h.b16 %v309
  %v389 = vunpack.c.l.b16 %v310
  %v390 = vunpack.c.h.b16 %v310
  %v391 = vunpack.c.l.b16 %v311
  %v392 = vunpack.c.h.b16 %v311
  %v393 = vunpack.c.l.b16 %v312
  %v394 = vunpack.c.h.b16 %v312
  %v395 = vunpack.c.l.b16 %v313
  %v396 = vunpack.c.h.b16 %v313
  %v397 = vunpack.c.l.b16 %v314
  %v398 = vunpack.c.h.b16 %v314
  %v399 = vunpack.c.l.b16 %v315
  %v400 = vunpack.c.h.b16 %v315
  %v401 = vunpack.c.l.b16 %v316
  %v402 = vunpack.c.h.b16 %v316
  %v403 = vunpack.c.l.b16 %v317
  %v404 = vunpack.c.h.b16 %v317
  %v405 = vunpack.c.l.b16 %v318
  %v406 = vunpack.c.h.b16 %v318
  %v407 = vunpack.c.l.b16 %v319
  %v408 = vunpack.c.h.b16 %v319
  %v409 = vunpack.c.l.b16 %v320
  %v410 = vunpack.c.h.b16 %v320
  %v411 = vunpack.c.l.b16 %v321
  %v412 = vunpack.c.h.b16 %v321
  %v413 = vunpack.c.l.b16 %v322
  %v414 = vunpack.c.h.b16 %v322
  %v415 = vunpack.c.l.b16 %v323
  %v416 = vunpack.c.h.b16 %v323
  %v417 = vunpack.c.l.b16 %v324
  %v418 = vunpack.c.h.b16 %v324
  %v419 = vunpack.c.l.b16 %v325
  %v420 = vunpack.c.h.b16 %v325
  %v421 = vunpack.c.l.b16 %v326
  %v422 = vunpack.c.h.b16 %v326
  %v423 = vunpack.c.l.b16 %v327
  %v424 = vunpack.c.h.b16 %v327
  %v425 = vunpack.c.l.b16 %v328
  %v426 = vunpack.c.h.b16 %v328
  %v427 = vunpack.c.l.b16 %v329
  %v428 = vunpack.c.h.b16 %v329
  %v429 = vunpack.c.l.b16 %v330
  %v430 = vunpack.c.h.b16 %v330
  %v431 = vunpack.c.l.b16 %v331
  %v432 = vunpack.c.h.b16 %v331
  %v433 = vunpack.c.l.b16 %v332
  %v434 = vunpack.c.h.b16 %v332
  %v435 = vunpack.c.l.b16 %v333
  %v436 = vunpack.c.h.b16 %v333
  %v437 = vunpack.c.l.b16 %v334
  %v438 = vunpack.c.h.b16 %v334
  %v439 = vunpack.c.l.b16 %v335
  %v440 = vunpack.c.h.b16 %v335
  %v441 = vunpack.c.l.b16 %v336
  %v442 = vunpack.c.h.b16 %v336
  %v443 = vunpack.c.l.b16 %v337
  %v444 = vunpack.c.h.b16 %v337
  %v445 = vunpack.c.l.b16 %v338
  %v446 = vunpack.c.h.b16 %v338
  %v447 = vpack.c.b16 %v393, %v375
  %v448 = vpack.c.b16 %v394, %v376
  %v449 = vpack.c.b16 %v395, %v377
  %v450 = vpack.c.b16 %v396, %v378
  %v451 = vpack.c.b16 %v397, %v379
  %v452 = vpack.c.b16 %v398, %v380
  %v453 = vpack.c.b16 %v399, %v381
  %v454 = vpack.c.b16 %v400, %v382
  %v455 = vpack.c.b16 %v401, %v383
  %v456 = vpack.c.b16 %v402, %v384
  %v457 = vpack.c.b16 %v403, %v385
  %v458 = vpack.c.b16 %v404, %v386
  %v459 = vpack.c.b16 %v405, %v387
  %v460 = vpack.c.b16 %v406, %v388
  %v461 = vpack.c.b16 %v407, %v389
  %v462 = vpack.c.b16 %v408, %v390
  %v463 = vpack.c.b16 %v409, %v391
  %v464 = vpack.c.b16 %v410, %v392
  %v465 = vpack.c.b16 %v429, %v411
  %v466 = vpack.c.b16 %v430, %v412
  %v467 = vpack.c.b16 %v431, %v413
  %v468 = vpack.c.b16 %v432, %v414
  %v469 = vpack.c.b16 %v433, %v415
  %v470 = vpack.c.b16 %v434, %v416
  %v471 = vpack.c.b16 %v435, %v417
  %v472 = vpack.c.b16 %v436, %v418
  %v473 = vpack.c.b16 %v437, %v419
  %v474 = vpack.c.b16 %v438, %v420
  %v475 = vpack.c.b16 %v439, %v421
  %v476 = vpack.c.b16 %v440, %v422
  %v477 = vpack.c.b16 %v441, %v423
  %v478 = vpack.c.b16 %v442, %v424
  %v479 = vpack.c.b16 %v443, %v425
  %v480 = vpack.c.b16 %v444, %v426
  %v481 = vpack.c.b16 %v445, %v427
  %v482 = vpack.c.b16 %v446, %v428
  %v807 = vunpack.c.l.b16 %v15
  %v808 = vunpack.c.l.b16 %v16
  %v809 = vunpack.c.l.b16 %v17
  %v810 = vunpack.c.l.b16 %v18
  %v811 = vunpack.c.l.b16 %v19
  %v812 = vunpack.c.l.b16 %v20
  %v813 = vunpack.c.l.b16 %v21
  %v814 = vunpack.c.l.b16 %v22
  %v815 = vunpack.c.l.b16 %v23
  %v816 = vunpack.c.l.b16 %v24
  %v817 = vunpack.c.l.b16 %v25
  %v818 = vunpack.c.l.b16 %v26
  %v819 = vunpack.c.l.b16 %v27
  %v820 = vunpack.c.l.b16 %v28
  %v821 = vunpack.c.l.b16 %v29
  %v822 = vunpack.c.l.b16 %v30
  %v823 = vunpack.c.l.b16 %v31
  %v824 = vunpack.c.l.b16 %v32
  %v825 = vunpack.c.l.b16 %v33
  %v826 = vunpack.c.l.b16 %v34
  %v827 = vunpack.c.l.b16 %v35
  %v828 = vunpack.c.l.b16 %v36
  %v829 = vunpack.c.l.b16 %v37
  %v830 = vunpack.c.l.b16 %v38
  %v831 = vunpack.c.l.b16 %v39
  %v832 = vunpack.c.l.b16 %v40
  %v833 = vunpack.c.l.b16 %v41
  %v834 = vunpack.c.l.b16 %v42
  %v835 = vunpack.c.l.b16 %v43
  %v836 = vunpack.c.l.b16 %v44
  %v837 = vunpack.c.l.b16 %v45
  %v838 = vunpack.c.l.b16 %v46
  %v839 = vunpack.c.l.b16 %v47
  %v840 = vunpack.c.l.b16 %v48
  %v841 = vunpack.c.l.b16 %v49
  %v842 = vunpack.c.l.b16 %v50
  %v843 = vunpack.c.l.b16 %v51
  %v844 = vunpack.c.l.b16 %v52
  %v845 = vunpack.c.l.b16 %v53
  %v846 = vunpack.c.l.b16 %v54
  %v847 = vunpack.c.l.b16 %v55
  %v848 = vunpack.c.l.b16 %v56
  %v849 = vunpack.c.l.b16 %v57
  %v850 = vunpack.c.l.b16 %v58
  %v851 = vunpack.c.l.b16 %v59
  %v852 = vunpack.c.l.b16 %v60
  %v853 = vunpack.c.l.b16 %v61
  %v854 = vunpack.c.l.b16 %v62
  %v855 = vunpack.c.l.b16 %v63
  %v856 = vunpack.c.l.b16 %v64
  %v857 = vunpack.c.l.b16 %v65
  %v858 = vunpack.c.l.b16 %v66
  %v859 = vunpack.c.l.b16 %v67
  %v860 = vunpack.c.l.b16 %v68
  %v861 = vunpack.c.l.b16 %v69
  %v862 = vunpack.c.l.b16 %v70
  %v863 = vunpack.c.l.b16 %v71
  %v864 = vunpack.c.l.b16 %v72
  %v865 = vunpack.c.l.b16 %v73
  %v866 = vunpack.c.l.b16 %v74
  %v867 = vunpack.c.l.b16 %v75
  %v868 = vunpack.c.l.b16 %v76
  %v869 = vunpack.c.l.b16 %v77
  %v870 = vunpack.c.l.b16 %v78
  %v871 = vunpack.c.l.b16 %v79
  %v872 = vunpack.c.l.b16 %v80
  %v873 = vunpack.c.l.b16 %v81
  %v874 = vunpack.c.l.b16 %v82
  %v875 = vunpack.c.l.b16 %v83
  %v876 = vunpack.c.l.b16 %v84
  %v877 = vunpack.c.l.b16 %v85
  %v878 = vunpack.c.l.b16 %v86
  %v879 = vunpack.c.l.b16 %v87
  %v880 = vunpack.c.l.b16 %v88
  %v881 = vunpack.c.l.b16 %v89
  %v882 = vunpack.c.l.b16 %v90
  %v883 = vunpack.c.l.b16 %v91
  %v884 = vunpack.c.l.b16 %v92
  %v885 = vunpack.c.l.b16 %v93
  %v886 = vunpack.c.l.b16 %v94
  %v887 = vunpack.c.l.b16 %v95
  %v888 = vunpack.c.l.b16 %v96
  %v889 = vunpack.c.l.b16 %v97
  %v890 = vunpack.c.l.b16 %v98
  %v891 = vunpack.c.l.b16 %v99
  %v892 = vunpack.c.l.b16 %v100
  %v893 = vunpack.c.l.b16 %v101
  %v894 = vunpack.c.l.b16 %v102
  %v895 = vunpack.c.l.b16 %v103
  %v896 = vunpack.c.l.b16 %v104
  %v897 = vunpack.c.l.b16 %v105
  %v898 = vunpack.c.l.b16 %v106
  %v899 = vunpack.c.l.b16 %v107
  %v900 = vunpack.c.l.b16 %v108
  %v901 = vunpack.c.l.b16 %v109
  %v902 = vunpack.c.l.b16 %v110
  %v903 = vunpack.c.l.b16 %v111
  %v904 = vunpack.c.l.b16 %v112
  %v905 = vunpack.c.l.b16 %v113
  %v906 = vunpack.c.l.b16 %v114
  %v907 = vunpack.c.l.b16 %v115
  %v908 = vunpack.c.l.b16 %v116
  %v909 = vunpack.c.l.b16 %v117
  %v910 = vunpack.c.l.b16 %v118
  %v911 = vunpack.c.l.b16 %v119
  %v912 = vunpack.c.l.b16 %v120
  %v913 = vunpack.c.l.b16 %v121
  %v914 = vunpack.c.l.b16 %v122
  %v915 = vunpack.c.l.b16 %v123
  %v916 = vunpack.c.l.b16 %v124
  %v917 = vunpack.c.l.b16 %v125
  %v918 = vunpack.c.l.b16 %v126
  %v919 = vunpack.c.l.b16 %v127
  %v920 = vunpack.c.l.b16 %v128
  %v921 = vunpack.c.l.b16 %v129
  %v922 = vunpack.c.l.b16 %v130
  %v923 = vunpack.c.l.b16 %v131
  %v924 = vunpack.c.l.b16 %v132
  %v925 = vunpack.c.l.b16 %v133
  %v926 = vunpack.c.l.b16 %v134
  %v927 = vunpack.c.l.b16 %v135
  %v928 = vunpack.c.l.b16 %v136
  %v929 = vunpack.c.l.b16 %v137
  %v930 = vunpack.c.l.b16 %v138
  %v931 = vunpack.c.l.b16 %v139
  %v932 = vunpack.c.l.b16 %v140
  %v933 = vunpack.c.l.b16 %v141
  %v934 = vunpack.c.l.b16 %v142
  %v935 = vunpack.c.l.b16 %v143
  %v936 = vunpack.c.l.b16 %v144
  %v937 = vunpack.c.l.b16 %v145
  %v938 = vunpack.c.l.b16 %v146
  %v939 = vunpack.c.l.b16 %v147
  %v940 = vunpack.c.l.b16 %v148
  %v941 = vunpack.c.l.b16 %v149
  %v942 = vunpack.c.l.b16 %v150
  %v943 = vunpack.c.l.b16 %v151
  %v944 = vunpack.c.l.b16 %v152
  %v945 = vunpack.c.l.b16 %v153
  %v946 = vunpack.c.l.b16 %v154
  %v947 = vunpack.c.l.b16 %v155
  %v948 = vunpack.c.l.b16 %v156
  %v949 = vunpack.c.l.b16 %v157
  %v950 = vunpack.c.l.b16 %v158
  %v951 = vunpack.c.l.b16 %v159
  %v952 = vunpack.c.l.b16 %v160
  %v953 = vunpack.c.l.b16 %v161
  %v954 = vunpack.c.l.b16 %v162
  %v955 = vunpack.c.l.b16 %v163
  %v956 = vunpack.c.l.b16 %v164
  %v957 = vunpack.c.l.b16 %v165
  %v958 = vunpack.c.l.b16 %v166
  %v959 = vunpack.c.l.b16 %v167
  %v960 = vunpack.c.l.b16 %v168
  %v961 = vunpack.c.l.b16 %v169
  %v962 = vunpack.c.l.b16 %v170
  %v963 = vunpack.c.l.b16 %v171
  %v964 = vunpack.c.l.b16 %v172
  %v965 = vunpack.c.l.b16 %v173
  %v966 = vunpack.c.l.b16 %v174
  %v967 = vunpack.c.l.b16 %v175
  %v968 = vunpack.c.l.b16 %v176
  %v969 = vunpack.c.l.b16 %v177
  %v970 = vunpack.c.l.b16 %v178
  %v971 = vunpack.c.l.b16 %v179
  %v972 = vunpack.c.l.b16 %v180
  %v973 = vunpack.c.l.b16 %v181
  %v974 = vunpack.c.l.b16 %v182
  %v975 = vunpack.c.l.b16 %v183
  %v976 = vunpack.c.l.b16 %v184
  %v977 = vunpack.c.l.b16 %v185
  %v978 = vunpack.c.l.b16 %v186
  %v979 = vunpack.c.l.b16 %v187
  %v980 = vunpack.c.l.b16 %v188
  %v981 = vunpack.c.l.b16 %v189
  %v982 = vunpack.c.l.b16 %v190
  %v983 = vunpack.c.l.b16 %v191
  %v984 = vunpack.c.l.b16 %v192
  %v985 = vunpack.c.l.b16 %v193
  %v986 = vunpack.c.l.b16 %v194
  %v987 = vunpack.c.l.b16 %v195
  %v988 = vunpack.c.l.b16 %v196
  %v989 = vunpack.c.l.b16 %v197
  %v990 = vunpack.c.l.b16 %v198
  %v991 = vunpack.c.l.b16 %v199
  %v992 = vunpack.c.l.b16 %v200
  %v993 = vunpack.c.l.b16 %v201
  %v994 = vunpack.c.l.b16 %v202
  %v995 = vunpack.c.l.b16 %v203
  %v996 = vunpack.c.l.b16 %v204
  %v997 = vunpack.c.l.b16 %v205
  %v998 = vunpack.c.l.b16 %v206
  %v999 = vunpack.c.l.b16 %v207
  %v1000 = vunpack.c.l.b16 %v208
  %v1001 = vunpack.c.l.b16 %v209
  %v1002 = vunpack.c.l.b16 %v210
  %v1003 = vunpack.c.l.b16 %v211
  %v1004 = vunpack.c.l.b16 %v212
  %v1005 = vunpack.c.l.b16 %v213
  %v1006 = vunpack.c.l.b16 %v214
  %v1007 = vunpack.c.l.b16 %v215
  %v1008 = vunpack.c.l.b16 %v216
  %v1009 = vunpack.c.l.b16 %v217
  %v1010 = vunpack.c.l.b16 %v218
  %v1011 = vunpack.c.l.b16 %v219
  %v1012 = vunpack.c.l.b16 %v220
  %v1013 = vunpack.c.l.b16 %v221
  %v1014 = vunpack.c.l.b16 %v222
  %v1015 = vunpack.c.l.b16 %v223
  %v1016 = vunpack.c.l.b16 %v224
  %v1017 = vunpack.c.l.b16 %v225
  %v1018 = vunpack.c.l.b16 %v226
  %v1019 = vunpack.c.l.b16 %v227
  %v1020 = vunpack.c.l.b16 %v228
  %v1021 = vunpack.c.l.b16 %v229
  %v1022 = vunpack.c.l.b16 %v230
  %v1023 = vunpack.c.l.b16 %v231
  %v1024 = vunpack.c.l.b16 %v232
  %v1025 = vunpack.c.l.b16 %v233
  %v1026 = vunpack.c.l.b16 %v234
  %v1027 = vunpack.c.l.b16 %v235
  %v1028 = vunpack.c.l.b16 %v236
  %v1029 = vunpack.c.l.b16 %v237
  %v1030 = vunpack.c.l.b16 %v238
  %v1031 = vunpack.c.l.b16 %v239
  %v1032 = vunpack.c.l.b16 %v240
  %v1033 = vunpack.c.l.b16 %v241
  %v1034 = vunpack.c.l.b16 %v242
  %v1035 = vunpack.c.l.b16 %v243
  %v1036 = vunpack.c.l.b16 %v244
  %v1037 = vunpack.c.l.b16 %v245
  %v1038 = vunpack.c.l.b16 %v246
  %v1039 = vunpack.c.l.b16 %v247
  %v1040 = vunpack.c.l.b16 %v248
  %v1041 = vunpack.c.l.b16 %v249
  %v1042 = vunpack.c.l.b16 %v250
  %v1043 = vunpack.c.l.b16 %v251
  %v1044 = vunpack.c.l.b16 %v252
  %v1045 = vunpack.c.l.b16 %v253
  %v1046 = vunpack.c.l.b16 %v254
  %v1047 = vunpack.c.l.b16 %v255
  %v1048 = vunpack.c.l.b16 %v256
  %v1049 = vunpack.c.l.b16 %v257
  %v1050 = vunpack.c.l.b16 %v258
  %v1051 = vunpack.c.l.b16 %v259
  %v1052 = vunpack.c.l.b16 %v260
  %v1053 = vunpack.c.l.b16 %v261
  %v1054 = vunpack.c.l.b16 %v262
  %v1055 = vunpack.c.l.b16 %v263
  %v1056 = vunpack.c.l.b16 %v264
  %v1057 = vunpack.c.l.b16 %v265
  %v1058 = vunpack.c.l.b16 %v266
  %v1059 = vunpack.c.l.b16 %v267
  %v1060 = vunpack.c.l.b16 %v268
  %v1061 = vunpack.c.l.b16 %v269
  %v1062 = vunpack.c.l.b16 %v270
  %v1063 = vunpack.c.l.b16 %v271
  %v1064 = vunpack.c.l.b16 %v272
  %v1065 = vunpack.c.l.b16 %v273
  %v1066 = vunpack.c.l.b16 %v274
  %v1067 = vunpack.c.l.b16 %v275
  %v1068 = vunpack.c.l.b16 %v276
  %v1069 = vunpack.c.l.b16 %v277
  %v1070 = vunpack.c.l.b16 %v278
  %v1071 = vunpack.c.l.b16 %v279
  %v1072 = vunpack.c.l.b16 %v280
  %v1073 = vunpack.c.l.b16 %v281
  %v1074 = vunpack.c.l.b16 %v282
  %v1075 = vunpack.c.l.b16 %v283
  %v1076 = vunpack.c.l.b16 %v284
  %v1077 = vunpack.c.l.b16 %v285
  %v1078 = vunpack.c.l.b16 %v286
  %v1079 = vunpack.c.l.b16 %v287
  %v1080 = vunpack.c.l.b16 %v288
  %v1081 = vunpack.c.l.b16 %v289
  %v1082 = vunpack.c.l.b16 %v290
  %v1083 = vunpack.c.l.b16 %v291
  %v1084 = vunpack.c.l.b16 %v292
  %v1085 = vunpack.c.l.b16 %v293
  %v1086 = vunpack.c.l.b16 %v294
  %v1087 = vunpack.c.l.b16 %v295
  %v1088 = vunpack.c.l.b16 %v296
  %v1089 = vunpack.c.l.b16 %v297
  %v1090 = vunpack.c.l.b16 %v298
  %v1091 = vunpack.c.l.b16 %v299
  %v1092 = vunpack.c.l.b16 %v300
  %v1093 = vunpack.c.l.b16 %v301
  %v1094 = vunpack.c.l.b16 %v302
  %v1095 = vpack.c.b16 %v808, %v807
  %v1096 = vpack.c.b16 %v810, %v809
  %v1097 = vpack.c.b16 %v812, %v811
  %v1098 = vpack.c.b16 %v814, %v813
  %v1099 = vpack.c.b16 %v816, %v815
  %v1100 = vpack.c.b16 %v818, %v817
  %v1101 = vpack.c.b16 %v820, %v819
  %v1102 = vpack.c.b16 %v822, %v821
  %v1103 = vpack.c.b16 %v824, %v823
  %v1104 = vpack.c.b16 %v826, %v825
  %v1105 = vpack.c.b16 %v828, %v827
  %v1106 = vpack.c.b16 %v830, %v829
  %v1107 = vpack.c.b16 %v832, %v831
  %v1108 = vpack.c.b16 %v834, %v833
  %v1109 = vpack.c.b16 %v836, %v835
  %v1110 = vpack.c.b16 %v838, %v837
  %v1111 = vpack.c.b16 %v840, %v839
  %v1112 = vpack.c.b16 %v842, %v841
  %v1113 = vpack.c.b16 %v844, %v843
  %v1114 = vpack.c.b16 %v846, %v845
  %v1115 = vpack.c.b16 %v848, %v847
  %v1116 = vpack.c.b16 %v850, %v849
  %v1117 = vpack.c.b16 %v852, %v851
  %v1118 = vpack.c.b16 %v854, %v853
  %v1119 = vpack.c.b16 %v856, %v855
  %v1120 = vpack.c.b16 %v858, %v857
  %v1121 = vpack.c.b16 %v860, %v859
  %v1122 = vpack.c.b16 %v862, %v861
  %v1123 = vpack.c.b16 %v864, %v863
  %v1124 = vpack.c.b16 %v866, %v865
  %v1125 = vpack.c.b16 %v868, %v867
  %v1126 = vpack.c.b16 %v870, %v869
  %v1127 = vpack.c.b16 %v872, %v871
  %v1128 = vpack.c.b16 %v874, %v873
  %v1129 = vpack.c.b16 %v876, %v875
  %v1130 = vpack.c.b16 %v878, %v877
  %v1131 = vpack.c.b16 %v880, %v879
  %v1132 = vpack.c.b16 %v882, %v881
  %v1133 = vpack.c.b16 %v884, %v883
  %v1134 = vpack.c.b16 %v886, %v885
  %v1135 = vpack.c.b16 %v888, %v887
  %v1136 = vpack.c.b16 %v890, %v889
  %v1137 = vpack.c.b16 %v892, %v891
  %v1138 = vpack.c.b16 %v894, %v893
  %v1139 = vpack.c.b16 %v896, %v895
  %v1140 = vpack.c.b16 %v898, %v897
  %v1141 = vpack.c.b16 %v900, %v899
  %v1142 = vpack.c.b16 %v902, %v901
  %v1143 = vpack.c.b16 %v904, %v903
  %v1144 = vpack.c.b16 %v906, %v905
  %v1145 = vpack.c.b16 %v908, %v907
  %v1146 = vpack.c.b16 %v910, %v909
  %v1147 = vpack.c.b16 %v912, %v911
  %v1148 = vpack.c.b16 %v914, %v913
  %v1149 = vpack.c.b16 %v916, %v915
  %v1150 = vpack.c.b16 %v918, %v917
  %v1151 = vpack.c.b16 %v920, %v919
  %v1152 = vpack.c.b16 %v922, %v921
  %v1153 = vpack.c.b16 %v924, %v923
  %v1154 = vpack.c.b16 %v926, %v925
  %v1155 = vpack.c.b16 %v928, %v927
  %v1156 = vpack.c.b16 %v930, %v929
  %v1157 = vpack.c.b16 %v932, %v931
  %v1158 = vpack.c.b16 %v934, %v933
  %v1159 = vpack.c.b16 %v936, %v935
  %v1160 = vpack.c.b16 %v938, %v937
  %v1161 = vpack.c.b16 %v940, %v939
  %v1162 = vpack.c.b16 %v942, %v941
  %v1163 = vpack.c.b16 %v944, %v943
  %v1164 = vpack.c.b16 %v946, %v945
  %v1165 = vpack.c.b16 %v948, %v947
  %v1166 = vpack.c.b16 %v950, %v949
  %v1167 = vpack.c.b16 %v952, %v951
  %v1168 = vpack.c.b16 %v954, %v953
  %v1169 = vpack.c.b16 %v956, %v955
  %v1170 = vpack.c.b16 %v958, %v957
  %v1171 = vpack.c.b16 %v960, %v959
  %v1172 = vpack.c.b16 %v962, %v961
  %v1173 = vpack.c.b16 %v964, %v963
  %v1174 = vpack.c.b16 %v966, %v965
  %v1175 = vpack.c.b16 %v968, %v967
  %v1176 = vpack.c.b16 %v970, %v969
  %v1177 = vpack.c.b16 %v972, %v971
  %v1178 = vpack.c.b16 %v974, %v973
  %v1179 = vpack.c.b16 %v976, %v975
  %v1180 = vpack.c.b16 %v978, %v977
  %v1181 = vpack.c.b16 %v980, %v979
  %v1182 = vpack.c.b16 %v982, %v981
  %v1183 = vpack.c.b16 %v984, %v983
  %v1184 = vpack.c.b16 %v986, %v985
  %v1185 = vpack.c.b16 %v988, %v987
  %v1186 = vpack.c.b16 %v990, %v989
  %v1187 = vpack.c.b16 %v992, %v991
  %v1188 = vpack.c.b16 %v994, %v993
  %v1189 = vpack.c.b16 %v996, %v995
  %v1190 = vpack.c.b16 %v998, %v997
  %v1191 = vpack.c.b16 %v1000, %v999
  %v1192 = vpack.c.b16 %v1002, %v1001
  %v1193 = vpack.c.b16 %v1004, %v1003
  %v1194 = vpack.c.b16 %v1006, %v1005
  %v1195 = vpack.c.b16 %v1008, %v1007
  %v1196 = vpack.c.b16 %v1010, %v1009
  %v1197 = vpack.c.b16 %v1012, %v1011
  %v1198 = vpack.c.b16 %v1014, %v1013
  %v1199 = vpack.c.b16 %v1016, %v1015
  %v1200 = vpack.c.b16 %v1018, %v1017
  %v1201 = vpack.c.b16 %v1020, %v1019
  %v1202 = vpack.c.b16 %v1022, %v1021
  %v1203 = vpack.c.b16 %v1024, %v1023
  %v1204 = vpack.c.b16 %v1026, %v1025
  %v1205 = vpack.c.b16 %v1028, %v1027
  %v1206 = vpack.c.b16 %v1030, %v1029
  %v1207 = vpack.c.b16 %v1032, %v1031
  %v1208 = vpack.c.b16 %v1034, %v1033
  %v1209 = vpack.c.b16 %v1036, %v1035
  %v1210 = vpack.c.b16 %v1038, %v1037
  %v1211 = vpack.c.b16 %v1040, %v1039
  %v1212 = vpack.c.b16 %v1042, %v1041
  %v1213 = vpack.c.b16 %v1044, %v1043
  %v1214 = vpack.c.b16 %v1046, %v1045
  %v1215 = vpack.c.b16 %v1048, %v1047
  %v1216 = vpack.c.b16 %v1050, %v1049
  %v1217 = vpack.c.b16 %v1052, %v1051
  %v1218 = vpack.c.b16 %v1054, %v1053
  %v1219 = vpack.c.b16 %v1056, %v1055
  %v1220 = vpack.c.b16 %v1058, %v1057
  %v1221 = vpack.c.b16 %v1060, %v1059
  %v1222 = vpack.c.b16 %v1062, %v1061
  %v1223 = vpack.c.b16 %v1064, %v1063
  %v1224 = vpack.c.b16 %v1066, %v1065
  %v1225 = vpack.c.b16 %v1068, %v1067
  %v1226 = vpack.c.b16 %v1070, %v1069
  %v1227 = vpack.c.b16 %v1072, %v1071
  %v1228 = vpack.c.b16 %v1074, %v1073
  %v1229 = vpack.c.b16 %v1076, %v1075
  %v1230 = vpack.c.b16 %v1078, %v1077
  %v1231 = vpack.c.b16 %v1080, %v1079
  %v1232 = vpack.c.b16 %v1082, %v1081
  %v1233 = vpack.c.b16 %v1084, %v1083
  %v1234 = vpack.c.b16 %v1086, %v1085
  %v1235 = vpack.c.b16 %v1088, %v1087
  %v1236 = vpack.c.b16 %v1090, %v1089
  %v1237 = vpack.c.b16 %v1092, %v1091
  %v1238 = vpack.c.b16 %v1094, %v1093
  %1383 = vmatprep.subr.bf16.mxu0 0
  %1384 = vmatpush1.bf16.msra.mxu0 %v1095
  %1385 = vmatprep.subr.bf16.mxu0 0
  %1386 = vmatpush1.bf16.msra.mxu0 %v1096
  %1387 = vmatprep.subr.bf16.mxu0 0
  %1388 = vmatpush1.bf16.msra.mxu0 %v1097
  %1389 = vmatprep.subr.bf16.mxu0 0
  %1390 = vmatpush1.bf16.msra.mxu0 %v1098
  %1391 = vmatprep.subr.bf16.mxu0 0
  %1392 = vmatpush1.bf16.msra.mxu0 %v1099
  %1393 = vmatprep.subr.bf16.mxu0 0
  %1394 = vmatpush1.bf16.msra.mxu0 %v1100
  %1395 = vmatprep.subr.bf16.mxu0 0
  %1396 = vmatpush1.bf16.msra.mxu0 %v1101
  %1397 = vmatprep.subr.bf16.mxu0 0
  %1398 = vmatpush1.bf16.msra.mxu0 %v1102
  %1399 = vmatprep.subr.bf16.mxu0 0
  %1400 = vmatpush1.bf16.msra.mxu0 %v1103
  %1401 = vmatprep.subr.bf16.mxu0 0
  %1402 = vmatpush1.bf16.msra.mxu0 %v1104
  %1403 = vmatprep.subr.bf16.mxu0 0
  %1404 = vmatpush1.bf16.msra.mxu0 %v1105
  %1405 = vmatprep.subr.bf16.mxu0 0
  %1406 = vmatpush1.bf16.msra.mxu0 %v1106
  %1407 = vmatprep.subr.bf16.mxu0 0
  %1408 = vmatpush1.bf16.msra.mxu0 %v1107
  %1409 = vmatprep.subr.bf16.mxu0 0
  %1410 = vmatpush1.bf16.msra.mxu0 %v1108
  %1411 = vmatprep.subr.bf16.mxu0 0
  %1412 = vmatpush1.bf16.msra.mxu0 %v1109
  %1413 = vmatprep.subr.bf16.mxu0 0
  %1414 = vmatpush1.bf16.msra.mxu0 %v1110
  %1415 = vmatprep.mubr.bf16.mxu0 %v448
  %1416 = vmatmul.mubr.bf16.gmra.mrb[0].mxu0 %v447
  %v1417 = vpop.f32.mrb[0].mxu0
  %v1418 = vadd.f32 0.0, %v1417
  %v1419 = vpop.f32.mrb[0].mxu0
  %v1420 = vpop.f32.mrb[0].mxu0
  %v1421 = vadd.f32 0.0, %v1420
  %v1422 = vpop.f32.mrb[0].mxu0
  %1423 = vmatprep.mubr.bf16.mxu0 %v466
  %1424 = vmatmul.mubr.bf16.gmra.mrb[0].mxu0 %v465
  %v1425 = vpop.f32.mrb[0].mxu0
  %v1426 = vadd.f32 0.0, %v1425
  %v1427 = vpop.f32.mrb[0].mxu0
  %v1428 = vpop.f32.mrb[0].mxu0
  %v1429 = vadd.f32 0.0, %v1428
  %v1430 = vpop.f32.mrb[0].mxu0
  %1431 = vdwg.mxu0
  %1432 = vmatprep.subr.bf16.mxu0 0
  %1433 = vmatpush1.bf16.msra.mxu0 %v1111
  %1434 = vmatprep.subr.bf16.mxu0 0
  %1435 = vmatpush1.bf16.msra.mxu0 %v1112
  %1436 = vmatprep.subr.bf16.mxu0 0
  %1437 = vmatpush1.bf16.msra.mxu0 %v1113
  %1438 = vmatprep.subr.bf16.mxu0 0
  %1439 = vmatpush1.bf16.msra.mxu0 %v1114
  %1440 = vmatprep.subr.bf16.mxu0 0
  %1441 = vmatpush1.bf16.msra.mxu0 %v1115
  %1442 = vmatprep.subr.bf16.mxu0 0
  %1443 = vmatpush1.bf16.msra.mxu0 %v1116
  %1444 = vmatprep.subr.bf16.mxu0 0
  %1445 = vmatpush1.bf16.msra.mxu0 %v1117
  %1446 = vmatprep.subr.bf16.mxu0 0
  %1447 = vmatpush1.bf16.msra.mxu0 %v1118
  %1448 = vmatprep.subr.bf16.mxu0 0
  %1449 = vmatpush1.bf16.msra.mxu0 %v1119
  %1450 = vmatprep.subr.bf16.mxu0 0
  %1451 = vmatpush1.bf16.msra.mxu0 %v1120
  %1452 = vmatprep.subr.bf16.mxu0 0
  %1453 = vmatpush1.bf16.msra.mxu0 %v1121
  %1454 = vmatprep.subr.bf16.mxu0 0
  %1455 = vmatpush1.bf16.msra.mxu0 %v1122
  %1456 = vmatprep.subr.bf16.mxu0 0
  %1457 = vmatpush1.bf16.msra.mxu0 %v1123
  %1458 = vmatprep.subr.bf16.mxu0 0
  %1459 = vmatpush1.bf16.msra.mxu0 %v1124
  %1460 = vmatprep.subr.bf16.mxu0 0
  %1461 = vmatpush1.bf16.msra.mxu0 %v1125
  %1462 = vmatprep.subr.bf16.mxu0 0
  %1463 = vmatpush1.bf16.msra.mxu0 %v1126
  %1464 = vmatprep.mubr.bf16.mxu0 %v450
  %1465 = vmatmul.mubr.bf16.gmra.mrb[0].mxu0 %v449
  %v1466 = vpop.f32.mrb[0].mxu0
  %v1467 = vadd.f32 %v1418, %v1466
  %v1468 = vpop.f32.mrb[0].mxu0
  %v1469 = vpop.f32.mrb[0].mxu0
  %v1470 = vadd.f32 %v1421, %v1469
  %v1471 = vpop.f32.mrb[0].mxu0
  %1472 = vmatprep.mubr.bf16.mxu0 %v468
  %1473 = vmatmul.mubr.bf16.gmra.mrb[0].mxu0 %v467
  %v1474 = vpop.f32.mrb[0].mxu0
  %v1475 = vadd.f32 %v1426, %v1474
  %v1476 = vpop.f32.mrb[0].mxu0
  %v1477 = vpop.f32.mrb[0].mxu0
  %v1478 = vadd.f32 %v1429, %v1477
  %v1479 = vpop.f32.mrb[0].mxu0
  %1480 = vdwg.mxu0
  %1481 = vmatprep.subr.bf16.mxu0 0
  %1482 = vmatpush1.bf16.msra.mxu0 %v1127
  %1483 = vmatprep.subr.bf16.mxu0 0
  %1484 = vmatpush1.bf16.msra.mxu0 %v1128
  %1485 = vmatprep.subr.bf16.mxu0 0
  %1486 = vmatpush1.bf16.msra.mxu0 %v1129
  %1487 = vmatprep.subr.bf16.mxu0 0
  %1488 = vmatpush1.bf16.msra.mxu0 %v1130
  %1489 = vmatprep.subr.bf16.mxu0 0
  %1490 = vmatpush1.bf16.msra.mxu0 %v1131
  %1491 = vmatprep.subr.bf16.mxu0 0
  %1492 = vmatpush1.bf16.msra.mxu0 %v1132
  %1493 = vmatprep.subr.bf16.mxu0 0
  %1494 = vmatpush1.bf16.msra.mxu0 %v1133
  %1495 = vmatprep.subr.bf16.mxu0 0
  %1496 = vmatpush1.bf16.msra.mxu0 %v1134
  %1497 = vmatprep.subr.bf16.mxu0 0
  %1498 = vmatpush1.bf16.msra.mxu0 %v1135
  %1499 = vmatprep.subr.bf16.mxu0 0
  %1500 = vmatpush1.bf16.msra.mxu0 %v1136
  %1501 = vmatprep.subr.bf16.mxu0 0
  %1502 = vmatpush1.bf16.msra.mxu0 %v1137
  %1503 = vmatprep.subr.bf16.mxu0 0
  %1504 = vmatpush1.bf16.msra.mxu0 %v1138
  %1505 = vmatprep.subr.bf16.mxu0 0
  %1506 = vmatpush1.bf16.msra.mxu0 %v1139
  %1507 = vmatprep.subr.bf16.mxu0 0
  %1508 = vmatpush1.bf16.msra.mxu0 %v1140
  %1509 = vmatprep.subr.bf16.mxu0 0
  %1510 = vmatpush1.bf16.msra.mxu0 %v1141
  %1511 = vmatprep.subr.bf16.mxu0 0
  %1512 = vmatpush1.bf16.msra.mxu0 %v1142
  %1513 = vmatprep.mubr.bf16.mxu0 %v452
  %1514 = vmatmul.mubr.bf16.gmra.mrb[0].mxu0 %v451
  %v1515 = vpop.f32.mrb[0].mxu0
  %v1516 = vadd.f32 %v1467, %v1515
  %v1517 = vpop.f32.mrb[0].mxu0
  %v1518 = vpop.f32.mrb[0].mxu0
  %v1519 = vadd.f32 %v1470, %v1518
  %v1520 = vpop.f32.mrb[0].mxu0
  %1521 = vmatprep.mubr.bf16.mxu0 %v470
  %1522 = vmatmul.mubr.bf16.gmra.mrb[0].mxu0 %v469
  %v1523 = vpop.f32.mrb[0].mxu0
  %v1524 = vadd.f32 %v1475, %v1523
  %v1525 = vpop.f32.mrb[0].mxu0
  %v1526 = vpop.f32.mrb[0].mxu0
  %v1527 = vadd.f32 %v1478, %v1526
  %v1528 = vpop.f32.mrb[0].mxu0
  %1529 = vdwg.mxu0
  %1530 = vmatprep.subr.bf16.mxu0 0
  %1531 = vmatpush1.bf16.msra.mxu0 %v1143
  %1532 = vmatprep.subr.bf16.mxu0 0
  %1533 = vmatpush1.bf16.msra.mxu0 %v1144
  %1534 = vmatprep.subr.bf16.mxu0 0
  %1535 = vmatpush1.bf16.msra.mxu0 %v1145
  %1536 = vmatprep.subr.bf16.mxu0 0
  %1537 = vmatpush1.bf16.msra.mxu0 %v1146
  %1538 = vmatprep.subr.bf16.mxu0 0
  %1539 = vmatpush1.bf16.msra.mxu0 %v1147
  %1540 = vmatprep.subr.bf16.mxu0 0
  %1541 = vmatpush1.bf16.msra.mxu0 %v1148
  %1542 = vmatprep.subr.bf16.mxu0 0
  %1543 = vmatpush1.bf16.msra.mxu0 %v1149
  %1544 = vmatprep.subr.bf16.mxu0 0
  %1545 = vmatpush1.bf16.msra.mxu0 %v1150
  %1546 = vmatprep.subr.bf16.mxu0 0
  %1547 = vmatpush1.bf16.msra.mxu0 %v1151
  %1548 = vmatprep.subr.bf16.mxu0 0
  %1549 = vmatpush1.bf16.msra.mxu0 %v1152
  %1550 = vmatprep.subr.bf16.mxu0 0
  %1551 = vmatpush1.bf16.msra.mxu0 %v1153
  %1552 = vmatprep.subr.bf16.mxu0 0
  %1553 = vmatpush1.bf16.msra.mxu0 %v1154
  %1554 = vmatprep.subr.bf16.mxu0 0
  %1555 = vmatpush1.bf16.msra.mxu0 %v1155
  %1556 = vmatprep.subr.bf16.mxu0 0
  %1557 = vmatpush1.bf16.msra.mxu0 %v1156
  %1558 = vmatprep.subr.bf16.mxu0 0
  %1559 = vmatpush1.bf16.msra.mxu0 %v1157
  %1560 = vmatprep.subr.bf16.mxu0 0
  %1561 = vmatpush1.bf16.msra.mxu0 %v1158
  %1562 = vmatprep.mubr.bf16.mxu0 %v454
  %1563 = vmatmul.mubr.bf16.gmra.mrb[0].mxu0 %v453
  %v1564 = vpop.f32.mrb[0].mxu0
  %v1565 = vadd.f32 %v1516, %v1564
  %v1566 = vpop.f32.mrb[0].mxu0
  %v1567 = vpop.f32.mrb[0].mxu0
  %v1568 = vadd.f32 %v1519, %v1567
  %v1569 = vpop.f32.mrb[0].mxu0
  %1570 = vmatprep.mubr.bf16.mxu0 %v472
  %1571 = vmatmul.mubr.bf16.gmra.mrb[0].mxu0 %v471
  %v1572 = vpop.f32.mrb[0].mxu0
  %v1573 = vadd.f32 %v1524, %v1572
  %v1574 = vpop.f32.mrb[0].mxu0
  %v1575 = vpop.f32.mrb[0].mxu0
  %v1576 = vadd.f32 %v1527, %v1575
  %v1577 = vpop.f32.mrb[0].mxu0
  %1578 = vdwg.mxu0
  %1579 = vmatprep.subr.bf16.mxu0 0
  %1580 = vmatpush1.bf16.msra.mxu0 %v1159
  %1581 = vmatprep.subr.bf16.mxu0 0
  %1582 = vmatpush1.bf16.msra.mxu0 %v1160
  %1583 = vmatprep.subr.bf16.mxu0 0
  %1584 = vmatpush1.bf16.msra.mxu0 %v1161
  %1585 = vmatprep.subr.bf16.mxu0 0
  %1586 = vmatpush1.bf16.msra.mxu0 %v1162
  %1587 = vmatprep.subr.bf16.mxu0 0
  %1588 = vmatpush1.bf16.msra.mxu0 %v1163
  %1589 = vmatprep.subr.bf16.mxu0 0
  %1590 = vmatpush1.bf16.msra.mxu0 %v1164
  %1591 = vmatprep.subr.bf16.mxu0 0
  %1592 = vmatpush1.bf16.msra.mxu0 %v1165
  %1593 = vmatprep.subr.bf16.mxu0 0
  %1594 = vmatpush1.bf16.msra.mxu0 %v1166
  %1595 = vmatprep.subr.bf16.mxu0 0
  %1596 = vmatpush1.bf16.msra.mxu0 %v1167
  %1597 = vmatprep.subr.bf16.mxu0 0
  %1598 = vmatpush1.bf16.msra.mxu0 %v1168
  %1599 = vmatprep.subr.bf16.mxu0 0
  %1600 = vmatpush1.bf16.msra.mxu0 %v1169
  %1601 = vmatprep.subr.bf16.mxu0 0
  %1602 = vmatpush1.bf16.msra.mxu0 %v1170
  %1603 = vmatprep.subr.bf16.mxu0 0
  %1604 = vmatpush1.bf16.msra.mxu0 %v1171
  %1605 = vmatprep.subr.bf16.mxu0 0
  %1606 = vmatpush1.bf16.msra.mxu0 %v1172
  %1607 = vmatprep.subr.bf16.mxu0 0
  %1608 = vmatpush1.bf16.msra.mxu0 %v1173
  %1609 = vmatprep.subr.bf16.mxu0 0
  %1610 = vmatpush1.bf16.msra.mxu0 %v1174
  %1611 = vmatprep.mubr.bf16.mxu0 %v456
  %1612 = vmatmul.mubr.bf16.gmra.mrb[0].mxu0 %v455
  %v1613 = vpop.f32.mrb[0].mxu0
  %v1614 = vadd.f32 %v1565, %v1613
  %v1615 = vpop.f32.mrb[0].mxu0
  %v1616 = vpop.f32.mrb[0].mxu0
  %v1617 = vadd.f32 %v1568, %v1616
  %v1618 = vpop.f32.mrb[0].mxu0
  %1619 = vmatprep.mubr.bf16.mxu0 %v474
  %1620 = vmatmul.mubr.bf16.gmra.mrb[0].mxu0 %v473
  %v1621 = vpop.f32.mrb[0].mxu0
  %v1622 = vadd.f32 %v1573, %v1621
  %v1623 = vpop.f32.mrb[0].mxu0
  %v1624 = vpop.f32.mrb[0].mxu0
  %v1625 = vadd.f32 %v1576, %v1624
  %v1626 = vpop.f32.mrb[0].mxu0
  %1627 = vdwg.mxu0
  %1628 = vmatprep.subr.bf16.mxu0 0
  %1629 = vmatpush1.bf16.msra.mxu0 %v1175
  %1630 = vmatprep.subr.bf16.mxu0 0
  %1631 = vmatpush1.bf16.msra.mxu0 %v1176
  %1632 = vmatprep.subr.bf16.mxu0 0
  %1633 = vmatpush1.bf16.msra.mxu0 %v1177
  %1634 = vmatprep.subr.bf16.mxu0 0
  %1635 = vmatpush1.bf16.msra.mxu0 %v1178
  %1636 = vmatprep.subr.bf16.mxu0 0
  %1637 = vmatpush1.bf16.msra.mxu0 %v1179
  %1638 = vmatprep.subr.bf16.mxu0 0
  %1639 = vmatpush1.bf16.msra.mxu0 %v1180
  %1640 = vmatprep.subr.bf16.mxu0 0
  %1641 = vmatpush1.bf16.msra.mxu0 %v1181
  %1642 = vmatprep.subr.bf16.mxu0 0
  %1643 = vmatpush1.bf16.msra.mxu0 %v1182
  %1644 = vmatprep.subr.bf16.mxu0 0
  %1645 = vmatpush1.bf16.msra.mxu0 %v1183
  %1646 = vmatprep.subr.bf16.mxu0 0
  %1647 = vmatpush1.bf16.msra.mxu0 %v1184
  %1648 = vmatprep.subr.bf16.mxu0 0
  %1649 = vmatpush1.bf16.msra.mxu0 %v1185
  %1650 = vmatprep.subr.bf16.mxu0 0
  %1651 = vmatpush1.bf16.msra.mxu0 %v1186
  %1652 = vmatprep.subr.bf16.mxu0 0
  %1653 = vmatpush1.bf16.msra.mxu0 %v1187
  %1654 = vmatprep.subr.bf16.mxu0 0
  %1655 = vmatpush1.bf16.msra.mxu0 %v1188
  %1656 = vmatprep.subr.bf16.mxu0 0
  %1657 = vmatpush1.bf16.msra.mxu0 %v1189
  %1658 = vmatprep.subr.bf16.mxu0 0
  %1659 = vmatpush1.bf16.msra.mxu0 %v1190
  %1660 = vmatprep.mubr.bf16.mxu0 %v458
  %1661 = vmatmul.mubr.bf16.gmra.mrb[0].mxu0 %v457
  %v1662 = vpop.f32.mrb[0].mxu0
  %v1663 = vadd.f32 %v1614, %v1662
  %v1664 = vpop.f32.mrb[0].mxu0
  %v1665 = vpop.f32.mrb[0].mxu0
  %v1666 = vadd.f32 %v1617, %v1665
  %v1667 = vpop.f32.mrb[0].mxu0
  %1668 = vmatprep.mubr.bf16.mxu0 %v476
  %1669 = vmatmul.mubr.bf16.gmra.mrb[0].mxu0 %v475
  %v1670 = vpop.f32.mrb[0].mxu0
  %v1671 = vadd.f32 %v1622, %v1670
  %v1672 = vpop.f32.mrb[0].mxu0
  %v1673 = vpop.f32.mrb[0].mxu0
  %v1674 = vadd.f32 %v1625, %v1673
  %v1675 = vpop.f32.mrb[0].mxu0
  %1676 = vdwg.mxu0
  %1677 = vmatprep.subr.bf16.mxu0 0
  %1678 = vmatpush1.bf16.msra.mxu0 %v1191
  %1679 = vmatprep.subr.bf16.mxu0 0
  %1680 = vmatpush1.bf16.msra.mxu0 %v1192
  %1681 = vmatprep.subr.bf16.mxu0 0
  %1682 = vmatpush1.bf16.msra.mxu0 %v1193
  %1683 = vmatprep.subr.bf16.mxu0 0
  %1684 = vmatpush1.bf16.msra.mxu0 %v1194
  %1685 = vmatprep.subr.bf16.mxu0 0
  %1686 = vmatpush1.bf16.msra.mxu0 %v1195
  %1687 = vmatprep.subr.bf16.mxu0 0
  %1688 = vmatpush1.bf16.msra.mxu0 %v1196
  %1689 = vmatprep.subr.bf16.mxu0 0
  %1690 = vmatpush1.bf16.msra.mxu0 %v1197
  %1691 = vmatprep.subr.bf16.mxu0 0
  %1692 = vmatpush1.bf16.msra.mxu0 %v1198
  %1693 = vmatprep.subr.bf16.mxu0 0
  %1694 = vmatpush1.bf16.msra.mxu0 %v1199
  %1695 = vmatprep.subr.bf16.mxu0 0
  %1696 = vmatpush1.bf16.msra.mxu0 %v1200
  %1697 = vmatprep.subr.bf16.mxu0 0
  %1698 = vmatpush1.bf16.msra.mxu0 %v1201
  %1699 = vmatprep.subr.bf16.mxu0 0
  %1700 = vmatpush1.bf16.msra.mxu0 %v1202
  %1701 = vmatprep.subr.bf16.mxu0 0
  %1702 = vmatpush1.bf16.msra.mxu0 %v1203
  %1703 = vmatprep.subr.bf16.mxu0 0
  %1704 = vmatpush1.bf16.msra.mxu0 %v1204
  %1705 = vmatprep.subr.bf16.mxu0 0
  %1706 = vmatpush1.bf16.msra.mxu0 %v1205
  %1707 = vmatprep.subr.bf16.mxu0 0
  %1708 = vmatpush1.bf16.msra.mxu0 %v1206
  %1709 = vmatprep.mubr.bf16.mxu0 %v460
  %1710 = vmatmul.mubr.bf16.gmra.mrb[0].mxu0 %v459
  %v1711 = vpop.f32.mrb[0].mxu0
  %v1712 = vadd.f32 %v1663, %v1711
  %v1713 = vpop.f32.mrb[0].mxu0
  %v1714 = vpop.f32.mrb[0].mxu0
  %v1715 = vadd.f32 %v1666, %v1714
  %v1716 = vpop.f32.mrb[0].mxu0
  %1717 = vmatprep.mubr.bf16.mxu0 %v478
  %1718 = vmatmul.mubr.bf16.gmra.mrb[0].mxu0 %v477
  %v1719 = vpop.f32.mrb[0].mxu0
  %v1720 = vadd.f32 %v1671, %v1719
  %v1721 = vpop.f32.mrb[0].mxu0
  %v1722 = vpop.f32.mrb[0].mxu0
  %v1723 = vadd.f32 %v1674, %v1722
  %v1724 = vpop.f32.mrb[0].mxu0
  %1725 = vdwg.mxu0
  %1726 = vmatprep.subr.bf16.mxu0 0
  %1727 = vmatpush1.bf16.msra.mxu0 %v1207
  %1728 = vmatprep.subr.bf16.mxu0 0
  %1729 = vmatpush1.bf16.msra.mxu0 %v1208
  %1730 = vmatprep.subr.bf16.mxu0 0
  %1731 = vmatpush1.bf16.msra.mxu0 %v1209
  %1732 = vmatprep.subr.bf16.mxu0 0
  %1733 = vmatpush1.bf16.msra.mxu0 %v1210
  %1734 = vmatprep.subr.bf16.mxu0 0
  %1735 = vmatpush1.bf16.msra.mxu0 %v1211
  %1736 = vmatprep.subr.bf16.mxu0 0
  %1737 = vmatpush1.bf16.msra.mxu0 %v1212
  %1738 = vmatprep.subr.bf16.mxu0 0
  %1739 = vmatpush1.bf16.msra.mxu0 %v1213
  %1740 = vmatprep.subr.bf16.mxu0 0
  %1741 = vmatpush1.bf16.msra.mxu0 %v1214
  %1742 = vmatprep.subr.bf16.mxu0 0
  %1743 = vmatpush1.bf16.msra.mxu0 %v1215
  %1744 = vmatprep.subr.bf16.mxu0 0
  %1745 = vmatpush1.bf16.msra.mxu0 %v1216
  %1746 = vmatprep.subr.bf16.mxu0 0
  %1747 = vmatpush1.bf16.msra.mxu0 %v1217
  %1748 = vmatprep.subr.bf16.mxu0 0
  %1749 = vmatpush1.bf16.msra.mxu0 %v1218
  %1750 = vmatprep.subr.bf16.mxu0 0
  %1751 = vmatpush1.bf16.msra.mxu0 %v1219
  %1752 = vmatprep.subr.bf16.mxu0 0
  %1753 = vmatpush1.bf16.msra.mxu0 %v1220
  %1754 = vmatprep.subr.bf16.mxu0 0
  %1755 = vmatpush1.bf16.msra.mxu0 %v1221
  %1756 = vmatprep.subr.bf16.mxu0 0
  %1757 = vmatpush1.bf16.msra.mxu0 %v1222
  %1758 = vmatprep.mubr.bf16.mxu0 %v462
  %1759 = vmatmul.mubr.bf16.gmra.mrb[0].mxu0 %v461
  %v1760 = vpop.f32.mrb[0].mxu0
  %v1761 = vadd.f32 %v1712, %v1760
  %v1762 = vpop.f32.mrb[0].mxu0
  %v1763 = vpop.f32.mrb[0].mxu0
  %v1764 = vadd.f32 %v1715, %v1763
  %v1765 = vpop.f32.mrb[0].mxu0
  %1766 = vmatprep.mubr.bf16.mxu0 %v480
  %1767 = vmatmul.mubr.bf16.gmra.mrb[0].mxu0 %v479
  %v1768 = vpop.f32.mrb[0].mxu0
  %v1769 = vadd.f32 %v1720, %v1768
  %v1770 = vpop.f32.mrb[0].mxu0
  %v1771 = vpop.f32.mrb[0].mxu0
  %v1772 = vadd.f32 %v1723, %v1771
  %v1773 = vpop.f32.mrb[0].mxu0
  %1774 = vdwg.mxu0
  %1775 = vmatprep.subr.bf16.mxu0 0
  %1776 = vmatpush1.bf16.msra.mxu0 %v1223
  %1777 = vmatprep.subr.bf16.mxu0 0
  %1778 = vmatpush1.bf16.msra.mxu0 %v1224
  %1779 = vmatprep.subr.bf16.mxu0 0
  %1780 = vmatpush1.bf16.msra.mxu0 %v1225
  %1781 = vmatprep.subr.bf16.mxu0 0
  %1782 = vmatpush1.bf16.msra.mxu0 %v1226
  %1783 = vmatprep.subr.bf16.mxu0 0
  %1784 = vmatpush1.bf16.msra.mxu0 %v1227
  %1785 = vmatprep.subr.bf16.mxu0 0
  %1786 = vmatpush1.bf16.msra.mxu0 %v1228
  %1787 = vmatprep.subr.bf16.mxu0 0
  %1788 = vmatpush1.bf16.msra.mxu0 %v1229
  %1789 = vmatprep.subr.bf16.mxu0 0
  %1790 = vmatpush1.bf16.msra.mxu0 %v1230
  %1791 = vmatprep.subr.bf16.mxu0 0
  %1792 = vmatpush1.bf16.msra.mxu0 %v1231
  %1793 = vmatprep.subr.bf16.mxu0 0
  %1794 = vmatpush1.bf16.msra.mxu0 %v1232
  %1795 = vmatprep.subr.bf16.mxu0 0
  %1796 = vmatpush1.bf16.msra.mxu0 %v1233
  %1797 = vmatprep.subr.bf16.mxu0 0
  %1798 = vmatpush1.bf16.msra.mxu0 %v1234
  %1799 = vmatprep.subr.bf16.mxu0 0
  %1800 = vmatpush1.bf16.msra.mxu0 %v1235
  %1801 = vmatprep.subr.bf16.mxu0 0
  %1802 = vmatpush1.bf16.msra.mxu0 %v1236
  %1803 = vmatprep.subr.bf16.mxu0 0
  %1804 = vmatpush1.bf16.msra.mxu0 %v1237
  %1805 = vmatprep.subr.bf16.mxu0 0
  %1806 = vmatpush1.bf16.msra.mxu0 %v1238
  %1807 = vmatprep.mubr.bf16.mxu0 %v464
  %1808 = vmatmul.mubr.bf16.gmra.mrb[0].mxu0 %v463
  %v1809 = vpop.f32.mrb[0].mxu0
  %v1810 = vadd.f32 %v1761, %v1809
  %v1811 = vpop.f32.mrb[0].mxu0
  %v1812 = vpop.f32.mrb[0].mxu0
  %v1813 = vadd.f32 %v1764, %v1812
  %v1814 = vpop.f32.mrb[0].mxu0
  %1815 = vmatprep.mubr.bf16.mxu0 %v482
  %1816 = vmatmul.mubr.bf16.gmra.mrb[0].mxu0 %v481
  %v1817 = vpop.f32.mrb[0].mxu0
  %v1818 = vadd.f32 %v1769, %v1817
  %v1819 = vpop.f32.mrb[0].mxu0
  %v1820 = vpop.f32.mrb[0].mxu0
  %v1821 = vadd.f32 %v1772, %v1820
  %v1822 = vpop.f32.mrb[0].mxu0
  %1823 = vdwg.mxu0
  %v1824 = vmax.f32 %v1810, %v1813
  %v1825 = vmax.f32 %v1824, %v1818
  %v1826 = vmax.f32 %v1825, %v1821
  %v1827 = vld [vmem:[%s2] sm:$0x1]
  %v1829 = vlaneseq
  %v1830 = vshrl.u32 %v1829, 7
  %v1831 = vsub.s32 0, %v1830
  %v1832 = vrot.slane %v1827, %v1831
  %v1834 = vadd.f32 %v1826, %v1832
  %v1835 = vmax.f32 %v1834, 0.0
  %v1836 = vpack.c.bf16 %v1835, %v1835
  %1837 = vst [vmem:[%s3] sm:$0xf] %v1836
  // Predicated region
  $region14: #{_stage1.6} parent=0 // pred_check
    _
  $region15: #{_stage1.6} parent=0 // pred_check_branch
    %1839 = sbr.rel (0) target = $region17
  $region16: #{_stage1.6} parent=0 // pred_region
    _
  $region17: #{_stage1.6} parent=0 // pred_fallthru
    _
  // Predicated region
  $region18: #{_stage1.6} parent=0 // pred_check
    _
  $region19: #{_stage1.6} parent=0 // pred_check_branch
    %1841 = sbr.rel (0) target = $region21
  $region20: #{_stage1.6} parent=0 // pred_region
    _
  $region21: #{_stage1.6} parent=0 // pred_fallthru
    _

// kernel: _stage1.7
$region0: #{_stage1.7}
  #allocation0 [shape = 'u32[]', space=smem, size = 0x4, offset = 0x4, fixed_abs, tag = 'smem constant byte address 0x4 - core index']
  #allocation1 [shape = 'u32[144,128]{1,0:T(1,128)}', space=vmem, size = 0x12000, scoped, tag = 'internal scratch']
  #allocation2 [shape = 'f32[2,128]{1,0:T(2,128)}', space=vmem, size = 0x400, scoped, tag = 'scratch operand']
  %s0 = inlined_call_operand.vmem [shape: bf16[2,512], index: 0, kind: input, shape index: {}]
  %s1 = inlined_call_operand.vmem [shape: bf16[512,2048], index: 1, kind: input, shape index: {}]
  %s2 = inlined_call_operand.vmem [shape: f32[1,2048], index: 2, kind: input, shape index: {}]
  %s3 = inlined_call_operand.vmem [shape: bf16[2048,128], index: 3, kind: input, shape index: {}]
  %s4 = inlined_call_operand.vmem [shape: f32[1,128], index: 4, kind: input, shape index: {}]
  %s5 = inlined_call_operand.vmem [shape: f32[2,128], index: 5, kind: output, shape index: {0}]
  %s6 = inlined_call_operand.hbm [shape: f32[1,2], index: 6, kind: output, shape index: {1}]
  %7 = xla_tuple %s5, %s6
  %s8 = sld [smem:[#allocation0]]
  $region92: #{_stage1.7} parent=0
    _
  %s10 = ssub.s32 1, %s8
  %s11 = scalar_select 0, %s10, %s8
  $region1: #{_stage1.7} parent=0
    #allocation3 [shape = 'u8[2097152]{0}', space=vmem, size = 0x200000, scoped, tag = 'input window, operand 1']
    #allocation4 [shape = 'u8[512]{0}', space=vmem, size = 0x400, scoped, tag = 'output window, operand 1, single buffered']
    #allocation5 [shape = 's32[2]{0}', space=sflag, size = 0x8, scoped, tag = 'scoped memory for _stage1.7']
    %12 = vsyncpa [#allocation5], 0
    loop: start=0, step=1, limit=4
    $region2: #{_stage1.7} parent=1 // loop_pre_header
      _
    $region3: #{_stage1.7} parent=1 // loop_header
      %s14 = sphi 0, %s18
      %p15 = scmp.ge.s32.totalorder %s14, 4
      %s22 = sphi 0, %s22
      %s24 = sphi 0, %s22
      %s25 = sphi 0, %s24
      %s39 = sphi 0, %s25
      %s45 = sphi 0, %s47
      %s48 = sphi 0, %s45
      %s49 = sphi 0, %s48
      %s65 = sphi 0, %s49
      %s71 = sphi 0, %s73
      %s74 = sphi 0, %s71
      %s75 = sphi 0, %s74
      %s91 = sphi 0, %s75
      %s97 = sphi 0, %s99
      %s100 = sphi 0, %s97
      %s101 = sphi 0, %s100
      %s117 = sphi 0, %s101
      %s121 = sphi 0, %s121
      %s123 = sphi 0, %s121
      %s124 = sphi 0, %s123
      %s138 = sphi 0, %s124
      %s142 = sphi 0, %s142
      %s144 = sphi 0, %s142
      %s145 = sphi 0, %s144
      %s159 = sphi 0, %s145
      %s163 = sphi 0, %s163
      %s165 = sphi 0, %s163
      %s166 = sphi 0, %s165
      %s180 = sphi 0, %s166
    $region4: #{_stage1.7} parent=1 // loop_header_branch
      %17 = sbr.rel (%p15) target = $region8
    $region5: #{_stage1.7} parent=1 // loop_body
      %s19 = ssub.s32 %s14, 1
      %s20 = ssub.s32 %s14, 2
      %s21 = sadd.s32 %s14, 1
      %s23 = sadd.s32 %s22, 1
      %p26 = scmp.eq.s32.totalorder %s14, 1
      %p27 = scmp.ne.s32.totalorder %s22, %s24
      %p28 = scmp.eq.s32.totalorder %s14, 0
      %p29 = por %p27, %p28
      %p30 = scmp.ne.s32.totalorder %s22, %s24
      %p31 = scmp.eq.s32.totalorder %s19, 1
      %p32 = por %p30, %p31
      %p33 = scmp.ne.s32.totalorder %s24, %s25
      %p34 = scmp.eq.s32.totalorder %s19, 0
      %p35 = por %p33, %p34
      %p36 = scmp.ne.s32.totalorder %s24, %s25
      %p37 = scmp.eq.s32.totalorder %s20, 1
      %p38 = por %p36, %p37
      %p40 = scmp.ne.s32.totalorder %s25, %s39
      %p41 = scmp.eq.s32.totalorder %s20, 0
      %p42 = por %p40, %p41
      %s43 = ssub.s32 %s14, %s21
      %p44 = scmp.eq.s32.totalorder %s43, 0
      %s46 = sadd.s32 %s45, 1
      %s47 = scalar_select %p44, %s45, %s46
      %p50 = pneg %p44
      %p51 = scmp.eq.s32.totalorder %s14, 1
      %p52 = por %p50, %p51
      %p53 = scmp.ne.s32.totalorder %s45, %s48
      %p54 = scmp.eq.s32.totalorder %s14, 0
      %p55 = por %p53, %p54
      %p56 = scmp.ne.s32.totalorder %s45, %s48
      %p57 = scmp.eq.s32.totalorder %s19, 1
      %p58 = por %p56, %p57
      %p59 = scmp.ne.s32.totalorder %s48, %s49
      %p60 = scmp.eq.s32.totalorder %s19, 0
      %p61 = por %p59, %p60
      %p62 = scmp.ne.s32.totalorder %s48, %s49
      %p63 = scmp.eq.s32.totalorder %s20, 1
      %p64 = por %p62, %p63
      %p66 = scmp.ne.s32.totalorder %s49, %s65
      %p67 = scmp.eq.s32.totalorder %s20, 0
      %p68 = por %p66, %p67
      %s69 = ssub.s32 %s14, %s21
      %p70 = scmp.eq.s32.totalorder %s69, 0
      %s72 = sadd.s32 %s71, 1
      %s73 = scalar_select %p70, %s71, %s72
      %p76 = pneg %p70
      %p77 = scmp.eq.s32.totalorder %s14, 1
      %p78 = por %p76, %p77
      %p79 = scmp.ne.s32.totalorder %s71, %s74
      %p80 = scmp.eq.s32.totalorder %s14, 0
      %p81 = por %p79, %p80
      %p82 = scmp.ne.s32.totalorder %s71, %s74
      %p83 = scmp.eq.s32.totalorder %s19, 1
      %p84 = por %p82, %p83
      %p85 = scmp.ne.s32.totalorder %s74, %s75
      %p86 = scmp.eq.s32.totalorder %s19, 0
      %p87 = por %p85, %p86
      %p88 = scmp.ne.s32.totalorder %s74, %s75
      %p89 = scmp.eq.s32.totalorder %s20, 1
      %p90 = por %p88, %p89
      %p92 = scmp.ne.s32.totalorder %s75, %s91
      %p93 = scmp.eq.s32.totalorder %s20, 0
      %p94 = por %p92, %p93
      %s95 = ssub.s32 %s14, %s21
      %p96 = scmp.eq.s32.totalorder %s95, 0
      %s98 = sadd.s32 %s97, 1
      %s99 = scalar_select %p96, %s97, %s98
      %p102 = pneg %p96
      %p103 = scmp.eq.s32.totalorder %s14, 1
      %p104 = por %p102, %p103
      %p105 = scmp.ne.s32.totalorder %s97, %s100
      %p106 = scmp.eq.s32.totalorder %s14, 0
      %p107 = por %p105, %p106
      %p108 = scmp.ne.s32.totalorder %s97, %s100
      %p109 = scmp.eq.s32.totalorder %s19, 1
      %p110 = por %p108, %p109
      %p111 = scmp.ne.s32.totalorder %s100, %s101
      %p112 = scmp.eq.s32.totalorder %s19, 0
      %p113 = por %p111, %p112
      %p114 = scmp.ne.s32.totalorder %s100, %s101
      %p115 = scmp.eq.s32.totalorder %s20, 1
      %p116 = por %p114, %p115
      %p118 = scmp.ne.s32.totalorder %s101, %s117
      %p119 = scmp.eq.s32.totalorder %s20, 0
      %p120 = por %p118, %p119
      %s122 = sadd.s32 %s121, 1
      %p125 = scmp.eq.s32.totalorder %s14, 1
      %p126 = scmp.ne.s32.totalorder %s121, %s123
      %p127 = scmp.eq.s32.totalorder %s14, 0
      %p128 = por %p126, %p127
      %p129 = scmp.ne.s32.totalorder %s121, %s123
      %p130 = scmp.eq.s32.totalorder %s19, 1
      %p131 = por %p129, %p130
      %p132 = scmp.ne.s32.totalorder %s123, %s124
      %p133 = scmp.eq.s32.totalorder %s19, 0
      %p134 = por %p132, %p133
      %p135 = scmp.ne.s32.totalorder %s123, %s124
      %p136 = scmp.eq.s32.totalorder %s20, 1
      %p137 = por %p135, %p136
      %p139 = scmp.ne.s32.totalorder %s124, %s138
      %p140 = scmp.eq.s32.totalorder %s20, 0
      %p141 = por %p139, %p140
      %s143 = sadd.s32 %s142, 1
      %p146 = scmp.eq.s32.totalorder %s14, 1
      %p147 = scmp.ne.s32.totalorder %s142, %s144
      %p148 = scmp.eq.s32.totalorder %s14, 0
      %p149 = por %p147, %p148
      %p150 = scmp.ne.s32.totalorder %s142, %s144
      %p151 = scmp.eq.s32.totalorder %s19, 1
      %p152 = por %p150, %p151
      %p153 = scmp.ne.s32.totalorder %s144, %s145
      %p154 = scmp.eq.s32.totalorder %s19, 0
      %p155 = por %p153, %p154
      %p156 = scmp.ne.s32.totalorder %s144, %s145
      %p157 = scmp.eq.s32.totalorder %s20, 1
      %p158 = por %p156, %p157
      %p160 = scmp.ne.s32.totalorder %s145, %s159
      %p161 = scmp.eq.s32.totalorder %s20, 0
      %p162 = por %p160, %p161
      %s164 = sadd.s32 %s163, 1
      %p167 = scmp.eq.s32.totalorder %s14, 1
      %p168 = scmp.ne.s32.totalorder %s163, %s165
      %p169 = scmp.eq.s32.totalorder %s14, 0
      %p170 = por %p168, %p169
      %p171 = scmp.ne.s32.totalorder %s163, %s165
      %p172 = scmp.eq.s32.totalorder %s19, 1
      %p173 = por %p171, %p172
      %p174 = scmp.ne.s32.totalorder %s165, %s166
      %p175 = scmp.eq.s32.totalorder %s19, 0
      %p176 = por %p174, %p175
      %p177 = scmp.ne.s32.totalorder %s165, %s166
      %p178 = scmp.eq.s32.totalorder %s20, 1
      %p179 = por %p177, %p178
      %p181 = scmp.ne.s32.totalorder %s166, %s180
      %p182 = scmp.eq.s32.totalorder %s20, 0
      %p183 = por %p181, %p182
      %p184 = scmp.le.s32.totalorder 1, %s14
      %p185 = scmp.lt.s32.totalorder %s14, 3
      %p186 = pnand %p184, %p185
      %p187 = pneg %p186
      // Predicated region
      $region9: #{_stage1.7} parent=5 // pred_check
        _
      $region10: #{_stage1.7} parent=5 // pred_check_branch
        %189 = sbr.rel (%p186) target = $region12
      $region11: #{_stage1.7} parent=5 // pred_region
        %s190 = ssub.s32 %s14, 1
        // Predicated region
        $region13: #{_stage1.7} parent=11 // pred_check
          %p191 = pneg %p35
        $region14: #{_stage1.7} parent=11 // pred_check_branch
          %193 = sbr.rel (%p191) target = $region16
        $region15: #{_stage1.7} parent=11 // pred_region
          _
        $region16: #{_stage1.7} parent=11 // pred_fallthru
          _
        // Predicated region
        $region17: #{_stage1.7} parent=11 // pred_check
          %p194 = pneg %p134
        $region18: #{_stage1.7} parent=11 // pred_check_branch
          %196 = sbr.rel (%p194) target = $region20
        $region19: #{_stage1.7} parent=11 // pred_region
          _
        $region20: #{_stage1.7} parent=11 // pred_fallthru
          _
      $region12: #{_stage1.7} parent=5 // pred_fallthru
        _
      %p197 = scmp.lt.s32.totalorder %s14, 2
      // Predicated region
      $region21: #{_stage1.7} parent=5 // pred_check
        %p198 = pneg %p197
      $region22: #{_stage1.7} parent=5 // pred_check_branch
        %200 = sbr.rel (%p198) target = $region24
      $region23: #{_stage1.7} parent=5 // pred_region
        // Predicated region
        $region25: #{_stage1.7} parent=23 // pred_check
          %p201 = pneg %p55
        $region26: #{_stage1.7} parent=23 // pred_check_branch
          %203 = sbr.rel (%p201) target = $region28
        $region27: #{_stage1.7} parent=23 // pred_region
          %s204 = sand.u32 %s45, 1
          %s205 = sand.u32 %s45, 1
          %s206 = smul.addr %s205, 2048
          %s207 = scalar_lea.vmem [#allocation3], %s206
          %s208 = smul.u32 8, %s14
          %s209 = smul.addr %s208, 4
          %s210 = scalar_lea.vmem %s1, %s209
          // Predicated region
          $region29: #{_stage1.7} parent=27 // pred_check
            _
          $region30: #{_stage1.7} parent=27 // pred_check_branch
            %212 = sbr.rel (0) target = $region32
          $region31: #{_stage1.7} parent=27 // pred_region
            // Predicated region
            $region33: #{_stage1.7} parent=31 // pred_check
              _
            $region34: #{_stage1.7} parent=31 // pred_check_branch
              %214 = sbr.rel (0) target = $region36
            $region35: #{_stage1.7} parent=31 // pred_region
              loop: start=0, step=1, limit=1
              $region37: #{_stage1.7} parent=35 // loop_pre_header
                _
              $region38: #{_stage1.7} parent=35 // loop_header
                %s216 = sphi 0, %s220
                %p217 = scmp.ge.s32.totalorder %s216, 1
                %s221 = sphi %s210, %s210
                %s222 = sphi %s207, %s207
              $region39: #{_stage1.7} parent=35 // loop_header_branch
                %219 = sbr.rel (%p217) target = $region43
              $region40: #{_stage1.7} parent=35 // loop_body
                %v223 = vld [vmem:[%s221] sm:$0xff]
                %224 = vst [vmem:[%s222] sm:$0xff] %v223
                %v225 = vld [vmem:[%s221 + $0x8] sm:$0xff]
                %226 = vst [vmem:[%s222 + $0x8] sm:$0xff] %v225
                %v227 = vld [vmem:[%s221 + $0x10] sm:$0xff]
                %228 = vst [vmem:[%s222 + $0x10] sm:$0xff] %v227
                %v229 = vld [vmem:[%s221 + $0x18] sm:$0xff]
                %230 = vst [vmem:[%s222 + $0x18] sm:$0xff] %v229
                %v231 = vld [vmem:[%s221 + $0x40] sm:$0xff]
                %232 = vst [vmem:[%s222 + $0x20] sm:$0xff] %v231
                %v233 = vld [vmem:[%s221 + $0x48] sm:$0xff]
                %234 = vst [vmem:[%s222 + $0x28] sm:$0xff] %v233
                %v235 = vld [vmem:[%s221 + $0x50] sm:$0xff]
                %236 = vst [vmem:[%s222 + $0x30] sm:$0xff] %v235
                %v237 = vld [vmem:[%s221 + $0x58] sm:$0xff]
                %238 = vst [vmem:[%s222 + $0x38] sm:$0xff] %v237
                %v239 = vld [vmem:[%s221 + $0x80] sm:$0xff]
                %240 = vst [vmem:[%s222 + $0x40] sm:$0xff] %v239
                %v241 = vld [vmem:[%s221 + $0x88] sm:$0xff]
                %242 = vst [vmem:[%s222 + $0x48] sm:$0xff] %v241
                %v243 = vld [vmem:[%s221 + $0x90] sm:$0xff]
                %244 = vst [vmem:[%s222 + $0x50] sm:$0xff] %v243
                %v245 = vld [vmem:[%s221 + $0x98] sm:$0xff]
                %246 = vst [vmem:[%s222 + $0x58] sm:$0xff] %v245
                %v247 = vld [vmem:[%s221 + $0xc0] sm:$0xff]
                %248 = vst [vmem:[%s222 + $0x60] sm:$0xff] %v247
                %v249 = vld [vmem:[%s221 + $0xc8] sm:$0xff]
                %250 = vst [vmem:[%s222 + $0x68] sm:$0xff] %v249
                %v251 = vld [vmem:[%s221 + $0xd0] sm:$0xff]
                %252 = vst [vmem:[%s222 + $0x70] sm:$0xff] %v251
                %v253 = vld [vmem:[%s221 + $0xd8] sm:$0xff]
                %254 = vst [vmem:[%s222 + $0x78] sm:$0xff] %v253
                %v255 = vld [vmem:[%s221 + $0x100] sm:$0xff]
                %256 = vst [vmem:[%s222 + $0x80] sm:$0xff] %v255
                %v257 = vld [vmem:[%s221 + $0x108] sm:$0xff]
                %258 = vst [vmem:[%s222 + $0x88] sm:$0xff] %v257
                %v259 = vld [vmem:[%s221 + $0x110] sm:$0xff]
                %260 = vst [vmem:[%s222 + $0x90] sm:$0xff] %v259
                %v261 = vld [vmem:[%s221 + $0x118] sm:$0xff]
                %262 = vst [vmem:[%s222 + $0x98] sm:$0xff] %v261
                %v263 = vld [vmem:[%s221 + $0x140] sm:$0xff]
                %264 = vst [vmem:[%s222 + $0xa0] sm:$0xff] %v263
                %v265 = vld [vmem:[%s221 + $0x148] sm:$0xff]
                %266 = vst [vmem:[%s222 + $0xa8] sm:$0xff] %v265
                %v267 = vld [vmem:[%s221 + $0x150] sm:$0xff]
                %268 = vst [vmem:[%s222 + $0xb0] sm:$0xff] %v267
                %v269 = vld [vmem:[%s221 + $0x158] sm:$0xff]
                %270 = vst [vmem:[%s222 + $0xb8] sm:$0xff] %v269
                %v271 = vld [vmem:[%s221 + $0x180] sm:$0xff]
                %272 = vst [vmem:[%s222 + $0xc0] sm:$0xff] %v271
                %v273 = vld [vmem:[%s221 + $0x188] sm:$0xff]
                %274 = vst [vmem:[%s222 + $0xc8] sm:$0xff] %v273
                %v275 = vld [vmem:[%s221 + $0x190] sm:$0xff]
                %276 = vst [vmem:[%s222 + $0xd0] sm:$0xff] %v275
                %v277 = vld [vmem:[%s221 + $0x198] sm:$0xff]
                %278 = vst [vmem:[%s222 + $0xd8] sm:$0xff] %v277
                %v279 = vld [vmem:[%s221 + $0x1c0] sm:$0xff]
                %280 = vst [vmem:[%s222 + $0xe0] sm:$0xff] %v279
                %v281 = vld [vmem:[%s221 + $0x1c8] sm:$0xff]
                %282 = vst [vmem:[%s222 + $0xe8] sm:$0xff] %v281
                %v283 = vld [vmem:[%s221 + $0x1d0] sm:$0xff]
                %284 = vst [vmem:[%s222 + $0xf0] sm:$0xff] %v283
                %v285 = vld [vmem:[%s221 + $0x1d8] sm:$0xff]
                %286 = vst [vmem:[%s222 + $0xf8] sm:$0xff] %v285
                %v287 = vld [vmem:[%s221 + $0x200] sm:$0xff]
                %288 = vst [vmem:[%s222 + $0x100] sm:$0xff] %v287
                %v289 = vld [vmem:[%s221 + $0x208] sm:$0xff]
                %290 = vst [vmem:[%s222 + $0x108] sm:$0xff] %v289
                %v291 = vld [vmem:[%s221 + $0x210] sm:$0xff]
                %292 = vst [vmem:[%s222 + $0x110] sm:$0xff] %v291
                %v293 = vld [vmem:[%s221 + $0x218] sm:$0xff]
                %294 = vst [vmem:[%s222 + $0x118] sm:$0xff] %v293
                %v295 = vld [vmem:[%s221 + $0x240] sm:$0xff]
                %296 = vst [vmem:[%s222 + $0x120] sm:$0xff] %v295
                %v297 = vld [vmem:[%s221 + $0x248] sm:$0xff]
                %298 = vst [vmem:[%s222 + $0x128] sm:$0xff] %v297
                %v299 = vld [vmem:[%s221 + $0x250] sm:$0xff]
                %300 = vst [vmem:[%s222 + $0x130] sm:$0xff] %v299
                %v301 = vld [vmem:[%s221 + $0x258] sm:$0xff]
                %302 = vst [vmem:[%s222 + $0x138] sm:$0xff] %v301
                %v303 = vld [vmem:[%s221 + $0x280] sm:$0xff]
                %304 = vst [vmem:[%s222 + $0x140] sm:$0xff] %v303
                %v305 = vld [vmem:[%s221 + $0x288] sm:$0xff]
                %306 = vst [vmem:[%s222 + $0x148] sm:$0xff] %v305
                %v307 = vld [vmem:[%s221 + $0x290] sm:$0xff]
                %308 = vst [vmem:[%s222 + $0x150] sm:$0xff] %v307
                %v309 = vld [vmem:[%s221 + $0x298] sm:$0xff]
                %310 = vst [vmem:[%s222 + $0x158] sm:$0xff] %v309
                %v311 = vld [vmem:[%s221 + $0x2c0] sm:$0xff]
                %312 = vst [vmem:[%s222 + $0x160] sm:$0xff] %v311
                %v313 = vld [vmem:[%s221 + $0x2c8] sm:$0xff]
                %314 = vst [vmem:[%s222 + $0x168] sm:$0xff] %v313
                %v315 = vld [vmem:[%s221 + $0x2d0] sm:$0xff]
                %316 = vst [vmem:[%s222 + $0x170] sm:$0xff] %v315
                %v317 = vld [vmem:[%s221 + $0x2d8] sm:$0xff]
                %318 = vst [vmem:[%s222 + $0x178] sm:$0xff] %v317
                %v319 = vld [vmem:[%s221 + $0x300] sm:$0xff]
                %320 = vst [vmem:[%s222 + $0x180] sm:$0xff] %v319
                %v321 = vld [vmem:[%s221 + $0x308] sm:$0xff]
                %322 = vst [vmem:[%s222 + $0x188] sm:$0xff] %v321
                %v323 = vld [vmem:[%s221 + $0x310] sm:$0xff]
                %324 = vst [vmem:[%s222 + $0x190] sm:$0xff] %v323
                %v325 = vld [vmem:[%s221 + $0x318] sm:$0xff]
                %326 = vst [vmem:[%s222 + $0x198] sm:$0xff] %v325
                %v327 = vld [vmem:[%s221 + $0x340] sm:$0xff]
                %328 = vst [vmem:[%s222 + $0x1a0] sm:$0xff] %v327
                %v329 = vld [vmem:[%s221 + $0x348] sm:$0xff]
                %330 = vst [vmem:[%s222 + $0x1a8] sm:$0xff] %v329
                %v331 = vld [vmem:[%s221 + $0x350] sm:$0xff]
                %332 = vst [vmem:[%s222 + $0x1b0] sm:$0xff] %v331
                %v333 = vld [vmem:[%s221 + $0x358] sm:$0xff]
                %334 = vst [vmem:[%s222 + $0x1b8] sm:$0xff] %v333
                %v335 = vld [vmem:[%s221 + $0x380] sm:$0xff]
                %336 = vst [vmem:[%s222 + $0x1c0] sm:$0xff] %v335
                %v337 = vld [vmem:[%s221 + $0x388] sm:$0xff]
                %338 = vst [vmem:[%s222 + $0x1c8] sm:$0xff] %v337
                %v339 = vld [vmem:[%s221 + $0x390] sm:$0xff]
                %340 = vst [vmem:[%s222 + $0x1d0] sm:$0xff] %v339
                %v341 = vld [vmem:[%s221 + $0x398] sm:$0xff]
                %342 = vst [vmem:[%s222 + $0x1d8] sm:$0xff] %v341
                %v343 = vld [vmem:[%s221 + $0x3c0] sm:$0xff]
                %344 = vst [vmem:[%s222 + $0x1e0] sm:$0xff] %v343
                %v345 = vld [vmem:[%s221 + $0x3c8] sm:$0xff]
                %346 = vst [vmem:[%s222 + $0x1e8] sm:$0xff] %v345
                %v347 = vld [vmem:[%s221 + $0x3d0] sm:$0xff]
                %348 = vst [vmem:[%s222 + $0x1f0] sm:$0xff] %v347
                %v349 = vld [vmem:[%s221 + $0x3d8] sm:$0xff]
                %350 = vst [vmem:[%s222 + $0x1f8] sm:$0xff] %v349
                %v351 = vld [vmem:[%s221 + $0x400] sm:$0xff]
                %352 = vst [vmem:[%s222 + $0x200] sm:$0xff] %v351
                %v353 = vld [vmem:[%s221 + $0x408] sm:$0xff]
                %354 = vst [vmem:[%s222 + $0x208] sm:$0xff] %v353
                %v355 = vld [vmem:[%s221 + $0x410] sm:$0xff]
                %356 = vst [vmem:[%s222 + $0x210] sm:$0xff] %v355
                %v357 = vld [vmem:[%s221 + $0x418] sm:$0xff]
                %358 = vst [vmem:[%s222 + $0x218] sm:$0xff] %v357
                %v359 = vld [vmem:[%s221 + $0x440] sm:$0xff]
                %360 = vst [vmem:[%s222 + $0x220] sm:$0xff] %v359
                %v361 = vld [vmem:[%s221 + $0x448] sm:$0xff]
                %362 = vst [vmem:[%s222 + $0x228] sm:$0xff] %v361
                %v363 = vld [vmem:[%s221 + $0x450] sm:$0xff]
                %364 = vst [vmem:[%s222 + $0x230] sm:$0xff] %v363
                %v365 = vld [vmem:[%s221 + $0x458] sm:$0xff]
                %366 = vst [vmem:[%s222 + $0x238] sm:$0xff] %v365
                %v367 = vld [vmem:[%s221 + $0x480] sm:$0xff]
                %368 = vst [vmem:[%s222 + $0x240] sm:$0xff] %v367
                %v369 = vld [vmem:[%s221 + $0x488] sm:$0xff]
                %370 = vst [vmem:[%s222 + $0x248] sm:$0xff] %v369
                %v371 = vld [vmem:[%s221 + $0x490] sm:$0xff]
                %372 = vst [vmem:[%s222 + $0x250] sm:$0xff] %v371
                %v373 = vld [vmem:[%s221 + $0x498] sm:$0xff]
                %374 = vst [vmem:[%s222 + $0x258] sm:$0xff] %v373
                %v375 = vld [vmem:[%s221 + $0x4c0] sm:$0xff]
                %376 = vst [vmem:[%s222 + $0x260] sm:$0xff] %v375
                %v377 = vld [vmem:[%s221 + $0x4c8] sm:$0xff]
                %378 = vst [vmem:[%s222 + $0x268] sm:$0xff] %v377
                %v379 = vld [vmem:[%s221 + $0x4d0] sm:$0xff]
                %380 = vst [vmem:[%s222 + $0x270] sm:$0xff] %v379
                %v381 = vld [vmem:[%s221 + $0x4d8] sm:$0xff]
                %382 = vst [vmem:[%s222 + $0x278] sm:$0xff] %v381
                %v383 = vld [vmem:[%s221 + $0x500] sm:$0xff]
                %384 = vst [vmem:[%s222 + $0x280] sm:$0xff] %v383
                %v385 = vld [vmem:[%s221 + $0x508] sm:$0xff]
                %386 = vst [vmem:[%s222 + $0x288] sm:$0xff] %v385
                %v387 = vld [vmem:[%s221 + $0x510] sm:$0xff]
                %388 = vst [vmem:[%s222 + $0x290] sm:$0xff] %v387
                %v389 = vld [vmem:[%s221 + $0x518] sm:$0xff]
                %390 = vst [vmem:[%s222 + $0x298] sm:$0xff] %v389
                %v391 = vld [vmem:[%s221 + $0x540] sm:$0xff]
                %392 = vst [vmem:[%s222 + $0x2a0] sm:$0xff] %v391
                %v393 = vld [vmem:[%s221 + $0x548] sm:$0xff]
                %394 = vst [vmem:[%s222 + $0x2a8] sm:$0xff] %v393
                %v395 = vld [vmem:[%s221 + $0x550] sm:$0xff]
                %396 = vst [vmem:[%s222 + $0x2b0] sm:$0xff] %v395
                %v397 = vld [vmem:[%s221 + $0x558] sm:$0xff]
                %398 = vst [vmem:[%s222 + $0x2b8] sm:$0xff] %v397
                %v399 = vld [vmem:[%s221 + $0x580] sm:$0xff]
                %400 = vst [vmem:[%s222 + $0x2c0] sm:$0xff] %v399
                %v401 = vld [vmem:[%s221 + $0x588] sm:$0xff]
                %402 = vst [vmem:[%s222 + $0x2c8] sm:$0xff] %v401
                %v403 = vld [vmem:[%s221 + $0x590] sm:$0xff]
                %404 = vst [vmem:[%s222 + $0x2d0] sm:$0xff] %v403
                %v405 = vld [vmem:[%s221 + $0x598] sm:$0xff]
                %406 = vst [vmem:[%s222 + $0x2d8] sm:$0xff] %v405
                %v407 = vld [vmem:[%s221 + $0x5c0] sm:$0xff]
                %408 = vst [vmem:[%s222 + $0x2e0] sm:$0xff] %v407
                %v409 = vld [vmem:[%s221 + $0x5c8] sm:$0xff]
                %410 = vst [vmem:[%s222 + $0x2e8] sm:$0xff] %v409
                %v411 = vld [vmem:[%s221 + $0x5d0] sm:$0xff]
                %412 = vst [vmem:[%s222 + $0x2f0] sm:$0xff] %v411
                %v413 = vld [vmem:[%s221 + $0x5d8] sm:$0xff]
                %414 = vst [vmem:[%s222 + $0x2f8] sm:$0xff] %v413
                %v415 = vld [vmem:[%s221 + $0x600] sm:$0xff]
                %416 = vst [vmem:[%s222 + $0x300] sm:$0xff] %v415
                %v417 = vld [vmem:[%s221 + $0x608] sm:$0xff]
                %418 = vst [vmem:[%s222 + $0x308] sm:$0xff] %v417
                %v419 = vld [vmem:[%s221 + $0x610] sm:$0xff]
                %420 = vst [vmem:[%s222 + $0x310] sm:$0xff] %v419
                %v421 = vld [vmem:[%s221 + $0x618] sm:$0xff]
                %422 = vst [vmem:[%s222 + $0x318] sm:$0xff] %v421
                %v423 = vld [vmem:[%s221 + $0x640] sm:$0xff]
                %424 = vst [vmem:[%s222 + $0x320] sm:$0xff] %v423
                %v425 = vld [vmem:[%s221 + $0x648] sm:$0xff]
                %426 = vst [vmem:[%s222 + $0x328] sm:$0xff] %v425
                %v427 = vld [vmem:[%s221 + $0x650] sm:$0xff]
                %428 = vst [vmem:[%s222 + $0x330] sm:$0xff] %v427
                %v429 = vld [vmem:[%s221 + $0x658] sm:$0xff]
                %430 = vst [vmem:[%s222 + $0x338] sm:$0xff] %v429
                %v431 = vld [vmem:[%s221 + $0x680] sm:$0xff]
                %432 = vst [vmem:[%s222 + $0x340] sm:$0xff] %v431
                %v433 = vld [vmem:[%s221 + $0x688] sm:$0xff]
                %434 = vst [vmem:[%s222 + $0x348] sm:$0xff] %v433
                %v435 = vld [vmem:[%s221 + $0x690] sm:$0xff]
                %436 = vst [vmem:[%s222 + $0x350] sm:$0xff] %v435
                %v437 = vld [vmem:[%s221 + $0x698] sm:$0xff]
                %438 = vst [vmem:[%s222 + $0x358] sm:$0xff] %v437
                %v439 = vld [vmem:[%s221 + $0x6c0] sm:$0xff]
                %440 = vst [vmem:[%s222 + $0x360] sm:$0xff] %v439
                %v441 = vld [vmem:[%s221 + $0x6c8] sm:$0xff]
                %442 = vst [vmem:[%s222 + $0x368] sm:$0xff] %v441
                %v443 = vld [vmem:[%s221 + $0x6d0] sm:$0xff]
                %444 = vst [vmem:[%s222 + $0x370] sm:$0xff] %v443
                %v445 = vld [vmem:[%s221 + $0x6d8] sm:$0xff]
                %446 = vst [vmem:[%s222 + $0x378] sm:$0xff] %v445
                %v447 = vld [vmem:[%s221 + $0x700] sm:$0xff]
                %448 = vst [vmem:[%s222 + $0x380] sm:$0xff] %v447
                %v449 = vld [vmem:[%s221 + $0x708] sm:$0xff]
                %450 = vst [vmem:[%s222 + $0x388] sm:$0xff] %v449
                %v451 = vld [vmem:[%s221 + $0x710] sm:$0xff]
                %452 = vst [vmem:[%s222 + $0x390] sm:$0xff] %v451
                %v453 = vld [vmem:[%s221 + $0x718] sm:$0xff]
                %454 = vst [vmem:[%s222 + $0x398] sm:$0xff] %v453
                %v455 = vld [vmem:[%s221 + $0x740] sm:$0xff]
                %456 = vst [vmem:[%s222 + $0x3a0] sm:$0xff] %v455
                %v457 = vld [vmem:[%s221 + $0x748] sm:$0xff]
                %458 = vst [vmem:[%s222 + $0x3a8] sm:$0xff] %v457
                %v459 = vld [vmem:[%s221 + $0x750] sm:$0xff]
                %460 = vst [vmem:[%s222 + $0x3b0] sm:$0xff] %v459
                %v461 = vld [vmem:[%s221 + $0x758] sm:$0xff]
                %462 = vst [vmem:[%s222 + $0x3b8] sm:$0xff] %v461
                %v463 = vld [vmem:[%s221 + $0x780] sm:$0xff]
                %464 = vst [vmem:[%s222 + $0x3c0] sm:$0xff] %v463
                %v465 = vld [vmem:[%s221 + $0x788] sm:$0xff]
                %466 = vst [vmem:[%s222 + $0x3c8] sm:$0xff] %v465
                %v467 = vld [vmem:[%s221 + $0x790] sm:$0xff]
                %468 = vst [vmem:[%s222 + $0x3d0] sm:$0xff] %v467
                %v469 = vld [vmem:[%s221 + $0x798] sm:$0xff]
                %470 = vst [vmem:[%s222 + $0x3d8] sm:$0xff] %v469
                %v471 = vld [vmem:[%s221 + $0x7c0] sm:$0xff]
                %472 = vst [vmem:[%s222 + $0x3e0] sm:$0xff] %v471
                %v473 = vld [vmem:[%s221 + $0x7c8] sm:$0xff]
                %474 = vst [vmem:[%s222 + $0x3e8] sm:$0xff] %v473
                %v475 = vld [vmem:[%s221 + $0x7d0] sm:$0xff]
                %476 = vst [vmem:[%s222 + $0x3f0] sm:$0xff] %v475
                %v477 = vld [vmem:[%s221 + $0x7d8] sm:$0xff]
                %478 = vst [vmem:[%s222 + $0x3f8] sm:$0xff] %v477
                %v479 = vld [vmem:[%s221 + $0x800] sm:$0xff]
                %480 = vst [vmem:[%s222 + $0x400] sm:$0xff] %v479
                %v481 = vld [vmem:[%s221 + $0x808] sm:$0xff]
                %482 = vst [vmem:[%s222 + $0x408] sm:$0xff] %v481
                %v483 = vld [vmem:[%s221 + $0x810] sm:$0xff]
                %484 = vst [vmem:[%s222 + $0x410] sm:$0xff] %v483
                %v485 = vld [vmem:[%s221 + $0x818] sm:$0xff]
                %486 = vst [vmem:[%s222 + $0x418] sm:$0xff] %v485
                %v487 = vld [vmem:[%s221 + $0x840] sm:$0xff]
                %488 = vst [vmem:[%s222 + $0x420] sm:$0xff] %v487
                %v489 = vld [vmem:[%s221 + $0x848] sm:$0xff]
                %490 = vst [vmem:[%s222 + $0x428] sm:$0xff] %v489
                %v491 = vld [vmem:[%s221 + $0x850] sm:$0xff]
                %492 = vst [vmem:[%s222 + $0x430] sm:$0xff] %v491
                %v493 = vld [vmem:[%s221 + $0x858] sm:$0xff]
                %494 = vst [vmem:[%s222 + $0x438] sm:$0xff] %v493
                %v495 = vld [vmem:[%s221 + $0x880] sm:$0xff]
                %496 = vst [vmem:[%s222 + $0x440] sm:$0xff] %v495
                %v497 = vld [vmem:[%s221 + $0x888] sm:$0xff]
                %498 = vst [vmem:[%s222 + $0x448] sm:$0xff] %v497
                %v499 = vld [vmem:[%s221 + $0x890] sm:$0xff]
                %500 = vst [vmem:[%s222 + $0x450] sm:$0xff] %v499
                %v501 = vld [vmem:[%s221 + $0x898] sm:$0xff]
                %502 = vst [vmem:[%s222 + $0x458] sm:$0xff] %v501
                %v503 = vld [vmem:[%s221 + $0x8c0] sm:$0xff]
                %504 = vst [vmem:[%s222 + $0x460] sm:$0xff] %v503
                %v505 = vld [vmem:[%s221 + $0x8c8] sm:$0xff]
                %506 = vst [vmem:[%s222 + $0x468] sm:$0xff] %v505
                %v507 = vld [vmem:[%s221 + $0x8d0] sm:$0xff]
                %508 = vst [vmem:[%s222 + $0x470] sm:$0xff] %v507
                %v509 = vld [vmem:[%s221 + $0x8d8] sm:$0xff]
                %510 = vst [vmem:[%s222 + $0x478] sm:$0xff] %v509
                %v511 = vld [vmem:[%s221 + $0x900] sm:$0xff]
                %512 = vst [vmem:[%s222 + $0x480] sm:$0xff] %v511
                %v513 = vld [vmem:[%s221 + $0x908] sm:$0xff]
                %514 = vst [vmem:[%s222 + $0x488] sm:$0xff] %v513
                %v515 = vld [vmem:[%s221 + $0x910] sm:$0xff]
                %516 = vst [vmem:[%s222 + $0x490] sm:$0xff] %v515
                %v517 = vld [vmem:[%s221 + $0x918] sm:$0xff]
                %518 = vst [vmem:[%s222 + $0x498] sm:$0xff] %v517
                %v519 = vld [vmem:[%s221 + $0x940] sm:$0xff]
                %520 = vst [vmem:[%s222 + $0x4a0] sm:$0xff] %v519
                %v521 = vld [vmem:[%s221 + $0x948] sm:$0xff]
                %522 = vst [vmem:[%s222 + $0x4a8] sm:$0xff] %v521
                %v523 = vld [vmem:[%s221 + $0x950] sm:$0xff]
                %524 = vst [vmem:[%s222 + $0x4b0] sm:$0xff] %v523
                %v525 = vld [vmem:[%s221 + $0x958] sm:$0xff]
                %526 = vst [vmem:[%s222 + $0x4b8] sm:$0xff] %v525
                %v527 = vld [vmem:[%s221 + $0x980] sm:$0xff]
                %528 = vst [vmem:[%s222 + $0x4c0] sm:$0xff] %v527
                %v529 = vld [vmem:[%s221 + $0x988] sm:$0xff]
                %530 = vst [vmem:[%s222 + $0x4c8] sm:$0xff] %v529
                %v531 = vld [vmem:[%s221 + $0x990] sm:$0xff]
                %532 = vst [vmem:[%s222 + $0x4d0] sm:$0xff] %v531
                %v533 = vld [vmem:[%s221 + $0x998] sm:$0xff]
                %534 = vst [vmem:[%s222 + $0x4d8] sm:$0xff] %v533
                %v535 = vld [vmem:[%s221 + $0x9c0] sm:$0xff]
                %536 = vst [vmem:[%s222 + $0x4e0] sm:$0xff] %v535
                %v537 = vld [vmem:[%s221 + $0x9c8] sm:$0xff]
                %538 = vst [vmem:[%s222 + $0x4e8] sm:$0xff] %v537
                %v539 = vld [vmem:[%s221 + $0x9d0] sm:$0xff]
                %540 = vst [vmem:[%s222 + $0x4f0] sm:$0xff] %v539
                %v541 = vld [vmem:[%s221 + $0x9d8] sm:$0xff]
                %542 = vst [vmem:[%s222 + $0x4f8] sm:$0xff] %v541
                %v543 = vld [vmem:[%s221 + $0xa00] sm:$0xff]
                %544 = vst [vmem:[%s222 + $0x500] sm:$0xff] %v543
                %v545 = vld [vmem:[%s221 + $0xa08] sm:$0xff]
                %546 = vst [vmem:[%s222 + $0x508] sm:$0xff] %v545
                %v547 = vld [vmem:[%s221 + $0xa10] sm:$0xff]
                %548 = vst [vmem:[%s222 + $0x510] sm:$0xff] %v547
                %v549 = vld [vmem:[%s221 + $0xa18] sm:$0xff]
                %550 = vst [vmem:[%s222 + $0x518] sm:$0xff] %v549
                %v551 = vld [vmem:[%s221 + $0xa40] sm:$0xff]
                %552 = vst [vmem:[%s222 + $0x520] sm:$0xff] %v551
                %v553 = vld [vmem:[%s221 + $0xa48] sm:$0xff]
                %554 = vst [vmem:[%s222 + $0x528] sm:$0xff] %v553
                %v555 = vld [vmem:[%s221 + $0xa50] sm:$0xff]
                %556 = vst [vmem:[%s222 + $0x530] sm:$0xff] %v555
                %v557 = vld [vmem:[%s221 + $0xa58] sm:$0xff]
                %558 = vst [vmem:[%s222 + $0x538] sm:$0xff] %v557
                %v559 = vld [vmem:[%s221 + $0xa80] sm:$0xff]
                %560 = vst [vmem:[%s222 + $0x540] sm:$0xff] %v559
                %v561 = vld [vmem:[%s221 + $0xa88] sm:$0xff]
                %562 = vst [vmem:[%s222 + $0x548] sm:$0xff] %v561
                %v563 = vld [vmem:[%s221 + $0xa90] sm:$0xff]
                %564 = vst [vmem:[%s222 + $0x550] sm:$0xff] %v563
                %v565 = vld [vmem:[%s221 + $0xa98] sm:$0xff]
                %566 = vst [vmem:[%s222 + $0x558] sm:$0xff] %v565
                %v567 = vld [vmem:[%s221 + $0xac0] sm:$0xff]
                %568 = vst [vmem:[%s222 + $0x560] sm:$0xff] %v567
                %v569 = vld [vmem:[%s221 + $0xac8] sm:$0xff]
                %570 = vst [vmem:[%s222 + $0x568] sm:$0xff] %v569
                %v571 = vld [vmem:[%s221 + $0xad0] sm:$0xff]
                %572 = vst [vmem:[%s222 + $0x570] sm:$0xff] %v571
                %v573 = vld [vmem:[%s221 + $0xad8] sm:$0xff]
                %574 = vst [vmem:[%s222 + $0x578] sm:$0xff] %v573
                %v575 = vld [vmem:[%s221 + $0xb00] sm:$0xff]
                %576 = vst [vmem:[%s222 + $0x580] sm:$0xff] %v575
                %v577 = vld [vmem:[%s221 + $0xb08] sm:$0xff]
                %578 = vst [vmem:[%s222 + $0x588] sm:$0xff] %v577
                %v579 = vld [vmem:[%s221 + $0xb10] sm:$0xff]
                %580 = vst [vmem:[%s222 + $0x590] sm:$0xff] %v579
                %v581 = vld [vmem:[%s221 + $0xb18] sm:$0xff]
                %582 = vst [vmem:[%s222 + $0x598] sm:$0xff] %v581
                %v583 = vld [vmem:[%s221 + $0xb40] sm:$0xff]
                %584 = vst [vmem:[%s222 + $0x5a0] sm:$0xff] %v583
                %v585 = vld [vmem:[%s221 + $0xb48] sm:$0xff]
                %586 = vst [vmem:[%s222 + $0x5a8] sm:$0xff] %v585
                %v587 = vld [vmem:[%s221 + $0xb50] sm:$0xff]
                %588 = vst [vmem:[%s222 + $0x5b0] sm:$0xff] %v587
                %v589 = vld [vmem:[%s221 + $0xb58] sm:$0xff]
                %590 = vst [vmem:[%s222 + $0x5b8] sm:$0xff] %v589
                %v591 = vld [vmem:[%s221 + $0xb80] sm:$0xff]
                %592 = vst [vmem:[%s222 + $0x5c0] sm:$0xff] %v591
                %v593 = vld [vmem:[%s221 + $0xb88] sm:$0xff]
                %594 = vst [vmem:[%s222 + $0x5c8] sm:$0xff] %v593
                %v595 = vld [vmem:[%s221 + $0xb90] sm:$0xff]
                %596 = vst [vmem:[%s222 + $0x5d0] sm:$0xff] %v595
                %v597 = vld [vmem:[%s221 + $0xb98] sm:$0xff]
                %598 = vst [vmem:[%s222 + $0x5d8] sm:$0xff] %v597
                %v599 = vld [vmem:[%s221 + $0xbc0] sm:$0xff]
                %600 = vst [vmem:[%s222 + $0x5e0] sm:$0xff] %v599
                %v601 = vld [vmem:[%s221 + $0xbc8] sm:$0xff]
                %602 = vst [vmem:[%s222 + $0x5e8] sm:$0xff] %v601
                %v603 = vld [vmem:[%s221 + $0xbd0] sm:$0xff]
                %604 = vst [vmem:[%s222 + $0x5f0] sm:$0xff] %v603
                %v605 = vld [vmem:[%s221 + $0xbd8] sm:$0xff]
                %606 = vst [vmem:[%s222 + $0x5f8] sm:$0xff] %v605
                %v607 = vld [vmem:[%s221 + $0xc00] sm:$0xff]
                %608 = vst [vmem:[%s222 + $0x600] sm:$0xff] %v607
                %v609 = vld [vmem:[%s221 + $0xc08] sm:$0xff]
                %610 = vst [vmem:[%s222 + $0x608] sm:$0xff] %v609
                %v611 = vld [vmem:[%s221 + $0xc10] sm:$0xff]
                %612 = vst [vmem:[%s222 + $0x610] sm:$0xff] %v611
                %v613 = vld [vmem:[%s221 + $0xc18] sm:$0xff]
                %614 = vst [vmem:[%s222 + $0x618] sm:$0xff] %v613
                %v615 = vld [vmem:[%s221 + $0xc40] sm:$0xff]
                %616 = vst [vmem:[%s222 + $0x620] sm:$0xff] %v615
                %v617 = vld [vmem:[%s221 + $0xc48] sm:$0xff]
                %618 = vst [vmem:[%s222 + $0x628] sm:$0xff] %v617
                %v619 = vld [vmem:[%s221 + $0xc50] sm:$0xff]
                %620 = vst [vmem:[%s222 + $0x630] sm:$0xff] %v619
                %v621 = vld [vmem:[%s221 + $0xc58] sm:$0xff]
                %622 = vst [vmem:[%s222 + $0x638] sm:$0xff] %v621
                %v623 = vld [vmem:[%s221 + $0xc80] sm:$0xff]
                %624 = vst [vmem:[%s222 + $0x640] sm:$0xff] %v623
                %v625 = vld [vmem:[%s221 + $0xc88] sm:$0xff]
                %626 = vst [vmem:[%s222 + $0x648] sm:$0xff] %v625
                %v627 = vld [vmem:[%s221 + $0xc90] sm:$0xff]
                %628 = vst [vmem:[%s222 + $0x650] sm:$0xff] %v627
                %v629 = vld [vmem:[%s221 + $0xc98] sm:$0xff]
                %630 = vst [vmem:[%s222 + $0x658] sm:$0xff] %v629
                %v631 = vld [vmem:[%s221 + $0xcc0] sm:$0xff]
                %632 = vst [vmem:[%s222 + $0x660] sm:$0xff] %v631
                %v633 = vld [vmem:[%s221 + $0xcc8] sm:$0xff]
                %634 = vst [vmem:[%s222 + $0x668] sm:$0xff] %v633
                %v635 = vld [vmem:[%s221 + $0xcd0] sm:$0xff]
                %636 = vst [vmem:[%s222 + $0x670] sm:$0xff] %v635
                %v637 = vld [vmem:[%s221 + $0xcd8] sm:$0xff]
                %638 = vst [vmem:[%s222 + $0x678] sm:$0xff] %v637
                %v639 = vld [vmem:[%s221 + $0xd00] sm:$0xff]
                %640 = vst [vmem:[%s222 + $0x680] sm:$0xff] %v639
                %v641 = vld [vmem:[%s221 + $0xd08] sm:$0xff]
                %642 = vst [vmem:[%s222 + $0x688] sm:$0xff] %v641
                %v643 = vld [vmem:[%s221 + $0xd10] sm:$0xff]
                %644 = vst [vmem:[%s222 + $0x690] sm:$0xff] %v643
                %v645 = vld [vmem:[%s221 + $0xd18] sm:$0xff]
                %646 = vst [vmem:[%s222 + $0x698] sm:$0xff] %v645
                %v647 = vld [vmem:[%s221 + $0xd40] sm:$0xff]
                %648 = vst [vmem:[%s222 + $0x6a0] sm:$0xff] %v647
                %v649 = vld [vmem:[%s221 + $0xd48] sm:$0xff]
                %650 = vst [vmem:[%s222 + $0x6a8] sm:$0xff] %v649
                %v651 = vld [vmem:[%s221 + $0xd50] sm:$0xff]
                %652 = vst [vmem:[%s222 + $0x6b0] sm:$0xff] %v651
                %v653 = vld [vmem:[%s221 + $0xd58] sm:$0xff]
                %654 = vst [vmem:[%s222 + $0x6b8] sm:$0xff] %v653
                %v655 = vld [vmem:[%s221 + $0xd80] sm:$0xff]
                %656 = vst [vmem:[%s222 + $0x6c0] sm:$0xff] %v655
                %v657 = vld [vmem:[%s221 + $0xd88] sm:$0xff]
                %658 = vst [vmem:[%s222 + $0x6c8] sm:$0xff] %v657
                %v659 = vld [vmem:[%s221 + $0xd90] sm:$0xff]
                %660 = vst [vmem:[%s222 + $0x6d0] sm:$0xff] %v659
                %v661 = vld [vmem:[%s221 + $0xd98] sm:$0xff]
                %662 = vst [vmem:[%s222 + $0x6d8] sm:$0xff] %v661
                %v663 = vld [vmem:[%s221 + $0xdc0] sm:$0xff]
                %664 = vst [vmem:[%s222 + $0x6e0] sm:$0xff] %v663
                %v665 = vld [vmem:[%s221 + $0xdc8] sm:$0xff]
                %666 = vst [vmem:[%s222 + $0x6e8] sm:$0xff] %v665
                %v667 = vld [vmem:[%s221 + $0xdd0] sm:$0xff]
                %668 = vst [vmem:[%s222 + $0x6f0] sm:$0xff] %v667
                %v669 = vld [vmem:[%s221 + $0xdd8] sm:$0xff]
                %670 = vst [vmem:[%s222 + $0x6f8] sm:$0xff] %v669
                %v671 = vld [vmem:[%s221 + $0xe00] sm:$0xff]
                %672 = vst [vmem:[%s222 + $0x700] sm:$0xff] %v671
                %v673 = vld [vmem:[%s221 + $0xe08] sm:$0xff]
                %674 = vst [vmem:[%s222 + $0x708] sm:$0xff] %v673
                %v675 = vld [vmem:[%s221 + $0xe10] sm:$0xff]
                %676 = vst [vmem:[%s222 + $0x710] sm:$0xff] %v675
                %v677 = vld [vmem:[%s221 + $0xe18] sm:$0xff]
                %678 = vst [vmem:[%s222 + $0x718] sm:$0xff] %v677
                %v679 = vld [vmem:[%s221 + $0xe40] sm:$0xff]
                %680 = vst [vmem:[%s222 + $0x720] sm:$0xff] %v679
                %v681 = vld [vmem:[%s221 + $0xe48] sm:$0xff]
                %682 = vst [vmem:[%s222 + $0x728] sm:$0xff] %v681
                %v683 = vld [vmem:[%s221 + $0xe50] sm:$0xff]
                %684 = vst [vmem:[%s222 + $0x730] sm:$0xff] %v683
                %v685 = vld [vmem:[%s221 + $0xe58] sm:$0xff]
                %686 = vst [vmem:[%s222 + $0x738] sm:$0xff] %v685
                %v687 = vld [vmem:[%s221 + $0xe80] sm:$0xff]
                %688 = vst [vmem:[%s222 + $0x740] sm:$0xff] %v687
                %v689 = vld [vmem:[%s221 + $0xe88] sm:$0xff]
                %690 = vst [vmem:[%s222 + $0x748] sm:$0xff] %v689
                %v691 = vld [vmem:[%s221 + $0xe90] sm:$0xff]
                %692 = vst [vmem:[%s222 + $0x750] sm:$0xff] %v691
                %v693 = vld [vmem:[%s221 + $0xe98] sm:$0xff]
                %694 = vst [vmem:[%s222 + $0x758] sm:$0xff] %v693
                %v695 = vld [vmem:[%s221 + $0xec0] sm:$0xff]
                %696 = vst [vmem:[%s222 + $0x760] sm:$0xff] %v695
                %v697 = vld [vmem:[%s221 + $0xec8] sm:$0xff]
                %698 = vst [vmem:[%s222 + $0x768] sm:$0xff] %v697
                %v699 = vld [vmem:[%s221 + $0xed0] sm:$0xff]
                %700 = vst [vmem:[%s222 + $0x770] sm:$0xff] %v699
                %v701 = vld [vmem:[%s221 + $0xed8] sm:$0xff]
                %702 = vst [vmem:[%s222 + $0x778] sm:$0xff] %v701
                %v703 = vld [vmem:[%s221 + $0xf00] sm:$0xff]
                %704 = vst [vmem:[%s222 + $0x780] sm:$0xff] %v703
                %v705 = vld [vmem:[%s221 + $0xf08] sm:$0xff]
                %706 = vst [vmem:[%s222 + $0x788] sm:$0xff] %v705
                %v707 = vld [vmem:[%s221 + $0xf10] sm:$0xff]
                %708 = vst [vmem:[%s222 + $0x790] sm:$0xff] %v707
                %v709 = vld [vmem:[%s221 + $0xf18] sm:$0xff]
                %710 = vst [vmem:[%s222 + $0x798] sm:$0xff] %v709
                %v711 = vld [vmem:[%s221 + $0xf40] sm:$0xff]
                %712 = vst [vmem:[%s222 + $0x7a0] sm:$0xff] %v711
                %v713 = vld [vmem:[%s221 + $0xf48] sm:$0xff]
                %714 = vst [vmem:[%s222 + $0x7a8] sm:$0xff] %v713
                %v715 = vld [vmem:[%s221 + $0xf50] sm:$0xff]
                %716 = vst [vmem:[%s222 + $0x7b0] sm:$0xff] %v715
                %v717 = vld [vmem:[%s221 + $0xf58] sm:$0xff]
                %718 = vst [vmem:[%s222 + $0x7b8] sm:$0xff] %v717
                %v719 = vld [vmem:[%s221 + $0xf80] sm:$0xff]
                %720 = vst [vmem:[%s222 + $0x7c0] sm:$0xff] %v719
                %v721 = vld [vmem:[%s221 + $0xf88] sm:$0xff]
                %722 = vst [vmem:[%s222 + $0x7c8] sm:$0xff] %v721
                %v723 = vld [vmem:[%s221 + $0xf90] sm:$0xff]
                %724 = vst [vmem:[%s222 + $0x7d0] sm:$0xff] %v723
                %v725 = vld [vmem:[%s221 + $0xf98] sm:$0xff]
                %726 = vst [vmem:[%s222 + $0x7d8] sm:$0xff] %v725
                %v727 = vld [vmem:[%s221 + $0xfc0] sm:$0xff]
                %728 = vst [vmem:[%s222 + $0x7e0] sm:$0xff] %v727
                %v729 = vld [vmem:[%s221 + $0xfc8] sm:$0xff]
                %730 = vst [vmem:[%s222 + $0x7e8] sm:$0xff] %v729
                %v731 = vld [vmem:[%s221 + $0xfd0] sm:$0xff]
                %732 = vst [vmem:[%s222 + $0x7f0] sm:$0xff] %v731
                %v733 = vld [vmem:[%s221 + $0xfd8] sm:$0xff]
                %734 = vst [vmem:[%s222 + $0x7f8] sm:$0xff] %v733
              $region41: #{_stage1.7} parent=35 // loop_footer
                %s220 = sadd.s32 1, %s216
              $region42: #{_stage1.7} parent=35 // loop_footer_branch
                %215 = sbr.rel target = $region38
              $region43: #{_stage1.7} parent=35 // loop_exit
                _
            $region36: #{_stage1.7} parent=31 // pred_fallthru
              _
            // Predicated region
            $region44: #{_stage1.7} parent=31 // pred_check
              _
            $region45: #{_stage1.7} parent=31 // pred_check_branch
              %736 = sbr.rel target = $region47
            $region46: #{_stage1.7} parent=31 // pred_region
              _
            $region47: #{_stage1.7} parent=31 // pred_fallthru
              _
          $region32: #{_stage1.7} parent=27 // pred_fallthru
            _
          %737 = vnop
        $region28: #{_stage1.7} parent=23 // pred_fallthru
          _
        // Predicated region
        $region48: #{_stage1.7} parent=23 // pred_check
          %p738 = pneg %p81
        $region49: #{_stage1.7} parent=23 // pred_check_branch
          %740 = sbr.rel (%p738) target = $region51
        $region50: #{_stage1.7} parent=23 // pred_region
          %s741 = smul.u32 8, %s14
          %p742 = scmp.lt.s32.totalorder %s741, 15
          %s743 = scalar_select %p742, %s741, 15
          %s744 = scalar_lea.vmem %s2, %s743
          %s745 = smul.u32 8, %s14
        $region51: #{_stage1.7} parent=23 // pred_fallthru
          _
        // Predicated region
        $region52: #{_stage1.7} parent=23 // pred_check
          %p746 = pneg %p107
        $region53: #{_stage1.7} parent=23 // pred_check_branch
          %748 = sbr.rel (%p746) target = $region55
        $region54: #{_stage1.7} parent=23 // pred_region
          %s749 = smul.u32 128, %s14
          %p750 = scmp.lt.s32.totalorder %s749, 255
          %s751 = scalar_select %p750, %s749, 255
          %s752 = smul.addr %s751, 4
          %s753 = scalar_lea.vmem %s3, %s752
          %s754 = smul.u32 128, %s14
        $region55: #{_stage1.7} parent=23 // pred_fallthru
          _
      $region24: #{_stage1.7} parent=5 // pred_fallthru
        _
      %p755 = scmp.le.s32.totalorder 1, %s14
      %p756 = scmp.lt.s32.totalorder %s14, 3
      %p757 = pnand %p755, %p756
      %p758 = pneg %p757
      // Predicated region
      $region56: #{_stage1.7} parent=5 // pred_check
        _
      $region57: #{_stage1.7} parent=5 // pred_check_branch
        %760 = sbr.rel (%p757) target = $region59
      $region58: #{_stage1.7} parent=5 // pred_region
        %s761 = ssub.s32 %s14, 1
        %s762 = sand.u32 %s48, 1
        %s763 = sand.u32 %s48, 1
        %s764 = smul.addr %s763, 2048
        %s765 = scalar_lea.vmem [#allocation3], %s764
        // Predicated region
        $region60: #{_stage1.7} parent=58 // pred_check
          %p766 = pneg %p61
        $region61: #{_stage1.7} parent=58 // pred_check_branch
          %768 = sbr.rel (%p766) target = $region63
        $region62: #{_stage1.7} parent=58 // pred_region
          _
        $region63: #{_stage1.7} parent=58 // pred_fallthru
          _
        %p769 = pneg %p35
        %p770 = pneg %p32
        %s771 = sand.u32 %s48, 1
        %s772 = sand.u32 %s48, 1
        %s773 = smul.addr %s772, 2048
        %s774 = scalar_lea.vmem [#allocation3], %s773
        %p775 = pneg %p61
        %p776 = pneg %p58
        %s777 = smul.u32 8, %s19
        %p778 = scmp.lt.s32.totalorder %s777, 15
        %s779 = scalar_select %p778, %s777, 15
        %s780 = scalar_lea.vmem %s2, %s779
        %p781 = pneg %p87
        %p782 = pneg %p84
        %s783 = smul.u32 128, %s19
        %p784 = scmp.lt.s32.totalorder %s783, 255
        %s785 = scalar_select %p784, %s783, 255
        %s786 = smul.addr %s785, 4
        %s787 = scalar_lea.vmem %s3, %s786
        %p788 = pneg %p113
        %p789 = pneg %p110
        %p790 = pneg %p134
        %p791 = pneg %p131
        %p792 = pneg %p155
        %p793 = pneg %p152
        %p794 = pneg %p176
        %p795 = pneg %p173
        %s796 = smul.u32 8, %s19
        %s797 = smul.u32 8, %s19
        %p798 = scmp.lt.s32.totalorder %s797, 15
        %s799 = scalar_select %p798, %s797, 15
        %s800 = scalar_lea.vmem %s2, %s799
        %s801 = smul.u32 8, %s19
        %s802 = smul.u32 128, %s19
        %p803 = scmp.lt.s32.totalorder %s802, 255
        %s804 = scalar_select %p803, %s802, 255
        %s805 = smul.addr %s804, 4
        %s806 = scalar_lea.vmem %s3, %s805
        %s807 = smul.u32 128, %s19
        %p809 = scmp.eq.s32.totalorder %s19, 0
        // Predicated region
        $region64: #{_stage1.7} parent=58 // pred_check
          %p810 = pneg %p809
        $region65: #{_stage1.7} parent=58 // pred_check_branch
          %812 = sbr.rel (%p810) target = $region67
        $region66: #{_stage1.7} parent=58 // pred_region
          %813 = vst [vmem:[#allocation2] sm:$0x3] 0.0
        $region67: #{_stage1.7} parent=58 // pred_fallthru
          _
        %v814 = vld [vmem:[%s0] sm:$0xf]
        %v815 = vld [vmem:[%s765] sm:$0xff]
        %v816 = vld [vmem:[%s765 + $0x8] sm:$0xff]
        %v817 = vld [vmem:[%s765 + $0x10] sm:$0xff]
        %v818 = vld [vmem:[%s765 + $0x18] sm:$0xff]
        %v819 = vld [vmem:[%s765 + $0x20] sm:$0xff]
        %v820 = vld [vmem:[%s765 + $0x28] sm:$0xff]
        %v821 = vld [vmem:[%s765 + $0x30] sm:$0xff]
        %v822 = vld [vmem:[%s765 + $0x38] sm:$0xff]
        %v823 = vld [vmem:[%s765 + $0x40] sm:$0xff]
        %v824 = vld [vmem:[%s765 + $0x48] sm:$0xff]
        %v825 = vld [vmem:[%s765 + $0x50] sm:$0xff]
        %v826 = vld [vmem:[%s765 + $0x58] sm:$0xff]
        %v827 = vld [vmem:[%s765 + $0x60] sm:$0xff]
        %v828 = vld [vmem:[%s765 + $0x68] sm:$0xff]
        %v829 = vld [vmem:[%s765 + $0x70] sm:$0xff]
        %v830 = vld [vmem:[%s765 + $0x78] sm:$0xff]
        %v831 = vld [vmem:[%s765 + $0x80] sm:$0xff]
        %v832 = vld [vmem:[%s765 + $0x88] sm:$0xff]
        %v833 = vld [vmem:[%s765 + $0x90] sm:$0xff]
        %v834 = vld [vmem:[%s765 + $0x98] sm:$0xff]
        %v835 = vld [vmem:[%s765 + $0xa0] sm:$0xff]
        %v836 = vld [vmem:[%s765 + $0xa8] sm:$0xff]
        %v837 = vld [vmem:[%s765 + $0xb0] sm:$0xff]
        %v838 = vld [vmem:[%s765 + $0xb8] sm:$0xff]
        %v839 = vld [vmem:[%s765 + $0xc0] sm:$0xff]
        %v840 = vld [vmem:[%s765 + $0xc8] sm:$0xff]
        %v841 = vld [vmem:[%s765 + $0xd0] sm:$0xff]
        %v842 = vld [vmem:[%s765 + $0xd8] sm:$0xff]
        %v843 = vld [vmem:[%s765 + $0xe0] sm:$0xff]
        %v844 = vld [vmem:[%s765 + $0xe8] sm:$0xff]
        %v845 = vld [vmem:[%s765 + $0xf0] sm:$0xff]
        %v846 = vld [vmem:[%s765 + $0xf8] sm:$0xff]
        %v847 = vld [vmem:[%s765 + $0x100] sm:$0xff]
        %v848 = vld [vmem:[%s765 + $0x108] sm:$0xff]
        %v849 = vld [vmem:[%s765 + $0x110] sm:$0xff]
        %v850 = vld [vmem:[%s765 + $0x118] sm:$0xff]
        %v851 = vld [vmem:[%s765 + $0x120] sm:$0xff]
        %v852 = vld [vmem:[%s765 + $0x128] sm:$0xff]
        %v853 = vld [vmem:[%s765 + $0x130] sm:$0xff]
        %v854 = vld [vmem:[%s765 + $0x138] sm:$0xff]
        %v855 = vld [vmem:[%s765 + $0x140] sm:$0xff]
        %v856 = vld [vmem:[%s765 + $0x148] sm:$0xff]
        %v857 = vld [vmem:[%s765 + $0x150] sm:$0xff]
        %v858 = vld [vmem:[%s765 + $0x158] sm:$0xff]
        %v859 = vld [vmem:[%s765 + $0x160] sm:$0xff]
        %v860 = vld [vmem:[%s765 + $0x168] sm:$0xff]
        %v861 = vld [vmem:[%s765 + $0x170] sm:$0xff]
        %v862 = vld [vmem:[%s765 + $0x178] sm:$0xff]
        %v863 = vld [vmem:[%s765 + $0x180] sm:$0xff]
        %v864 = vld [vmem:[%s765 + $0x188] sm:$0xff]
        %v865 = vld [vmem:[%s765 + $0x190] sm:$0xff]
        %v866 = vld [vmem:[%s765 + $0x198] sm:$0xff]
        %v867 = vld [vmem:[%s765 + $0x1a0] sm:$0xff]
        %v868 = vld [vmem:[%s765 + $0x1a8] sm:$0xff]
        %v869 = vld [vmem:[%s765 + $0x1b0] sm:$0xff]
        %v870 = vld [vmem:[%s765 + $0x1b8] sm:$0xff]
        %v871 = vld [vmem:[%s765 + $0x1c0] sm:$0xff]
        %v872 = vld [vmem:[%s765 + $0x1c8] sm:$0xff]
        %v873 = vld [vmem:[%s765 + $0x1d0] sm:$0xff]
        %v874 = vld [vmem:[%s765 + $0x1d8] sm:$0xff]
        %v875 = vld [vmem:[%s765 + $0x1e0] sm:$0xff]
        %v876 = vld [vmem:[%s765 + $0x1e8] sm:$0xff]
        %v877 = vld [vmem:[%s765 + $0x1f0] sm:$0xff]
        %v878 = vld [vmem:[%s765 + $0x1f8] sm:$0xff]
        %v879 = vld [vmem:[%s765 + $0x200] sm:$0xff]
        %v880 = vld [vmem:[%s765 + $0x208] sm:$0xff]
        %v881 = vld [vmem:[%s765 + $0x210] sm:$0xff]
        %v882 = vld [vmem:[%s765 + $0x218] sm:$0xff]
        %v883 = vld [vmem:[%s765 + $0x220] sm:$0xff]
        %v884 = vld [vmem:[%s765 + $0x228] sm:$0xff]
        %v885 = vld [vmem:[%s765 + $0x230] sm:$0xff]
        %v886 = vld [vmem:[%s765 + $0x238] sm:$0xff]
        %v887 = vld [vmem:[%s765 + $0x240] sm:$0xff]
        %v888 = vld [vmem:[%s765 + $0x248] sm:$0xff]
        %v889 = vld [vmem:[%s765 + $0x250] sm:$0xff]
        %v890 = vld [vmem:[%s765 + $0x258] sm:$0xff]
        %v891 = vld [vmem:[%s765 + $0x260] sm:$0xff]
        %v892 = vld [vmem:[%s765 + $0x268] sm:$0xff]
        %v893 = vld [vmem:[%s765 + $0x270] sm:$0xff]
        %v894 = vld [vmem:[%s765 + $0x278] sm:$0xff]
        %v895 = vld [vmem:[%s765 + $0x280] sm:$0xff]
        %v896 = vld [vmem:[%s765 + $0x288] sm:$0xff]
        %v897 = vld [vmem:[%s765 + $0x290] sm:$0xff]
        %v898 = vld [vmem:[%s765 + $0x298] sm:$0xff]
        %v899 = vld [vmem:[%s765 + $0x2a0] sm:$0xff]
        %v900 = vld [vmem:[%s765 + $0x2a8] sm:$0xff]
        %v901 = vld [vmem:[%s765 + $0x2b0] sm:$0xff]
        %v902 = vld [vmem:[%s765 + $0x2b8] sm:$0xff]
        %v903 = vld [vmem:[%s765 + $0x2c0] sm:$0xff]
        %v904 = vld [vmem:[%s765 + $0x2c8] sm:$0xff]
        %v905 = vld [vmem:[%s765 + $0x2d0] sm:$0xff]
        %v906 = vld [vmem:[%s765 + $0x2d8] sm:$0xff]
        %v907 = vld [vmem:[%s765 + $0x2e0] sm:$0xff]
        %v908 = vld [vmem:[%s765 + $0x2e8] sm:$0xff]
        %v909 = vld [vmem:[%s765 + $0x2f0] sm:$0xff]
        %v910 = vld [vmem:[%s765 + $0x2f8] sm:$0xff]
        %v911 = vld [vmem:[%s765 + $0x300] sm:$0xff]
        %v912 = vld [vmem:[%s765 + $0x308] sm:$0xff]
        %v913 = vld [vmem:[%s765 + $0x310] sm:$0xff]
        %v914 = vld [vmem:[%s765 + $0x318] sm:$0xff]
        %v915 = vld [vmem:[%s765 + $0x320] sm:$0xff]
        %v916 = vld [vmem:[%s765 + $0x328] sm:$0xff]
        %v917 = vld [vmem:[%s765 + $0x330] sm:$0xff]
        %v918 = vld [vmem:[%s765 + $0x338] sm:$0xff]
        %v919 = vld [vmem:[%s765 + $0x340] sm:$0xff]
        %v920 = vld [vmem:[%s765 + $0x348] sm:$0xff]
        %v921 = vld [vmem:[%s765 + $0x350] sm:$0xff]
        %v922 = vld [vmem:[%s765 + $0x358] sm:$0xff]
        %v923 = vld [vmem:[%s765 + $0x360] sm:$0xff]
        %v924 = vld [vmem:[%s765 + $0x368] sm:$0xff]
        %v925 = vld [vmem:[%s765 + $0x370] sm:$0xff]
        %v926 = vld [vmem:[%s765 + $0x378] sm:$0xff]
        %v927 = vld [vmem:[%s765 + $0x380] sm:$0xff]
        %v928 = vld [vmem:[%s765 + $0x388] sm:$0xff]
        %v929 = vld [vmem:[%s765 + $0x390] sm:$0xff]
        %v930 = vld [vmem:[%s765 + $0x398] sm:$0xff]
        %v931 = vld [vmem:[%s765 + $0x3a0] sm:$0xff]
        %v932 = vld [vmem:[%s765 + $0x3a8] sm:$0xff]
        %v933 = vld [vmem:[%s765 + $0x3b0] sm:$0xff]
        %v934 = vld [vmem:[%s765 + $0x3b8] sm:$0xff]
        %v935 = vld [vmem:[%s765 + $0x3c0] sm:$0xff]
        %v936 = vld [vmem:[%s765 + $0x3c8] sm:$0xff]
        %v937 = vld [vmem:[%s765 + $0x3d0] sm:$0xff]
        %v938 = vld [vmem:[%s765 + $0x3d8] sm:$0xff]
        %v939 = vld [vmem:[%s765 + $0x3e0] sm:$0xff]
        %v940 = vld [vmem:[%s765 + $0x3e8] sm:$0xff]
        %v941 = vld [vmem:[%s765 + $0x3f0] sm:$0xff]
        %v942 = vld [vmem:[%s765 + $0x3f8] sm:$0xff]
        %v943 = vld [vmem:[%s765 + $0x400] sm:$0xff]
        %v944 = vld [vmem:[%s765 + $0x408] sm:$0xff]
        %v945 = vld [vmem:[%s765 + $0x410] sm:$0xff]
        %v946 = vld [vmem:[%s765 + $0x418] sm:$0xff]
        %v947 = vld [vmem:[%s765 + $0x420] sm:$0xff]
        %v948 = vld [vmem:[%s765 + $0x428] sm:$0xff]
        %v949 = vld [vmem:[%s765 + $0x430] sm:$0xff]
        %v950 = vld [vmem:[%s765 + $0x438] sm:$0xff]
        %v951 = vld [vmem:[%s765 + $0x440] sm:$0xff]
        %v952 = vld [vmem:[%s765 + $0x448] sm:$0xff]
        %v953 = vld [vmem:[%s765 + $0x450] sm:$0xff]
        %v954 = vld [vmem:[%s765 + $0x458] sm:$0xff]
        %v955 = vld [vmem:[%s765 + $0x460] sm:$0xff]
        %v956 = vld [vmem:[%s765 + $0x468] sm:$0xff]
        %v957 = vld [vmem:[%s765 + $0x470] sm:$0xff]
        %v958 = vld [vmem:[%s765 + $0x478] sm:$0xff]
        %v959 = vld [vmem:[%s765 + $0x480] sm:$0xff]
        %v960 = vld [vmem:[%s765 + $0x488] sm:$0xff]
        %v961 = vld [vmem:[%s765 + $0x490] sm:$0xff]
        %v962 = vld [vmem:[%s765 + $0x498] sm:$0xff]
        %v963 = vld [vmem:[%s765 + $0x4a0] sm:$0xff]
        %v964 = vld [vmem:[%s765 + $0x4a8] sm:$0xff]
        %v965 = vld [vmem:[%s765 + $0x4b0] sm:$0xff]
        %v966 = vld [vmem:[%s765 + $0x4b8] sm:$0xff]
        %v967 = vld [vmem:[%s765 + $0x4c0] sm:$0xff]
        %v968 = vld [vmem:[%s765 + $0x4c8] sm:$0xff]
        %v969 = vld [vmem:[%s765 + $0x4d0] sm:$0xff]
        %v970 = vld [vmem:[%s765 + $0x4d8] sm:$0xff]
        %v971 = vld [vmem:[%s765 + $0x4e0] sm:$0xff]
        %v972 = vld [vmem:[%s765 + $0x4e8] sm:$0xff]
        %v973 = vld [vmem:[%s765 + $0x4f0] sm:$0xff]
        %v974 = vld [vmem:[%s765 + $0x4f8] sm:$0xff]
        %v975 = vld [vmem:[%s765 + $0x500] sm:$0xff]
        %v976 = vld [vmem:[%s765 + $0x508] sm:$0xff]
        %v977 = vld [vmem:[%s765 + $0x510] sm:$0xff]
        %v978 = vld [vmem:[%s765 + $0x518] sm:$0xff]
        %v979 = vld [vmem:[%s765 + $0x520] sm:$0xff]
        %v980 = vld [vmem:[%s765 + $0x528] sm:$0xff]
        %v981 = vld [vmem:[%s765 + $0x530] sm:$0xff]
        %v982 = vld [vmem:[%s765 + $0x538] sm:$0xff]
        %v983 = vld [vmem:[%s765 + $0x540] sm:$0xff]
        %v984 = vld [vmem:[%s765 + $0x548] sm:$0xff]
        %v985 = vld [vmem:[%s765 + $0x550] sm:$0xff]
        %v986 = vld [vmem:[%s765 + $0x558] sm:$0xff]
        %v987 = vld [vmem:[%s765 + $0x560] sm:$0xff]
        %v988 = vld [vmem:[%s765 + $0x568] sm:$0xff]
        %v989 = vld [vmem:[%s765 + $0x570] sm:$0xff]
        %v990 = vld [vmem:[%s765 + $0x578] sm:$0xff]
        %v991 = vld [vmem:[%s765 + $0x580] sm:$0xff]
        %v992 = vld [vmem:[%s765 + $0x588] sm:$0xff]
        %v993 = vld [vmem:[%s765 + $0x590] sm:$0xff]
        %v994 = vld [vmem:[%s765 + $0x598] sm:$0xff]
        %v995 = vld [vmem:[%s765 + $0x5a0] sm:$0xff]
        %v996 = vld [vmem:[%s765 + $0x5a8] sm:$0xff]
        %v997 = vld [vmem:[%s765 + $0x5b0] sm:$0xff]
        %v998 = vld [vmem:[%s765 + $0x5b8] sm:$0xff]
        %v999 = vld [vmem:[%s765 + $0x5c0] sm:$0xff]
        %v1000 = vld [vmem:[%s765 + $0x5c8] sm:$0xff]
        %v1001 = vld [vmem:[%s765 + $0x5d0] sm:$0xff]
        %v1002 = vld [vmem:[%s765 + $0x5d8] sm:$0xff]
        %v1003 = vld [vmem:[%s765 + $0x5e0] sm:$0xff]
        %v1004 = vld [vmem:[%s765 + $0x5e8] sm:$0xff]
        %v1005 = vld [vmem:[%s765 + $0x5f0] sm:$0xff]
        %v1006 = vld [vmem:[%s765 + $0x5f8] sm:$0xff]
        %v1007 = vld [vmem:[%s765 + $0x600] sm:$0xff]
        %v1008 = vld [vmem:[%s765 + $0x608] sm:$0xff]
        %v1009 = vld [vmem:[%s765 + $0x610] sm:$0xff]
        %v1010 = vld [vmem:[%s765 + $0x618] sm:$0xff]
        %v1011 = vld [vmem:[%s765 + $0x620] sm:$0xff]
        %v1012 = vld [vmem:[%s765 + $0x628] sm:$0xff]
        %v1013 = vld [vmem:[%s765 + $0x630] sm:$0xff]
        %v1014 = vld [vmem:[%s765 + $0x638] sm:$0xff]
        %v1015 = vld [vmem:[%s765 + $0x640] sm:$0xff]
        %v1016 = vld [vmem:[%s765 + $0x648] sm:$0xff]
        %v1017 = vld [vmem:[%s765 + $0x650] sm:$0xff]
        %v1018 = vld [vmem:[%s765 + $0x658] sm:$0xff]
        %v1019 = vld [vmem:[%s765 + $0x660] sm:$0xff]
        %v1020 = vld [vmem:[%s765 + $0x668] sm:$0xff]
        %v1021 = vld [vmem:[%s765 + $0x670] sm:$0xff]
        %v1022 = vld [vmem:[%s765 + $0x678] sm:$0xff]
        %v1023 = vld [vmem:[%s765 + $0x680] sm:$0xff]
        %v1024 = vld [vmem:[%s765 + $0x688] sm:$0xff]
        %v1025 = vld [vmem:[%s765 + $0x690] sm:$0xff]
        %v1026 = vld [vmem:[%s765 + $0x698] sm:$0xff]
        %v1027 = vld [vmem:[%s765 + $0x6a0] sm:$0xff]
        %v1028 = vld [vmem:[%s765 + $0x6a8] sm:$0xff]
        %v1029 = vld [vmem:[%s765 + $0x6b0] sm:$0xff]
        %v1030 = vld [vmem:[%s765 + $0x6b8] sm:$0xff]
        %v1031 = vld [vmem:[%s765 + $0x6c0] sm:$0xff]
        %v1032 = vld [vmem:[%s765 + $0x6c8] sm:$0xff]
        %v1033 = vld [vmem:[%s765 + $0x6d0] sm:$0xff]
        %v1034 = vld [vmem:[%s765 + $0x6d8] sm:$0xff]
        %v1035 = vld [vmem:[%s765 + $0x6e0] sm:$0xff]
        %v1036 = vld [vmem:[%s765 + $0x6e8] sm:$0xff]
        %v1037 = vld [vmem:[%s765 + $0x6f0] sm:$0xff]
        %v1038 = vld [vmem:[%s765 + $0x6f8] sm:$0xff]
        %v1039 = vld [vmem:[%s765 + $0x700] sm:$0xff]
        %v1040 = vld [vmem:[%s765 + $0x708] sm:$0xff]
        %v1041 = vld [vmem:[%s765 + $0x710] sm:$0xff]
        %v1042 = vld [vmem:[%s765 + $0x718] sm:$0xff]
        %v1043 = vld [vmem:[%s765 + $0x720] sm:$0xff]
        %v1044 = vld [vmem:[%s765 + $0x728] sm:$0xff]
        %v1045 = vld [vmem:[%s765 + $0x730] sm:$0xff]
        %v1046 = vld [vmem:[%s765 + $0x738] sm:$0xff]
        %v1047 = vld [vmem:[%s765 + $0x740] sm:$0xff]
        %v1048 = vld [vmem:[%s765 + $0x748] sm:$0xff]
        %v1049 = vld [vmem:[%s765 + $0x750] sm:$0xff]
        %v1050 = vld [vmem:[%s765 + $0x758] sm:$0xff]
        %v1051 = vld [vmem:[%s765 + $0x760] sm:$0xff]
        %v1052 = vld [vmem:[%s765 + $0x768] sm:$0xff]
        %v1053 = vld [vmem:[%s765 + $0x770] sm:$0xff]
        %v1054 = vld [vmem:[%s765 + $0x778] sm:$0xff]
        %v1055 = vld [vmem:[%s765 + $0x780] sm:$0xff]
        %v1056 = vld [vmem:[%s765 + $0x788] sm:$0xff]
        %v1057 = vld [vmem:[%s765 + $0x790] sm:$0xff]
        %v1058 = vld [vmem:[%s765 + $0x798] sm:$0xff]
        %v1059 = vld [vmem:[%s765 + $0x7a0] sm:$0xff]
        %v1060 = vld [vmem:[%s765 + $0x7a8] sm:$0xff]
        %v1061 = vld [vmem:[%s765 + $0x7b0] sm:$0xff]
        %v1062 = vld [vmem:[%s765 + $0x7b8] sm:$0xff]
        %v1063 = vld [vmem:[%s765 + $0x7c0] sm:$0xff]
        %v1064 = vld [vmem:[%s765 + $0x7c8] sm:$0xff]
        %v1065 = vld [vmem:[%s765 + $0x7d0] sm:$0xff]
        %v1066 = vld [vmem:[%s765 + $0x7d8] sm:$0xff]
        %v1067 = vld [vmem:[%s765 + $0x7e0] sm:$0xff]
        %v1068 = vld [vmem:[%s765 + $0x7e8] sm:$0xff]
        %v1069 = vld [vmem:[%s765 + $0x7f0] sm:$0xff]
        %v1070 = vld [vmem:[%s765 + $0x7f8] sm:$0xff]
        %v1071 = vld [vmem:[%s800] sm:$0xff]
        %v1073 = vlaneseq
        %v1074 = vshrl.u32 %v1073, 7
        %v1075 = vsub.s32 0, %v1074
        %v1076 = vrot.slane %v1071, %v1075
        %v1077 = vlaneseq
        %v1078 = vshrl.u32 %v1077, 7
        %v1079 = vsub.s32 1, %v1078
        %v1080 = vrot.slane %v1071, %v1079
        %v1081 = vlaneseq
        %v1082 = vshrl.u32 %v1081, 7
        %v1083 = vsub.s32 2, %v1082
        %v1084 = vrot.slane %v1071, %v1083
        %v1085 = vlaneseq
        %v1086 = vshrl.u32 %v1085, 7
        %v1087 = vsub.s32 3, %v1086
        %v1088 = vrot.slane %v1071, %v1087
        %v1089 = vlaneseq
        %v1090 = vshrl.u32 %v1089, 7
        %v1091 = vsub.s32 4, %v1090
        %v1092 = vrot.slane %v1071, %v1091
        %v1093 = vlaneseq
        %v1094 = vshrl.u32 %v1093, 7
        %v1095 = vsub.s32 5, %v1094
        %v1096 = vrot.slane %v1071, %v1095
        %v1097 = vlaneseq
        %v1098 = vshrl.u32 %v1097, 7
        %v1099 = vsub.s32 6, %v1098
        %v1100 = vrot.slane %v1071, %v1099
        %v1101 = vlaneseq
        %v1102 = vshrl.u32 %v1101, 7
        %v1103 = vsub.s32 7, %v1102
        %v1104 = vrot.slane %v1071, %v1103
        %v1115 = vunpack.c.l.s4 1966171168
        %v1116 = vunpack.c.0.s8 %v1115
        %v1117 = vlaneseq
        %v1118 = vshrl.u32 %v1117, 7
        %v1119 = vsub.s32 %v1116, %v1118
        %v1120 = vrot.slane %v814, %v1119
        %v1121 = vcombine.high %v1120, %v1120
        %v1123 = vunpack.c.l.s4 1966171168
        %v1124 = vunpack.c.0.s8 %v1123
        %v1125 = vlaneseq
        %v1126 = vshrl.u32 %v1125, 7
        %v1127 = vsub.s32 %v1124, %v1126
        %v1128 = vrot.slane %v1120, %v1127
        %v1130 = vunpack.c.l.s4 1966171168
        %v1131 = vunpack.c.0.s8 %v1130
        %v1132 = vlaneseq
        %v1133 = vshrl.u32 %v1132, 7
        %v1134 = vsub.s32 %v1131, %v1133
        %v1135 = vrot.slane %v1121, %v1134
        %v1136 = vcombine.high %v1128, %v1128
        %v1137 = vcombine.high %v1135, %v1135
        %v1398 = vunpack.c.l.b16 %v815
        %v1399 = vunpack.c.h.b16 %v815
        %v1400 = vunpack.c.l.b16 %v816
        %v1401 = vunpack.c.h.b16 %v816
        %v1402 = vunpack.c.l.b16 %v817
        %v1403 = vunpack.c.h.b16 %v817
        %v1404 = vunpack.c.l.b16 %v818
        %v1405 = vunpack.c.h.b16 %v818
        %v1406 = vunpack.c.l.b16 %v819
        %v1407 = vunpack.c.h.b16 %v819
        %v1408 = vunpack.c.l.b16 %v820
        %v1409 = vunpack.c.h.b16 %v820
        %v1410 = vunpack.c.l.b16 %v821
        %v1411 = vunpack.c.h.b16 %v821
        %v1412 = vunpack.c.l.b16 %v822
        %v1413 = vunpack.c.h.b16 %v822
        %v1414 = vunpack.c.l.b16 %v823
        %v1415 = vunpack.c.h.b16 %v823
        %v1416 = vunpack.c.l.b16 %v824
        %v1417 = vunpack.c.h.b16 %v824
        %v1418 = vunpack.c.l.b16 %v825
        %v1419 = vunpack.c.h.b16 %v825
        %v1420 = vunpack.c.l.b16 %v826
        %v1421 = vunpack.c.h.b16 %v826
        %v1422 = vunpack.c.l.b16 %v827
        %v1423 = vunpack.c.h.b16 %v827
        %v1424 = vunpack.c.l.b16 %v828
        %v1425 = vunpack.c.h.b16 %v828
        %v1426 = vunpack.c.l.b16 %v829
        %v1427 = vunpack.c.h.b16 %v829
        %v1428 = vunpack.c.l.b16 %v830
        %v1429 = vunpack.c.h.b16 %v830
        %v1430 = vunpack.c.l.b16 %v831
        %v1431 = vunpack.c.h.b16 %v831
        %v1432 = vunpack.c.l.b16 %v832
        %v1433 = vunpack.c.h.b16 %v832
        %v1434 = vunpack.c.l.b16 %v833
        %v1435 = vunpack.c.h.b16 %v833
        %v1436 = vunpack.c.l.b16 %v834
        %v1437 = vunpack.c.h.b16 %v834
        %v1438 = vunpack.c.l.b16 %v835
        %v1439 = vunpack.c.h.b16 %v835
        %v1440 = vunpack.c.l.b16 %v836
        %v1441 = vunpack.c.h.b16 %v836
        %v1442 = vunpack.c.l.b16 %v837
        %v1443 = vunpack.c.h.b16 %v837
        %v1444 = vunpack.c.l.b16 %v838
        %v1445 = vunpack.c.h.b16 %v838
        %v1446 = vunpack.c.l.b16 %v839
        %v1447 = vunpack.c.h.b16 %v839
        %v1448 = vunpack.c.l.b16 %v840
        %v1449 = vunpack.c.h.b16 %v840
        %v1450 = vunpack.c.l.b16 %v841
        %v1451 = vunpack.c.h.b16 %v841
        %v1452 = vunpack.c.l.b16 %v842
        %v1453 = vunpack.c.h.b16 %v842
        %v1454 = vunpack.c.l.b16 %v843
        %v1455 = vunpack.c.h.b16 %v843
        %v1456 = vunpack.c.l.b16 %v844
        %v1457 = vunpack.c.h.b16 %v844
        %v1458 = vunpack.c.l.b16 %v845
        %v1459 = vunpack.c.h.b16 %v845
        %v1460 = vunpack.c.l.b16 %v846
        %v1461 = vunpack.c.h.b16 %v846
        %v1462 = vunpack.c.l.b16 %v847
        %v1463 = vunpack.c.h.b16 %v847
        %v1464 = vunpack.c.l.b16 %v848
        %v1465 = vunpack.c.h.b16 %v848
        %v1466 = vunpack.c.l.b16 %v849
        %v1467 = vunpack.c.h.b16 %v849
        %v1468 = vunpack.c.l.b16 %v850
        %v1469 = vunpack.c.h.b16 %v850
        %v1470 = vunpack.c.l.b16 %v851
        %v1471 = vunpack.c.h.b16 %v851
        %v1472 = vunpack.c.l.b16 %v852
        %v1473 = vunpack.c.h.b16 %v852
        %v1474 = vunpack.c.l.b16 %v853
        %v1475 = vunpack.c.h.b16 %v853
        %v1476 = vunpack.c.l.b16 %v854
        %v1477 = vunpack.c.h.b16 %v854
        %v1478 = vunpack.c.l.b16 %v855
        %v1479 = vunpack.c.h.b16 %v855
        %v1480 = vunpack.c.l.b16 %v856
        %v1481 = vunpack.c.h.b16 %v856
        %v1482 = vunpack.c.l.b16 %v857
        %v1483 = vunpack.c.h.b16 %v857
        %v1484 = vunpack.c.l.b16 %v858
        %v1485 = vunpack.c.h.b16 %v858
        %v1486 = vunpack.c.l.b16 %v859
        %v1487 = vunpack.c.h.b16 %v859
        %v1488 = vunpack.c.l.b16 %v860
        %v1489 = vunpack.c.h.b16 %v860
        %v1490 = vunpack.c.l.b16 %v861
        %v1491 = vunpack.c.h.b16 %v861
        %v1492 = vunpack.c.l.b16 %v862
        %v1493 = vunpack.c.h.b16 %v862
        %v1494 = vunpack.c.l.b16 %v863
        %v1495 = vunpack.c.h.b16 %v863
        %v1496 = vunpack.c.l.b16 %v864
        %v1497 = vunpack.c.h.b16 %v864
        %v1498 = vunpack.c.l.b16 %v865
        %v1499 = vunpack.c.h.b16 %v865
        %v1500 = vunpack.c.l.b16 %v866
        %v1501 = vunpack.c.h.b16 %v866
        %v1502 = vunpack.c.l.b16 %v867
        %v1503 = vunpack.c.h.b16 %v867
        %v1504 = vunpack.c.l.b16 %v868
        %v1505 = vunpack.c.h.b16 %v868
        %v1506 = vunpack.c.l.b16 %v869
        %v1507 = vunpack.c.h.b16 %v869
        %v1508 = vunpack.c.l.b16 %v870
        %v1509 = vunpack.c.h.b16 %v870
        %v1510 = vunpack.c.l.b16 %v871
        %v1511 = vunpack.c.h.b16 %v871
        %v1512 = vunpack.c.l.b16 %v872
        %v1513 = vunpack.c.h.b16 %v872
        %v1514 = vunpack.c.l.b16 %v873
        %v1515 = vunpack.c.h.b16 %v873
        %v1516 = vunpack.c.l.b16 %v874
        %v1517 = vunpack.c.h.b16 %v874
        %v1518 = vunpack.c.l.b16 %v875
        %v1519 = vunpack.c.h.b16 %v875
        %v1520 = vunpack.c.l.b16 %v876
        %v1521 = vunpack.c.h.b16 %v876
        %v1522 = vunpack.c.l.b16 %v877
        %v1523 = vunpack.c.h.b16 %v877
        %v1524 = vunpack.c.l.b16 %v878
        %v1525 = vunpack.c.h.b16 %v878
        %v1526 = vunpack.c.l.b16 %v879
        %v1527 = vunpack.c.h.b16 %v879
        %v1528 = vunpack.c.l.b16 %v880
        %v1529 = vunpack.c.h.b16 %v880
        %v1530 = vunpack.c.l.b16 %v881
        %v1531 = vunpack.c.h.b16 %v881
        %v1532 = vunpack.c.l.b16 %v882
        %v1533 = vunpack.c.h.b16 %v882
        %v1534 = vunpack.c.l.b16 %v883
        %v1535 = vunpack.c.h.b16 %v883
        %v1536 = vunpack.c.l.b16 %v884
        %v1537 = vunpack.c.h.b16 %v884
        %v1538 = vunpack.c.l.b16 %v885
        %v1539 = vunpack.c.h.b16 %v885
        %v1540 = vunpack.c.l.b16 %v886
        %v1541 = vunpack.c.h.b16 %v886
        %v1542 = vunpack.c.l.b16 %v887
        %v1543 = vunpack.c.h.b16 %v887
        %v1544 = vunpack.c.l.b16 %v888
        %v1545 = vunpack.c.h.b16 %v888
        %v1546 = vunpack.c.l.b16 %v889
        %v1547 = vunpack.c.h.b16 %v889
        %v1548 = vunpack.c.l.b16 %v890
        %v1549 = vunpack.c.h.b16 %v890
        %v1550 = vunpack.c.l.b16 %v891
        %v1551 = vunpack.c.h.b16 %v891
        %v1552 = vunpack.c.l.b16 %v892
        %v1553 = vunpack.c.h.b16 %v892
        %v1554 = vunpack.c.l.b16 %v893
        %v1555 = vunpack.c.h.b16 %v893
        %v1556 = vunpack.c.l.b16 %v894
        %v1557 = vunpack.c.h.b16 %v894
        %v1558 = vunpack.c.l.b16 %v895
        %v1559 = vunpack.c.h.b16 %v895
        %v1560 = vunpack.c.l.b16 %v896
        %v1561 = vunpack.c.h.b16 %v896
        %v1562 = vunpack.c.l.b16 %v897
        %v1563 = vunpack.c.h.b16 %v897
        %v1564 = vunpack.c.l.b16 %v898
        %v1565 = vunpack.c.h.b16 %v898
        %v1566 = vunpack.c.l.b16 %v899
        %v1567 = vunpack.c.h.b16 %v899
        %v1568 = vunpack.c.l.b16 %v900
        %v1569 = vunpack.c.h.b16 %v900
        %v1570 = vunpack.c.l.b16 %v901
        %v1571 = vunpack.c.h.b16 %v901
        %v1572 = vunpack.c.l.b16 %v902
        %v1573 = vunpack.c.h.b16 %v902
        %v1574 = vunpack.c.l.b16 %v903
        %v1575 = vunpack.c.h.b16 %v903
        %v1576 = vunpack.c.l.b16 %v904
        %v1577 = vunpack.c.h.b16 %v904
        %v1578 = vunpack.c.l.b16 %v905
        %v1579 = vunpack.c.h.b16 %v905
        %v1580 = vunpack.c.l.b16 %v906
        %v1581 = vunpack.c.h.b16 %v906
        %v1582 = vunpack.c.l.b16 %v907
        %v1583 = vunpack.c.h.b16 %v907
        %v1584 = vunpack.c.l.b16 %v908
        %v1585 = vunpack.c.h.b16 %v908
        %v1586 = vunpack.c.l.b16 %v909
        %v1587 = vunpack.c.h.b16 %v909
        %v1588 = vunpack.c.l.b16 %v910
        %v1589 = vunpack.c.h.b16 %v910
        %v1590 = vunpack.c.l.b16 %v911
        %v1591 = vunpack.c.h.b16 %v911
        %v1592 = vunpack.c.l.b16 %v912
        %v1593 = vunpack.c.h.b16 %v912
        %v1594 = vunpack.c.l.b16 %v913
        %v1595 = vunpack.c.h.b16 %v913
        %v1596 = vunpack.c.l.b16 %v914
        %v1597 = vunpack.c.h.b16 %v914
        %v1598 = vunpack.c.l.b16 %v915
        %v1599 = vunpack.c.h.b16 %v915
        %v1600 = vunpack.c.l.b16 %v916
        %v1601 = vunpack.c.h.b16 %v916
        %v1602 = vunpack.c.l.b16 %v917
        %v1603 = vunpack.c.h.b16 %v917
        %v1604 = vunpack.c.l.b16 %v918
        %v1605 = vunpack.c.h.b16 %v918
        %v1606 = vunpack.c.l.b16 %v919
        %v1607 = vunpack.c.h.b16 %v919
        %v1608 = vunpack.c.l.b16 %v920
        %v1609 = vunpack.c.h.b16 %v920
        %v1610 = vunpack.c.l.b16 %v921
        %v1611 = vunpack.c.h.b16 %v921
        %v1612 = vunpack.c.l.b16 %v922
        %v1613 = vunpack.c.h.b16 %v922
        %v1614 = vunpack.c.l.b16 %v923
        %v1615 = vunpack.c.h.b16 %v923
        %v1616 = vunpack.c.l.b16 %v924
        %v1617 = vunpack.c.h.b16 %v924
        %v1618 = vunpack.c.l.b16 %v925
        %v1619 = vunpack.c.h.b16 %v925
        %v1620 = vunpack.c.l.b16 %v926
        %v1621 = vunpack.c.h.b16 %v926
        %v1622 = vunpack.c.l.b16 %v927
        %v1623 = vunpack.c.h.b16 %v927
        %v1624 = vunpack.c.l.b16 %v928
        %v1625 = vunpack.c.h.b16 %v928
        %v1626 = vunpack.c.l.b16 %v929
        %v1627 = vunpack.c.h.b16 %v929
        %v1628 = vunpack.c.l.b16 %v930
        %v1629 = vunpack.c.h.b16 %v930
        %v1630 = vunpack.c.l.b16 %v931
        %v1631 = vunpack.c.h.b16 %v931
        %v1632 = vunpack.c.l.b16 %v932
        %v1633 = vunpack.c.h.b16 %v932
        %v1634 = vunpack.c.l.b16 %v933
        %v1635 = vunpack.c.h.b16 %v933
        %v1636 = vunpack.c.l.b16 %v934
        %v1637 = vunpack.c.h.b16 %v934
        %v1638 = vunpack.c.l.b16 %v935
        %v1639 = vunpack.c.h.b16 %v935
        %v1640 = vunpack.c.l.b16 %v936
        %v1641 = vunpack.c.h.b16 %v936
        %v1642 = vunpack.c.l.b16 %v937
        %v1643 = vunpack.c.h.b16 %v937
        %v1644 = vunpack.c.l.b16 %v938
        %v1645 = vunpack.c.h.b16 %v938
        %v1646 = vunpack.c.l.b16 %v939
        %v1647 = vunpack.c.h.b16 %v939
        %v1648 = vunpack.c.l.b16 %v940
        %v1649 = vunpack.c.h.b16 %v940
        %v1650 = vunpack.c.l.b16 %v941
        %v1651 = vunpack.c.h.b16 %v941
        %v1652 = vunpack.c.l.b16 %v942
        %v1653 = vunpack.c.h.b16 %v942
        %v1654 = vunpack.c.l.b16 %v943
        %v1655 = vunpack.c.h.b16 %v943
        %v1656 = vunpack.c.l.b16 %v944
        %v1657 = vunpack.c.h.b16 %v944
        %v1658 = vunpack.c.l.b16 %v945
        %v1659 = vunpack.c.h.b16 %v945
        %v1660 = vunpack.c.l.b16 %v946
        %v1661 = vunpack.c.h.b16 %v946
        %v1662 = vunpack.c.l.b16 %v947
        %v1663 = vunpack.c.h.b16 %v947
        %v1664 = vunpack.c.l.b16 %v948
        %v1665 = vunpack.c.h.b16 %v948
        %v1666 = vunpack.c.l.b16 %v949
        %v1667 = vunpack.c.h.b16 %v949
        %v1668 = vunpack.c.l.b16 %v950
        %v1669 = vunpack.c.h.b16 %v950
        %v1670 = vunpack.c.l.b16 %v951
        %v1671 = vunpack.c.h.b16 %v951
        %v1672 = vunpack.c.l.b16 %v952
        %v1673 = vunpack.c.h.b16 %v952
        %v1674 = vunpack.c.l.b16 %v953
        %v1675 = vunpack.c.h.b16 %v953
        %v1676 = vunpack.c.l.b16 %v954
        %v1677 = vunpack.c.h.b16 %v954
        %v1678 = vunpack.c.l.b16 %v955
        %v1679 = vunpack.c.h.b16 %v955
        %v1680 = vunpack.c.l.b16 %v956
        %v1681 = vunpack.c.h.b16 %v956
        %v1682 = vunpack.c.l.b16 %v957
        %v1683 = vunpack.c.h.b16 %v957
        %v1684 = vunpack.c.l.b16 %v958
        %v1685 = vunpack.c.h.b16 %v958
        %v1686 = vunpack.c.l.b16 %v959
        %v1687 = vunpack.c.h.b16 %v959
        %v1688 = vunpack.c.l.b16 %v960
        %v1689 = vunpack.c.h.b16 %v960
        %v1690 = vunpack.c.l.b16 %v961
        %v1691 = vunpack.c.h.b16 %v961
        %v1692 = vunpack.c.l.b16 %v962
        %v1693 = vunpack.c.h.b16 %v962
        %v1694 = vunpack.c.l.b16 %v963
        %v1695 = vunpack.c.h.b16 %v963
        %v1696 = vunpack.c.l.b16 %v964
        %v1697 = vunpack.c.h.b16 %v964
        %v1698 = vunpack.c.l.b16 %v965
        %v1699 = vunpack.c.h.b16 %v965
        %v1700 = vunpack.c.l.b16 %v966
        %v1701 = vunpack.c.h.b16 %v966
        %v1702 = vunpack.c.l.b16 %v967
        %v1703 = vunpack.c.h.b16 %v967
        %v1704 = vunpack.c.l.b16 %v968
        %v1705 = vunpack.c.h.b16 %v968
        %v1706 = vunpack.c.l.b16 %v969
        %v1707 = vunpack.c.h.b16 %v969
        %v1708 = vunpack.c.l.b16 %v970
        %v1709 = vunpack.c.h.b16 %v970
        %v1710 = vunpack.c.l.b16 %v971
        %v1711 = vunpack.c.h.b16 %v971
        %v1712 = vunpack.c.l.b16 %v972
        %v1713 = vunpack.c.h.b16 %v972
        %v1714 = vunpack.c.l.b16 %v973
        %v1715 = vunpack.c.h.b16 %v973
        %v1716 = vunpack.c.l.b16 %v974
        %v1717 = vunpack.c.h.b16 %v974
        %v1718 = vunpack.c.l.b16 %v975
        %v1719 = vunpack.c.h.b16 %v975
        %v1720 = vunpack.c.l.b16 %v976
        %v1721 = vunpack.c.h.b16 %v976
        %v1722 = vunpack.c.l.b16 %v977
        %v1723 = vunpack.c.h.b16 %v977
        %v1724 = vunpack.c.l.b16 %v978
        %v1725 = vunpack.c.h.b16 %v978
        %v1726 = vunpack.c.l.b16 %v979
        %v1727 = vunpack.c.h.b16 %v979
        %v1728 = vunpack.c.l.b16 %v980
        %v1729 = vunpack.c.h.b16 %v980
        %v1730 = vunpack.c.l.b16 %v981
        %v1731 = vunpack.c.h.b16 %v981
        %v1732 = vunpack.c.l.b16 %v982
        %v1733 = vunpack.c.h.b16 %v982
        %v1734 = vunpack.c.l.b16 %v983
        %v1735 = vunpack.c.h.b16 %v983
        %v1736 = vunpack.c.l.b16 %v984
        %v1737 = vunpack.c.h.b16 %v984
        %v1738 = vunpack.c.l.b16 %v985
        %v1739 = vunpack.c.h.b16 %v985
        %v1740 = vunpack.c.l.b16 %v986
        %v1741 = vunpack.c.h.b16 %v986
        %v1742 = vunpack.c.l.b16 %v987
        %v1743 = vunpack.c.h.b16 %v987
        %v1744 = vunpack.c.l.b16 %v988
        %v1745 = vunpack.c.h.b16 %v988
        %v1746 = vunpack.c.l.b16 %v989
        %v1747 = vunpack.c.h.b16 %v989
        %v1748 = vunpack.c.l.b16 %v990
        %v1749 = vunpack.c.h.b16 %v990
        %v1750 = vunpack.c.l.b16 %v991
        %v1751 = vunpack.c.h.b16 %v991
        %v1752 = vunpack.c.l.b16 %v992
        %v1753 = vunpack.c.h.b16 %v992
        %v1754 = vunpack.c.l.b16 %v993
        %v1755 = vunpack.c.h.b16 %v993
        %v1756 = vunpack.c.l.b16 %v994
        %v1757 = vunpack.c.h.b16 %v994
        %v1758 = vunpack.c.l.b16 %v995
        %v1759 = vunpack.c.h.b16 %v995
        %v1760 = vunpack.c.l.b16 %v996
        %v1761 = vunpack.c.h.b16 %v996
        %v1762 = vunpack.c.l.b16 %v997
        %v1763 = vunpack.c.h.b16 %v997
        %v1764 = vunpack.c.l.b16 %v998
        %v1765 = vunpack.c.h.b16 %v998
        %v1766 = vunpack.c.l.b16 %v999
        %v1767 = vunpack.c.h.b16 %v999
        %v1768 = vunpack.c.l.b16 %v1000
        %v1769 = vunpack.c.h.b16 %v1000
        %v1770 = vunpack.c.l.b16 %v1001
        %v1771 = vunpack.c.h.b16 %v1001
        %v1772 = vunpack.c.l.b16 %v1002
        %v1773 = vunpack.c.h.b16 %v1002
        %v1774 = vunpack.c.l.b16 %v1003
        %v1775 = vunpack.c.h.b16 %v1003
        %v1776 = vunpack.c.l.b16 %v1004
        %v1777 = vunpack.c.h.b16 %v1004
        %v1778 = vunpack.c.l.b16 %v1005
        %v1779 = vunpack.c.h.b16 %v1005
        %v1780 = vunpack.c.l.b16 %v1006
        %v1781 = vunpack.c.h.b16 %v1006
        %v1782 = vunpack.c.l.b16 %v1007
        %v1783 = vunpack.c.h.b16 %v1007
        %v1784 = vunpack.c.l.b16 %v1008
        %v1785 = vunpack.c.h.b16 %v1008
        %v1786 = vunpack.c.l.b16 %v1009
        %v1787 = vunpack.c.h.b16 %v1009
        %v1788 = vunpack.c.l.b16 %v1010
        %v1789 = vunpack.c.h.b16 %v1010
        %v1790 = vunpack.c.l.b16 %v1011
        %v1791 = vunpack.c.h.b16 %v1011
        %v1792 = vunpack.c.l.b16 %v1012
        %v1793 = vunpack.c.h.b16 %v1012
        %v1794 = vunpack.c.l.b16 %v1013
        %v1795 = vunpack.c.h.b16 %v1013
        %v1796 = vunpack.c.l.b16 %v1014
        %v1797 = vunpack.c.h.b16 %v1014
        %v1798 = vunpack.c.l.b16 %v1015
        %v1799 = vunpack.c.h.b16 %v1015
        %v1800 = vunpack.c.l.b16 %v1016
        %v1801 = vunpack.c.h.b16 %v1016
        %v1802 = vunpack.c.l.b16 %v1017
        %v1803 = vunpack.c.h.b16 %v1017
        %v1804 = vunpack.c.l.b16 %v1018
        %v1805 = vunpack.c.h.b16 %v1018
        %v1806 = vunpack.c.l.b16 %v1019
        %v1807 = vunpack.c.h.b16 %v1019
        %v1808 = vunpack.c.l.b16 %v1020
        %v1809 = vunpack.c.h.b16 %v1020
        %v1810 = vunpack.c.l.b16 %v1021
        %v1811 = vunpack.c.h.b16 %v1021
        %v1812 = vunpack.c.l.b16 %v1022
        %v1813 = vunpack.c.h.b16 %v1022
        %v1814 = vunpack.c.l.b16 %v1023
        %v1815 = vunpack.c.h.b16 %v1023
        %v1816 = vunpack.c.l.b16 %v1024
        %v1817 = vunpack.c.h.b16 %v1024
        %v1818 = vunpack.c.l.b16 %v1025
        %v1819 = vunpack.c.h.b16 %v1025
        %v1820 = vunpack.c.l.b16 %v1026
        %v1821 = vunpack.c.h.b16 %v1026
        %v1822 = vunpack.c.l.b16 %v1027
        %v1823 = vunpack.c.h.b16 %v1027
        %v1824 = vunpack.c.l.b16 %v1028
        %v1825 = vunpack.c.h.b16 %v1028
        %v1826 = vunpack.c.l.b16 %v1029
        %v1827 = vunpack.c.h.b16 %v1029
        %v1828 = vunpack.c.l.b16 %v1030
        %v1829 = vunpack.c.h.b16 %v1030
        %v1830 = vunpack.c.l.b16 %v1031
        %v1831 = vunpack.c.h.b16 %v1031
        %v1832 = vunpack.c.l.b16 %v1032
        %v1833 = vunpack.c.h.b16 %v1032
        %v1834 = vunpack.c.l.b16 %v1033
        %v1835 = vunpack.c.h.b16 %v1033
        %v1836 = vunpack.c.l.b16 %v1034
        %v1837 = vunpack.c.h.b16 %v1034
        %v1838 = vunpack.c.l.b16 %v1035
        %v1839 = vunpack.c.h.b16 %v1035
        %v1840 = vunpack.c.l.b16 %v1036
        %v1841 = vunpack.c.h.b16 %v1036
        %v1842 = vunpack.c.l.b16 %v1037
        %v1843 = vunpack.c.h.b16 %v1037
        %v1844 = vunpack.c.l.b16 %v1038
        %v1845 = vunpack.c.h.b16 %v1038
        %v1846 = vunpack.c.l.b16 %v1039
        %v1847 = vunpack.c.h.b16 %v1039
        %v1848 = vunpack.c.l.b16 %v1040
        %v1849 = vunpack.c.h.b16 %v1040
        %v1850 = vunpack.c.l.b16 %v1041
        %v1851 = vunpack.c.h.b16 %v1041
        %v1852 = vunpack.c.l.b16 %v1042
        %v1853 = vunpack.c.h.b16 %v1042
        %v1854 = vunpack.c.l.b16 %v1043
        %v1855 = vunpack.c.h.b16 %v1043
        %v1856 = vunpack.c.l.b16 %v1044
        %v1857 = vunpack.c.h.b16 %v1044
        %v1858 = vunpack.c.l.b16 %v1045
        %v1859 = vunpack.c.h.b16 %v1045
        %v1860 = vunpack.c.l.b16 %v1046
        %v1861 = vunpack.c.h.b16 %v1046
        %v1862 = vunpack.c.l.b16 %v1047
        %v1863 = vunpack.c.h.b16 %v1047
        %v1864 = vunpack.c.l.b16 %v1048
        %v1865 = vunpack.c.h.b16 %v1048
        %v1866 = vunpack.c.l.b16 %v1049
        %v1867 = vunpack.c.h.b16 %v1049
        %v1868 = vunpack.c.l.b16 %v1050
        %v1869 = vunpack.c.h.b16 %v1050
        %v1870 = vunpack.c.l.b16 %v1051
        %v1871 = vunpack.c.h.b16 %v1051
        %v1872 = vunpack.c.l.b16 %v1052
        %v1873 = vunpack.c.h.b16 %v1052
        %v1874 = vunpack.c.l.b16 %v1053
        %v1875 = vunpack.c.h.b16 %v1053
        %v1876 = vunpack.c.l.b16 %v1054
        %v1877 = vunpack.c.h.b16 %v1054
        %v1878 = vunpack.c.l.b16 %v1055
        %v1879 = vunpack.c.h.b16 %v1055
        %v1880 = vunpack.c.l.b16 %v1056
        %v1881 = vunpack.c.h.b16 %v1056
        %v1882 = vunpack.c.l.b16 %v1057
        %v1883 = vunpack.c.h.b16 %v1057
        %v1884 = vunpack.c.l.b16 %v1058
        %v1885 = vunpack.c.h.b16 %v1058
        %v1886 = vunpack.c.l.b16 %v1059
        %v1887 = vunpack.c.h.b16 %v1059
        %v1888 = vunpack.c.l.b16 %v1060
        %v1889 = vunpack.c.h.b16 %v1060
        %v1890 = vunpack.c.l.b16 %v1061
        %v1891 = vunpack.c.h.b16 %v1061
        %v1892 = vunpack.c.l.b16 %v1062
        %v1893 = vunpack.c.h.b16 %v1062
        %v1894 = vunpack.c.l.b16 %v1063
        %v1895 = vunpack.c.h.b16 %v1063
        %v1896 = vunpack.c.l.b16 %v1064
        %v1897 = vunpack.c.h.b16 %v1064
        %v1898 = vunpack.c.l.b16 %v1065
        %v1899 = vunpack.c.h.b16 %v1065
        %v1900 = vunpack.c.l.b16 %v1066
        %v1901 = vunpack.c.h.b16 %v1066
        %v1902 = vunpack.c.l.b16 %v1067
        %v1903 = vunpack.c.h.b16 %v1067
        %v1904 = vunpack.c.l.b16 %v1068
        %v1905 = vunpack.c.h.b16 %v1068
        %v1906 = vunpack.c.l.b16 %v1069
        %v1907 = vunpack.c.h.b16 %v1069
        %v1908 = vunpack.c.l.b16 %v1070
        %v1909 = vunpack.c.h.b16 %v1070
        %v1910 = vpack.c.b16 %v1406, %v1398
        %v1911 = vpack.c.b16 %v1407, %v1399
        %v1912 = vpack.c.b16 %v1408, %v1400
        %v1913 = vpack.c.b16 %v1409, %v1401
        %v1914 = vpack.c.b16 %v1410, %v1402
        %v1915 = vpack.c.b16 %v1411, %v1403
        %v1916 = vpack.c.b16 %v1412, %v1404
        %v1917 = vpack.c.b16 %v1413, %v1405
        %v1918 = vpack.c.b16 %v1422, %v1414
        %v1919 = vpack.c.b16 %v1423, %v1415
        %v1920 = vpack.c.b16 %v1424, %v1416
        %v1921 = vpack.c.b16 %v1425, %v1417
        %v1922 = vpack.c.b16 %v1426, %v1418
        %v1923 = vpack.c.b16 %v1427, %v1419
        %v1924 = vpack.c.b16 %v1428, %v1420
        %v1925 = vpack.c.b16 %v1429, %v1421
        %v1926 = vpack.c.b16 %v1438, %v1430
        %v1927 = vpack.c.b16 %v1439, %v1431
        %v1928 = vpack.c.b16 %v1440, %v1432
        %v1929 = vpack.c.b16 %v1441, %v1433
        %v1930 = vpack.c.b16 %v1442, %v1434
        %v1931 = vpack.c.b16 %v1443, %v1435
        %v1932 = vpack.c.b16 %v1444, %v1436
        %v1933 = vpack.c.b16 %v1445, %v1437
        %v1934 = vpack.c.b16 %v1454, %v1446
        %v1935 = vpack.c.b16 %v1455, %v1447
        %v1936 = vpack.c.b16 %v1456, %v1448
        %v1937 = vpack.c.b16 %v1457, %v1449
        %v1938 = vpack.c.b16 %v1458, %v1450
        %v1939 = vpack.c.b16 %v1459, %v1451
        %v1940 = vpack.c.b16 %v1460, %v1452
        %v1941 = vpack.c.b16 %v1461, %v1453
        %v1942 = vpack.c.b16 %v1470, %v1462
        %v1943 = vpack.c.b16 %v1471, %v1463
        %v1944 = vpack.c.b16 %v1472, %v1464
        %v1945 = vpack.c.b16 %v1473, %v1465
        %v1946 = vpack.c.b16 %v1474, %v1466
        %v1947 = vpack.c.b16 %v1475, %v1467
        %v1948 = vpack.c.b16 %v1476, %v1468
        %v1949 = vpack.c.b16 %v1477, %v1469
        %v1950 = vpack.c.b16 %v1486, %v1478
        %v1951 = vpack.c.b16 %v1487, %v1479
        %v1952 = vpack.c.b16 %v1488, %v1480
        %v1953 = vpack.c.b16 %v1489, %v1481
        %v1954 = vpack.c.b16 %v1490, %v1482
        %v1955 = vpack.c.b16 %v1491, %v1483
        %v1956 = vpack.c.b16 %v1492, %v1484
        %v1957 = vpack.c.b16 %v1493, %v1485
        %v1958 = vpack.c.b16 %v1502, %v1494
        %v1959 = vpack.c.b16 %v1503, %v1495
        %v1960 = vpack.c.b16 %v1504, %v1496
        %v1961 = vpack.c.b16 %v1505, %v1497
        %v1962 = vpack.c.b16 %v1506, %v1498
        %v1963 = vpack.c.b16 %v1507, %v1499
        %v1964 = vpack.c.b16 %v1508, %v1500
        %v1965 = vpack.c.b16 %v1509, %v1501
        %v1966 = vpack.c.b16 %v1518, %v1510
        %v1967 = vpack.c.b16 %v1519, %v1511
        %v1968 = vpack.c.b16 %v1520, %v1512
        %v1969 = vpack.c.b16 %v1521, %v1513
        %v1970 = vpack.c.b16 %v1522, %v1514
        %v1971 = vpack.c.b16 %v1523, %v1515
        %v1972 = vpack.c.b16 %v1524, %v1516
        %v1973 = vpack.c.b16 %v1525, %v1517
        %v1974 = vpack.c.b16 %v1534, %v1526
        %v1975 = vpack.c.b16 %v1535, %v1527
        %v1976 = vpack.c.b16 %v1536, %v1528
        %v1977 = vpack.c.b16 %v1537, %v1529
        %v1978 = vpack.c.b16 %v1538, %v1530
        %v1979 = vpack.c.b16 %v1539, %v1531
        %v1980 = vpack.c.b16 %v1540, %v1532
        %v1981 = vpack.c.b16 %v1541, %v1533
        %v1982 = vpack.c.b16 %v1550, %v1542
        %v1983 = vpack.c.b16 %v1551, %v1543
        %v1984 = vpack.c.b16 %v1552, %v1544
        %v1985 = vpack.c.b16 %v1553, %v1545
        %v1986 = vpack.c.b16 %v1554, %v1546
        %v1987 = vpack.c.b16 %v1555, %v1547
        %v1988 = vpack.c.b16 %v1556, %v1548
        %v1989 = vpack.c.b16 %v1557, %v1549
        %v1990 = vpack.c.b16 %v1566, %v1558
        %v1991 = vpack.c.b16 %v1567, %v1559
        %v1992 = vpack.c.b16 %v1568, %v1560
        %v1993 = vpack.c.b16 %v1569, %v1561
        %v1994 = vpack.c.b16 %v1570, %v1562
        %v1995 = vpack.c.b16 %v1571, %v1563
        %v1996 = vpack.c.b16 %v1572, %v1564
        %v1997 = vpack.c.b16 %v1573, %v1565
        %v1998 = vpack.c.b16 %v1582, %v1574
        %v1999 = vpack.c.b16 %v1583, %v1575
        %v2000 = vpack.c.b16 %v1584, %v1576
        %v2001 = vpack.c.b16 %v1585, %v1577
        %v2002 = vpack.c.b16 %v1586, %v1578
        %v2003 = vpack.c.b16 %v1587, %v1579
        %v2004 = vpack.c.b16 %v1588, %v1580
        %v2005 = vpack.c.b16 %v1589, %v1581
        %v2006 = vpack.c.b16 %v1598, %v1590
        %v2007 = vpack.c.b16 %v1599, %v1591
        %v2008 = vpack.c.b16 %v1600, %v1592
        %v2009 = vpack.c.b16 %v1601, %v1593
        %v2010 = vpack.c.b16 %v1602, %v1594
        %v2011 = vpack.c.b16 %v1603, %v1595
        %v2012 = vpack.c.b16 %v1604, %v1596
        %v2013 = vpack.c.b16 %v1605, %v1597
        %v2014 = vpack.c.b16 %v1614, %v1606
        %v2015 = vpack.c.b16 %v1615, %v1607
        %v2016 = vpack.c.b16 %v1616, %v1608
        %v2017 = vpack.c.b16 %v1617, %v1609
        %v2018 = vpack.c.b16 %v1618, %v1610
        %v2019 = vpack.c.b16 %v1619, %v1611
        %v2020 = vpack.c.b16 %v1620, %v1612
        %v2021 = vpack.c.b16 %v1621, %v1613
        %v2022 = vpack.c.b16 %v1630, %v1622
        %v2023 = vpack.c.b16 %v1631, %v1623
        %v2024 = vpack.c.b16 %v1632, %v1624
        %v2025 = vpack.c.b16 %v1633, %v1625
        %v2026 = vpack.c.b16 %v1634, %v1626
        %v2027 = vpack.c.b16 %v1635, %v1627
        %v2028 = vpack.c.b16 %v1636, %v1628
        %v2029 = vpack.c.b16 %v1637, %v1629
        %v2030 = vpack.c.b16 %v1646, %v1638
        %v2031 = vpack.c.b16 %v1647, %v1639
        %v2032 = vpack.c.b16 %v1648, %v1640
        %v2033 = vpack.c.b16 %v1649, %v1641
        %v2034 = vpack.c.b16 %v1650, %v1642
        %v2035 = vpack.c.b16 %v1651, %v1643
        %v2036 = vpack.c.b16 %v1652, %v1644
        %v2037 = vpack.c.b16 %v1653, %v1645
        %v2038 = vpack.c.b16 %v1662, %v1654
        %v2039 = vpack.c.b16 %v1663, %v1655
        %v2040 = vpack.c.b16 %v1664, %v1656
        %v2041 = vpack.c.b16 %v1665, %v1657
        %v2042 = vpack.c.b16 %v1666, %v1658
        %v2043 = vpack.c.b16 %v1667, %v1659
        %v2044 = vpack.c.b16 %v1668, %v1660
        %v2045 = vpack.c.b16 %v1669, %v1661
        %v2046 = vpack.c.b16 %v1678, %v1670
        %v2047 = vpack.c.b16 %v1679, %v1671
        %v2048 = vpack.c.b16 %v1680, %v1672
        %v2049 = vpack.c.b16 %v1681, %v1673
        %v2050 = vpack.c.b16 %v1682, %v1674
        %v2051 = vpack.c.b16 %v1683, %v1675
        %v2052 = vpack.c.b16 %v1684, %v1676
        %v2053 = vpack.c.b16 %v1685, %v1677
        %v2054 = vpack.c.b16 %v1694, %v1686
        %v2055 = vpack.c.b16 %v1695, %v1687
        %v2056 = vpack.c.b16 %v1696, %v1688
        %v2057 = vpack.c.b16 %v1697, %v1689
        %v2058 = vpack.c.b16 %v1698, %v1690
        %v2059 = vpack.c.b16 %v1699, %v1691
        %v2060 = vpack.c.b16 %v1700, %v1692
        %v2061 = vpack.c.b16 %v1701, %v1693
        %v2062 = vpack.c.b16 %v1710, %v1702
        %v2063 = vpack.c.b16 %v1711, %v1703
        %v2064 = vpack.c.b16 %v1712, %v1704
        %v2065 = vpack.c.b16 %v1713, %v1705
        %v2066 = vpack.c.b16 %v1714, %v1706
        %v2067 = vpack.c.b16 %v1715, %v1707
        %v2068 = vpack.c.b16 %v1716, %v1708
        %v2069 = vpack.c.b16 %v1717, %v1709
        %v2070 = vpack.c.b16 %v1726, %v1718
        %v2071 = vpack.c.b16 %v1727, %v1719
        %v2072 = vpack.c.b16 %v1728, %v1720
        %v2073 = vpack.c.b16 %v1729, %v1721
        %v2074 = vpack.c.b16 %v1730, %v1722
        %v2075 = vpack.c.b16 %v1731, %v1723
        %v2076 = vpack.c.b16 %v1732, %v1724
        %v2077 = vpack.c.b16 %v1733, %v1725
        %v2078 = vpack.c.b16 %v1742, %v1734
        %v2079 = vpack.c.b16 %v1743, %v1735
        %v2080 = vpack.c.b16 %v1744, %v1736
        %v2081 = vpack.c.b16 %v1745, %v1737
        %v2082 = vpack.c.b16 %v1746, %v1738
        %v2083 = vpack.c.b16 %v1747, %v1739
        %v2084 = vpack.c.b16 %v1748, %v1740
        %v2085 = vpack.c.b16 %v1749, %v1741
        %v2086 = vpack.c.b16 %v1758, %v1750
        %v2087 = vpack.c.b16 %v1759, %v1751
        %v2088 = vpack.c.b16 %v1760, %v1752
        %v2089 = vpack.c.b16 %v1761, %v1753
        %v2090 = vpack.c.b16 %v1762, %v1754
        %v2091 = vpack.c.b16 %v1763, %v1755
        %v2092 = vpack.c.b16 %v1764, %v1756
        %v2093 = vpack.c.b16 %v1765, %v1757
        %v2094 = vpack.c.b16 %v1774, %v1766
        %v2095 = vpack.c.b16 %v1775, %v1767
        %v2096 = vpack.c.b16 %v1776, %v1768
        %v2097 = vpack.c.b16 %v1777, %v1769
        %v2098 = vpack.c.b16 %v1778, %v1770
        %v2099 = vpack.c.b16 %v1779, %v1771
        %v2100 = vpack.c.b16 %v1780, %v1772
        %v2101 = vpack.c.b16 %v1781, %v1773
        %v2102 = vpack.c.b16 %v1790, %v1782
        %v2103 = vpack.c.b16 %v1791, %v1783
        %v2104 = vpack.c.b16 %v1792, %v1784
        %v2105 = vpack.c.b16 %v1793, %v1785
        %v2106 = vpack.c.b16 %v1794, %v1786
        %v2107 = vpack.c.b16 %v1795, %v1787
        %v2108 = vpack.c.b16 %v1796, %v1788
        %v2109 = vpack.c.b16 %v1797, %v1789
        %v2110 = vpack.c.b16 %v1806, %v1798
        %v2111 = vpack.c.b16 %v1807, %v1799
        %v2112 = vpack.c.b16 %v1808, %v1800
        %v2113 = vpack.c.b16 %v1809, %v1801
        %v2114 = vpack.c.b16 %v1810, %v1802
        %v2115 = vpack.c.b16 %v1811, %v1803
        %v2116 = vpack.c.b16 %v1812, %v1804
        %v2117 = vpack.c.b16 %v1813, %v1805
        %v2118 = vpack.c.b16 %v1822, %v1814
        %v2119 = vpack.c.b16 %v1823, %v1815
        %v2120 = vpack.c.b16 %v1824, %v1816
        %v2121 = vpack.c.b16 %v1825, %v1817
        %v2122 = vpack.c.b16 %v1826, %v1818
        %v2123 = vpack.c.b16 %v1827, %v1819
        %v2124 = vpack.c.b16 %v1828, %v1820
        %v2125 = vpack.c.b16 %v1829, %v1821
        %v2126 = vpack.c.b16 %v1838, %v1830
        %v2127 = vpack.c.b16 %v1839, %v1831
        %v2128 = vpack.c.b16 %v1840, %v1832
        %v2129 = vpack.c.b16 %v1841, %v1833
        %v2130 = vpack.c.b16 %v1842, %v1834
        %v2131 = vpack.c.b16 %v1843, %v1835
        %v2132 = vpack.c.b16 %v1844, %v1836
        %v2133 = vpack.c.b16 %v1845, %v1837
        %v2134 = vpack.c.b16 %v1854, %v1846
        %v2135 = vpack.c.b16 %v1855, %v1847
        %v2136 = vpack.c.b16 %v1856, %v1848
        %v2137 = vpack.c.b16 %v1857, %v1849
        %v2138 = vpack.c.b16 %v1858, %v1850
        %v2139 = vpack.c.b16 %v1859, %v1851
        %v2140 = vpack.c.b16 %v1860, %v1852
        %v2141 = vpack.c.b16 %v1861, %v1853
        %v2142 = vpack.c.b16 %v1870, %v1862
        %v2143 = vpack.c.b16 %v1871, %v1863
        %v2144 = vpack.c.b16 %v1872, %v1864
        %v2145 = vpack.c.b16 %v1873, %v1865
        %v2146 = vpack.c.b16 %v1874, %v1866
        %v2147 = vpack.c.b16 %v1875, %v1867
        %v2148 = vpack.c.b16 %v1876, %v1868
        %v2149 = vpack.c.b16 %v1877, %v1869
        %v2150 = vpack.c.b16 %v1886, %v1878
        %v2151 = vpack.c.b16 %v1887, %v1879
        %v2152 = vpack.c.b16 %v1888, %v1880
        %v2153 = vpack.c.b16 %v1889, %v1881
        %v2154 = vpack.c.b16 %v1890, %v1882
        %v2155 = vpack.c.b16 %v1891, %v1883
        %v2156 = vpack.c.b16 %v1892, %v1884
        %v2157 = vpack.c.b16 %v1893, %v1885
        %v2158 = vpack.c.b16 %v1902, %v1894
        %v2159 = vpack.c.b16 %v1903, %v1895
        %v2160 = vpack.c.b16 %v1904, %v1896
        %v2161 = vpack.c.b16 %v1905, %v1897
        %v2162 = vpack.c.b16 %v1906, %v1898
        %v2163 = vpack.c.b16 %v1907, %v1899
        %v2164 = vpack.c.b16 %v1908, %v1900
        %v2165 = vpack.c.b16 %v1909, %v1901
        %2422 = vmatprep.subr.bf16.mxu0 %v1911
        %2423 = vmatpush1.bf16.msra.mxu0 %v1910
        %2424 = vmatprep.subr.bf16.mxu0 %v1919
        %2425 = vmatpush1.bf16.msra.mxu0 %v1918
        %2426 = vmatprep.subr.bf16.mxu0 %v1927
        %2427 = vmatpush1.bf16.msra.mxu0 %v1926
        %2428 = vmatprep.subr.bf16.mxu0 %v1935
        %2429 = vmatpush1.bf16.msra.mxu0 %v1934
        %2430 = vmatprep.subr.bf16.mxu0 %v1943
        %2431 = vmatpush1.bf16.msra.mxu0 %v1942
        %2432 = vmatprep.subr.bf16.mxu0 %v1951
        %2433 = vmatpush1.bf16.msra.mxu0 %v1950
        %2434 = vmatprep.subr.bf16.mxu0 %v1959
        %2435 = vmatpush1.bf16.msra.mxu0 %v1958
        %2436 = vmatprep.subr.bf16.mxu0 %v1967
        %2437 = vmatpush1.bf16.msra.mxu0 %v1966
        %2438 = vmatprep.subr.bf16.mxu0 %v1975
        %2439 = vmatpush1.bf16.msra.mxu0 %v1974
        %2440 = vmatprep.subr.bf16.mxu0 %v1983
        %2441 = vmatpush1.bf16.msra.mxu0 %v1982
        %2442 = vmatprep.subr.bf16.mxu0 %v1991
        %2443 = vmatpush1.bf16.msra.mxu0 %v1990
        %2444 = vmatprep.subr.bf16.mxu0 %v1999
        %2445 = vmatpush1.bf16.msra.mxu0 %v1998
        %2446 = vmatprep.subr.bf16.mxu0 %v2007
        %2447 = vmatpush1.bf16.msra.mxu0 %v2006
        %2448 = vmatprep.subr.bf16.mxu0 %v2015
        %2449 = vmatpush1.bf16.msra.mxu0 %v2014
        %2450 = vmatprep.subr.bf16.mxu0 %v2023
        %2451 = vmatpush1.bf16.msra.mxu0 %v2022
        %2452 = vmatprep.subr.bf16.mxu0 %v2031
        %2453 = vmatpush1.bf16.msra.mxu0 %v2030
        %2454 = vmatprep.mubr.bf16.mxu0 %v1135
        %2455 = vmatmul.mubr.bf16.gmra.mrb[0].mxu0 %v1128
        %v2456 = vpop.f32.mrb[0].mxu0
        %v2457 = vadd.f32 %v1076, %v2456
        %v2458 = vpop.f32.mrb[0].mxu0
        %v2459 = vadd.f32 %v1080, %v2458
        %v2460 = vpop.f32.mrb[0].mxu0
        %v2461 = vpop.f32.mrb[0].mxu0
        %2462 = vdwg.mxu0
        %2463 = vmatprep.subr.bf16.mxu0 %v2039
        %2464 = vmatpush1.bf16.msra.mxu0 %v2038
        %2465 = vmatprep.subr.bf16.mxu0 %v2047
        %2466 = vmatpush1.bf16.msra.mxu0 %v2046
        %2467 = vmatprep.subr.bf16.mxu0 %v2055
        %2468 = vmatpush1.bf16.msra.mxu0 %v2054
        %2469 = vmatprep.subr.bf16.mxu0 %v2063
        %2470 = vmatpush1.bf16.msra.mxu0 %v2062
        %2471 = vmatprep.subr.bf16.mxu0 %v2071
        %2472 = vmatpush1.bf16.msra.mxu0 %v2070
        %2473 = vmatprep.subr.bf16.mxu0 %v2079
        %2474 = vmatpush1.bf16.msra.mxu0 %v2078
        %2475 = vmatprep.subr.bf16.mxu0 %v2087
        %2476 = vmatpush1.bf16.msra.mxu0 %v2086
        %2477 = vmatprep.subr.bf16.mxu0 %v2095
        %2478 = vmatpush1.bf16.msra.mxu0 %v2094
        %2479 = vmatprep.subr.bf16.mxu0 %v2103
        %2480 = vmatpush1.bf16.msra.mxu0 %v2102
        %2481 = vmatprep.subr.bf16.mxu0 %v2111
        %2482 = vmatpush1.bf16.msra.mxu0 %v2110
        %2483 = vmatprep.subr.bf16.mxu0 %v2119
        %2484 = vmatpush1.bf16.msra.mxu0 %v2118
        %2485 = vmatprep.subr.bf16.mxu0 %v2127
        %2486 = vmatpush1.bf16.msra.mxu0 %v2126
        %2487 = vmatprep.subr.bf16.mxu0 %v2135
        %2488 = vmatpush1.bf16.msra.mxu0 %v2134
        %2489 = vmatprep.subr.bf16.mxu0 %v2143
        %2490 = vmatpush1.bf16.msra.mxu0 %v2142
        %2491 = vmatprep.subr.bf16.mxu0 %v2151
        %2492 = vmatpush1.bf16.msra.mxu0 %v2150
        %2493 = vmatprep.subr.bf16.mxu0 %v2159
        %2494 = vmatpush1.bf16.msra.mxu0 %v2158
        %2495 = vmatprep.mubr.bf16.mxu0 %v1137
        %2496 = vmatmul.mubr.bf16.gmra.mrb[0].mxu0 %v1136
        %v2497 = vpop.f32.mrb[0].mxu0
        %v2498 = vadd.f32 %v2457, %v2497
        %v2499 = vpop.f32.mrb[0].mxu0
        %v2500 = vadd.f32 %v2459, %v2499
        %v2501 = vpop.f32.mrb[0].mxu0
        %v2502 = vpop.f32.mrb[0].mxu0
        %2503 = vdwg.mxu0
        %2504 = vmatprep.subr.bf16.mxu0 %v1913
        %2505 = vmatpush1.bf16.msra.mxu0 %v1912
        %2506 = vmatprep.subr.bf16.mxu0 %v1921
        %2507 = vmatpush1.bf16.msra.mxu0 %v1920
        %2508 = vmatprep.subr.bf16.mxu0 %v1929
        %2509 = vmatpush1.bf16.msra.mxu0 %v1928
        %2510 = vmatprep.subr.bf16.mxu0 %v1937
        %2511 = vmatpush1.bf16.msra.mxu0 %v1936
        %2512 = vmatprep.subr.bf16.mxu0 %v1945
        %2513 = vmatpush1.bf16.msra.mxu0 %v1944
        %2514 = vmatprep.subr.bf16.mxu0 %v1953
        %2515 = vmatpush1.bf16.msra.mxu0 %v1952
        %2516 = vmatprep.subr.bf16.mxu0 %v1961
        %2517 = vmatpush1.bf16.msra.mxu0 %v1960
        %2518 = vmatprep.subr.bf16.mxu0 %v1969
        %2519 = vmatpush1.bf16.msra.mxu0 %v1968
        %2520 = vmatprep.subr.bf16.mxu0 %v1977
        %2521 = vmatpush1.bf16.msra.mxu0 %v1976
        %2522 = vmatprep.subr.bf16.mxu0 %v1985
        %2523 = vmatpush1.bf16.msra.mxu0 %v1984
        %2524 = vmatprep.subr.bf16.mxu0 %v1993
        %2525 = vmatpush1.bf16.msra.mxu0 %v1992
        %2526 = vmatprep.subr.bf16.mxu0 %v2001
        %2527 = vmatpush1.bf16.msra.mxu0 %v2000
        %2528 = vmatprep.subr.bf16.mxu0 %v2009
        %2529 = vmatpush1.bf16.msra.mxu0 %v2008
        %2530 = vmatprep.subr.bf16.mxu0 %v2017
        %2531 = vmatpush1.bf16.msra.mxu0 %v2016
        %2532 = vmatprep.subr.bf16.mxu0 %v2025
        %2533 = vmatpush1.bf16.msra.mxu0 %v2024
        %2534 = vmatprep.subr.bf16.mxu0 %v2033
        %2535 = vmatpush1.bf16.msra.mxu0 %v2032
        %2536 = vmatprep.mubr.bf16.mxu0 %v1135
        %2537 = vmatmul.mubr.bf16.gmra.mrb[0].mxu0 %v1128
        %v2538 = vpop.f32.mrb[0].mxu0
        %v2539 = vadd.f32 %v1084, %v2538
        %v2540 = vpop.f32.mrb[0].mxu0
        %v2541 = vadd.f32 %v1088, %v2540
        %v2542 = vpop.f32.mrb[0].mxu0
        %v2543 = vpop.f32.mrb[0].mxu0
        %2544 = vdwg.mxu0
        %2545 = vmatprep.subr.bf16.mxu0 %v2041
        %2546 = vmatpush1.bf16.msra.mxu0 %v2040
        %2547 = vmatprep.subr.bf16.mxu0 %v2049
        %2548 = vmatpush1.bf16.msra.mxu0 %v2048
        %2549 = vmatprep.subr.bf16.mxu0 %v2057
        %2550 = vmatpush1.bf16.msra.mxu0 %v2056
        %2551 = vmatprep.subr.bf16.mxu0 %v2065
        %2552 = vmatpush1.bf16.msra.mxu0 %v2064
        %2553 = vmatprep.subr.bf16.mxu0 %v2073
        %2554 = vmatpush1.bf16.msra.mxu0 %v2072
        %2555 = vmatprep.subr.bf16.mxu0 %v2081
        %2556 = vmatpush1.bf16.msra.mxu0 %v2080
        %2557 = vmatprep.subr.bf16.mxu0 %v2089
        %2558 = vmatpush1.bf16.msra.mxu0 %v2088
        %2559 = vmatprep.subr.bf16.mxu0 %v2097
        %2560 = vmatpush1.bf16.msra.mxu0 %v2096
        %2561 = vmatprep.subr.bf16.mxu0 %v2105
        %2562 = vmatpush1.bf16.msra.mxu0 %v2104
        %2563 = vmatprep.subr.bf16.mxu0 %v2113
        %2564 = vmatpush1.bf16.msra.mxu0 %v2112
        %2565 = vmatprep.subr.bf16.mxu0 %v2121
        %2566 = vmatpush1.bf16.msra.mxu0 %v2120
        %2567 = vmatprep.subr.bf16.mxu0 %v2129
        %2568 = vmatpush1.bf16.msra.mxu0 %v2128
        %2569 = vmatprep.subr.bf16.mxu0 %v2137
        %2570 = vmatpush1.bf16.msra.mxu0 %v2136
        %2571 = vmatprep.subr.bf16.mxu0 %v2145
        %2572 = vmatpush1.bf16.msra.mxu0 %v2144
        %2573 = vmatprep.subr.bf16.mxu0 %v2153
        %2574 = vmatpush1.bf16.msra.mxu0 %v2152
        %2575 = vmatprep.subr.bf16.mxu0 %v2161
        %2576 = vmatpush1.bf16.msra.mxu0 %v2160
        %2577 = vmatprep.mubr.bf16.mxu0 %v1137
        %2578 = vmatmul.mubr.bf16.gmra.mrb[0].mxu0 %v1136
        %v2579 = vpop.f32.mrb[0].mxu0
        %v2580 = vadd.f32 %v2539, %v2579
        %v2581 = vpop.f32.mrb[0].mxu0
        %v2582 = vadd.f32 %v2541, %v2581
        %v2583 = vpop.f32.mrb[0].mxu0
        %v2584 = vpop.f32.mrb[0].mxu0
        %2585 = vdwg.mxu0
        %2586 = vmatprep.subr.bf16.mxu0 %v1915
        %2587 = vmatpush1.bf16.msra.mxu0 %v1914
        %2588 = vmatprep.subr.bf16.mxu0 %v1923
        %2589 = vmatpush1.bf16.msra.mxu0 %v1922
        %2590 = vmatprep.subr.bf16.mxu0 %v1931
        %2591 = vmatpush1.bf16.msra.mxu0 %v1930
        %2592 = vmatprep.subr.bf16.mxu0 %v1939
        %2593 = vmatpush1.bf16.msra.mxu0 %v1938
        %2594 = vmatprep.subr.bf16.mxu0 %v1947
        %2595 = vmatpush1.bf16.msra.mxu0 %v1946
        %2596 = vmatprep.subr.bf16.mxu0 %v1955
        %2597 = vmatpush1.bf16.msra.mxu0 %v1954
        %2598 = vmatprep.subr.bf16.mxu0 %v1963
        %2599 = vmatpush1.bf16.msra.mxu0 %v1962
        %2600 = vmatprep.subr.bf16.mxu0 %v1971
        %2601 = vmatpush1.bf16.msra.mxu0 %v1970
        %2602 = vmatprep.subr.bf16.mxu0 %v1979
        %2603 = vmatpush1.bf16.msra.mxu0 %v1978
        %2604 = vmatprep.subr.bf16.mxu0 %v1987
        %2605 = vmatpush1.bf16.msra.mxu0 %v1986
        %2606 = vmatprep.subr.bf16.mxu0 %v1995
        %2607 = vmatpush1.bf16.msra.mxu0 %v1994
        %2608 = vmatprep.subr.bf16.mxu0 %v2003
        %2609 = vmatpush1.bf16.msra.mxu0 %v2002
        %2610 = vmatprep.subr.bf16.mxu0 %v2011
        %2611 = vmatpush1.bf16.msra.mxu0 %v2010
        %2612 = vmatprep.subr.bf16.mxu0 %v2019
        %2613 = vmatpush1.bf16.msra.mxu0 %v2018
        %2614 = vmatprep.subr.bf16.mxu0 %v2027
        %2615 = vmatpush1.bf16.msra.mxu0 %v2026
        %2616 = vmatprep.subr.bf16.mxu0 %v2035
        %2617 = vmatpush1.bf16.msra.mxu0 %v2034
        %2618 = vmatprep.mubr.bf16.mxu0 %v1135
        %2619 = vmatmul.mubr.bf16.gmra.mrb[0].mxu0 %v1128
        %v2620 = vpop.f32.mrb[0].mxu0
        %v2621 = vadd.f32 %v1092, %v2620
        %v2622 = vpop.f32.mrb[0].mxu0
        %v2623 = vadd.f32 %v1096, %v2622
        %v2624 = vpop.f32.mrb[0].mxu0
        %v2625 = vpop.f32.mrb[0].mxu0
        %2626 = vdwg.mxu0
        %2627 = vmatprep.subr.bf16.mxu0 %v2043
        %2628 = vmatpush1.bf16.msra.mxu0 %v2042
        %2629 = vmatprep.subr.bf16.mxu0 %v2051
        %2630 = vmatpush1.bf16.msra.mxu0 %v2050
        %2631 = vmatprep.subr.bf16.mxu0 %v2059
        %2632 = vmatpush1.bf16.msra.mxu0 %v2058
        %2633 = vmatprep.subr.bf16.mxu0 %v2067
        %2634 = vmatpush1.bf16.msra.mxu0 %v2066
        %2635 = vmatprep.subr.bf16.mxu0 %v2075
        %2636 = vmatpush1.bf16.msra.mxu0 %v2074
        %2637 = vmatprep.subr.bf16.mxu0 %v2083
        %2638 = vmatpush1.bf16.msra.mxu0 %v2082
        %2639 = vmatprep.subr.bf16.mxu0 %v2091
        %2640 = vmatpush1.bf16.msra.mxu0 %v2090
        %2641 = vmatprep.subr.bf16.mxu0 %v2099
        %2642 = vmatpush1.bf16.msra.mxu0 %v2098
        %2643 = vmatprep.subr.bf16.mxu0 %v2107
        %2644 = vmatpush1.bf16.msra.mxu0 %v2106
        %2645 = vmatprep.subr.bf16.mxu0 %v2115
        %2646 = vmatpush1.bf16.msra.mxu0 %v2114
        %2647 = vmatprep.subr.bf16.mxu0 %v2123
        %2648 = vmatpush1.bf16.msra.mxu0 %v2122
        %2649 = vmatprep.subr.bf16.mxu0 %v2131
        %2650 = vmatpush1.bf16.msra.mxu0 %v2130
        %2651 = vmatprep.subr.bf16.mxu0 %v2139
        %2652 = vmatpush1.bf16.msra.mxu0 %v2138
        %2653 = vmatprep.subr.bf16.mxu0 %v2147
        %2654 = vmatpush1.bf16.msra.mxu0 %v2146
        %2655 = vmatprep.subr.bf16.mxu0 %v2155
        %2656 = vmatpush1.bf16.msra.mxu0 %v2154
        %2657 = vmatprep.subr.bf16.mxu0 %v2163
        %2658 = vmatpush1.bf16.msra.mxu0 %v2162
        %2659 = vmatprep.mubr.bf16.mxu0 %v1137
        %2660 = vmatmul.mubr.bf16.gmra.mrb[0].mxu0 %v1136
        %v2661 = vpop.f32.mrb[0].mxu0
        %v2662 = vadd.f32 %v2621, %v2661
        %v2663 = vpop.f32.mrb[0].mxu0
        %v2664 = vadd.f32 %v2623, %v2663
        %v2665 = vpop.f32.mrb[0].mxu0
        %v2666 = vpop.f32.mrb[0].mxu0
        %2667 = vdwg.mxu0
        %2668 = vmatprep.subr.bf16.mxu0 %v1917
        %2669 = vmatpush1.bf16.msra.mxu0 %v1916
        %2670 = vmatprep.subr.bf16.mxu0 %v1925
        %2671 = vmatpush1.bf16.msra.mxu0 %v1924
        %2672 = vmatprep.subr.bf16.mxu0 %v1933
        %2673 = vmatpush1.bf16.msra.mxu0 %v1932
        %2674 = vmatprep.subr.bf16.mxu0 %v1941
        %2675 = vmatpush1.bf16.msra.mxu0 %v1940
        %2676 = vmatprep.subr.bf16.mxu0 %v1949
        %2677 = vmatpush1.bf16.msra.mxu0 %v1948
        %2678 = vmatprep.subr.bf16.mxu0 %v1957
        %2679 = vmatpush1.bf16.msra.mxu0 %v1956
        %2680 = vmatprep.subr.bf16.mxu0 %v1965
        %2681 = vmatpush1.bf16.msra.mxu0 %v1964
        %2682 = vmatprep.subr.bf16.mxu0 %v1973
        %2683 = vmatpush1.bf16.msra.mxu0 %v1972
        %2684 = vmatprep.subr.bf16.mxu0 %v1981
        %2685 = vmatpush1.bf16.msra.mxu0 %v1980
        %2686 = vmatprep.subr.bf16.mxu0 %v1989
        %2687 = vmatpush1.bf16.msra.mxu0 %v1988
        %2688 = vmatprep.subr.bf16.mxu0 %v1997
        %2689 = vmatpush1.bf16.msra.mxu0 %v1996
        %2690 = vmatprep.subr.bf16.mxu0 %v2005
        %2691 = vmatpush1.bf16.msra.mxu0 %v2004
        %2692 = vmatprep.subr.bf16.mxu0 %v2013
        %2693 = vmatpush1.bf16.msra.mxu0 %v2012
        %2694 = vmatprep.subr.bf16.mxu0 %v2021
        %2695 = vmatpush1.bf16.msra.mxu0 %v2020
        %2696 = vmatprep.subr.bf16.mxu0 %v2029
        %2697 = vmatpush1.bf16.msra.mxu0 %v2028
        %2698 = vmatprep.subr.bf16.mxu0 %v2037
        %2699 = vmatpush1.bf16.msra.mxu0 %v2036
        %2700 = vmatprep.mubr.bf16.mxu0 %v1135
        %2701 = vmatmul.mubr.bf16.gmra.mrb[0].mxu0 %v1128
        %v2702 = vpop.f32.mrb[0].mxu0
        %v2703 = vadd.f32 %v1100, %v2702
        %v2704 = vpop.f32.mrb[0].mxu0
        %v2705 = vadd.f32 %v1104, %v2704
        %v2706 = vpop.f32.mrb[0].mxu0
        %v2707 = vpop.f32.mrb[0].mxu0
        %2708 = vdwg.mxu0
        %2709 = vmatprep.subr.bf16.mxu0 %v2045
        %2710 = vmatpush1.bf16.msra.mxu0 %v2044
        %2711 = vmatprep.subr.bf16.mxu0 %v2053
        %2712 = vmatpush1.bf16.msra.mxu0 %v2052
        %2713 = vmatprep.subr.bf16.mxu0 %v2061
        %2714 = vmatpush1.bf16.msra.mxu0 %v2060
        %2715 = vmatprep.subr.bf16.mxu0 %v2069
        %2716 = vmatpush1.bf16.msra.mxu0 %v2068
        %2717 = vmatprep.subr.bf16.mxu0 %v2077
        %2718 = vmatpush1.bf16.msra.mxu0 %v2076
        %2719 = vmatprep.subr.bf16.mxu0 %v2085
        %2720 = vmatpush1.bf16.msra.mxu0 %v2084
        %2721 = vmatprep.subr.bf16.mxu0 %v2093
        %2722 = vmatpush1.bf16.msra.mxu0 %v2092
        %2723 = vmatprep.subr.bf16.mxu0 %v2101
        %2724 = vmatpush1.bf16.msra.mxu0 %v2100
        %2725 = vmatprep.subr.bf16.mxu0 %v2109
        %2726 = vmatpush1.bf16.msra.mxu0 %v2108
        %2727 = vmatprep.subr.bf16.mxu0 %v2117
        %2728 = vmatpush1.bf16.msra.mxu0 %v2116
        %2729 = vmatprep.subr.bf16.mxu0 %v2125
        %2730 = vmatpush1.bf16.msra.mxu0 %v2124
        %2731 = vmatprep.subr.bf16.mxu0 %v2133
        %2732 = vmatpush1.bf16.msra.mxu0 %v2132
        %2733 = vmatprep.subr.bf16.mxu0 %v2141
        %2734 = vmatpush1.bf16.msra.mxu0 %v2140
        %2735 = vmatprep.subr.bf16.mxu0 %v2149
        %2736 = vmatpush1.bf16.msra.mxu0 %v2148
        %2737 = vmatprep.subr.bf16.mxu0 %v2157
        %2738 = vmatpush1.bf16.msra.mxu0 %v2156
        %2739 = vmatprep.subr.bf16.mxu0 %v2165
        %2740 = vmatpush1.bf16.msra.mxu0 %v2164
        %2741 = vmatprep.mubr.bf16.mxu0 %v1137
        %2742 = vmatmul.mubr.bf16.gmra.mrb[0].mxu0 %v1136
        %v2743 = vpop.f32.mrb[0].mxu0
        %v2744 = vadd.f32 %v2703, %v2743
        %v2745 = vpop.f32.mrb[0].mxu0
        %v2746 = vadd.f32 %v2705, %v2745
        %v2747 = vpop.f32.mrb[0].mxu0
        %v2748 = vpop.f32.mrb[0].mxu0
        %2749 = vdwg.mxu0
        %v2750 = vmax.f32 %v2498, 0.0
        %v2751 = vmax.f32 %v2500, 0.0
        %v2752 = vmax.f32 %v2580, 0.0
        %v2753 = vmax.f32 %v2582, 0.0
        %v2754 = vmax.f32 %v2662, 0.0
        %v2755 = vmax.f32 %v2664, 0.0
        %v2756 = vmax.f32 %v2744, 0.0
        %v2757 = vmax.f32 %v2746, 0.0
        %v2758 = vld [vmem:[#allocation2] sm:$0x3]
        %v2759 = vpack.c.bf16 %v2750, %v2750
        %v2760 = vpack.c.bf16 %v2751, %v2751
        %v2761 = vpack.c.bf16 %v2752, %v2752
        %v2762 = vpack.c.bf16 %v2753, %v2753
        %v2763 = vpack.c.bf16 %v2754, %v2754
        %v2764 = vpack.c.bf16 %v2755, %v2755
        %v2765 = vpack.c.bf16 %v2756, %v2756
        %v2766 = vpack.c.bf16 %v2757, %v2757
        %v2767 = vld [vmem:[%s806] sm:$0xf]
        %v2768 = vld [vmem:[%s806 + $0x4] sm:$0xf]
        %v2769 = vld [vmem:[%s806 + $0x8] sm:$0xf]
        %v2770 = vld [vmem:[%s806 + $0xc] sm:$0xf]
        %v2771 = vld [vmem:[%s806 + $0x10] sm:$0xf]
        %v2772 = vld [vmem:[%s806 + $0x14] sm:$0xf]
        %v2773 = vld [vmem:[%s806 + $0x18] sm:$0xf]
        %v2774 = vld [vmem:[%s806 + $0x1c] sm:$0xf]
        %v2775 = vld [vmem:[%s806 + $0x20] sm:$0xf]
        %v2776 = vld [vmem:[%s806 + $0x24] sm:$0xf]
        %v2777 = vld [vmem:[%s806 + $0x28] sm:$0xf]
        %v2778 = vld [vmem:[%s806 + $0x2c] sm:$0xf]
        %v2779 = vld [vmem:[%s806 + $0x30] sm:$0xf]
        %v2780 = vld [vmem:[%s806 + $0x34] sm:$0xf]
        %v2781 = vld [vmem:[%s806 + $0x38] sm:$0xf]
        %v2782 = vld [vmem:[%s806 + $0x3c] sm:$0xf]
        %v2783 = vld [vmem:[%s806 + $0x40] sm:$0xf]
        %v2784 = vld [vmem:[%s806 + $0x44] sm:$0xf]
        %v2785 = vld [vmem:[%s806 + $0x48] sm:$0xf]
        %v2786 = vld [vmem:[%s806 + $0x4c] sm:$0xf]
        %v2787 = vld [vmem:[%s806 + $0x50] sm:$0xf]
        %v2788 = vld [vmem:[%s806 + $0x54] sm:$0xf]
        %v2789 = vld [vmem:[%s806 + $0x58] sm:$0xf]
        %v2790 = vld [vmem:[%s806 + $0x5c] sm:$0xf]
        %v2791 = vld [vmem:[%s806 + $0x60] sm:$0xf]
        %v2792 = vld [vmem:[%s806 + $0x64] sm:$0xf]
        %v2793 = vld [vmem:[%s806 + $0x68] sm:$0xf]
        %v2794 = vld [vmem:[%s806 + $0x6c] sm:$0xf]
        %v2795 = vld [vmem:[%s806 + $0x70] sm:$0xf]
        %v2796 = vld [vmem:[%s806 + $0x74] sm:$0xf]
        %v2797 = vld [vmem:[%s806 + $0x78] sm:$0xf]
        %v2798 = vld [vmem:[%s806 + $0x7c] sm:$0xf]
        %v2799 = vld [vmem:[%s806 + $0x80] sm:$0xf]
        %v2800 = vld [vmem:[%s806 + $0x84] sm:$0xf]
        %v2801 = vld [vmem:[%s806 + $0x88] sm:$0xf]
        %v2802 = vld [vmem:[%s806 + $0x8c] sm:$0xf]
        %v2803 = vld [vmem:[%s806 + $0x90] sm:$0xf]
        %v2804 = vld [vmem:[%s806 + $0x94] sm:$0xf]
        %v2805 = vld [vmem:[%s806 + $0x98] sm:$0xf]
        %v2806 = vld [vmem:[%s806 + $0x9c] sm:$0xf]
        %v2807 = vld [vmem:[%s806 + $0xa0] sm:$0xf]
        %v2808 = vld [vmem:[%s806 + $0xa4] sm:$0xf]
        %v2809 = vld [vmem:[%s806 + $0xa8] sm:$0xf]
        %v2810 = vld [vmem:[%s806 + $0xac] sm:$0xf]
        %v2811 = vld [vmem:[%s806 + $0xb0] sm:$0xf]
        %v2812 = vld [vmem:[%s806 + $0xb4] sm:$0xf]
        %v2813 = vld [vmem:[%s806 + $0xb8] sm:$0xf]
        %v2814 = vld [vmem:[%s806 + $0xbc] sm:$0xf]
        %v2815 = vld [vmem:[%s806 + $0xc0] sm:$0xf]
        %v2816 = vld [vmem:[%s806 + $0xc4] sm:$0xf]
        %v2817 = vld [vmem:[%s806 + $0xc8] sm:$0xf]
        %v2818 = vld [vmem:[%s806 + $0xcc] sm:$0xf]
        %v2819 = vld [vmem:[%s806 + $0xd0] sm:$0xf]
        %v2820 = vld [vmem:[%s806 + $0xd4] sm:$0xf]
        %v2821 = vld [vmem:[%s806 + $0xd8] sm:$0xf]
        %v2822 = vld [vmem:[%s806 + $0xdc] sm:$0xf]
        %v2823 = vld [vmem:[%s806 + $0xe0] sm:$0xf]
        %v2824 = vld [vmem:[%s806 + $0xe4] sm:$0xf]
        %v2825 = vld [vmem:[%s806 + $0xe8] sm:$0xf]
        %v2826 = vld [vmem:[%s806 + $0xec] sm:$0xf]
        %v2827 = vld [vmem:[%s806 + $0xf0] sm:$0xf]
        %v2828 = vld [vmem:[%s806 + $0xf4] sm:$0xf]
        %v2829 = vld [vmem:[%s806 + $0xf8] sm:$0xf]
        %v2830 = vld [vmem:[%s806 + $0xfc] sm:$0xf]
        %v2831 = vld [vmem:[%s806 + $0x100] sm:$0xf]
        %v2832 = vld [vmem:[%s806 + $0x104] sm:$0xf]
        %v2833 = vld [vmem:[%s806 + $0x108] sm:$0xf]
        %v2834 = vld [vmem:[%s806 + $0x10c] sm:$0xf]
        %v2835 = vld [vmem:[%s806 + $0x110] sm:$0xf]
        %v2836 = vld [vmem:[%s806 + $0x114] sm:$0xf]
        %v2837 = vld [vmem:[%s806 + $0x118] sm:$0xf]
        %v2838 = vld [vmem:[%s806 + $0x11c] sm:$0xf]
        %v2839 = vld [vmem:[%s806 + $0x120] sm:$0xf]
        %v2840 = vld [vmem:[%s806 + $0x124] sm:$0xf]
        %v2841 = vld [vmem:[%s806 + $0x128] sm:$0xf]
        %v2842 = vld [vmem:[%s806 + $0x12c] sm:$0xf]
        %v2843 = vld [vmem:[%s806 + $0x130] sm:$0xf]
        %v2844 = vld [vmem:[%s806 + $0x134] sm:$0xf]
        %v2845 = vld [vmem:[%s806 + $0x138] sm:$0xf]
        %v2846 = vld [vmem:[%s806 + $0x13c] sm:$0xf]
        %v2847 = vld [vmem:[%s806 + $0x140] sm:$0xf]
        %v2848 = vld [vmem:[%s806 + $0x144] sm:$0xf]
        %v2849 = vld [vmem:[%s806 + $0x148] sm:$0xf]
        %v2850 = vld [vmem:[%s806 + $0x14c] sm:$0xf]
        %v2851 = vld [vmem:[%s806 + $0x150] sm:$0xf]
        %v2852 = vld [vmem:[%s806 + $0x154] sm:$0xf]
        %v2853 = vld [vmem:[%s806 + $0x158] sm:$0xf]
        %v2854 = vld [vmem:[%s806 + $0x15c] sm:$0xf]
        %v2855 = vld [vmem:[%s806 + $0x160] sm:$0xf]
        %v2856 = vld [vmem:[%s806 + $0x164] sm:$0xf]
        %v2857 = vld [vmem:[%s806 + $0x168] sm:$0xf]
        %v2858 = vld [vmem:[%s806 + $0x16c] sm:$0xf]
        %v2859 = vld [vmem:[%s806 + $0x170] sm:$0xf]
        %v2860 = vld [vmem:[%s806 + $0x174] sm:$0xf]
        %v2861 = vld [vmem:[%s806 + $0x178] sm:$0xf]
        %v2862 = vld [vmem:[%s806 + $0x17c] sm:$0xf]
        %v2863 = vld [vmem:[%s806 + $0x180] sm:$0xf]
        %v2864 = vld [vmem:[%s806 + $0x184] sm:$0xf]
        %v2865 = vld [vmem:[%s806 + $0x188] sm:$0xf]
        %v2866 = vld [vmem:[%s806 + $0x18c] sm:$0xf]
        %v2867 = vld [vmem:[%s806 + $0x190] sm:$0xf]
        %v2868 = vld [vmem:[%s806 + $0x194] sm:$0xf]
        %v2869 = vld [vmem:[%s806 + $0x198] sm:$0xf]
        %v2870 = vld [vmem:[%s806 + $0x19c] sm:$0xf]
        %v2871 = vld [vmem:[%s806 + $0x1a0] sm:$0xf]
        %v2872 = vld [vmem:[%s806 + $0x1a4] sm:$0xf]
        %v2873 = vld [vmem:[%s806 + $0x1a8] sm:$0xf]
        %v2874 = vld [vmem:[%s806 + $0x1ac] sm:$0xf]
        %v2875 = vld [vmem:[%s806 + $0x1b0] sm:$0xf]
        %v2876 = vld [vmem:[%s806 + $0x1b4] sm:$0xf]
        %v2877 = vld [vmem:[%s806 + $0x1b8] sm:$0xf]
        %v2878 = vld [vmem:[%s806 + $0x1bc] sm:$0xf]
        %v2879 = vld [vmem:[%s806 + $0x1c0] sm:$0xf]
        %v2880 = vld [vmem:[%s806 + $0x1c4] sm:$0xf]
        %v2881 = vld [vmem:[%s806 + $0x1c8] sm:$0xf]
        %v2882 = vld [vmem:[%s806 + $0x1cc] sm:$0xf]
        %v2883 = vld [vmem:[%s806 + $0x1d0] sm:$0xf]
        %v2884 = vld [vmem:[%s806 + $0x1d4] sm:$0xf]
        %v2885 = vld [vmem:[%s806 + $0x1d8] sm:$0xf]
        %v2886 = vld [vmem:[%s806 + $0x1dc] sm:$0xf]
        %v2887 = vld [vmem:[%s806 + $0x1e0] sm:$0xf]
        %v2888 = vld [vmem:[%s806 + $0x1e4] sm:$0xf]
        %v2889 = vld [vmem:[%s806 + $0x1e8] sm:$0xf]
        %v2890 = vld [vmem:[%s806 + $0x1ec] sm:$0xf]
        %v2891 = vld [vmem:[%s806 + $0x1f0] sm:$0xf]
        %v2892 = vld [vmem:[%s806 + $0x1f4] sm:$0xf]
        %v2893 = vld [vmem:[%s806 + $0x1f8] sm:$0xf]
        %v2894 = vld [vmem:[%s806 + $0x1fc] sm:$0xf]
        %v3023 = vunpack.c.l.b16 %v2767
        %v3024 = vunpack.c.l.b16 %v2768
        %v3025 = vunpack.c.l.b16 %v2769
        %v3026 = vunpack.c.l.b16 %v2770
        %v3027 = vunpack.c.l.b16 %v2771
        %v3028 = vunpack.c.l.b16 %v2772
        %v3029 = vunpack.c.l.b16 %v2773
        %v3030 = vunpack.c.l.b16 %v2774
        %v3031 = vunpack.c.l.b16 %v2775
        %v3032 = vunpack.c.l.b16 %v2776
        %v3033 = vunpack.c.l.b16 %v2777
        %v3034 = vunpack.c.l.b16 %v2778
        %v3035 = vunpack.c.l.b16 %v2779
        %v3036 = vunpack.c.l.b16 %v2780
        %v3037 = vunpack.c.l.b16 %v2781
        %v3038 = vunpack.c.l.b16 %v2782
        %v3039 = vunpack.c.l.b16 %v2783
        %v3040 = vunpack.c.l.b16 %v2784
        %v3041 = vunpack.c.l.b16 %v2785
        %v3042 = vunpack.c.l.b16 %v2786
        %v3043 = vunpack.c.l.b16 %v2787
        %v3044 = vunpack.c.l.b16 %v2788
        %v3045 = vunpack.c.l.b16 %v2789
        %v3046 = vunpack.c.l.b16 %v2790
        %v3047 = vunpack.c.l.b16 %v2791
        %v3048 = vunpack.c.l.b16 %v2792
        %v3049 = vunpack.c.l.b16 %v2793
        %v3050 = vunpack.c.l.b16 %v2794
        %v3051 = vunpack.c.l.b16 %v2795
        %v3052 = vunpack.c.l.b16 %v2796
        %v3053 = vunpack.c.l.b16 %v2797
        %v3054 = vunpack.c.l.b16 %v2798
        %v3055 = vunpack.c.l.b16 %v2799
        %v3056 = vunpack.c.l.b16 %v2800
        %v3057 = vunpack.c.l.b16 %v2801
        %v3058 = vunpack.c.l.b16 %v2802
        %v3059 = vunpack.c.l.b16 %v2803
        %v3060 = vunpack.c.l.b16 %v2804
        %v3061 = vunpack.c.l.b16 %v2805
        %v3062 = vunpack.c.l.b16 %v2806
        %v3063 = vunpack.c.l.b16 %v2807
        %v3064 = vunpack.c.l.b16 %v2808
        %v3065 = vunpack.c.l.b16 %v2809
        %v3066 = vunpack.c.l.b16 %v2810
        %v3067 = vunpack.c.l.b16 %v2811
        %v3068 = vunpack.c.l.b16 %v2812
        %v3069 = vunpack.c.l.b16 %v2813
        %v3070 = vunpack.c.l.b16 %v2814
        %v3071 = vunpack.c.l.b16 %v2815
        %v3072 = vunpack.c.l.b16 %v2816
        %v3073 = vunpack.c.l.b16 %v2817
        %v3074 = vunpack.c.l.b16 %v2818
        %v3075 = vunpack.c.l.b16 %v2819
        %v3076 = vunpack.c.l.b16 %v2820
        %v3077 = vunpack.c.l.b16 %v2821
        %v3078 = vunpack.c.l.b16 %v2822
        %v3079 = vunpack.c.l.b16 %v2823
        %v3080 = vunpack.c.l.b16 %v2824
        %v3081 = vunpack.c.l.b16 %v2825
        %v3082 = vunpack.c.l.b16 %v2826
        %v3083 = vunpack.c.l.b16 %v2827
        %v3084 = vunpack.c.l.b16 %v2828
        %v3085 = vunpack.c.l.b16 %v2829
        %v3086 = vunpack.c.l.b16 %v2830
        %v3087 = vunpack.c.l.b16 %v2831
        %v3088 = vunpack.c.l.b16 %v2832
        %v3089 = vunpack.c.l.b16 %v2833
        %v3090 = vunpack.c.l.b16 %v2834
        %v3091 = vunpack.c.l.b16 %v2835
        %v3092 = vunpack.c.l.b16 %v2836
        %v3093 = vunpack.c.l.b16 %v2837
        %v3094 = vunpack.c.l.b16 %v2838
        %v3095 = vunpack.c.l.b16 %v2839
        %v3096 = vunpack.c.l.b16 %v2840
        %v3097 = vunpack.c.l.b16 %v2841
        %v3098 = vunpack.c.l.b16 %v2842
        %v3099 = vunpack.c.l.b16 %v2843
        %v3100 = vunpack.c.l.b16 %v2844
        %v3101 = vunpack.c.l.b16 %v2845
        %v3102 = vunpack.c.l.b16 %v2846
        %v3103 = vunpack.c.l.b16 %v2847
        %v3104 = vunpack.c.l.b16 %v2848
        %v3105 = vunpack.c.l.b16 %v2849
        %v3106 = vunpack.c.l.b16 %v2850
        %v3107 = vunpack.c.l.b16 %v2851
        %v3108 = vunpack.c.l.b16 %v2852
        %v3109 = vunpack.c.l.b16 %v2853
        %v3110 = vunpack.c.l.b16 %v2854
        %v3111 = vunpack.c.l.b16 %v2855
        %v3112 = vunpack.c.l.b16 %v2856
        %v3113 = vunpack.c.l.b16 %v2857
        %v3114 = vunpack.c.l.b16 %v2858
        %v3115 = vunpack.c.l.b16 %v2859
        %v3116 = vunpack.c.l.b16 %v2860
        %v3117 = vunpack.c.l.b16 %v2861
        %v3118 = vunpack.c.l.b16 %v2862
        %v3119 = vunpack.c.l.b16 %v2863
        %v3120 = vunpack.c.l.b16 %v2864
        %v3121 = vunpack.c.l.b16 %v2865
        %v3122 = vunpack.c.l.b16 %v2866
        %v3123 = vunpack.c.l.b16 %v2867
        %v3124 = vunpack.c.l.b16 %v2868
        %v3125 = vunpack.c.l.b16 %v2869
        %v3126 = vunpack.c.l.b16 %v2870
        %v3127 = vunpack.c.l.b16 %v2871
        %v3128 = vunpack.c.l.b16 %v2872
        %v3129 = vunpack.c.l.b16 %v2873
        %v3130 = vunpack.c.l.b16 %v2874
        %v3131 = vunpack.c.l.b16 %v2875
        %v3132 = vunpack.c.l.b16 %v2876
        %v3133 = vunpack.c.l.b16 %v2877
        %v3134 = vunpack.c.l.b16 %v2878
        %v3135 = vunpack.c.l.b16 %v2879
        %v3136 = vunpack.c.l.b16 %v2880
        %v3137 = vunpack.c.l.b16 %v2881
        %v3138 = vunpack.c.l.b16 %v2882
        %v3139 = vunpack.c.l.b16 %v2883
        %v3140 = vunpack.c.l.b16 %v2884
        %v3141 = vunpack.c.l.b16 %v2885
        %v3142 = vunpack.c.l.b16 %v2886
        %v3143 = vunpack.c.l.b16 %v2887
        %v3144 = vunpack.c.l.b16 %v2888
        %v3145 = vunpack.c.l.b16 %v2889
        %v3146 = vunpack.c.l.b16 %v2890
        %v3147 = vunpack.c.l.b16 %v2891
        %v3148 = vunpack.c.l.b16 %v2892
        %v3149 = vunpack.c.l.b16 %v2893
        %v3150 = vunpack.c.l.b16 %v2894
        %v3151 = vpack.c.b16 %v3024, %v3023
        %v3152 = vpack.c.b16 %v3026, %v3025
        %v3153 = vpack.c.b16 %v3028, %v3027
        %v3154 = vpack.c.b16 %v3030, %v3029
        %v3155 = vpack.c.b16 %v3032, %v3031
        %v3156 = vpack.c.b16 %v3034, %v3033
        %v3157 = vpack.c.b16 %v3036, %v3035
        %v3158 = vpack.c.b16 %v3038, %v3037
        %v3159 = vpack.c.b16 %v3040, %v3039
        %v3160 = vpack.c.b16 %v3042, %v3041
        %v3161 = vpack.c.b16 %v3044, %v3043
        %v3162 = vpack.c.b16 %v3046, %v3045
        %v3163 = vpack.c.b16 %v3048, %v3047
        %v3164 = vpack.c.b16 %v3050, %v3049
        %v3165 = vpack.c.b16 %v3052, %v3051
        %v3166 = vpack.c.b16 %v3054, %v3053
        %v3167 = vpack.c.b16 %v3056, %v3055
        %v3168 = vpack.c.b16 %v3058, %v3057
        %v3169 = vpack.c.b16 %v3060, %v3059
        %v3170 = vpack.c.b16 %v3062, %v3061
        %v3171 = vpack.c.b16 %v3064, %v3063
        %v3172 = vpack.c.b16 %v3066, %v3065
        %v3173 = vpack.c.b16 %v3068, %v3067
        %v3174 = vpack.c.b16 %v3070, %v3069
        %v3175 = vpack.c.b16 %v3072, %v3071
        %v3176 = vpack.c.b16 %v3074, %v3073
        %v3177 = vpack.c.b16 %v3076, %v3075
        %v3178 = vpack.c.b16 %v3078, %v3077
        %v3179 = vpack.c.b16 %v3080, %v3079
        %v3180 = vpack.c.b16 %v3082, %v3081
        %v3181 = vpack.c.b16 %v3084, %v3083
        %v3182 = vpack.c.b16 %v3086, %v3085
        %v3183 = vpack.c.b16 %v3088, %v3087
        %v3184 = vpack.c.b16 %v3090, %v3089
        %v3185 = vpack.c.b16 %v3092, %v3091
        %v3186 = vpack.c.b16 %v3094, %v3093
        %v3187 = vpack.c.b16 %v3096, %v3095
        %v3188 = vpack.c.b16 %v3098, %v3097
        %v3189 = vpack.c.b16 %v3100, %v3099
        %v3190 = vpack.c.b16 %v3102, %v3101
        %v3191 = vpack.c.b16 %v3104, %v3103
        %v3192 = vpack.c.b16 %v3106, %v3105
        %v3193 = vpack.c.b16 %v3108, %v3107
        %v3194 = vpack.c.b16 %v3110, %v3109
        %v3195 = vpack.c.b16 %v3112, %v3111
        %v3196 = vpack.c.b16 %v3114, %v3113
        %v3197 = vpack.c.b16 %v3116, %v3115
        %v3198 = vpack.c.b16 %v3118, %v3117
        %v3199 = vpack.c.b16 %v3120, %v3119
        %v3200 = vpack.c.b16 %v3122, %v3121
        %v3201 = vpack.c.b16 %v3124, %v3123
        %v3202 = vpack.c.b16 %v3126, %v3125
        %v3203 = vpack.c.b16 %v3128, %v3127
        %v3204 = vpack.c.b16 %v3130, %v3129
        %v3205 = vpack.c.b16 %v3132, %v3131
        %v3206 = vpack.c.b16 %v3134, %v3133
        %v3207 = vpack.c.b16 %v3136, %v3135
        %v3208 = vpack.c.b16 %v3138, %v3137
        %v3209 = vpack.c.b16 %v3140, %v3139
        %v3210 = vpack.c.b16 %v3142, %v3141
        %v3211 = vpack.c.b16 %v3144, %v3143
        %v3212 = vpack.c.b16 %v3146, %v3145
        %v3213 = vpack.c.b16 %v3148, %v3147
        %v3214 = vpack.c.b16 %v3150, %v3149
        %3279 = vmatprep.subr.bf16.mxu0 0
        %3280 = vmatpush1.bf16.msra.mxu0 %v3151
        %3281 = vmatprep.subr.bf16.mxu0 0
        %3282 = vmatpush1.bf16.msra.mxu0 %v3152
        %3283 = vmatprep.subr.bf16.mxu0 0
        %3284 = vmatpush1.bf16.msra.mxu0 %v3153
        %3285 = vmatprep.subr.bf16.mxu0 0
        %3286 = vmatpush1.bf16.msra.mxu0 %v3154
        %3287 = vmatprep.subr.bf16.mxu0 0
        %3288 = vmatpush1.bf16.msra.mxu0 %v3155
        %3289 = vmatprep.subr.bf16.mxu0 0
        %3290 = vmatpush1.bf16.msra.mxu0 %v3156
        %3291 = vmatprep.subr.bf16.mxu0 0
        %3292 = vmatpush1.bf16.msra.mxu0 %v3157
        %3293 = vmatprep.subr.bf16.mxu0 0
        %3294 = vmatpush1.bf16.msra.mxu0 %v3158
        %3295 = vmatprep.subr.bf16.mxu0 0
        %3296 = vmatpush1.bf16.msra.mxu0 %v3159
        %3297 = vmatprep.subr.bf16.mxu0 0
        %3298 = vmatpush1.bf16.msra.mxu0 %v3160
        %3299 = vmatprep.subr.bf16.mxu0 0
        %3300 = vmatpush1.bf16.msra.mxu0 %v3161
        %3301 = vmatprep.subr.bf16.mxu0 0
        %3302 = vmatpush1.bf16.msra.mxu0 %v3162
        %3303 = vmatprep.subr.bf16.mxu0 0
        %3304 = vmatpush1.bf16.msra.mxu0 %v3163
        %3305 = vmatprep.subr.bf16.mxu0 0
        %3306 = vmatpush1.bf16.msra.mxu0 %v3164
        %3307 = vmatprep.subr.bf16.mxu0 0
        %3308 = vmatpush1.bf16.msra.mxu0 %v3165
        %3309 = vmatprep.subr.bf16.mxu0 0
        %3310 = vmatpush1.bf16.msra.mxu0 %v3166
        %3311 = vmatprep.mubr.bf16.mxu0 %v2760
        %3312 = vmatmul.mubr.bf16.gmra.mrb[0].mxu0 %v2759
        %v3313 = vpop.f32.mrb[0].mxu0
        %v3314 = vadd.f32 0.0, %v3313
        %v3315 = vpop.f32.mrb[0].mxu0
        %v3316 = vpop.f32.mrb[0].mxu0
        %v3317 = vpop.f32.mrb[0].mxu0
        %3318 = vdwg.mxu0
        %3319 = vmatprep.subr.bf16.mxu0 0
        %3320 = vmatpush1.bf16.msra.mxu0 %v3167
        %3321 = vmatprep.subr.bf16.mxu0 0
        %3322 = vmatpush1.bf16.msra.mxu0 %v3168
        %3323 = vmatprep.subr.bf16.mxu0 0
        %3324 = vmatpush1.bf16.msra.mxu0 %v3169
        %3325 = vmatprep.subr.bf16.mxu0 0
        %3326 = vmatpush1.bf16.msra.mxu0 %v3170
        %3327 = vmatprep.subr.bf16.mxu0 0
        %3328 = vmatpush1.bf16.msra.mxu0 %v3171
        %3329 = vmatprep.subr.bf16.mxu0 0
        %3330 = vmatpush1.bf16.msra.mxu0 %v3172
        %3331 = vmatprep.subr.bf16.mxu0 0
        %3332 = vmatpush1.bf16.msra.mxu0 %v3173
        %3333 = vmatprep.subr.bf16.mxu0 0
        %3334 = vmatpush1.bf16.msra.mxu0 %v3174
        %3335 = vmatprep.subr.bf16.mxu0 0
        %3336 = vmatpush1.bf16.msra.mxu0 %v3175
        %3337 = vmatprep.subr.bf16.mxu0 0
        %3338 = vmatpush1.bf16.msra.mxu0 %v3176
        %3339 = vmatprep.subr.bf16.mxu0 0
        %3340 = vmatpush1.bf16.msra.mxu0 %v3177
        %3341 = vmatprep.subr.bf16.mxu0 0
        %3342 = vmatpush1.bf16.msra.mxu0 %v3178
        %3343 = vmatprep.subr.bf16.mxu0 0
        %3344 = vmatpush1.bf16.msra.mxu0 %v3179
        %3345 = vmatprep.subr.bf16.mxu0 0
        %3346 = vmatpush1.bf16.msra.mxu0 %v3180
        %3347 = vmatprep.subr.bf16.mxu0 0
        %3348 = vmatpush1.bf16.msra.mxu0 %v3181
        %3349 = vmatprep.subr.bf16.mxu0 0
        %3350 = vmatpush1.bf16.msra.mxu0 %v3182
        %3351 = vmatprep.mubr.bf16.mxu0 %v2762
        %3352 = vmatmul.mubr.bf16.gmra.mrb[0].mxu0 %v2761
        %v3353 = vpop.f32.mrb[0].mxu0
        %v3354 = vadd.f32 %v3314, %v3353
        %v3355 = vpop.f32.mrb[0].mxu0
        %v3356 = vpop.f32.mrb[0].mxu0
        %v3357 = vpop.f32.mrb[0].mxu0
        %3358 = vdwg.mxu0
        %3359 = vmatprep.subr.bf16.mxu0 0
        %3360 = vmatpush1.bf16.msra.mxu0 %v3183
        %3361 = vmatprep.subr.bf16.mxu0 0
        %3362 = vmatpush1.bf16.msra.mxu0 %v3184
        %3363 = vmatprep.subr.bf16.mxu0 0
        %3364 = vmatpush1.bf16.msra.mxu0 %v3185
        %3365 = vmatprep.subr.bf16.mxu0 0
        %3366 = vmatpush1.bf16.msra.mxu0 %v3186
        %3367 = vmatprep.subr.bf16.mxu0 0
        %3368 = vmatpush1.bf16.msra.mxu0 %v3187
        %3369 = vmatprep.subr.bf16.mxu0 0
        %3370 = vmatpush1.bf16.msra.mxu0 %v3188
        %3371 = vmatprep.subr.bf16.mxu0 0
        %3372 = vmatpush1.bf16.msra.mxu0 %v3189
        %3373 = vmatprep.subr.bf16.mxu0 0
        %3374 = vmatpush1.bf16.msra.mxu0 %v3190
        %3375 = vmatprep.subr.bf16.mxu0 0
        %3376 = vmatpush1.bf16.msra.mxu0 %v3191
        %3377 = vmatprep.subr.bf16.mxu0 0
        %3378 = vmatpush1.bf16.msra.mxu0 %v3192
        %3379 = vmatprep.subr.bf16.mxu0 0
        %3380 = vmatpush1.bf16.msra.mxu0 %v3193
        %3381 = vmatprep.subr.bf16.mxu0 0
        %3382 = vmatpush1.bf16.msra.mxu0 %v3194
        %3383 = vmatprep.subr.bf16.mxu0 0
        %3384 = vmatpush1.bf16.msra.mxu0 %v3195
        %3385 = vmatprep.subr.bf16.mxu0 0
        %3386 = vmatpush1.bf16.msra.mxu0 %v3196
        %3387 = vmatprep.subr.bf16.mxu0 0
        %3388 = vmatpush1.bf16.msra.mxu0 %v3197
        %3389 = vmatprep.subr.bf16.mxu0 0
        %3390 = vmatpush1.bf16.msra.mxu0 %v3198
        %3391 = vmatprep.mubr.bf16.mxu0 %v2764
        %3392 = vmatmul.mubr.bf16.gmra.mrb[0].mxu0 %v2763
        %v3393 = vpop.f32.mrb[0].mxu0
        %v3394 = vadd.f32 %v3354, %v3393
        %v3395 = vpop.f32.mrb[0].mxu0
        %v3396 = vpop.f32.mrb[0].mxu0
        %v3397 = vpop.f32.mrb[0].mxu0
        %3398 = vdwg.mxu0
        %3399 = vmatprep.subr.bf16.mxu0 0
        %3400 = vmatpush1.bf16.msra.mxu0 %v3199
        %3401 = vmatprep.subr.bf16.mxu0 0
        %3402 = vmatpush1.bf16.msra.mxu0 %v3200
        %3403 = vmatprep.subr.bf16.mxu0 0
        %3404 = vmatpush1.bf16.msra.mxu0 %v3201
        %3405 = vmatprep.subr.bf16.mxu0 0
        %3406 = vmatpush1.bf16.msra.mxu0 %v3202
        %3407 = vmatprep.subr.bf16.mxu0 0
        %3408 = vmatpush1.bf16.msra.mxu0 %v3203
        %3409 = vmatprep.subr.bf16.mxu0 0
        %3410 = vmatpush1.bf16.msra.mxu0 %v3204
        %3411 = vmatprep.subr.bf16.mxu0 0
        %3412 = vmatpush1.bf16.msra.mxu0 %v3205
        %3413 = vmatprep.subr.bf16.mxu0 0
        %3414 = vmatpush1.bf16.msra.mxu0 %v3206
        %3415 = vmatprep.subr.bf16.mxu0 0
        %3416 = vmatpush1.bf16.msra.mxu0 %v3207
        %3417 = vmatprep.subr.bf16.mxu0 0
        %3418 = vmatpush1.bf16.msra.mxu0 %v3208
        %3419 = vmatprep.subr.bf16.mxu0 0
        %3420 = vmatpush1.bf16.msra.mxu0 %v3209
        %3421 = vmatprep.subr.bf16.mxu0 0
        %3422 = vmatpush1.bf16.msra.mxu0 %v3210
        %3423 = vmatprep.subr.bf16.mxu0 0
        %3424 = vmatpush1.bf16.msra.mxu0 %v3211
        %3425 = vmatprep.subr.bf16.mxu0 0
        %3426 = vmatpush1.bf16.msra.mxu0 %v3212
        %3427 = vmatprep.subr.bf16.mxu0 0
        %3428 = vmatpush1.bf16.msra.mxu0 %v3213
        %3429 = vmatprep.subr.bf16.mxu0 0
        %3430 = vmatpush1.bf16.msra.mxu0 %v3214
        %3431 = vmatprep.mubr.bf16.mxu0 %v2766
        %3432 = vmatmul.mubr.bf16.gmra.mrb[0].mxu0 %v2765
        %v3433 = vpop.f32.mrb[0].mxu0
        %v3434 = vadd.f32 %v3394, %v3433
        %v3435 = vpop.f32.mrb[0].mxu0
        %v3436 = vpop.f32.mrb[0].mxu0
        %v3437 = vpop.f32.mrb[0].mxu0
        %3438 = vdwg.mxu0
        %v3439 = vadd.f32 %v2758, %v3434
        %3440 = vst [vmem:[#allocation2] sm:$0x3] %v3439
        %p3441 = scmp.eq.s32.totalorder %s19, 1
        // Predicated region
        $region68: #{_stage1.7} parent=58 // pred_check
          %p3442 = pneg %p3441
        $region69: #{_stage1.7} parent=58 // pred_check_branch
          %3444 = sbr.rel (%p3442) target = $region71
        $region70: #{_stage1.7} parent=58 // pred_region
          %v3445 = vld [vmem:[#allocation2] sm:$0x3]
          %v3446 = vld [vmem:[%s4] sm:$0x1]
          %v3448 = vlaneseq
          %v3449 = vshrl.u32 %v3448, 7
          %v3450 = vsub.s32 0, %v3449
          %v3451 = vrot.slane %v3446, %v3450
          %v3453 = vadd.f32 %v3445, %v3451
          %3454 = vst [vmem:[%s5] sm:$0x3] %v3453
          %v3455 = vlaneseq
          %v3456 = vand.u32 %v3455, 127
          %vm3457 = vcmp.ge.s32.totalorder %v3456, 0
          %vm3458 = vcmp.lt.s32.totalorder %v3456, 100
          %vm3459 = vmand %vm3457, %vm3458
          %v3460 = vsel %vm3459, %v3453, -1e+30
          %vm3461 = vcmask 1041408
          %v3462 = vsel %vm3461, %v3460, -inf
          %3463 = vmax.xlane.f32.xlu0 %v3462
          %v3464 = vpop.xlane.xlu0 %3463
          %v3465 = vsub.f32 %v3460, %v3464
          %v3466 = vmul.f32 %v3465, 1.442695
          %v3467 = vpow.pop %v3466
          %v3468 = vsel %vm3461, %v3467, 0.0
          %3469 = vadd.xlane.f32.xlu0 %v3468
          %v3470 = vpop.xlane.xlu0 %3469
          %v3471 = vrcp.pop %v3470
          %v3472 = vmul.f32 %v3467, %v3471
          %v3473 = vlog2.pop %v3470
          %v3474 = vmul.f32 %v3473, 0.6931472
          %v3475 = vsub.f32 %v3465, %v3474
          %v3476 = vmul.f32 %v3472, %v3475
          %v3477 = vsel %vm3459, %v3476, 0.0
          %v3478 = vsel %vm3461, %v3477, 0.0
          %3479 = vadd.xlane.f32.xlu0 %v3478
          %v3480 = vpop.xlane.xlu0 %3479
          %v3481 = vsub.f32 0.0, %v3480
          %v3482 = vsel %vm3461, %v3481, 0.0
          %v3483 = vrot.slane %v3482, 4
          %v3484 = vadd.f32 %v3482, %v3483
          %v3485 = vrot.slane %v3484, 2
          %v3486 = vadd.f32 %v3484, %v3485
          %v3487 = vrot.slane %v3486, 1
          %v3488 = vadd.f32 %v3486, %v3487
          %v3489 = vmul.f32 %v3488, 0.5
          %vm3490 = vcmp.ge.s32.totalorder %v3456, 100
          %vm3491 = vcmp.lt.s32.totalorder %v3456, 120
          %vm3492 = vmand %vm3490, %vm3491
          %v3493 = vsel %vm3492, %v3453, -1e+30
          %v3494 = vsel %vm3461, %v3493, -inf
          %3495 = vmax.xlane.f32.xlu0 %v3494
          %v3496 = vpop.xlane.xlu0 %3495
          %v3497 = vsub.f32 %v3493, %v3496
          %v3498 = vmul.f32 %v3497, 1.442695
          %v3499 = vpow.pop %v3498
          %v3500 = vsel %vm3461, %v3499, 0.0
          %3501 = vadd.xlane.f32.xlu0 %v3500
          %v3502 = vpop.xlane.xlu0 %3501
          %v3503 = vrcp.pop %v3502
          %v3504 = vmul.f32 %v3499, %v3503
          %v3505 = vlog2.pop %v3502
          %v3506 = vmul.f32 %v3505, 0.6931472
          %v3507 = vsub.f32 %v3497, %v3506
          %v3508 = vmul.f32 %v3504, %v3507
          %v3509 = vsel %vm3492, %v3508, 0.0
          %v3510 = vsel %vm3461, %v3509, 0.0
          %3511 = vadd.xlane.f32.xlu0 %v3510
          %v3512 = vpop.xlane.xlu0 %3511
          %v3513 = vsub.f32 0.0, %v3512
          %v3514 = vsel %vm3461, %v3513, 0.0
          %v3515 = vrot.slane %v3514, 4
          %v3516 = vadd.f32 %v3514, %v3515
          %v3517 = vrot.slane %v3516, 2
          %v3518 = vadd.f32 %v3516, %v3517
          %v3519 = vrot.slane %v3518, 1
          %v3520 = vadd.f32 %v3518, %v3519
          %v3521 = vmul.f32 %v3520, 0.5
          %vm3522 = vcmask 7168
          %v3523 = vsel %vm3522, %v3489, %v3521
          %vm3524 = vcmask 8192
          %3525 = vst.msk [vmem:[#allocation4] sm:$0x1] %vm3524, %v3523
        $region71: #{_stage1.7} parent=58 // pred_fallthru
          _
        // Predicated region
        $region72: #{_stage1.7} parent=58 // pred_check
          %p3526 = pneg %p152
        $region73: #{_stage1.7} parent=58 // pred_check_branch
          %3528 = sbr.rel (%p3526) target = $region75
        $region74: #{_stage1.7} parent=58 // pred_region
          _
        $region75: #{_stage1.7} parent=58 // pred_fallthru
          _
        // Predicated region
        $region76: #{_stage1.7} parent=58 // pred_check
          %p3529 = pneg %p173
        $region77: #{_stage1.7} parent=58 // pred_check_branch
          %3531 = sbr.rel (%p3529) target = $region79
        $region78: #{_stage1.7} parent=58 // pred_region
          %s3533 = ssub.s32 16, 16
          %3534 = vsyncadd [#allocation5], %s3533
          %s3536 = sshll.u32 [#allocation4], 4
          %s3537 = int_to_ptr.vmem [resolvable:$true] %s3536
          %3539 = dma.vmem_to_hbm [thread:$0]  %s3537, 16, %s6, [#allocation5]
        $region79: #{_stage1.7} parent=58 // pred_fallthru
          _
        // Predicated region
        $region80: #{_stage1.7} parent=58 // pred_check
          %p3540 = pneg %p152
        $region81: #{_stage1.7} parent=58 // pred_check_branch
          %3542 = sbr.rel (%p3540) target = $region83
        $region82: #{_stage1.7} parent=58 // pred_region
          _
        $region83: #{_stage1.7} parent=58 // pred_fallthru
          _
        // Predicated region
        $region84: #{_stage1.7} parent=58 // pred_check
          %p3543 = pneg %p173
        $region85: #{_stage1.7} parent=58 // pred_check_branch
          %3545 = sbr.rel (%p3543) target = $region87
        $region86: #{_stage1.7} parent=58 // pred_region
          %3546 = dma.done [#allocation5], 16
        $region87: #{_stage1.7} parent=58 // pred_fallthru
          _
      $region59: #{_stage1.7} parent=5 // pred_fallthru
        _
      %p3547 = scmp.le.s32.totalorder 2, %s14
      // Predicated region
      $region88: #{_stage1.7} parent=5 // pred_check
        %p3548 = pneg %p3547
      $region89: #{_stage1.7} parent=5 // pred_check_branch
        %3550 = sbr.rel (%p3548) target = $region91
      $region90: #{_stage1.7} parent=5 // pred_region
        %s3551 = ssub.s32 %s14, 2
      $region91: #{_stage1.7} parent=5 // pred_fallthru
        _
    $region6: #{_stage1.7} parent=1 // loop_footer
      %s18 = sadd.s32 1, %s14
    $region7: #{_stage1.7} parent=1 // loop_footer_branch
      %13 = sbr.rel target = $region3
    $region8: #{_stage1.7} parent=1 // loop_exit
      _
    %3552 = vsyncpa [#allocation5], 1
    %s3553 = scalar_lea.sflag [#allocation5], 1
    %3554 = vsyncpa %s3553, 1

</llo_original>
